<compile_context>
chip_gen: v5e
topology: v5e:2x2
jax: 0.10.0
libtpu: 0.0.40
codegen_flags: <defaults>
</compile_context>

<pallas_src>
import functools

import jax
import jax.numpy as jnp
from jax.experimental import pallas as pl
from jax.experimental.pallas import tpu as pltpu

LATENT_DIM = 128
_VMEM_LIMIT = 32 * 1024 * 1024
_PHASE_TAPS = ((3, 1), (2, 0))  # output-parity -> original 4x4 kernel tap indices


def _round_up(v, m):
    return (v + m - 1) // m * m


def _pick_tile(dim, cap, align):
    return cap if dim >= cap else _round_up(dim, align)


# ----------------------------------------------------------------------------
# Generic batched fused GEMM + bias + activation kernel
# ----------------------------------------------------------------------------
def _gemm_kernel(a_ref, b_ref, bias_ref, o_ref, acc_ref, *, act):
    @pl.when(pl.program_id(3) == 0)
    def _():
        acc_ref[...] = jnp.zeros_like(acc_ref)

    acc_ref[...] += jnp.dot(a_ref[...], b_ref[...],
                            preferred_element_type=jnp.float32)

    @pl.when(pl.program_id(3) == pl.num_programs(3) - 1)
    def _():
        acc = acc_ref[...] + bias_ref[...]
        if act == "relu":
            acc = jnp.maximum(acc, 0.0)
        elif act == "sigmoid":
            acc = jax.nn.sigmoid(acc)
        o_ref[...] = acc.astype(o_ref.dtype)


def gemm_bias_act(a, b, bias, *, act="none", bias_on_rows=False,
                  out_dtype=jnp.float32, tm=256, tn=512, tk=512):
    """out[g] = act(a[g] @ b[g] + bias[g]).

    a: [G, M, K], b: [G, K, N] (cast to bf16 for the MXU),
    bias: [G, M] (broadcast over columns) if bias_on_rows else [G, N].
    Accumulation, bias and activation run in f32.
    """
    G, M, K = a.shape
    _, _, N = b.shape
    TM = _pick_tile(M, tm, 8)
    TN = _pick_tile(N, tn, 128)
    TK = _pick_tile(K, tk, 128)
    Mp, Np, Kp = _round_up(M, TM), _round_up(N, TN), _round_up(K, TK)

    a_p = jnp.pad(a.astype(jnp.bfloat16), ((0, 0), (0, Mp - M), (0, Kp - K)))
    b_p = jnp.pad(b.astype(jnp.bfloat16), ((0, 0), (0, Kp - K), (0, Np - N)))
    if bias_on_rows:
        bias_p = jnp.pad(bias.astype(jnp.float32),
                         ((0, 0), (0, Mp - M)))[:, :, None]          # [G, Mp, 1]
        bias_spec = pl.BlockSpec((None, TM, 1), lambda g, i, j, k: (g, i, 0))
    else:
        bias_p = jnp.pad(bias.astype(jnp.float32),
                         ((0, 0), (0, Np - N)))[:, None, :]          # [G, 1, Np]
        bias_spec = pl.BlockSpec((None, 1, TN), lambda g, i, j, k: (g, 0, j))

    out = pl.pallas_call(
        functools.partial(_gemm_kernel, act=act),
        out_shape=jax.ShapeDtypeStruct((G, Mp, Np), out_dtype),
        grid_spec=pltpu.PrefetchScalarGridSpec(
            num_scalar_prefetch=0,
            grid=(G, Mp // TM, Np // TN, Kp // TK),
            in_specs=[
                pl.BlockSpec((None, TM, TK), lambda g, i, j, k: (g, i, k)),
                pl.BlockSpec((None, TK, TN), lambda g, i, j, k: (g, k, j)),
                bias_spec,
            ],
            out_specs=pl.BlockSpec((None, TM, TN), lambda g, i, j, k: (g, i, j)),
            scratch_shapes=[pltpu.VMEM((TM, TN), jnp.float32)],
        ),
        compiler_params=pltpu.CompilerParams(
            dimension_semantics=("parallel", "parallel", "parallel", "arbitrary"),
            vmem_limit_bytes=_VMEM_LIMIT,
        ),
    )(a_p, b_p, bias_p)
    return out[:, :M, :N]


# ----------------------------------------------------------------------------
# Fused latent-head kernel: [mu | logvar] = h @ Wcat + bcat ; z = mu + eps*std
# ----------------------------------------------------------------------------
def _heads_kernel(h_ref, w_ref, b_ref, eps_ref, mu_ref, lv_ref, z_ref,
                  acc_ref, *, latent):
    @pl.when(pl.program_id(0) == 0)
    def _():
        acc_ref[...] = jnp.zeros_like(acc_ref)

    acc_ref[...] += jnp.dot(h_ref[...], w_ref[...],
                            preferred_element_type=jnp.float32)

    @pl.when(pl.program_id(0) == pl.num_programs(0) - 1)
    def _():
        acc = acc_ref[...] + b_ref[...]
        mu = acc[:, :latent]
        logvar = acc[:, latent:]
        mu_ref[...] = mu
        lv_ref[...] = logvar
        z_ref[...] = mu + eps_ref[...] * jnp.exp(0.5 * logvar)


def encode_heads_and_sample(h, w_cat, b_cat, eps, latent=LATENT_DIM, tk=512):
    """h: [B, K].  w_cat: [K, 2*latent].  b_cat: [2*latent].  eps: [B, latent]."""
    B, K = h.shape
    Bp = _round_up(B, 8)
    TK = _pick_tile(K, tk, 128)
    Kp = _round_up(K, TK)

    h_p = jnp.pad(h.astype(jnp.bfloat16), ((0, Bp - B), (0, Kp - K)))
    w_p = jnp.pad(w_cat.astype(jnp.bfloat16), ((0, Kp - K), (0, 0)))
    eps_p = jnp.pad(eps.astype(jnp.float32), ((0, Bp - B), (0, 0)))
    b2 = b_cat.astype(jnp.float32).reshape(1, 2 * latent)

    out_sds = jax.ShapeDtypeStruct((Bp, latent), jnp.float32)
    o_spec = pl.BlockSpec((Bp, latent), lambda k: (0, 0))
    mu, logvar, z = pl.pallas_call(
        functools.partial(_heads_kernel, latent=latent),
        out_shape=(out_sds, out_sds, out_sds),
        grid_spec=pltpu.PrefetchScalarGridSpec(
            num_scalar_prefetch=0,
            grid=(Kp // TK,),
            in_specs=[
                pl.BlockSpec((Bp, TK), lambda k: (0, k)),
                pl.BlockSpec((TK, 2 * latent), lambda k: (k, 0)),
                pl.BlockSpec((1, 2 * latent), lambda k: (0, 0)),
                pl.BlockSpec((Bp, latent), lambda k: (0, 0)),
            ],
            out_specs=(o_spec, o_spec, o_spec),
            scratch_shapes=[pltpu.VMEM((Bp, 2 * latent), jnp.float32)],
        ),
        compiler_params=pltpu.CompilerParams(
            dimension_semantics=("arbitrary",),
            vmem_limit_bytes=_VMEM_LIMIT,
        ),
    )(h_p, w_p, b2, eps_p)
    return mu[:B], logvar[:B], z[:B]


# ----------------------------------------------------------------------------
# Conv / ConvTranspose lowering (patch extraction in XLA, GEMM in Pallas)
# ----------------------------------------------------------------------------
def conv2d(x, w_packed, b, *, k, stride, pad, act, out_dtype=jnp.float32):
    """x: [B,C,H,W].  w_packed: [1, OC, C*k*k] bf16.  OC-major (lane-dense) GEMM."""
    B, C, H, W = x.shape
    OC = w_packed.shape[1]
    Ho = (H + 2 * pad - k) // stride + 1
    Wo = (W + 2 * pad - k) // stride + 1
    xp = jnp.pad(x, ((0, 0), (0, 0), (pad, pad), (pad, pad)))
    cols = [xp[:, :, di:di + stride * (Ho - 1) + 1:stride,
                     dj:dj + stride * (Wo - 1) + 1:stride]
            for di in range(k) for dj in range(k)]
    p = jnp.stack(cols, axis=2)                          # [B, C, k*k, Ho, Wo]
    p = p.transpose(1, 2, 0, 3, 4).reshape(C * k * k, B * Ho * Wo)
    y = gemm_bias_act(w_packed, p[None], b.reshape(1, OC),
                      act=act, bias_on_rows=True, out_dtype=out_dtype)
    return y[0].reshape(OC, B, Ho, Wo).transpose(1, 0, 2, 3)


def conv_transpose2d(x, w_phases, b, *, act, out_dtype=jnp.float32):
    """Sub-pixel ConvTranspose2d(k=4, stride=2, pad=1).

    x: [B,C,H,W].  w_phases: [4, OC, C*4] bf16 (packed by pack_params).
    Each output-pixel parity phase is a stride-1 k=2 conv over the un-dilated
    input; the 4 phases are batched into a single Pallas GEMM call.
    """
    B, C, H, W = x.shape
    OC = w_phases.shape[1]
    pats = []
    for pi in (0, 1):
        for pj in (0, 1):
            xp = jnp.pad(x, ((0, 0), (0, 0), (1 - pi, pi), (1 - pj, pj)))
            cols = [xp[:, :, a:a + H, c:c + W] for a in (0, 1) for c in (0, 1)]
            p = jnp.stack(cols, axis=2)                  # [B, C, 4, H, W]
            pats.append(p.transpose(1, 2, 0, 3, 4).reshape(C * 4, B * H * W))
    pats = jnp.stack(pats)                               # [4, C*4, B*H*W]
    bias = jnp.broadcast_to(b.reshape(1, OC), (4, OC))
    y = gemm_bias_act(w_phases, pats, bias, act=act,
                      bias_on_rows=True, out_dtype=out_dtype)  # [4, OC, B*H*W]
    y = y.reshape(2, 2, OC, B, H, W)                     # (pi, pj, oc, b, io, jo)
    y = y.transpose(3, 2, 4, 0, 5, 1).reshape(B, OC, 2 * H, 2 * W)
    return y


# ----------------------------------------------------------------------------
# Parameter init (PyTorch layouts) + one-time packing to kernel layouts
# ----------------------------------------------------------------------------
def init_raw_params(key):
    ks = jax.random.split(key, 14)
    s = 0.05

    def n(k_, shape):
        return s * jax.random.normal(k_, shape, jnp.float32)

    return {
        "enc_w1": n(ks[0], (32, 3, 4, 4)),   "enc_b1": n(ks[1], (32,)),
        "enc_w2": n(ks[2], (64, 32, 4, 4)),  "enc_b2": n(ks[3], (64,)),
        "fc_mu_w": n(ks[4], (LATENT_DIM, 64 * 8 * 8)), "fc_mu_b": n(ks[5], (LATENT_DIM,)),
        "fc_lv_w": n(ks[6], (LATENT_DIM, 64 * 8 * 8)), "fc_lv_b": n(ks[7], (LATENT_DIM,)),
        "dec_in_w": n(ks[8], (64 * 8 * 8, LATENT_DIM)), "dec_in_b": n(ks[9], (64 * 8 * 8,)),
        "dec_w1": n(ks[10], (64, 32, 4, 4)), "dec_b1": n(ks[11], (32,)),
        "dec_w2": n(ks[12], (32, 3, 4, 4)),  "dec_b2": n(ks[13], (3,)),
    }


def _pack_conv(w):
    # PyTorch Conv2d weight [OC, C, k, k] -> [1, OC, C*k*k] bf16.
    return w.reshape(w.shape[0], -1).astype(jnp.bfloat16)[None]


def _pack_deconv(w):
    # PyTorch ConvTranspose2d weight [C, OC, 4, 4] -> per-phase 2x2 sub-kernels
    # [4, OC, C*4] bf16 for the stride^2 sub-pixel decomposition.
    C, OC = w.shape[0], w.shape[1]
    phases = []
    for pi in (0, 1):
        ri = jnp.array(_PHASE_TAPS[pi])
        for pj in (0, 1):
            ci = jnp.array(_PHASE_TAPS[pj])
            sub = w[:, :, ri, :][:, :, :, ci]            # [C, OC, 2, 2]
            phases.append(sub.transpose(1, 0, 2, 3).reshape(OC, C * 4))
    return jnp.stack(phases).astype(jnp.bfloat16)


def pack_params(raw):
    return {
        "enc_w1": _pack_conv(raw["enc_w1"]), "enc_b1": raw["enc_b1"],
        "enc_w2": _pack_conv(raw["enc_w2"]), "enc_b2": raw["enc_b2"],
        # fused mu/logvar head: [in, 2*latent]
        "fc_w": jnp.concatenate([raw["fc_mu_w"].T, raw["fc_lv_w"].T],
                                axis=1).astype(jnp.bfloat16),
        "fc_b": jnp.concatenate([raw["fc_mu_b"], raw["fc_lv_b"]]),
        "dec_in_w": raw["dec_in_w"].T.astype(jnp.bfloat16)[None],   # [1, latent, 4096]
        "dec_in_b": raw["dec_in_b"],
        "dec_w1": _pack_deconv(raw["dec_w1"]), "dec_b1": raw["dec_b1"],
        "dec_w2": _pack_deconv(raw["dec_w2"]), "dec_b2": raw["dec_b2"],
    }


# ----------------------------------------------------------------------------
# LazyVAE forward
# ----------------------------------------------------------------------------
@jax.jit
def lazy_vae_forward(params, x, eps):
    B = x.shape[0]
    # encoder
    h = conv2d(x, params["enc_w1"], params["enc_b1"], k=4, stride=2, pad=1,
               act="relu", out_dtype=jnp.bfloat16)
    h = conv2d(h, params["enc_w2"], params["enc_b2"], k=4, stride=2, pad=1,
               act="relu", out_dtype=jnp.bfloat16)
    h = h.reshape(B, -1)                                 # Flatten (C,H,W order)
    # fused mu / logvar heads + reparameterization
    mu, logvar, z = encode_heads_and_sample(h, params["fc_w"], params["fc_b"], eps)
    # decoder
    d = gemm_bias_act(z[None], params["dec_in_w"], params["dec_in_b"][None],
                      act="none", out_dtype=jnp.bfloat16)[0]        # [B, 4096]
    d = d.reshape(B, 64, 8, 8)                           # Unflatten
    d = conv_transpose2d(d, params["dec_w1"], params["dec_b1"], act="relu",
                         out_dtype=jnp.bfloat16)
    recon = conv_transpose2d(d, params["dec_w2"], params["dec_b2"],
                             act="sigmoid", out_dtype=jnp.float32)
    return recon, mu, logvar


if __name__ == "__main__":
    key = jax.random.PRNGKey(0)
    k_x, k_eps, k_p = jax.random.split(key, 3)

    # fc_mu = Linear(64*8*8, latent) implies 3x32x32 inputs.
    x = jax.random.normal(k_x, (2, 3, 32, 32), jnp.float32)
    eps = jax.random.normal(k_eps, (2, LATENT_DIM), jnp.float32)
    params = pack_params(init_raw_params(k_p))

    recon, mu, logvar = lazy_vae_forward(params, x, eps)
    jax.block_until_ready((recon, mu, logvar))

    assert recon.shape == (2, 3, 32, 32)
    assert mu.shape == (2, LATENT_DIM)
    assert logvar.shape == (2, LATENT_DIM)
    assert recon.dtype == jnp.float32
    print("KERNEL_OK")
</pallas_src>

<mosaic_0001>
module attributes {stable_mosaic.version = 11 : i64} {
  func.func @_gemm_kernel(%arg0: i32, %arg1: i32, %arg2: i32, %arg3: i32, %arg4: memref<1x32x128xbf16, #tpu.memory_space<vmem>>, %arg5: memref<1x128x512xbf16, #tpu.memory_space<vmem>>, %arg6: memref<1x32x1xf32, #tpu.memory_space<vmem>>, %arg7: memref<1x32x512xbf16, #tpu.memory_space<vmem>>, %arg8: memref<32x512xf32, #tpu.memory_space<vmem>>) attributes {dimension_semantics = [#tpu.dimension_semantics<parallel>, #tpu.dimension_semantics<parallel>, #tpu.dimension_semantics<parallel>, #tpu.dimension_semantics<arbitrary>], iteration_bounds = array<i64: 1, 1, 1, 1>, scalar_prefetch = 0 : i64, scratch_operands = 1 : i64, tpu.core_type = #tpu.core_type<tc>, window_params = [{transform_indices = @transform_0, window_bounds = array<i64: 1, 32, 128>}, {transform_indices = @transform_1, window_bounds = array<i64: 1, 128, 512>}, {transform_indices = @transform_2, window_bounds = array<i64: 1, 32, 1>}, {transform_indices = @transform_3, window_bounds = array<i64: 1, 32, 512>}]} {
    %c0_i32 = arith.constant 0 : i32
    %0 = arith.cmpi eq, %arg3, %c0_i32 : i32
    %1 = arith.extui %0 : i1 to i32
    %c0_i32_0 = arith.constant 0 : i32
    %2 = arith.cmpi ne, %1, %c0_i32_0 : i32
    scf.if %2 {
      %cst_12 = arith.constant 0.000000e+00 : f32
      %14 = vector.broadcast %cst_12 : f32 to vector<32x512xf32>
      %c0_13 = arith.constant 0 : index
      %c0_14 = arith.constant 0 : index
      %15 = vector.load %arg8[%c0_13, %c0_14] : memref<32x512xf32, #tpu.memory_space<vmem>>, vector<32x512xf32>
      tpu.vector_store %arg8[%c0_13, %c0_14], %14 {strides = array<i32>} : memref<32x512xf32, #tpu.memory_space<vmem>>, vector<32x512xf32>,
    } else {
    }
    %c0 = arith.constant 0 : index
    %c0_1 = arith.constant 0 : index
    %3 = vector.load %arg8[%c0, %c0_1] : memref<32x512xf32, #tpu.memory_space<vmem>>, vector<32x512xf32>
    %c0_2 = arith.constant 0 : index
    %c0_3 = arith.constant 0 : index
    %c0_4 = arith.constant 0 : index
    %4 = vector.load %arg4[%c0_2, %c0_3, %c0_4] : memref<1x32x128xbf16, #tpu.memory_space<vmem>>, vector<1x32x128xbf16>
    %5 = vector.shape_cast %4 : vector<1x32x128xbf16> to vector<32x128xbf16>
    %c0_5 = arith.constant 0 : index
    %c0_6 = arith.constant 0 : index
    %c0_7 = arith.constant 0 : index
    %6 = vector.load %arg5[%c0_5, %c0_6, %c0_7] : memref<1x128x512xbf16, #tpu.memory_space<vmem>>, vector<1x128x512xbf16>
    %7 = vector.shape_cast %6 : vector<1x128x512xbf16> to vector<128x512xbf16>
    %cst = arith.constant dense<0.000000e+00> : vector<32x512xf32>
    %8 = tpu.matmul %5, %7, %cst {dimension_numbers = #tpu.dot_dimension_numbers<[1], [0], [0], [1], [0, 0, 1, 1], [], []>} : vector<32x128xbf16>, vector<128x512xbf16>, vector<32x512xf32> -> vector<32x512xf32>
    %9 = arith.addf %3, %8 : vector<32x512xf32>
    %c0_8 = arith.constant 0 : index
    %c0_9 = arith.constant 0 : index
    %10 = vector.load %arg8[%c0_8, %c0_9] : memref<32x512xf32, #tpu.memory_space<vmem>>, vector<32x512xf32>
    tpu.vector_store %arg8[%c0_8, %c0_9], %9 {strides = array<i32>} : memref<32x512xf32, #tpu.memory_space<vmem>>, vector<32x512xf32>,
    %c0_i32_10 = arith.constant 0 : i32
    %11 = arith.cmpi eq, %arg3, %c0_i32_10 : i32
    %12 = arith.extui %11 : i1 to i32
    %c0_i32_11 = arith.constant 0 : i32
    %13 = arith.cmpi ne, %12, %c0_i32_11 : i32
    scf.if %13 {
      %c0_12 = arith.constant 0 : index
      %c0_13 = arith.constant 0 : index
      %14 = vector.load %arg8[%c0_12, %c0_13] : memref<32x512xf32, #tpu.memory_space<vmem>>, vector<32x512xf32>
      %c0_14 = arith.constant 0 : index
      %c0_15 = arith.constant 0 : index
      %c0_16 = arith.constant 0 : index
      %15 = vector.load %arg6[%c0_14, %c0_15, %c0_16] : memref<1x32x1xf32, #tpu.memory_space<vmem>>, vector<1x32x1xf32>
      %16 = vector.shape_cast %15 : vector<1x32x1xf32> to vector<32x1xf32>
      %17 = vector.broadcast %16 : vector<32x1xf32> to vector<32x512xf32>
      %18 = arith.addf %14, %17 : vector<32x512xf32>
      %cst_17 = arith.constant 0.000000e+00 : f32
      %19 = vector.broadcast %cst_17 : f32 to vector<32x512xf32>
      %20 = arith.maximumf %18, %19 : vector<32x512xf32>
      %21 = arith.truncf %20 : vector<32x512xf32> to vector<32x512xbf16>
      %c0_18 = arith.constant 0 : index
      %c0_19 = arith.constant 0 : index
      %c0_20 = arith.constant 0 : index
      %22 = vector.load %arg7[%c0_18, %c0_19, %c0_20] : memref<1x32x512xbf16, #tpu.memory_space<vmem>>, vector<1x32x512xbf16>
      %23 = vector.shape_cast %22 : vector<1x32x512xbf16> to vector<32x512xbf16>
      %24 = vector.shape_cast %21 : vector<32x512xbf16> to vector<1x32x512xbf16>
      tpu.vector_store %arg7[%c0_18, %c0_19, %c0_20], %24 {strides = array<i32>} : memref<1x32x512xbf16, #tpu.memory_space<vmem>>, vector<1x32x512xbf16>,
    } else {
    }
    return
  }
  func.func @transform_0(%arg0: i32, %arg1: i32, %arg2: i32, %arg3: i32) -> (i32, i32, i32) {
    %c0_i32 = arith.constant 0 : i32
    return %arg0, %arg1, %arg3 : i32, i32, i32
  }
  func.func @transform_1(%arg0: i32, %arg1: i32, %arg2: i32, %arg3: i32) -> (i32, i32, i32) {
    %c0_i32 = arith.constant 0 : i32
    return %arg0, %arg3, %arg2 : i32, i32, i32
  }
  func.func @transform_2(%arg0: i32, %arg1: i32, %arg2: i32, %arg3: i32) -> (i32, i32, i32) {
    %c0_i32 = arith.constant 0 : i32
    %c0_i32_0 = arith.constant 0 : i32
    return %arg0, %arg1, %c0_i32 : i32, i32, i32
  }
  func.func @transform_3(%arg0: i32, %arg1: i32, %arg2: i32, %arg3: i32) -> (i32, i32, i32) {
    %c0_i32 = arith.constant 0 : i32
    return %arg0, %arg1, %arg2 : i32, i32, i32
  }
}

module attributes {stable_mosaic.version = 11 : i64} {
  func.func @_gemm_kernel(%arg0: i32, %arg1: i32, %arg2: i32, %arg3: i32, %arg4: memref<1x64x512xbf16, #tpu.memory_space<vmem>>, %arg5: memref<1x512x128xbf16, #tpu.memory_space<vmem>>, %arg6: memref<1x64x1xf32, #tpu.memory_space<vmem>>, %arg7: memref<1x64x128xbf16, #tpu.memory_space<vmem>>, %arg8: memref<64x128xf32, #tpu.memory_space<vmem>>) attributes {dimension_semantics = [#tpu.dimension_semantics<parallel>, #tpu.dimension_semantics<parallel>, #tpu.dimension_semantics<parallel>, #tpu.dimension_semantics<arbitrary>], iteration_bounds = array<i64: 1, 1, 1, 1>, scalar_prefetch = 0 : i64, scratch_operands = 1 : i64, tpu.core_type = #tpu.core_type<tc>, window_params = [{transform_indices = @transform_0, window_bounds = array<i64: 1, 64, 512>}, {transform_indices = @transform_1, window_bounds = array<i64: 1, 512, 128>}, {transform_indices = @transform_2, window_bounds = array<i64: 1, 64, 1>}, {transform_indices = @transform_3, window_bounds = array<i64: 1, 64, 128>}]} {
    %c0_i32 = arith.constant 0 : i32
    %0 = arith.cmpi eq, %arg3, %c0_i32 : i32
    %1 = arith.extui %0 : i1 to i32
    %c0_i32_0 = arith.constant 0 : i32
    %2 = arith.cmpi ne, %1, %c0_i32_0 : i32
    scf.if %2 {
      %cst_12 = arith.constant 0.000000e+00 : f32
      %14 = vector.broadcast %cst_12 : f32 to vector<64x128xf32>
      %c0_13 = arith.constant 0 : index
      %c0_14 = arith.constant 0 : index
      %15 = vector.load %arg8[%c0_13, %c0_14] : memref<64x128xf32, #tpu.memory_space<vmem>>, vector<64x128xf32>
      tpu.vector_store %arg8[%c0_13, %c0_14], %14 {strides = array<i32>} : memref<64x128xf32, #tpu.memory_space<vmem>>, vector<64x128xf32>,
    } else {
    }
    %c0 = arith.constant 0 : index
    %c0_1 = arith.constant 0 : index
    %3 = vector.load %arg8[%c0, %c0_1] : memref<64x128xf32, #tpu.memory_space<vmem>>, vector<64x128xf32>
    %c0_2 = arith.constant 0 : index
    %c0_3 = arith.constant 0 : index
    %c0_4 = arith.constant 0 : index
    %4 = vector.load %arg4[%c0_2, %c0_3, %c0_4] : memref<1x64x512xbf16, #tpu.memory_space<vmem>>, vector<1x64x512xbf16>
    %5 = vector.shape_cast %4 : vector<1x64x512xbf16> to vector<64x512xbf16>
    %c0_5 = arith.constant 0 : index
    %c0_6 = arith.constant 0 : index
    %c0_7 = arith.constant 0 : index
    %6 = vector.load %arg5[%c0_5, %c0_6, %c0_7] : memref<1x512x128xbf16, #tpu.memory_space<vmem>>, vector<1x512x128xbf16>
    %7 = vector.shape_cast %6 : vector<1x512x128xbf16> to vector<512x128xbf16>
    %cst = arith.constant dense<0.000000e+00> : vector<64x128xf32>
    %8 = tpu.matmul %5, %7, %cst {dimension_numbers = #tpu.dot_dimension_numbers<[1], [0], [0], [1], [0, 0, 1, 1], [], []>} : vector<64x512xbf16>, vector<512x128xbf16>, vector<64x128xf32> -> vector<64x128xf32>
    %9 = arith.addf %3, %8 : vector<64x128xf32>
    %c0_8 = arith.constant 0 : index
    %c0_9 = arith.constant 0 : index
    %10 = vector.load %arg8[%c0_8, %c0_9] : memref<64x128xf32, #tpu.memory_space<vmem>>, vector<64x128xf32>
    tpu.vector_store %arg8[%c0_8, %c0_9], %9 {strides = array<i32>} : memref<64x128xf32, #tpu.memory_space<vmem>>, vector<64x128xf32>,
    %c0_i32_10 = arith.constant 0 : i32
    %11 = arith.cmpi eq, %arg3, %c0_i32_10 : i32
    %12 = arith.extui %11 : i1 to i32
    %c0_i32_11 = arith.constant 0 : i32
    %13 = arith.cmpi ne, %12, %c0_i32_11 : i32
    scf.if %13 {
      %c0_12 = arith.constant 0 : index
      %c0_13 = arith.constant 0 : index
      %14 = vector.load %arg8[%c0_12, %c0_13] : memref<64x128xf32, #tpu.memory_space<vmem>>, vector<64x128xf32>
      %c0_14 = arith.constant 0 : index
      %c0_15 = arith.constant 0 : index
      %c0_16 = arith.constant 0 : index
      %15 = vector.load %arg6[%c0_14, %c0_15, %c0_16] : memref<1x64x1xf32, #tpu.memory_space<vmem>>, vector<1x64x1xf32>
      %16 = vector.shape_cast %15 : vector<1x64x1xf32> to vector<64x1xf32>
      %17 = vector.broadcast %16 : vector<64x1xf32> to vector<64x128xf32>
      %18 = arith.addf %14, %17 : vector<64x128xf32>
      %cst_17 = arith.constant 0.000000e+00 : f32
      %19 = vector.broadcast %cst_17 : f32 to vector<64x128xf32>
      %20 = arith.maximumf %18, %19 : vector<64x128xf32>
      %21 = arith.truncf %20 : vector<64x128xf32> to vector<64x128xbf16>
      %c0_18 = arith.constant 0 : index
      %c0_19 = arith.constant 0 : index
      %c0_20 = arith.constant 0 : index
      %22 = vector.load %arg7[%c0_18, %c0_19, %c0_20] : memref<1x64x128xbf16, #tpu.memory_space<vmem>>, vector<1x64x128xbf16>
      %23 = vector.shape_cast %22 : vector<1x64x128xbf16> to vector<64x128xbf16>
      %24 = vector.shape_cast %21 : vector<64x128xbf16> to vector<1x64x128xbf16>
      tpu.vector_store %arg7[%c0_18, %c0_19, %c0_20], %24 {strides = array<i32>} : memref<1x64x128xbf16, #tpu.memory_space<vmem>>, vector<1x64x128xbf16>,
    } else {
    }
    return
  }
  func.func @transform_0(%arg0: i32, %arg1: i32, %arg2: i32, %arg3: i32) -> (i32, i32, i32) {
    %c0_i32 = arith.constant 0 : i32
    return %arg0, %arg1, %arg3 : i32, i32, i32
  }
  func.func @transform_1(%arg0: i32, %arg1: i32, %arg2: i32, %arg3: i32) -> (i32, i32, i32) {
    %c0_i32 = arith.constant 0 : i32
    return %arg0, %arg3, %arg2 : i32, i32, i32
  }
  func.func @transform_2(%arg0: i32, %arg1: i32, %arg2: i32, %arg3: i32) -> (i32, i32, i32) {
    %c0_i32 = arith.constant 0 : i32
    %c0_i32_0 = arith.constant 0 : i32
    return %arg0, %arg1, %c0_i32 : i32, i32, i32
  }
  func.func @transform_3(%arg0: i32, %arg1: i32, %arg2: i32, %arg3: i32) -> (i32, i32, i32) {
    %c0_i32 = arith.constant 0 : i32
    return %arg0, %arg1, %arg2 : i32, i32, i32
  }
}

module attributes {stable_mosaic.version = 11 : i64} {
  func.func @_heads_kernel(%arg0: i32, %arg1: memref<8x512xbf16, #tpu.memory_space<vmem>>, %arg2: memref<512x256xbf16, #tpu.memory_space<vmem>>, %arg3: memref<1x256xf32, #tpu.memory_space<vmem>>, %arg4: memref<8x128xf32, #tpu.memory_space<vmem>>, %arg5: memref<8x128xf32, #tpu.memory_space<vmem>>, %arg6: memref<8x128xf32, #tpu.memory_space<vmem>>, %arg7: memref<8x128xf32, #tpu.memory_space<vmem>>, %arg8: memref<8x256xf32, #tpu.memory_space<vmem>>) attributes {dimension_semantics = [#tpu.dimension_semantics<arbitrary>], iteration_bounds = array<i64: 8>, scalar_prefetch = 0 : i64, scratch_operands = 1 : i64, tpu.core_type = #tpu.core_type<tc>, window_params = [{transform_indices = @transform_0, window_bounds = array<i64: 8, 512>}, {transform_indices = @transform_1, window_bounds = array<i64: 512, 256>}, {pipeline_mode = #tpu.pipeline_mode<synchronous>, transform_indices = @transform_2, window_bounds = array<i64: 1, 256>}, {pipeline_mode = #tpu.pipeline_mode<synchronous>, transform_indices = @transform_3, window_bounds = array<i64: 8, 128>}, {pipeline_mode = #tpu.pipeline_mode<synchronous>, transform_indices = @transform_4, window_bounds = array<i64: 8, 128>}, {pipeline_mode = #tpu.pipeline_mode<synchronous>, transform_indices = @transform_5, window_bounds = array<i64: 8, 128>}, {pipeline_mode = #tpu.pipeline_mode<synchronous>, transform_indices = @transform_6, window_bounds = array<i64: 8, 128>}]} {
    %c0_i32 = arith.constant 0 : i32
    %0 = arith.cmpi eq, %arg0, %c0_i32 : i32
    %1 = arith.extui %0 : i1 to i32
    %c0_i32_0 = arith.constant 0 : i32
    %2 = arith.cmpi ne, %1, %c0_i32_0 : i32
    scf.if %2 {
      %cst_9 = arith.constant 0.000000e+00 : f32
      %12 = vector.broadcast %cst_9 : f32 to vector<8x256xf32>
      %c0_10 = arith.constant 0 : index
      %c0_11 = arith.constant 0 : index
      %13 = vector.load %arg8[%c0_10, %c0_11] : memref<8x256xf32, #tpu.memory_space<vmem>>, vector<8x256xf32>
      tpu.vector_store %arg8[%c0_10, %c0_11], %12 {strides = array<i32>} : memref<8x256xf32, #tpu.memory_space<vmem>>, vector<8x256xf32>,
    } else {
    }
    %c0 = arith.constant 0 : index
    %c0_1 = arith.constant 0 : index
    %3 = vector.load %arg8[%c0, %c0_1] : memref<8x256xf32, #tpu.memory_space<vmem>>, vector<8x256xf32>
    %c0_2 = arith.constant 0 : index
    %c0_3 = arith.constant 0 : index
    %4 = vector.load %arg1[%c0_2, %c0_3] : memref<8x512xbf16, #tpu.memory_space<vmem>>, vector<8x512xbf16>
    %c0_4 = arith.constant 0 : index
    %c0_5 = arith.constant 0 : index
    %5 = vector.load %arg2[%c0_4, %c0_5] : memref<512x256xbf16, #tpu.memory_space<vmem>>, vector<512x256xbf16>
    %cst = arith.constant dense<0.000000e+00> : vector<8x256xf32>
    %6 = tpu.matmul %4, %5, %cst {dimension_numbers = #tpu.dot_dimension_numbers<[1], [0], [0], [1], [0, 0, 1, 1], [], []>} : vector<8x512xbf16>, vector<512x256xbf16>, vector<8x256xf32> -> vector<8x256xf32>
    %7 = arith.addf %3, %6 : vector<8x256xf32>
    %c0_6 = arith.constant 0 : index
    %c0_7 = arith.constant 0 : index
    %8 = vector.load %arg8[%c0_6, %c0_7] : memref<8x256xf32, #tpu.memory_space<vmem>>, vector<8x256xf32>
    tpu.vector_store %arg8[%c0_6, %c0_7], %7 {strides = array<i32>} : memref<8x256xf32, #tpu.memory_space<vmem>>, vector<8x256xf32>,
    %c7_i32 = arith.constant 7 : i32
    %9 = arith.cmpi eq, %arg0, %c7_i32 : i32
    %10 = arith.extui %9 : i1 to i32
    %c0_i32_8 = arith.constant 0 : i32
    %11 = arith.cmpi ne, %10, %c0_i32_8 : i32
    scf.if %11 {
      %c0_9 = arith.constant 0 : index
      %c0_10 = arith.constant 0 : index
      %12 = vector.load %arg8[%c0_9, %c0_10] : memref<8x256xf32, #tpu.memory_space<vmem>>, vector<8x256xf32>
      %c0_11 = arith.constant 0 : index
      %c0_12 = arith.constant 0 : index
      %13 = vector.load %arg3[%c0_11, %c0_12] : memref<1x256xf32, #tpu.memory_space<vmem>>, vector<1x256xf32>
      %14 = vector.broadcast %13 : vector<1x256xf32> to vector<8x256xf32>
      %15 = arith.addf %12, %14 : vector<8x256xf32>
      %16 = vector.extract_strided_slice %15 {offsets = [0, 0], sizes = [8, 128], strides = [1, 1]} : vector<8x256xf32> to vector<8x128xf32>
      %17 = vector.extract_strided_slice %15 {offsets = [0, 128], sizes = [8, 128], strides = [1, 1]} : vector<8x256xf32> to vector<8x128xf32>
      %c0_13 = arith.constant 0 : index
      %c0_14 = arith.constant 0 : index
      %18 = vector.load %arg5[%c0_13, %c0_14] : memref<8x128xf32, #tpu.memory_space<vmem>>, vector<8x128xf32>
      tpu.vector_store %arg5[%c0_13, %c0_14], %16 {strides = array<i32>} : memref<8x128xf32, #tpu.memory_space<vmem>>, vector<8x128xf32>,
      %c0_15 = arith.constant 0 : index
      %c0_16 = arith.constant 0 : index
      %19 = vector.load %arg6[%c0_15, %c0_16] : memref<8x128xf32, #tpu.memory_space<vmem>>, vector<8x128xf32>
      tpu.vector_store %arg6[%c0_15, %c0_16], %17 {strides = array<i32>} : memref<8x128xf32, #tpu.memory_space<vmem>>, vector<8x128xf32>,
      %c0_17 = arith.constant 0 : index
      %c0_18 = arith.constant 0 : index
      %20 = vector.load %arg4[%c0_17, %c0_18] : memref<8x128xf32, #tpu.memory_space<vmem>>, vector<8x128xf32>
      %cst_19 = arith.constant 5.000000e-01 : f32
      %21 = vector.broadcast %cst_19 : f32 to vector<8x128xf32>
      %22 = arith.mulf %21, %17 : vector<8x128xf32>
      %23 = math.exp %22 : vector<8x128xf32>
      %24 = arith.mulf %20, %23 : vector<8x128xf32>
      %25 = arith.addf %16, %24 : vector<8x128xf32>
      %c0_20 = arith.constant 0 : index
      %c0_21 = arith.constant 0 : index
      %26 = vector.load %arg7[%c0_20, %c0_21] : memref<8x128xf32, #tpu.memory_space<vmem>>, vector<8x128xf32>
      tpu.vector_store %arg7[%c0_20, %c0_21], %25 {strides = array<i32>} : memref<8x128xf32, #tpu.memory_space<vmem>>, vector<8x128xf32>,
    } else {
    }
    return
  }
  func.func @transform_0(%arg0: i32) -> (i32, i32) {
    %c0_i32 = arith.constant 0 : i32
    %c0_i32_0 = arith.constant 0 : i32
    return %c0_i32, %arg0 : i32, i32
  }
  func.func @transform_1(%arg0: i32) -> (i32, i32) {
    %c0_i32 = arith.constant 0 : i32
    %c0_i32_0 = arith.constant 0 : i32
    return %arg0, %c0_i32 : i32, i32
  }
  func.func @transform_2(%arg0: i32) -> (i32, i32) {
    %c0_i32 = arith.constant 0 : i32
    %c0_i32_0 = arith.constant 0 : i32
    %c0_i32_1 = arith.constant 0 : i32
    return %c0_i32, %c0_i32_0 : i32, i32
  }
  func.func @transform_3(%arg0: i32) -> (i32, i32) {
    %c0_i32 = arith.constant 0 : i32
    %c0_i32_0 = arith.constant 0 : i32
    %c0_i32_1 = arith.constant 0 : i32
    return %c0_i32, %c0_i32_0 : i32, i32
  }
  func.func @transform_4(%arg0: i32) -> (i32, i32) {
    %c0_i32 = arith.constant 0 : i32
    %c0_i32_0 = arith.constant 0 : i32
    %c0_i32_1 = arith.constant 0 : i32
    return %c0_i32, %c0_i32_0 : i32, i32
  }
  func.func @transform_5(%arg0: i32) -> (i32, i32) {
    %c0_i32 = arith.constant 0 : i32
    %c0_i32_0 = arith.constant 0 : i32
    %c0_i32_1 = arith.constant 0 : i32
    return %c0_i32, %c0_i32_0 : i32, i32
  }
  func.func @transform_6(%arg0: i32) -> (i32, i32) {
    %c0_i32 = arith.constant 0 : i32
    %c0_i32_0 = arith.constant 0 : i32
    %c0_i32_1 = arith.constant 0 : i32
    return %c0_i32, %c0_i32_0 : i32, i32
  }
}

module attributes {stable_mosaic.version = 11 : i64} {
  func.func @_gemm_kernel(%arg0: i32, %arg1: i32, %arg2: i32, %arg3: i32, %arg4: memref<1x8x128xbf16, #tpu.memory_space<vmem>>, %arg5: memref<1x128x512xbf16, #tpu.memory_space<vmem>>, %arg6: memref<1x1x512xf32, #tpu.memory_space<vmem>>, %arg7: memref<1x8x512xbf16, #tpu.memory_space<vmem>>, %arg8: memref<8x512xf32, #tpu.memory_space<vmem>>) attributes {dimension_semantics = [#tpu.dimension_semantics<parallel>, #tpu.dimension_semantics<parallel>, #tpu.dimension_semantics<parallel>, #tpu.dimension_semantics<arbitrary>], iteration_bounds = array<i64: 1, 1, 8, 1>, scalar_prefetch = 0 : i64, scratch_operands = 1 : i64, tpu.core_type = #tpu.core_type<tc>, window_params = [{transform_indices = @transform_0, window_bounds = array<i64: 1, 8, 128>}, {transform_indices = @transform_1, window_bounds = array<i64: 1, 128, 512>}, {transform_indices = @transform_2, window_bounds = array<i64: 1, 1, 512>}, {transform_indices = @transform_3, window_bounds = array<i64: 1, 8, 512>}]} {
    %c0_i32 = arith.constant 0 : i32
    %0 = arith.cmpi eq, %arg3, %c0_i32 : i32
    %1 = arith.extui %0 : i1 to i32
    %c0_i32_0 = arith.constant 0 : i32
    %2 = arith.cmpi ne, %1, %c0_i32_0 : i32
    scf.if %2 {
      %cst_12 = arith.constant 0.000000e+00 : f32
      %14 = vector.broadcast %cst_12 : f32 to vector<8x512xf32>
      %c0_13 = arith.constant 0 : index
      %c0_14 = arith.constant 0 : index
      %15 = vector.load %arg8[%c0_13, %c0_14] : memref<8x512xf32, #tpu.memory_space<vmem>>, vector<8x512xf32>
      tpu.vector_store %arg8[%c0_13, %c0_14], %14 {strides = array<i32>} : memref<8x512xf32, #tpu.memory_space<vmem>>, vector<8x512xf32>,
    } else {
    }
    %c0 = arith.constant 0 : index
    %c0_1 = arith.constant 0 : index
    %3 = vector.load %arg8[%c0, %c0_1] : memref<8x512xf32, #tpu.memory_space<vmem>>, vector<8x512xf32>
    %c0_2 = arith.constant 0 : index
    %c0_3 = arith.constant 0 : index
    %c0_4 = arith.constant 0 : index
    %4 = vector.load %arg4[%c0_2, %c0_3, %c0_4] : memref<1x8x128xbf16, #tpu.memory_space<vmem>>, vector<1x8x128xbf16>
    %5 = vector.shape_cast %4 : vector<1x8x128xbf16> to vector<8x128xbf16>
    %c0_5 = arith.constant 0 : index
    %c0_6 = arith.constant 0 : index
    %c0_7 = arith.constant 0 : index
    %6 = vector.load %arg5[%c0_5, %c0_6, %c0_7] : memref<1x128x512xbf16, #tpu.memory_space<vmem>>, vector<1x128x512xbf16>
    %7 = vector.shape_cast %6 : vector<1x128x512xbf16> to vector<128x512xbf16>
    %cst = arith.constant dense<0.000000e+00> : vector<8x512xf32>
    %8 = tpu.matmul %5, %7, %cst {dimension_numbers = #tpu.dot_dimension_numbers<[1], [0], [0], [1], [0, 0, 1, 1], [], []>} : vector<8x128xbf16>, vector<128x512xbf16>, vector<8x512xf32> -> vector<8x512xf32>
    %9 = arith.addf %3, %8 : vector<8x512xf32>
    %c0_8 = arith.constant 0 : index
    %c0_9 = arith.constant 0 : index
    %10 = vector.load %arg8[%c0_8, %c0_9] : memref<8x512xf32, #tpu.memory_space<vmem>>, vector<8x512xf32>
    tpu.vector_store %arg8[%c0_8, %c0_9], %9 {strides = array<i32>} : memref<8x512xf32, #tpu.memory_space<vmem>>, vector<8x512xf32>,
    %c0_i32_10 = arith.constant 0 : i32
    %11 = arith.cmpi eq, %arg3, %c0_i32_10 : i32
    %12 = arith.extui %11 : i1 to i32
    %c0_i32_11 = arith.constant 0 : i32
    %13 = arith.cmpi ne, %12, %c0_i32_11 : i32
    scf.if %13 {
      %c0_12 = arith.constant 0 : index
      %c0_13 = arith.constant 0 : index
      %14 = vector.load %arg8[%c0_12, %c0_13] : memref<8x512xf32, #tpu.memory_space<vmem>>, vector<8x512xf32>
      %c0_14 = arith.constant 0 : index
      %c0_15 = arith.constant 0 : index
      %c0_16 = arith.constant 0 : index
      %15 = vector.load %arg6[%c0_14, %c0_15, %c0_16] : memref<1x1x512xf32, #tpu.memory_space<vmem>>, vector<1x1x512xf32>
      %16 = vector.shape_cast %15 : vector<1x1x512xf32> to vector<1x512xf32>
      %17 = vector.broadcast %16 : vector<1x512xf32> to vector<8x512xf32>
      %18 = arith.addf %14, %17 : vector<8x512xf32>
      %19 = arith.truncf %18 : vector<8x512xf32> to vector<8x512xbf16>
      %c0_17 = arith.constant 0 : index
      %c0_18 = arith.constant 0 : index
      %c0_19 = arith.constant 0 : index
      %20 = vector.load %arg7[%c0_17, %c0_18, %c0_19] : memref<1x8x512xbf16, #tpu.memory_space<vmem>>, vector<1x8x512xbf16>
      %21 = vector.shape_cast %20 : vector<1x8x512xbf16> to vector<8x512xbf16>
      %22 = vector.shape_cast %19 : vector<8x512xbf16> to vector<1x8x512xbf16>
      tpu.vector_store %arg7[%c0_17, %c0_18, %c0_19], %22 {strides = array<i32>} : memref<1x8x512xbf16, #tpu.memory_space<vmem>>, vector<1x8x512xbf16>,
    } else {
    }
    return
  }
  func.func @transform_0(%arg0: i32, %arg1: i32, %arg2: i32, %arg3: i32) -> (i32, i32, i32) {
    %c0_i32 = arith.constant 0 : i32
    return %arg0, %arg1, %arg3 : i32, i32, i32
  }
  func.func @transform_1(%arg0: i32, %arg1: i32, %arg2: i32, %arg3: i32) -> (i32, i32, i32) {
    %c0_i32 = arith.constant 0 : i32
    return %arg0, %arg3, %arg2 : i32, i32, i32
  }
  func.func @transform_2(%arg0: i32, %arg1: i32, %arg2: i32, %arg3: i32) -> (i32, i32, i32) {
    %c0_i32 = arith.constant 0 : i32
    %c0_i32_0 = arith.constant 0 : i32
    return %arg0, %c0_i32, %arg2 : i32, i32, i32
  }
  func.func @transform_3(%arg0: i32, %arg1: i32, %arg2: i32, %arg3: i32) -> (i32, i32, i32) {
    %c0_i32 = arith.constant 0 : i32
    return %arg0, %arg1, %arg2 : i32, i32, i32
  }
}

module attributes {stable_mosaic.version = 11 : i64} {
  func.func @_gemm_kernel(%arg0: i32, %arg1: i32, %arg2: i32, %arg3: i32, %arg4: memref<1x32x256xbf16, #tpu.memory_space<vmem>>, %arg5: memref<1x256x128xbf16, #tpu.memory_space<vmem>>, %arg6: memref<1x32x1xf32, #tpu.memory_space<vmem>>, %arg7: memref<1x32x128xbf16, #tpu.memory_space<vmem>>, %arg8: memref<32x128xf32, #tpu.memory_space<vmem>>) attributes {dimension_semantics = [#tpu.dimension_semantics<parallel>, #tpu.dimension_semantics<parallel>, #tpu.dimension_semantics<parallel>, #tpu.dimension_semantics<arbitrary>], iteration_bounds = array<i64: 4, 1, 1, 1>, scalar_prefetch = 0 : i64, scratch_operands = 1 : i64, tpu.core_type = #tpu.core_type<tc>, window_params = [{transform_indices = @transform_0, window_bounds = array<i64: 1, 32, 256>}, {transform_indices = @transform_1, window_bounds = array<i64: 1, 256, 128>}, {transform_indices = @transform_2, window_bounds = array<i64: 1, 32, 1>}, {transform_indices = @transform_3, window_bounds = array<i64: 1, 32, 128>}]} {
    %c0_i32 = arith.constant 0 : i32
    %0 = arith.cmpi eq, %arg3, %c0_i32 : i32
    %1 = arith.extui %0 : i1 to i32
    %c0_i32_0 = arith.constant 0 : i32
    %2 = arith.cmpi ne, %1, %c0_i32_0 : i32
    scf.if %2 {
      %cst_12 = arith.constant 0.000000e+00 : f32
      %14 = vector.broadcast %cst_12 : f32 to vector<32x128xf32>
      %c0_13 = arith.constant 0 : index
      %c0_14 = arith.constant 0 : index
      %15 = vector.load %arg8[%c0_13, %c0_14] : memref<32x128xf32, #tpu.memory_space<vmem>>, vector<32x128xf32>
      tpu.vector_store %arg8[%c0_13, %c0_14], %14 {strides = array<i32>} : memref<32x128xf32, #tpu.memory_space<vmem>>, vector<32x128xf32>,
    } else {
    }
    %c0 = arith.constant 0 : index
    %c0_1 = arith.constant 0 : index
    %3 = vector.load %arg8[%c0, %c0_1] : memref<32x128xf32, #tpu.memory_space<vmem>>, vector<32x128xf32>
    %c0_2 = arith.constant 0 : index
    %c0_3 = arith.constant 0 : index
    %c0_4 = arith.constant 0 : index
    %4 = vector.load %arg4[%c0_2, %c0_3, %c0_4] : memref<1x32x256xbf16, #tpu.memory_space<vmem>>, vector<1x32x256xbf16>
    %5 = vector.shape_cast %4 : vector<1x32x256xbf16> to vector<32x256xbf16>
    %c0_5 = arith.constant 0 : index
    %c0_6 = arith.constant 0 : index
    %c0_7 = arith.constant 0 : index
    %6 = vector.load %arg5[%c0_5, %c0_6, %c0_7] : memref<1x256x128xbf16, #tpu.memory_space<vmem>>, vector<1x256x128xbf16>
    %7 = vector.shape_cast %6 : vector<1x256x128xbf16> to vector<256x128xbf16>
    %cst = arith.constant dense<0.000000e+00> : vector<32x128xf32>
    %8 = tpu.matmul %5, %7, %cst {dimension_numbers = #tpu.dot_dimension_numbers<[1], [0], [0], [1], [0, 0, 1, 1], [], []>} : vector<32x256xbf16>, vector<256x128xbf16>, vector<32x128xf32> -> vector<32x128xf32>
    %9 = arith.addf %3, %8 : vector<32x128xf32>
    %c0_8 = arith.constant 0 : index
    %c0_9 = arith.constant 0 : index
    %10 = vector.load %arg8[%c0_8, %c0_9] : memref<32x128xf32, #tpu.memory_space<vmem>>, vector<32x128xf32>
    tpu.vector_store %arg8[%c0_8, %c0_9], %9 {strides = array<i32>} : memref<32x128xf32, #tpu.memory_space<vmem>>, vector<32x128xf32>,
    %c0_i32_10 = arith.constant 0 : i32
    %11 = arith.cmpi eq, %arg3, %c0_i32_10 : i32
    %12 = arith.extui %11 : i1 to i32
    %c0_i32_11 = arith.constant 0 : i32
    %13 = arith.cmpi ne, %12, %c0_i32_11 : i32
    scf.if %13 {
      %c0_12 = arith.constant 0 : index
      %c0_13 = arith.constant 0 : index
      %14 = vector.load %arg8[%c0_12, %c0_13] : memref<32x128xf32, #tpu.memory_space<vmem>>, vector<32x128xf32>
      %c0_14 = arith.constant 0 : index
      %c0_15 = arith.constant 0 : index
      %c0_16 = arith.constant 0 : index
      %15 = vector.load %arg6[%c0_14, %c0_15, %c0_16] : memref<1x32x1xf32, #tpu.memory_space<vmem>>, vector<1x32x1xf32>
      %16 = vector.shape_cast %15 : vector<1x32x1xf32> to vector<32x1xf32>
      %17 = vector.broadcast %16 : vector<32x1xf32> to vector<32x128xf32>
      %18 = arith.addf %14, %17 : vector<32x128xf32>
      %cst_17 = arith.constant 0.000000e+00 : f32
      %19 = vector.broadcast %cst_17 : f32 to vector<32x128xf32>
      %20 = arith.maximumf %18, %19 : vector<32x128xf32>
      %21 = arith.truncf %20 : vector<32x128xf32> to vector<32x128xbf16>
      %c0_18 = arith.constant 0 : index
      %c0_19 = arith.constant 0 : index
      %c0_20 = arith.constant 0 : index
      %22 = vector.load %arg7[%c0_18, %c0_19, %c0_20] : memref<1x32x128xbf16, #tpu.memory_space<vmem>>, vector<1x32x128xbf16>
      %23 = vector.shape_cast %22 : vector<1x32x128xbf16> to vector<32x128xbf16>
      %24 = vector.shape_cast %21 : vector<32x128xbf16> to vector<1x32x128xbf16>
      tpu.vector_store %arg7[%c0_18, %c0_19, %c0_20], %24 {strides = array<i32>} : memref<1x32x128xbf16, #tpu.memory_space<vmem>>, vector<1x32x128xbf16>,
    } else {
    }
    return
  }
  func.func @transform_0(%arg0: i32, %arg1: i32, %arg2: i32, %arg3: i32) -> (i32, i32, i32) {
    %c0_i32 = arith.constant 0 : i32
    return %arg0, %arg1, %arg3 : i32, i32, i32
  }
  func.func @transform_1(%arg0: i32, %arg1: i32, %arg2: i32, %arg3: i32) -> (i32, i32, i32) {
    %c0_i32 = arith.constant 0 : i32
    return %arg0, %arg3, %arg2 : i32, i32, i32
  }
  func.func @transform_2(%arg0: i32, %arg1: i32, %arg2: i32, %arg3: i32) -> (i32, i32, i32) {
    %c0_i32 = arith.constant 0 : i32
    %c0_i32_0 = arith.constant 0 : i32
    return %arg0, %arg1, %c0_i32 : i32, i32, i32
  }
  func.func @transform_3(%arg0: i32, %arg1: i32, %arg2: i32, %arg3: i32) -> (i32, i32, i32) {
    %c0_i32 = arith.constant 0 : i32
    return %arg0, %arg1, %arg2 : i32, i32, i32
  }
}

module attributes {stable_mosaic.version = 11 : i64} {
  func.func @_gemm_kernel(%arg0: i32, %arg1: i32, %arg2: i32, %arg3: i32, %arg4: memref<1x8x128xbf16, #tpu.memory_space<vmem>>, %arg5: memref<1x128x512xbf16, #tpu.memory_space<vmem>>, %arg6: memref<1x8x1xf32, #tpu.memory_space<vmem>>, %arg7: memref<1x8x512xf32, #tpu.memory_space<vmem>>, %arg8: memref<8x512xf32, #tpu.memory_space<vmem>>) attributes {dimension_semantics = [#tpu.dimension_semantics<parallel>, #tpu.dimension_semantics<parallel>, #tpu.dimension_semantics<parallel>, #tpu.dimension_semantics<arbitrary>], iteration_bounds = array<i64: 4, 1, 1, 1>, scalar_prefetch = 0 : i64, scratch_operands = 1 : i64, tpu.core_type = #tpu.core_type<tc>, window_params = [{transform_indices = @transform_0, window_bounds = array<i64: 1, 8, 128>}, {transform_indices = @transform_1, window_bounds = array<i64: 1, 128, 512>}, {transform_indices = @transform_2, window_bounds = array<i64: 1, 8, 1>}, {transform_indices = @transform_3, window_bounds = array<i64: 1, 8, 512>}]} {
    %c0_i32 = arith.constant 0 : i32
    %0 = arith.cmpi eq, %arg3, %c0_i32 : i32
    %1 = arith.extui %0 : i1 to i32
    %c0_i32_0 = arith.constant 0 : i32
    %2 = arith.cmpi ne, %1, %c0_i32_0 : i32
    scf.if %2 {
      %cst_12 = arith.constant 0.000000e+00 : f32
      %14 = vector.broadcast %cst_12 : f32 to vector<8x512xf32>
      %c0_13 = arith.constant 0 : index
      %c0_14 = arith.constant 0 : index
      %15 = vector.load %arg8[%c0_13, %c0_14] : memref<8x512xf32, #tpu.memory_space<vmem>>, vector<8x512xf32>
      tpu.vector_store %arg8[%c0_13, %c0_14], %14 {strides = array<i32>} : memref<8x512xf32, #tpu.memory_space<vmem>>, vector<8x512xf32>,
    } else {
    }
    %c0 = arith.constant 0 : index
    %c0_1 = arith.constant 0 : index
    %3 = vector.load %arg8[%c0, %c0_1] : memref<8x512xf32, #tpu.memory_space<vmem>>, vector<8x512xf32>
    %c0_2 = arith.constant 0 : index
    %c0_3 = arith.constant 0 : index
    %c0_4 = arith.constant 0 : index
    %4 = vector.load %arg4[%c0_2, %c0_3, %c0_4] : memref<1x8x128xbf16, #tpu.memory_space<vmem>>, vector<1x8x128xbf16>
    %5 = vector.shape_cast %4 : vector<1x8x128xbf16> to vector<8x128xbf16>
    %c0_5 = arith.constant 0 : index
    %c0_6 = arith.constant 0 : index
    %c0_7 = arith.constant 0 : index
    %6 = vector.load %arg5[%c0_5, %c0_6, %c0_7] : memref<1x128x512xbf16, #tpu.memory_space<vmem>>, vector<1x128x512xbf16>
    %7 = vector.shape_cast %6 : vector<1x128x512xbf16> to vector<128x512xbf16>
    %cst = arith.constant dense<0.000000e+00> : vector<8x512xf32>
    %8 = tpu.matmul %5, %7, %cst {dimension_numbers = #tpu.dot_dimension_numbers<[1], [0], [0], [1], [0, 0, 1, 1], [], []>} : vector<8x128xbf16>, vector<128x512xbf16>, vector<8x512xf32> -> vector<8x512xf32>
    %9 = arith.addf %3, %8 : vector<8x512xf32>
    %c0_8 = arith.constant 0 : index
    %c0_9 = arith.constant 0 : index
    %10 = vector.load %arg8[%c0_8, %c0_9] : memref<8x512xf32, #tpu.memory_space<vmem>>, vector<8x512xf32>
    tpu.vector_store %arg8[%c0_8, %c0_9], %9 {strides = array<i32>} : memref<8x512xf32, #tpu.memory_space<vmem>>, vector<8x512xf32>,
    %c0_i32_10 = arith.constant 0 : i32
    %11 = arith.cmpi eq, %arg3, %c0_i32_10 : i32
    %12 = arith.extui %11 : i1 to i32
    %c0_i32_11 = arith.constant 0 : i32
    %13 = arith.cmpi ne, %12, %c0_i32_11 : i32
    scf.if %13 {
      %c0_12 = arith.constant 0 : index
      %c0_13 = arith.constant 0 : index
      %14 = vector.load %arg8[%c0_12, %c0_13] : memref<8x512xf32, #tpu.memory_space<vmem>>, vector<8x512xf32>
      %c0_14 = arith.constant 0 : index
      %c0_15 = arith.constant 0 : index
      %c0_16 = arith.constant 0 : index
      %15 = vector.load %arg6[%c0_14, %c0_15, %c0_16] : memref<1x8x1xf32, #tpu.memory_space<vmem>>, vector<1x8x1xf32>
      %16 = vector.shape_cast %15 : vector<1x8x1xf32> to vector<8x1xf32>
      %17 = vector.broadcast %16 : vector<8x1xf32> to vector<8x512xf32>
      %18 = arith.addf %14, %17 : vector<8x512xf32>
      %19 = arith.negf %18 : vector<8x512xf32>
      %20 = math.exp %19 : vector<8x512xf32>
      %cst_17 = arith.constant 1.000000e+00 : f32
      %21 = vector.broadcast %cst_17 : f32 to vector<8x512xf32>
      %22 = arith.addf %21, %20 : vector<8x512xf32>
      %23 = arith.divf %21, %22 : vector<8x512xf32>
      %c0_18 = arith.constant 0 : index
      %c0_19 = arith.constant 0 : index
      %c0_20 = arith.constant 0 : index
      %24 = vector.load %arg7[%c0_18, %c0_19, %c0_20] : memref<1x8x512xf32, #tpu.memory_space<vmem>>, vector<1x8x512xf32>
      %25 = vector.shape_cast %24 : vector<1x8x512xf32> to vector<8x512xf32>
      %26 = vector.shape_cast %23 : vector<8x512xf32> to vector<1x8x512xf32>
      tpu.vector_store %arg7[%c0_18, %c0_19, %c0_20], %26 {strides = array<i32>} : memref<1x8x512xf32, #tpu.memory_space<vmem>>, vector<1x8x512xf32>,
    } else {
    }
    return
  }
  func.func @transform_0(%arg0: i32, %arg1: i32, %arg2: i32, %arg3: i32) -> (i32, i32, i32) {
    %c0_i32 = arith.constant 0 : i32
    return %arg0, %arg1, %arg3 : i32, i32, i32
  }
  func.func @transform_1(%arg0: i32, %arg1: i32, %arg2: i32, %arg3: i32) -> (i32, i32, i32) {
    %c0_i32 = arith.constant 0 : i32
    return %arg0, %arg3, %arg2 : i32, i32, i32
  }
  func.func @transform_2(%arg0: i32, %arg1: i32, %arg2: i32, %arg3: i32) -> (i32, i32, i32) {
    %c0_i32 = arith.constant 0 : i32
    %c0_i32_0 = arith.constant 0 : i32
    return %arg0, %arg1, %c0_i32 : i32, i32, i32
  }
  func.func @transform_3(%arg0: i32, %arg1: i32, %arg2: i32, %arg3: i32) -> (i32, i32, i32) {
    %c0_i32 = arith.constant 0 : i32
    return %arg0, %arg1, %arg2 : i32, i32, i32
  }
}

</mosaic_0001>

<llo_original>
// kernel: lazy_vae_forward.6
$region0: #{lazy_vae_forward.6}
  #allocation0 [shape = 'u32[]', space=smem, size = 0x4, offset = 0x4, fixed_abs, tag = 'smem constant byte address 0x4 - core index']
  #allocation1 [shape = 'u32[72,128]{1,0:T(1,128)}', space=vmem, size = 0x9000, scoped, tag = 'internal scratch']
  #allocation2 [shape = 'f32[32,512]{1,0:T(8,128)}', space=vmem, size = 0x10000, scoped, tag = 'scratch operand']
  %s0 = inlined_call_operand.vmem [shape: bf16[1,32,128], index: 0, kind: input, shape index: {}]
  %s1 = inlined_call_operand.vmem [shape: bf16[1,128,512], index: 1, kind: input, shape index: {}]
  %s2 = inlined_call_operand.vmem [shape: f32[1,32,1], index: 2, kind: input, shape index: {}]
  %s3 = inlined_call_operand.vmem [shape: bf16[1,32,512], index: 3, kind: output, shape index: {}]
  %s4 = sld [smem:[#allocation0]]
  $region30: #{lazy_vae_forward.6} parent=0
    _
  %s6 = ssub.s32 1, %s4
  %s7 = scalar_select 0, %s6, %s4
  // Predicated region
  $region2: #{lazy_vae_forward.6} parent=0 // pred_check
    _
  $region3: #{lazy_vae_forward.6} parent=0 // pred_check_branch
    %9 = sbr.rel (0) target = $region5
  $region4: #{lazy_vae_forward.6} parent=0 // pred_region
    _
  $region5: #{lazy_vae_forward.6} parent=0 // pred_fallthru
    _
  // Predicated region
  $region6: #{lazy_vae_forward.6} parent=0 // pred_check
    _
  $region7: #{lazy_vae_forward.6} parent=0 // pred_check_branch
    %11 = sbr.rel (0) target = $region9
  $region8: #{lazy_vae_forward.6} parent=0 // pred_region
    _
  $region9: #{lazy_vae_forward.6} parent=0 // pred_fallthru
    _
  // Predicated region
  $region10: #{lazy_vae_forward.6} parent=0 // pred_check
    _
  $region11: #{lazy_vae_forward.6} parent=0 // pred_check_branch
    %13 = sbr.rel (0) target = $region13
  $region12: #{lazy_vae_forward.6} parent=0 // pred_region
    _
  $region13: #{lazy_vae_forward.6} parent=0 // pred_fallthru
    _
  %p14 = scmp.eq.s32.totalorder 0, 0
  // Predicated region
  $region14: #{lazy_vae_forward.6} parent=0 // pred_check
    %p15 = pneg %p14
  $region15: #{lazy_vae_forward.6} parent=0 // pred_check_branch
    %17 = sbr.rel (%p15) target = $region17
  $region16: #{lazy_vae_forward.6} parent=0 // pred_region
    %18 = vst [vmem:[#allocation2] sm:$0xff] 0.0
    %19 = vst [vmem:[#allocation2 + $0x8] sm:$0xff] 0.0
    %20 = vst [vmem:[#allocation2 + $0x10] sm:$0xff] 0.0
    %21 = vst [vmem:[#allocation2 + $0x18] sm:$0xff] 0.0
    %22 = vst [vmem:[#allocation2 + $0x20] sm:$0xff] 0.0
    %23 = vst [vmem:[#allocation2 + $0x28] sm:$0xff] 0.0
    %24 = vst [vmem:[#allocation2 + $0x30] sm:$0xff] 0.0
    %25 = vst [vmem:[#allocation2 + $0x38] sm:$0xff] 0.0
    %26 = vst [vmem:[#allocation2 + $0x40] sm:$0xff] 0.0
    %27 = vst [vmem:[#allocation2 + $0x48] sm:$0xff] 0.0
    %28 = vst [vmem:[#allocation2 + $0x50] sm:$0xff] 0.0
    %29 = vst [vmem:[#allocation2 + $0x58] sm:$0xff] 0.0
    %30 = vst [vmem:[#allocation2 + $0x60] sm:$0xff] 0.0
    %31 = vst [vmem:[#allocation2 + $0x68] sm:$0xff] 0.0
    %32 = vst [vmem:[#allocation2 + $0x70] sm:$0xff] 0.0
    %33 = vst [vmem:[#allocation2 + $0x78] sm:$0xff] 0.0
  $region17: #{lazy_vae_forward.6} parent=0 // pred_fallthru
    _
  %v34 = vld [vmem:[#allocation2] sm:$0xff]
  %v35 = vld [vmem:[#allocation2 + $0x8] sm:$0xff]
  %v36 = vld [vmem:[#allocation2 + $0x10] sm:$0xff]
  %v37 = vld [vmem:[#allocation2 + $0x18] sm:$0xff]
  %v38 = vld [vmem:[#allocation2 + $0x20] sm:$0xff]
  %v39 = vld [vmem:[#allocation2 + $0x28] sm:$0xff]
  %v40 = vld [vmem:[#allocation2 + $0x30] sm:$0xff]
  %v41 = vld [vmem:[#allocation2 + $0x38] sm:$0xff]
  %v42 = vld [vmem:[#allocation2 + $0x40] sm:$0xff]
  %v43 = vld [vmem:[#allocation2 + $0x48] sm:$0xff]
  %v44 = vld [vmem:[#allocation2 + $0x50] sm:$0xff]
  %v45 = vld [vmem:[#allocation2 + $0x58] sm:$0xff]
  %v46 = vld [vmem:[#allocation2 + $0x60] sm:$0xff]
  %v47 = vld [vmem:[#allocation2 + $0x68] sm:$0xff]
  %v48 = vld [vmem:[#allocation2 + $0x70] sm:$0xff]
  %v49 = vld [vmem:[#allocation2 + $0x78] sm:$0xff]
  %v50 = vld [vmem:[%s0] sm:$0xf]
  %v51 = vld [vmem:[%s0 + $0x4] sm:$0xf]
  %v52 = vld [vmem:[%s0 + $0x8] sm:$0xf]
  %v53 = vld [vmem:[%s0 + $0xc] sm:$0xf]
  %v54 = vld [vmem:[%s1] sm:$0xff]
  %v55 = vld [vmem:[%s1 + $0x8] sm:$0xff]
  %v56 = vld [vmem:[%s1 + $0x10] sm:$0xff]
  %v57 = vld [vmem:[%s1 + $0x18] sm:$0xff]
  %v58 = vld [vmem:[%s1 + $0x20] sm:$0xff]
  %v59 = vld [vmem:[%s1 + $0x28] sm:$0xff]
  %v60 = vld [vmem:[%s1 + $0x30] sm:$0xff]
  %v61 = vld [vmem:[%s1 + $0x38] sm:$0xff]
  %v62 = vld [vmem:[%s1 + $0x40] sm:$0xff]
  %v63 = vld [vmem:[%s1 + $0x48] sm:$0xff]
  %v64 = vld [vmem:[%s1 + $0x50] sm:$0xff]
  %v65 = vld [vmem:[%s1 + $0x58] sm:$0xff]
  %v66 = vld [vmem:[%s1 + $0x60] sm:$0xff]
  %v67 = vld [vmem:[%s1 + $0x68] sm:$0xff]
  %v68 = vld [vmem:[%s1 + $0x70] sm:$0xff]
  %v69 = vld [vmem:[%s1 + $0x78] sm:$0xff]
  %v70 = vld [vmem:[%s1 + $0x80] sm:$0xff]
  %v71 = vld [vmem:[%s1 + $0x88] sm:$0xff]
  %v72 = vld [vmem:[%s1 + $0x90] sm:$0xff]
  %v73 = vld [vmem:[%s1 + $0x98] sm:$0xff]
  %v74 = vld [vmem:[%s1 + $0xa0] sm:$0xff]
  %v75 = vld [vmem:[%s1 + $0xa8] sm:$0xff]
  %v76 = vld [vmem:[%s1 + $0xb0] sm:$0xff]
  %v77 = vld [vmem:[%s1 + $0xb8] sm:$0xff]
  %v78 = vld [vmem:[%s1 + $0xc0] sm:$0xff]
  %v79 = vld [vmem:[%s1 + $0xc8] sm:$0xff]
  %v80 = vld [vmem:[%s1 + $0xd0] sm:$0xff]
  %v81 = vld [vmem:[%s1 + $0xd8] sm:$0xff]
  %v82 = vld [vmem:[%s1 + $0xe0] sm:$0xff]
  %v83 = vld [vmem:[%s1 + $0xe8] sm:$0xff]
  %v84 = vld [vmem:[%s1 + $0xf0] sm:$0xff]
  %v85 = vld [vmem:[%s1 + $0xf8] sm:$0xff]
  %v90 = vunpack.c.l.b16 %v50
  %v91 = vunpack.c.l.b16 %v51
  %v92 = vunpack.c.l.b16 %v52
  %v93 = vunpack.c.l.b16 %v53
  %v94 = vpack.c.b16 %v91, %v90
  %v95 = vpack.c.b16 %v93, %v92
  %v130 = vunpack.c.l.b16 %v54
  %v131 = vunpack.c.h.b16 %v54
  %v132 = vunpack.c.l.b16 %v55
  %v133 = vunpack.c.h.b16 %v55
  %v134 = vunpack.c.l.b16 %v56
  %v135 = vunpack.c.h.b16 %v56
  %v136 = vunpack.c.l.b16 %v57
  %v137 = vunpack.c.h.b16 %v57
  %v138 = vunpack.c.l.b16 %v58
  %v139 = vunpack.c.h.b16 %v58
  %v140 = vunpack.c.l.b16 %v59
  %v141 = vunpack.c.h.b16 %v59
  %v142 = vunpack.c.l.b16 %v60
  %v143 = vunpack.c.h.b16 %v60
  %v144 = vunpack.c.l.b16 %v61
  %v145 = vunpack.c.h.b16 %v61
  %v146 = vunpack.c.l.b16 %v62
  %v147 = vunpack.c.h.b16 %v62
  %v148 = vunpack.c.l.b16 %v63
  %v149 = vunpack.c.h.b16 %v63
  %v150 = vunpack.c.l.b16 %v64
  %v151 = vunpack.c.h.b16 %v64
  %v152 = vunpack.c.l.b16 %v65
  %v153 = vunpack.c.h.b16 %v65
  %v154 = vunpack.c.l.b16 %v66
  %v155 = vunpack.c.h.b16 %v66
  %v156 = vunpack.c.l.b16 %v67
  %v157 = vunpack.c.h.b16 %v67
  %v158 = vunpack.c.l.b16 %v68
  %v159 = vunpack.c.h.b16 %v68
  %v160 = vunpack.c.l.b16 %v69
  %v161 = vunpack.c.h.b16 %v69
  %v162 = vunpack.c.l.b16 %v70
  %v163 = vunpack.c.h.b16 %v70
  %v164 = vunpack.c.l.b16 %v71
  %v165 = vunpack.c.h.b16 %v71
  %v166 = vunpack.c.l.b16 %v72
  %v167 = vunpack.c.h.b16 %v72
  %v168 = vunpack.c.l.b16 %v73
  %v169 = vunpack.c.h.b16 %v73
  %v170 = vunpack.c.l.b16 %v74
  %v171 = vunpack.c.h.b16 %v74
  %v172 = vunpack.c.l.b16 %v75
  %v173 = vunpack.c.h.b16 %v75
  %v174 = vunpack.c.l.b16 %v76
  %v175 = vunpack.c.h.b16 %v76
  %v176 = vunpack.c.l.b16 %v77
  %v177 = vunpack.c.h.b16 %v77
  %v178 = vunpack.c.l.b16 %v78
  %v179 = vunpack.c.h.b16 %v78
  %v180 = vunpack.c.l.b16 %v79
  %v181 = vunpack.c.h.b16 %v79
  %v182 = vunpack.c.l.b16 %v80
  %v183 = vunpack.c.h.b16 %v80
  %v184 = vunpack.c.l.b16 %v81
  %v185 = vunpack.c.h.b16 %v81
  %v186 = vunpack.c.l.b16 %v82
  %v187 = vunpack.c.h.b16 %v82
  %v188 = vunpack.c.l.b16 %v83
  %v189 = vunpack.c.h.b16 %v83
  %v190 = vunpack.c.l.b16 %v84
  %v191 = vunpack.c.h.b16 %v84
  %v192 = vunpack.c.l.b16 %v85
  %v193 = vunpack.c.h.b16 %v85
  %v194 = vpack.c.b16 %v134, %v130
  %v195 = vpack.c.b16 %v135, %v131
  %v196 = vpack.c.b16 %v136, %v132
  %v197 = vpack.c.b16 %v137, %v133
  %v198 = vpack.c.b16 %v142, %v138
  %v199 = vpack.c.b16 %v143, %v139
  %v200 = vpack.c.b16 %v144, %v140
  %v201 = vpack.c.b16 %v145, %v141
  %v202 = vpack.c.b16 %v150, %v146
  %v203 = vpack.c.b16 %v151, %v147
  %v204 = vpack.c.b16 %v152, %v148
  %v205 = vpack.c.b16 %v153, %v149
  %v206 = vpack.c.b16 %v158, %v154
  %v207 = vpack.c.b16 %v159, %v155
  %v208 = vpack.c.b16 %v160, %v156
  %v209 = vpack.c.b16 %v161, %v157
  %v210 = vpack.c.b16 %v166, %v162
  %v211 = vpack.c.b16 %v167, %v163
  %v212 = vpack.c.b16 %v168, %v164
  %v213 = vpack.c.b16 %v169, %v165
  %v214 = vpack.c.b16 %v174, %v170
  %v215 = vpack.c.b16 %v175, %v171
  %v216 = vpack.c.b16 %v176, %v172
  %v217 = vpack.c.b16 %v177, %v173
  %v218 = vpack.c.b16 %v182, %v178
  %v219 = vpack.c.b16 %v183, %v179
  %v220 = vpack.c.b16 %v184, %v180
  %v221 = vpack.c.b16 %v185, %v181
  %v222 = vpack.c.b16 %v190, %v186
  %v223 = vpack.c.b16 %v191, %v187
  %v224 = vpack.c.b16 %v192, %v188
  %v225 = vpack.c.b16 %v193, %v189
  %258 = vmatpush.bf16.msra.mxu0 %v222
  %259 = vmatpush.bf16.msra.mxu0 %v218
  %260 = vmatpush.bf16.msra.mxu0 %v214
  %261 = vmatpush.bf16.msra.mxu0 %v210
  %262 = vmatpush.bf16.msra.mxu0 %v206
  %263 = vmatpush.bf16.msra.mxu0 %v202
  %264 = vmatpush.bf16.msra.mxu0 %v198
  %265 = vmatpush.bf16.msra.mxu0 %v194
  %266 = vmatmul.bf16.gmra.mxu0 %v94
  %v267 = vpop.f32.mrf.mxu0
  %v268 = vadd.f32 0.0, %v267
  %v269 = vpop.f32.mrf.mxu0
  %v270 = vadd.f32 0.0, %v269
  %271 = vmatmul.bf16.gmra.mxu0 %v95
  %v272 = vpop.f32.mrf.mxu0
  %v273 = vadd.f32 0.0, %v272
  %v274 = vpop.f32.mrf.mxu0
  %v275 = vadd.f32 0.0, %v274
  %276 = vdwg.mxu0
  %277 = vmatpush.bf16.msra.mxu0 %v223
  %278 = vmatpush.bf16.msra.mxu0 %v219
  %279 = vmatpush.bf16.msra.mxu0 %v215
  %280 = vmatpush.bf16.msra.mxu0 %v211
  %281 = vmatpush.bf16.msra.mxu0 %v207
  %282 = vmatpush.bf16.msra.mxu0 %v203
  %283 = vmatpush.bf16.msra.mxu0 %v199
  %284 = vmatpush.bf16.msra.mxu0 %v195
  %285 = vmatmul.bf16.gmra.mxu0 %v94
  %v286 = vpop.f32.mrf.mxu0
  %v287 = vadd.f32 0.0, %v286
  %v288 = vpop.f32.mrf.mxu0
  %v289 = vadd.f32 0.0, %v288
  %290 = vmatmul.bf16.gmra.mxu0 %v95
  %v291 = vpop.f32.mrf.mxu0
  %v292 = vadd.f32 0.0, %v291
  %v293 = vpop.f32.mrf.mxu0
  %v294 = vadd.f32 0.0, %v293
  %295 = vdwg.mxu0
  %296 = vmatpush.bf16.msra.mxu0 %v224
  %297 = vmatpush.bf16.msra.mxu0 %v220
  %298 = vmatpush.bf16.msra.mxu0 %v216
  %299 = vmatpush.bf16.msra.mxu0 %v212
  %300 = vmatpush.bf16.msra.mxu0 %v208
  %301 = vmatpush.bf16.msra.mxu0 %v204
  %302 = vmatpush.bf16.msra.mxu0 %v200
  %303 = vmatpush.bf16.msra.mxu0 %v196
  %304 = vmatmul.bf16.gmra.mxu0 %v94
  %v305 = vpop.f32.mrf.mxu0
  %v306 = vadd.f32 0.0, %v305
  %v307 = vpop.f32.mrf.mxu0
  %v308 = vadd.f32 0.0, %v307
  %309 = vmatmul.bf16.gmra.mxu0 %v95
  %v310 = vpop.f32.mrf.mxu0
  %v311 = vadd.f32 0.0, %v310
  %v312 = vpop.f32.mrf.mxu0
  %v313 = vadd.f32 0.0, %v312
  %314 = vdwg.mxu0
  %315 = vmatpush.bf16.msra.mxu0 %v225
  %316 = vmatpush.bf16.msra.mxu0 %v221
  %317 = vmatpush.bf16.msra.mxu0 %v217
  %318 = vmatpush.bf16.msra.mxu0 %v213
  %319 = vmatpush.bf16.msra.mxu0 %v209
  %320 = vmatpush.bf16.msra.mxu0 %v205
  %321 = vmatpush.bf16.msra.mxu0 %v201
  %322 = vmatpush.bf16.msra.mxu0 %v197
  %323 = vmatmul.bf16.gmra.mxu0 %v94
  %v324 = vpop.f32.mrf.mxu0
  %v325 = vadd.f32 0.0, %v324
  %v326 = vpop.f32.mrf.mxu0
  %v327 = vadd.f32 0.0, %v326
  %328 = vmatmul.bf16.gmra.mxu0 %v95
  %v329 = vpop.f32.mrf.mxu0
  %v330 = vadd.f32 0.0, %v329
  %v331 = vpop.f32.mrf.mxu0
  %v332 = vadd.f32 0.0, %v331
  %333 = vdwg.mxu0
  %v334 = vadd.f32 %v34, %v268
  %v335 = vadd.f32 %v35, %v287
  %v336 = vadd.f32 %v36, %v306
  %v337 = vadd.f32 %v37, %v325
  %v338 = vadd.f32 %v38, %v270
  %v339 = vadd.f32 %v39, %v289
  %v340 = vadd.f32 %v40, %v308
  %v341 = vadd.f32 %v41, %v327
  %v342 = vadd.f32 %v42, %v273
  %v343 = vadd.f32 %v43, %v292
  %v344 = vadd.f32 %v44, %v311
  %v345 = vadd.f32 %v45, %v330
  %v346 = vadd.f32 %v46, %v275
  %v347 = vadd.f32 %v47, %v294
  %v348 = vadd.f32 %v48, %v313
  %v349 = vadd.f32 %v49, %v332
  %350 = vst [vmem:[#allocation2] sm:$0xff] %v334
  %351 = vst [vmem:[#allocation2 + $0x8] sm:$0xff] %v335
  %352 = vst [vmem:[#allocation2 + $0x10] sm:$0xff] %v336
  %353 = vst [vmem:[#allocation2 + $0x18] sm:$0xff] %v337
  %354 = vst [vmem:[#allocation2 + $0x20] sm:$0xff] %v338
  %355 = vst [vmem:[#allocation2 + $0x28] sm:$0xff] %v339
  %356 = vst [vmem:[#allocation2 + $0x30] sm:$0xff] %v340
  %357 = vst [vmem:[#allocation2 + $0x38] sm:$0xff] %v341
  %358 = vst [vmem:[#allocation2 + $0x40] sm:$0xff] %v342
  %359 = vst [vmem:[#allocation2 + $0x48] sm:$0xff] %v343
  %360 = vst [vmem:[#allocation2 + $0x50] sm:$0xff] %v344
  %361 = vst [vmem:[#allocation2 + $0x58] sm:$0xff] %v345
  %362 = vst [vmem:[#allocation2 + $0x60] sm:$0xff] %v346
  %363 = vst [vmem:[#allocation2 + $0x68] sm:$0xff] %v347
  %364 = vst [vmem:[#allocation2 + $0x70] sm:$0xff] %v348
  %365 = vst [vmem:[#allocation2 + $0x78] sm:$0xff] %v349
  // Predicated region
  $region18: #{lazy_vae_forward.6} parent=0 // pred_check
    %p366 = pneg %p14
  $region19: #{lazy_vae_forward.6} parent=0 // pred_check_branch
    %368 = sbr.rel (%p366) target = $region21
  $region20: #{lazy_vae_forward.6} parent=0 // pred_region
    %v369 = vld [vmem:[#allocation2] sm:$0xff]
    %v370 = vld [vmem:[#allocation2 + $0x8] sm:$0xff]
    %v371 = vld [vmem:[#allocation2 + $0x10] sm:$0xff]
    %v372 = vld [vmem:[#allocation2 + $0x18] sm:$0xff]
    %v373 = vld [vmem:[#allocation2 + $0x20] sm:$0xff]
    %v374 = vld [vmem:[#allocation2 + $0x28] sm:$0xff]
    %v375 = vld [vmem:[#allocation2 + $0x30] sm:$0xff]
    %v376 = vld [vmem:[#allocation2 + $0x38] sm:$0xff]
    %v377 = vld [vmem:[#allocation2 + $0x40] sm:$0xff]
    %v378 = vld [vmem:[#allocation2 + $0x48] sm:$0xff]
    %v379 = vld [vmem:[#allocation2 + $0x50] sm:$0xff]
    %v380 = vld [vmem:[#allocation2 + $0x58] sm:$0xff]
    %v381 = vld [vmem:[#allocation2 + $0x60] sm:$0xff]
    %v382 = vld [vmem:[#allocation2 + $0x68] sm:$0xff]
    %v383 = vld [vmem:[#allocation2 + $0x70] sm:$0xff]
    %v384 = vld [vmem:[#allocation2 + $0x78] sm:$0xff]
    %v385 = vld [vmem:[%s2] sm:$0xff]
    %v386 = vld [vmem:[%s2 + $0x8] sm:$0xff]
    %v387 = vld [vmem:[%s2 + $0x10] sm:$0xff]
    %v388 = vld [vmem:[%s2 + $0x18] sm:$0xff]
    %390 = vset.pattern.permute.xlu0 0
    %391 = vperm.xlu0 %390, %v385
    %v392 = vpop.permute.xlu0 %391
    %395 = vset.pattern.permute.xlu0 0
    %396 = vperm.xlu0 %395, %v386
    %v397 = vpop.permute.xlu0 %396
    %400 = vset.pattern.permute.xlu0 0
    %401 = vperm.xlu0 %400, %v387
    %v402 = vpop.permute.xlu0 %401
    %405 = vset.pattern.permute.xlu0 0
    %406 = vperm.xlu0 %405, %v388
    %v407 = vpop.permute.xlu0 %406
    %v409 = vadd.f32 %v369, %v392
    %v410 = vadd.f32 %v370, %v392
    %v411 = vadd.f32 %v371, %v392
    %v412 = vadd.f32 %v372, %v392
    %v413 = vadd.f32 %v373, %v397
    %v414 = vadd.f32 %v374, %v397
    %v415 = vadd.f32 %v375, %v397
    %v416 = vadd.f32 %v376, %v397
    %v417 = vadd.f32 %v377, %v402
    %v418 = vadd.f32 %v378, %v402
    %v419 = vadd.f32 %v379, %v402
    %v420 = vadd.f32 %v380, %v402
    %v421 = vadd.f32 %v381, %v407
    %v422 = vadd.f32 %v382, %v407
    %v423 = vadd.f32 %v383, %v407
    %v424 = vadd.f32 %v384, %v407
    %v425 = vmax.f32 %v409, 0.0
    %v426 = vmax.f32 %v410, 0.0
    %v427 = vmax.f32 %v411, 0.0
    %v428 = vmax.f32 %v412, 0.0
    %v429 = vmax.f32 %v413, 0.0
    %v430 = vmax.f32 %v414, 0.0
    %v431 = vmax.f32 %v415, 0.0
    %v432 = vmax.f32 %v416, 0.0
    %v433 = vmax.f32 %v417, 0.0
    %v434 = vmax.f32 %v418, 0.0
    %v435 = vmax.f32 %v419, 0.0
    %v436 = vmax.f32 %v420, 0.0
    %v437 = vmax.f32 %v421, 0.0
    %v438 = vmax.f32 %v422, 0.0
    %v439 = vmax.f32 %v423, 0.0
    %v440 = vmax.f32 %v424, 0.0
    %v441 = vpack.c.bf16 %v426, %v425
    %v442 = vpack.c.bf16 %v428, %v427
    %v443 = vpack.c.bf16 %v430, %v429
    %v444 = vpack.c.bf16 %v432, %v431
    %v445 = vpack.c.bf16 %v434, %v433
    %v446 = vpack.c.bf16 %v436, %v435
    %v447 = vpack.c.bf16 %v438, %v437
    %v448 = vpack.c.bf16 %v440, %v439
    %449 = vst [vmem:[%s3] sm:$0xff] %v441
    %450 = vst [vmem:[%s3 + $0x8] sm:$0xff] %v442
    %451 = vst [vmem:[%s3 + $0x10] sm:$0xff] %v443
    %452 = vst [vmem:[%s3 + $0x18] sm:$0xff] %v444
    %453 = vst [vmem:[%s3 + $0x20] sm:$0xff] %v445
    %454 = vst [vmem:[%s3 + $0x28] sm:$0xff] %v446
    %455 = vst [vmem:[%s3 + $0x30] sm:$0xff] %v447
    %456 = vst [vmem:[%s3 + $0x38] sm:$0xff] %v448
  $region21: #{lazy_vae_forward.6} parent=0 // pred_fallthru
    _
  // Predicated region
  $region22: #{lazy_vae_forward.6} parent=0 // pred_check
    _
  $region23: #{lazy_vae_forward.6} parent=0 // pred_check_branch
    %458 = sbr.rel (0) target = $region25
  $region24: #{lazy_vae_forward.6} parent=0 // pred_region
    _
  $region25: #{lazy_vae_forward.6} parent=0 // pred_fallthru
    _
  // Predicated region
  $region26: #{lazy_vae_forward.6} parent=0 // pred_check
    _
  $region27: #{lazy_vae_forward.6} parent=0 // pred_check_branch
    %460 = sbr.rel (0) target = $region29
  $region28: #{lazy_vae_forward.6} parent=0 // pred_region
    _
  $region29: #{lazy_vae_forward.6} parent=0 // pred_fallthru
    _

// kernel: lazy_vae_forward.7
$region0: #{lazy_vae_forward.7}
  #allocation0 [shape = 'u32[]', space=smem, size = 0x4, offset = 0x4, fixed_abs, tag = 'smem constant byte address 0x4 - core index']
  #allocation1 [shape = 'u32[72,128]{1,0:T(1,128)}', space=vmem, size = 0x9000, scoped, tag = 'internal scratch']
  #allocation2 [shape = 'f32[64,128]{1,0:T(8,128)}', space=vmem, size = 0x8000, scoped, tag = 'scratch operand']
  %s0 = inlined_call_operand.vmem [shape: bf16[1,64,512], index: 0, kind: input, shape index: {}]
  %s1 = inlined_call_operand.vmem [shape: bf16[1,512,128], index: 1, kind: input, shape index: {}]
  %s2 = inlined_call_operand.vmem [shape: f32[1,64,1], index: 2, kind: input, shape index: {}]
  %s3 = inlined_call_operand.vmem [shape: bf16[1,64,128], index: 3, kind: output, shape index: {}]
  %s4 = sld [smem:[#allocation0]]
  $region30: #{lazy_vae_forward.7} parent=0
    _
  %s6 = ssub.s32 1, %s4
  %s7 = scalar_select 0, %s6, %s4
  // Predicated region
  $region2: #{lazy_vae_forward.7} parent=0 // pred_check
    _
  $region3: #{lazy_vae_forward.7} parent=0 // pred_check_branch
    %9 = sbr.rel (0) target = $region5
  $region4: #{lazy_vae_forward.7} parent=0 // pred_region
    _
  $region5: #{lazy_vae_forward.7} parent=0 // pred_fallthru
    _
  // Predicated region
  $region6: #{lazy_vae_forward.7} parent=0 // pred_check
    _
  $region7: #{lazy_vae_forward.7} parent=0 // pred_check_branch
    %11 = sbr.rel (0) target = $region9
  $region8: #{lazy_vae_forward.7} parent=0 // pred_region
    _
  $region9: #{lazy_vae_forward.7} parent=0 // pred_fallthru
    _
  // Predicated region
  $region10: #{lazy_vae_forward.7} parent=0 // pred_check
    _
  $region11: #{lazy_vae_forward.7} parent=0 // pred_check_branch
    %13 = sbr.rel (0) target = $region13
  $region12: #{lazy_vae_forward.7} parent=0 // pred_region
    _
  $region13: #{lazy_vae_forward.7} parent=0 // pred_fallthru
    _
  %p14 = scmp.eq.s32.totalorder 0, 0
  // Predicated region
  $region14: #{lazy_vae_forward.7} parent=0 // pred_check
    %p15 = pneg %p14
  $region15: #{lazy_vae_forward.7} parent=0 // pred_check_branch
    %17 = sbr.rel (%p15) target = $region17
  $region16: #{lazy_vae_forward.7} parent=0 // pred_region
    %18 = vst [vmem:[#allocation2] sm:$0xff] 0.0
    %19 = vst [vmem:[#allocation2 + $0x8] sm:$0xff] 0.0
    %20 = vst [vmem:[#allocation2 + $0x10] sm:$0xff] 0.0
    %21 = vst [vmem:[#allocation2 + $0x18] sm:$0xff] 0.0
    %22 = vst [vmem:[#allocation2 + $0x20] sm:$0xff] 0.0
    %23 = vst [vmem:[#allocation2 + $0x28] sm:$0xff] 0.0
    %24 = vst [vmem:[#allocation2 + $0x30] sm:$0xff] 0.0
    %25 = vst [vmem:[#allocation2 + $0x38] sm:$0xff] 0.0
  $region17: #{lazy_vae_forward.7} parent=0 // pred_fallthru
    _
  %v26 = vld [vmem:[#allocation2] sm:$0xff]
  %v27 = vld [vmem:[#allocation2 + $0x8] sm:$0xff]
  %v28 = vld [vmem:[#allocation2 + $0x10] sm:$0xff]
  %v29 = vld [vmem:[#allocation2 + $0x18] sm:$0xff]
  %v30 = vld [vmem:[#allocation2 + $0x20] sm:$0xff]
  %v31 = vld [vmem:[#allocation2 + $0x28] sm:$0xff]
  %v32 = vld [vmem:[#allocation2 + $0x30] sm:$0xff]
  %v33 = vld [vmem:[#allocation2 + $0x38] sm:$0xff]
  %v34 = vld [vmem:[%s0] sm:$0xff]
  %v35 = vld [vmem:[%s0 + $0x8] sm:$0xff]
  %v36 = vld [vmem:[%s0 + $0x10] sm:$0xff]
  %v37 = vld [vmem:[%s0 + $0x18] sm:$0xff]
  %v38 = vld [vmem:[%s0 + $0x20] sm:$0xff]
  %v39 = vld [vmem:[%s0 + $0x28] sm:$0xff]
  %v40 = vld [vmem:[%s0 + $0x30] sm:$0xff]
  %v41 = vld [vmem:[%s0 + $0x38] sm:$0xff]
  %v42 = vld [vmem:[%s0 + $0x40] sm:$0xff]
  %v43 = vld [vmem:[%s0 + $0x48] sm:$0xff]
  %v44 = vld [vmem:[%s0 + $0x50] sm:$0xff]
  %v45 = vld [vmem:[%s0 + $0x58] sm:$0xff]
  %v46 = vld [vmem:[%s0 + $0x60] sm:$0xff]
  %v47 = vld [vmem:[%s0 + $0x68] sm:$0xff]
  %v48 = vld [vmem:[%s0 + $0x70] sm:$0xff]
  %v49 = vld [vmem:[%s0 + $0x78] sm:$0xff]
  %v50 = vld [vmem:[%s1] sm:$0xf]
  %v51 = vld [vmem:[%s1 + $0x4] sm:$0xf]
  %v52 = vld [vmem:[%s1 + $0x8] sm:$0xf]
  %v53 = vld [vmem:[%s1 + $0xc] sm:$0xf]
  %v54 = vld [vmem:[%s1 + $0x10] sm:$0xf]
  %v55 = vld [vmem:[%s1 + $0x14] sm:$0xf]
  %v56 = vld [vmem:[%s1 + $0x18] sm:$0xf]
  %v57 = vld [vmem:[%s1 + $0x1c] sm:$0xf]
  %v58 = vld [vmem:[%s1 + $0x20] sm:$0xf]
  %v59 = vld [vmem:[%s1 + $0x24] sm:$0xf]
  %v60 = vld [vmem:[%s1 + $0x28] sm:$0xf]
  %v61 = vld [vmem:[%s1 + $0x2c] sm:$0xf]
  %v62 = vld [vmem:[%s1 + $0x30] sm:$0xf]
  %v63 = vld [vmem:[%s1 + $0x34] sm:$0xf]
  %v64 = vld [vmem:[%s1 + $0x38] sm:$0xf]
  %v65 = vld [vmem:[%s1 + $0x3c] sm:$0xf]
  %v66 = vld [vmem:[%s1 + $0x40] sm:$0xf]
  %v67 = vld [vmem:[%s1 + $0x44] sm:$0xf]
  %v68 = vld [vmem:[%s1 + $0x48] sm:$0xf]
  %v69 = vld [vmem:[%s1 + $0x4c] sm:$0xf]
  %v70 = vld [vmem:[%s1 + $0x50] sm:$0xf]
  %v71 = vld [vmem:[%s1 + $0x54] sm:$0xf]
  %v72 = vld [vmem:[%s1 + $0x58] sm:$0xf]
  %v73 = vld [vmem:[%s1 + $0x5c] sm:$0xf]
  %v74 = vld [vmem:[%s1 + $0x60] sm:$0xf]
  %v75 = vld [vmem:[%s1 + $0x64] sm:$0xf]
  %v76 = vld [vmem:[%s1 + $0x68] sm:$0xf]
  %v77 = vld [vmem:[%s1 + $0x6c] sm:$0xf]
  %v78 = vld [vmem:[%s1 + $0x70] sm:$0xf]
  %v79 = vld [vmem:[%s1 + $0x74] sm:$0xf]
  %v80 = vld [vmem:[%s1 + $0x78] sm:$0xf]
  %v81 = vld [vmem:[%s1 + $0x7c] sm:$0xf]
  %v82 = vld [vmem:[%s1 + $0x80] sm:$0xf]
  %v83 = vld [vmem:[%s1 + $0x84] sm:$0xf]
  %v84 = vld [vmem:[%s1 + $0x88] sm:$0xf]
  %v85 = vld [vmem:[%s1 + $0x8c] sm:$0xf]
  %v86 = vld [vmem:[%s1 + $0x90] sm:$0xf]
  %v87 = vld [vmem:[%s1 + $0x94] sm:$0xf]
  %v88 = vld [vmem:[%s1 + $0x98] sm:$0xf]
  %v89 = vld [vmem:[%s1 + $0x9c] sm:$0xf]
  %v90 = vld [vmem:[%s1 + $0xa0] sm:$0xf]
  %v91 = vld [vmem:[%s1 + $0xa4] sm:$0xf]
  %v92 = vld [vmem:[%s1 + $0xa8] sm:$0xf]
  %v93 = vld [vmem:[%s1 + $0xac] sm:$0xf]
  %v94 = vld [vmem:[%s1 + $0xb0] sm:$0xf]
  %v95 = vld [vmem:[%s1 + $0xb4] sm:$0xf]
  %v96 = vld [vmem:[%s1 + $0xb8] sm:$0xf]
  %v97 = vld [vmem:[%s1 + $0xbc] sm:$0xf]
  %v98 = vld [vmem:[%s1 + $0xc0] sm:$0xf]
  %v99 = vld [vmem:[%s1 + $0xc4] sm:$0xf]
  %v100 = vld [vmem:[%s1 + $0xc8] sm:$0xf]
  %v101 = vld [vmem:[%s1 + $0xcc] sm:$0xf]
  %v102 = vld [vmem:[%s1 + $0xd0] sm:$0xf]
  %v103 = vld [vmem:[%s1 + $0xd4] sm:$0xf]
  %v104 = vld [vmem:[%s1 + $0xd8] sm:$0xf]
  %v105 = vld [vmem:[%s1 + $0xdc] sm:$0xf]
  %v106 = vld [vmem:[%s1 + $0xe0] sm:$0xf]
  %v107 = vld [vmem:[%s1 + $0xe4] sm:$0xf]
  %v108 = vld [vmem:[%s1 + $0xe8] sm:$0xf]
  %v109 = vld [vmem:[%s1 + $0xec] sm:$0xf]
  %v110 = vld [vmem:[%s1 + $0xf0] sm:$0xf]
  %v111 = vld [vmem:[%s1 + $0xf4] sm:$0xf]
  %v112 = vld [vmem:[%s1 + $0xf8] sm:$0xf]
  %v113 = vld [vmem:[%s1 + $0xfc] sm:$0xf]
  %v130 = vunpack.c.l.b16 %v34
  %v131 = vunpack.c.h.b16 %v34
  %v132 = vunpack.c.l.b16 %v35
  %v133 = vunpack.c.h.b16 %v35
  %v134 = vunpack.c.l.b16 %v36
  %v135 = vunpack.c.h.b16 %v36
  %v136 = vunpack.c.l.b16 %v37
  %v137 = vunpack.c.h.b16 %v37
  %v138 = vunpack.c.l.b16 %v38
  %v139 = vunpack.c.h.b16 %v38
  %v140 = vunpack.c.l.b16 %v39
  %v141 = vunpack.c.h.b16 %v39
  %v142 = vunpack.c.l.b16 %v40
  %v143 = vunpack.c.h.b16 %v40
  %v144 = vunpack.c.l.b16 %v41
  %v145 = vunpack.c.h.b16 %v41
  %v146 = vunpack.c.l.b16 %v42
  %v147 = vunpack.c.h.b16 %v42
  %v148 = vunpack.c.l.b16 %v43
  %v149 = vunpack.c.h.b16 %v43
  %v150 = vunpack.c.l.b16 %v44
  %v151 = vunpack.c.h.b16 %v44
  %v152 = vunpack.c.l.b16 %v45
  %v153 = vunpack.c.h.b16 %v45
  %v154 = vunpack.c.l.b16 %v46
  %v155 = vunpack.c.h.b16 %v46
  %v156 = vunpack.c.l.b16 %v47
  %v157 = vunpack.c.h.b16 %v47
  %v158 = vunpack.c.l.b16 %v48
  %v159 = vunpack.c.h.b16 %v48
  %v160 = vunpack.c.l.b16 %v49
  %v161 = vunpack.c.h.b16 %v49
  %v162 = vpack.c.b16 %v134, %v130
  %v163 = vpack.c.b16 %v135, %v131
  %v164 = vpack.c.b16 %v136, %v132
  %v165 = vpack.c.b16 %v137, %v133
  %v166 = vpack.c.b16 %v142, %v138
  %v167 = vpack.c.b16 %v143, %v139
  %v168 = vpack.c.b16 %v144, %v140
  %v169 = vpack.c.b16 %v145, %v141
  %v170 = vpack.c.b16 %v150, %v146
  %v171 = vpack.c.b16 %v151, %v147
  %v172 = vpack.c.b16 %v152, %v148
  %v173 = vpack.c.b16 %v153, %v149
  %v174 = vpack.c.b16 %v158, %v154
  %v175 = vpack.c.b16 %v159, %v155
  %v176 = vpack.c.b16 %v160, %v156
  %v177 = vpack.c.b16 %v161, %v157
  %v258 = vunpack.c.l.b16 %v50
  %v259 = vunpack.c.l.b16 %v51
  %v260 = vunpack.c.l.b16 %v52
  %v261 = vunpack.c.l.b16 %v53
  %v262 = vunpack.c.l.b16 %v54
  %v263 = vunpack.c.l.b16 %v55
  %v264 = vunpack.c.l.b16 %v56
  %v265 = vunpack.c.l.b16 %v57
  %v266 = vunpack.c.l.b16 %v58
  %v267 = vunpack.c.l.b16 %v59
  %v268 = vunpack.c.l.b16 %v60
  %v269 = vunpack.c.l.b16 %v61
  %v270 = vunpack.c.l.b16 %v62
  %v271 = vunpack.c.l.b16 %v63
  %v272 = vunpack.c.l.b16 %v64
  %v273 = vunpack.c.l.b16 %v65
  %v274 = vunpack.c.l.b16 %v66
  %v275 = vunpack.c.l.b16 %v67
  %v276 = vunpack.c.l.b16 %v68
  %v277 = vunpack.c.l.b16 %v69
  %v278 = vunpack.c.l.b16 %v70
  %v279 = vunpack.c.l.b16 %v71
  %v280 = vunpack.c.l.b16 %v72
  %v281 = vunpack.c.l.b16 %v73
  %v282 = vunpack.c.l.b16 %v74
  %v283 = vunpack.c.l.b16 %v75
  %v284 = vunpack.c.l.b16 %v76
  %v285 = vunpack.c.l.b16 %v77
  %v286 = vunpack.c.l.b16 %v78
  %v287 = vunpack.c.l.b16 %v79
  %v288 = vunpack.c.l.b16 %v80
  %v289 = vunpack.c.l.b16 %v81
  %v290 = vunpack.c.l.b16 %v82
  %v291 = vunpack.c.l.b16 %v83
  %v292 = vunpack.c.l.b16 %v84
  %v293 = vunpack.c.l.b16 %v85
  %v294 = vunpack.c.l.b16 %v86
  %v295 = vunpack.c.l.b16 %v87
  %v296 = vunpack.c.l.b16 %v88
  %v297 = vunpack.c.l.b16 %v89
  %v298 = vunpack.c.l.b16 %v90
  %v299 = vunpack.c.l.b16 %v91
  %v300 = vunpack.c.l.b16 %v92
  %v301 = vunpack.c.l.b16 %v93
  %v302 = vunpack.c.l.b16 %v94
  %v303 = vunpack.c.l.b16 %v95
  %v304 = vunpack.c.l.b16 %v96
  %v305 = vunpack.c.l.b16 %v97
  %v306 = vunpack.c.l.b16 %v98
  %v307 = vunpack.c.l.b16 %v99
  %v308 = vunpack.c.l.b16 %v100
  %v309 = vunpack.c.l.b16 %v101
  %v310 = vunpack.c.l.b16 %v102
  %v311 = vunpack.c.l.b16 %v103
  %v312 = vunpack.c.l.b16 %v104
  %v313 = vunpack.c.l.b16 %v105
  %v314 = vunpack.c.l.b16 %v106
  %v315 = vunpack.c.l.b16 %v107
  %v316 = vunpack.c.l.b16 %v108
  %v317 = vunpack.c.l.b16 %v109
  %v318 = vunpack.c.l.b16 %v110
  %v319 = vunpack.c.l.b16 %v111
  %v320 = vunpack.c.l.b16 %v112
  %v321 = vunpack.c.l.b16 %v113
  %v322 = vpack.c.b16 %v259, %v258
  %v323 = vpack.c.b16 %v261, %v260
  %v324 = vpack.c.b16 %v263, %v262
  %v325 = vpack.c.b16 %v265, %v264
  %v326 = vpack.c.b16 %v267, %v266
  %v327 = vpack.c.b16 %v269, %v268
  %v328 = vpack.c.b16 %v271, %v270
  %v329 = vpack.c.b16 %v273, %v272
  %v330 = vpack.c.b16 %v275, %v274
  %v331 = vpack.c.b16 %v277, %v276
  %v332 = vpack.c.b16 %v279, %v278
  %v333 = vpack.c.b16 %v281, %v280
  %v334 = vpack.c.b16 %v283, %v282
  %v335 = vpack.c.b16 %v285, %v284
  %v336 = vpack.c.b16 %v287, %v286
  %v337 = vpack.c.b16 %v289, %v288
  %v338 = vpack.c.b16 %v291, %v290
  %v339 = vpack.c.b16 %v293, %v292
  %v340 = vpack.c.b16 %v295, %v294
  %v341 = vpack.c.b16 %v297, %v296
  %v342 = vpack.c.b16 %v299, %v298
  %v343 = vpack.c.b16 %v301, %v300
  %v344 = vpack.c.b16 %v303, %v302
  %v345 = vpack.c.b16 %v305, %v304
  %v346 = vpack.c.b16 %v307, %v306
  %v347 = vpack.c.b16 %v309, %v308
  %v348 = vpack.c.b16 %v311, %v310
  %v349 = vpack.c.b16 %v313, %v312
  %v350 = vpack.c.b16 %v315, %v314
  %v351 = vpack.c.b16 %v317, %v316
  %v352 = vpack.c.b16 %v319, %v318
  %v353 = vpack.c.b16 %v321, %v320
  %386 = vmatpush.bf16.msra.mxu0 %v329
  %387 = vmatpush.bf16.msra.mxu0 %v328
  %388 = vmatpush.bf16.msra.mxu0 %v327
  %389 = vmatpush.bf16.msra.mxu0 %v326
  %390 = vmatpush.bf16.msra.mxu0 %v325
  %391 = vmatpush.bf16.msra.mxu0 %v324
  %392 = vmatpush.bf16.msra.mxu0 %v323
  %393 = vmatpush.bf16.msra.mxu0 %v322
  %394 = vmatmul.bf16.gmra.mxu0 %v162
  %v395 = vpop.f32.mrf.mxu0
  %v396 = vadd.f32 0.0, %v395
  %v397 = vpop.f32.mrf.mxu0
  %v398 = vadd.f32 0.0, %v397
  %399 = vmatmul.bf16.gmra.mxu0 %v166
  %v400 = vpop.f32.mrf.mxu0
  %v401 = vadd.f32 0.0, %v400
  %v402 = vpop.f32.mrf.mxu0
  %v403 = vadd.f32 0.0, %v402
  %404 = vmatmul.bf16.gmra.mxu0 %v170
  %v405 = vpop.f32.mrf.mxu0
  %v406 = vadd.f32 0.0, %v405
  %v407 = vpop.f32.mrf.mxu0
  %v408 = vadd.f32 0.0, %v407
  %409 = vmatmul.bf16.gmra.mxu0 %v174
  %v410 = vpop.f32.mrf.mxu0
  %v411 = vadd.f32 0.0, %v410
  %v412 = vpop.f32.mrf.mxu0
  %v413 = vadd.f32 0.0, %v412
  %414 = vdwg.mxu0
  %415 = vmatpush.bf16.msra.mxu0 %v337
  %416 = vmatpush.bf16.msra.mxu0 %v336
  %417 = vmatpush.bf16.msra.mxu0 %v335
  %418 = vmatpush.bf16.msra.mxu0 %v334
  %419 = vmatpush.bf16.msra.mxu0 %v333
  %420 = vmatpush.bf16.msra.mxu0 %v332
  %421 = vmatpush.bf16.msra.mxu0 %v331
  %422 = vmatpush.bf16.msra.mxu0 %v330
  %423 = vmatmul.bf16.gmra.mxu0 %v163
  %v424 = vpop.f32.mrf.mxu0
  %v425 = vadd.f32 %v396, %v424
  %v426 = vpop.f32.mrf.mxu0
  %v427 = vadd.f32 %v398, %v426
  %428 = vmatmul.bf16.gmra.mxu0 %v167
  %v429 = vpop.f32.mrf.mxu0
  %v430 = vadd.f32 %v401, %v429
  %v431 = vpop.f32.mrf.mxu0
  %v432 = vadd.f32 %v403, %v431
  %433 = vmatmul.bf16.gmra.mxu0 %v171
  %v434 = vpop.f32.mrf.mxu0
  %v435 = vadd.f32 %v406, %v434
  %v436 = vpop.f32.mrf.mxu0
  %v437 = vadd.f32 %v408, %v436
  %438 = vmatmul.bf16.gmra.mxu0 %v175
  %v439 = vpop.f32.mrf.mxu0
  %v440 = vadd.f32 %v411, %v439
  %v441 = vpop.f32.mrf.mxu0
  %v442 = vadd.f32 %v413, %v441
  %443 = vdwg.mxu0
  %444 = vmatpush.bf16.msra.mxu0 %v345
  %445 = vmatpush.bf16.msra.mxu0 %v344
  %446 = vmatpush.bf16.msra.mxu0 %v343
  %447 = vmatpush.bf16.msra.mxu0 %v342
  %448 = vmatpush.bf16.msra.mxu0 %v341
  %449 = vmatpush.bf16.msra.mxu0 %v340
  %450 = vmatpush.bf16.msra.mxu0 %v339
  %451 = vmatpush.bf16.msra.mxu0 %v338
  %452 = vmatmul.bf16.gmra.mxu0 %v164
  %v453 = vpop.f32.mrf.mxu0
  %v454 = vadd.f32 %v425, %v453
  %v455 = vpop.f32.mrf.mxu0
  %v456 = vadd.f32 %v427, %v455
  %457 = vmatmul.bf16.gmra.mxu0 %v168
  %v458 = vpop.f32.mrf.mxu0
  %v459 = vadd.f32 %v430, %v458
  %v460 = vpop.f32.mrf.mxu0
  %v461 = vadd.f32 %v432, %v460
  %462 = vmatmul.bf16.gmra.mxu0 %v172
  %v463 = vpop.f32.mrf.mxu0
  %v464 = vadd.f32 %v435, %v463
  %v465 = vpop.f32.mrf.mxu0
  %v466 = vadd.f32 %v437, %v465
  %467 = vmatmul.bf16.gmra.mxu0 %v176
  %v468 = vpop.f32.mrf.mxu0
  %v469 = vadd.f32 %v440, %v468
  %v470 = vpop.f32.mrf.mxu0
  %v471 = vadd.f32 %v442, %v470
  %472 = vdwg.mxu0
  %473 = vmatpush.bf16.msra.mxu0 %v353
  %474 = vmatpush.bf16.msra.mxu0 %v352
  %475 = vmatpush.bf16.msra.mxu0 %v351
  %476 = vmatpush.bf16.msra.mxu0 %v350
  %477 = vmatpush.bf16.msra.mxu0 %v349
  %478 = vmatpush.bf16.msra.mxu0 %v348
  %479 = vmatpush.bf16.msra.mxu0 %v347
  %480 = vmatpush.bf16.msra.mxu0 %v346
  %481 = vmatmul.bf16.gmra.mxu0 %v165
  %v482 = vpop.f32.mrf.mxu0
  %v483 = vadd.f32 %v454, %v482
  %v484 = vpop.f32.mrf.mxu0
  %v485 = vadd.f32 %v456, %v484
  %486 = vmatmul.bf16.gmra.mxu0 %v169
  %v487 = vpop.f32.mrf.mxu0
  %v488 = vadd.f32 %v459, %v487
  %v489 = vpop.f32.mrf.mxu0
  %v490 = vadd.f32 %v461, %v489
  %491 = vmatmul.bf16.gmra.mxu0 %v173
  %v492 = vpop.f32.mrf.mxu0
  %v493 = vadd.f32 %v464, %v492
  %v494 = vpop.f32.mrf.mxu0
  %v495 = vadd.f32 %v466, %v494
  %496 = vmatmul.bf16.gmra.mxu0 %v177
  %v497 = vpop.f32.mrf.mxu0
  %v498 = vadd.f32 %v469, %v497
  %v499 = vpop.f32.mrf.mxu0
  %v500 = vadd.f32 %v471, %v499
  %501 = vdwg.mxu0
  %v502 = vadd.f32 %v26, %v483
  %v503 = vadd.f32 %v27, %v485
  %v504 = vadd.f32 %v28, %v488
  %v505 = vadd.f32 %v29, %v490
  %v506 = vadd.f32 %v30, %v493
  %v507 = vadd.f32 %v31, %v495
  %v508 = vadd.f32 %v32, %v498
  %v509 = vadd.f32 %v33, %v500
  %510 = vst [vmem:[#allocation2] sm:$0xff] %v502
  %511 = vst [vmem:[#allocation2 + $0x8] sm:$0xff] %v503
  %512 = vst [vmem:[#allocation2 + $0x10] sm:$0xff] %v504
  %513 = vst [vmem:[#allocation2 + $0x18] sm:$0xff] %v505
  %514 = vst [vmem:[#allocation2 + $0x20] sm:$0xff] %v506
  %515 = vst [vmem:[#allocation2 + $0x28] sm:$0xff] %v507
  %516 = vst [vmem:[#allocation2 + $0x30] sm:$0xff] %v508
  %517 = vst [vmem:[#allocation2 + $0x38] sm:$0xff] %v509
  // Predicated region
  $region18: #{lazy_vae_forward.7} parent=0 // pred_check
    %p518 = pneg %p14
  $region19: #{lazy_vae_forward.7} parent=0 // pred_check_branch
    %520 = sbr.rel (%p518) target = $region21
  $region20: #{lazy_vae_forward.7} parent=0 // pred_region
    %v521 = vld [vmem:[#allocation2] sm:$0xff]
    %v522 = vld [vmem:[#allocation2 + $0x8] sm:$0xff]
    %v523 = vld [vmem:[#allocation2 + $0x10] sm:$0xff]
    %v524 = vld [vmem:[#allocation2 + $0x18] sm:$0xff]
    %v525 = vld [vmem:[#allocation2 + $0x20] sm:$0xff]
    %v526 = vld [vmem:[#allocation2 + $0x28] sm:$0xff]
    %v527 = vld [vmem:[#allocation2 + $0x30] sm:$0xff]
    %v528 = vld [vmem:[#allocation2 + $0x38] sm:$0xff]
    %v529 = vld [vmem:[%s2] sm:$0xff]
    %v530 = vld [vmem:[%s2 + $0x8] sm:$0xff]
    %v531 = vld [vmem:[%s2 + $0x10] sm:$0xff]
    %v532 = vld [vmem:[%s2 + $0x18] sm:$0xff]
    %v533 = vld [vmem:[%s2 + $0x20] sm:$0xff]
    %v534 = vld [vmem:[%s2 + $0x28] sm:$0xff]
    %v535 = vld [vmem:[%s2 + $0x30] sm:$0xff]
    %v536 = vld [vmem:[%s2 + $0x38] sm:$0xff]
    %538 = vset.pattern.permute.xlu0 0
    %539 = vperm.xlu0 %538, %v529
    %v540 = vpop.permute.xlu0 %539
    %543 = vset.pattern.permute.xlu0 0
    %544 = vperm.xlu0 %543, %v530
    %v545 = vpop.permute.xlu0 %544
    %548 = vset.pattern.permute.xlu0 0
    %549 = vperm.xlu0 %548, %v531
    %v550 = vpop.permute.xlu0 %549
    %553 = vset.pattern.permute.xlu0 0
    %554 = vperm.xlu0 %553, %v532
    %v555 = vpop.permute.xlu0 %554
    %558 = vset.pattern.permute.xlu0 0
    %559 = vperm.xlu0 %558, %v533
    %v560 = vpop.permute.xlu0 %559
    %563 = vset.pattern.permute.xlu0 0
    %564 = vperm.xlu0 %563, %v534
    %v565 = vpop.permute.xlu0 %564
    %568 = vset.pattern.permute.xlu0 0
    %569 = vperm.xlu0 %568, %v535
    %v570 = vpop.permute.xlu0 %569
    %573 = vset.pattern.permute.xlu0 0
    %574 = vperm.xlu0 %573, %v536
    %v575 = vpop.permute.xlu0 %574
    %v577 = vadd.f32 %v521, %v540
    %v578 = vadd.f32 %v522, %v545
    %v579 = vadd.f32 %v523, %v550
    %v580 = vadd.f32 %v524, %v555
    %v581 = vadd.f32 %v525, %v560
    %v582 = vadd.f32 %v526, %v565
    %v583 = vadd.f32 %v527, %v570
    %v584 = vadd.f32 %v528, %v575
    %v585 = vmax.f32 %v577, 0.0
    %v586 = vmax.f32 %v578, 0.0
    %v587 = vmax.f32 %v579, 0.0
    %v588 = vmax.f32 %v580, 0.0
    %v589 = vmax.f32 %v581, 0.0
    %v590 = vmax.f32 %v582, 0.0
    %v591 = vmax.f32 %v583, 0.0
    %v592 = vmax.f32 %v584, 0.0
    %v593 = vpack.c.bf16 %v585, %v585
    %v594 = vpack.c.bf16 %v586, %v586
    %v595 = vpack.c.bf16 %v587, %v587
    %v596 = vpack.c.bf16 %v588, %v588
    %v597 = vpack.c.bf16 %v589, %v589
    %v598 = vpack.c.bf16 %v590, %v590
    %v599 = vpack.c.bf16 %v591, %v591
    %v600 = vpack.c.bf16 %v592, %v592
    %601 = vst [vmem:[%s3] sm:$0xf] %v593
    %602 = vst [vmem:[%s3 + $0x4] sm:$0xf] %v594
    %603 = vst [vmem:[%s3 + $0x8] sm:$0xf] %v595
    %604 = vst [vmem:[%s3 + $0xc] sm:$0xf] %v596
    %605 = vst [vmem:[%s3 + $0x10] sm:$0xf] %v597
    %606 = vst [vmem:[%s3 + $0x14] sm:$0xf] %v598
    %607 = vst [vmem:[%s3 + $0x18] sm:$0xf] %v599
    %608 = vst [vmem:[%s3 + $0x1c] sm:$0xf] %v600
  $region21: #{lazy_vae_forward.7} parent=0 // pred_fallthru
    _
  // Predicated region
  $region22: #{lazy_vae_forward.7} parent=0 // pred_check
    _
  $region23: #{lazy_vae_forward.7} parent=0 // pred_check_branch
    %610 = sbr.rel (0) target = $region25
  $region24: #{lazy_vae_forward.7} parent=0 // pred_region
    _
  $region25: #{lazy_vae_forward.7} parent=0 // pred_fallthru
    _
  // Predicated region
  $region26: #{lazy_vae_forward.7} parent=0 // pred_check
    _
  $region27: #{lazy_vae_forward.7} parent=0 // pred_check_branch
    %612 = sbr.rel (0) target = $region29
  $region28: #{lazy_vae_forward.7} parent=0 // pred_region
    _
  $region29: #{lazy_vae_forward.7} parent=0 // pred_fallthru
    _

// kernel: lazy_vae_forward.8
$region0: #{lazy_vae_forward.8}
  #allocation0 [shape = 'u32[]', space=smem, size = 0x4, offset = 0x4, fixed_abs, tag = 'smem constant byte address 0x4 - core index']
  #allocation1 [shape = 'u32[72,128]{1,0:T(1,128)}', space=vmem, size = 0x9000, scoped, tag = 'internal scratch']
  #allocation2 [shape = 'f32[8,256]{1,0:T(8,128)}', space=vmem, size = 0x2000, scoped, tag = 'scratch operand']
  %s0 = inlined_call_operand.vmem [shape: bf16[8,4096], index: 0, kind: input, shape index: {}]
  %s1 = inlined_call_operand.vmem [shape: bf16[4096,256], index: 1, kind: input, shape index: {}]
  %s2 = inlined_call_operand.vmem [shape: f32[1,256], index: 2, kind: input, shape index: {}]
  %s3 = inlined_call_operand.vmem [shape: f32[8,128], index: 3, kind: input, shape index: {}]
  %s4 = inlined_call_operand.vmem [shape: f32[8,128], index: 4, kind: output, shape index: {0}]
  %s5 = inlined_call_operand.vmem [shape: f32[8,128], index: 5, kind: output, shape index: {1}]
  %s6 = inlined_call_operand.vmem [shape: f32[8,128], index: 6, kind: output, shape index: {2}]
  %7 = xla_tuple %s4, %s5, %s6
  %s8 = sld [smem:[#allocation0]]
  $region73: #{lazy_vae_forward.8} parent=0
    _
  %s10 = ssub.s32 1, %s8
  %s11 = scalar_select 0, %s10, %s8
  loop: start=0, step=1, limit=10
  $region2: #{lazy_vae_forward.8} parent=0 // loop_pre_header
    _
  $region3: #{lazy_vae_forward.8} parent=0 // loop_header
    %s13 = sphi 0, %s17
    %p14 = scmp.ge.s32.totalorder %s13, 10
    %s23 = sphi 0, %s25
    %s26 = sphi 0, %s23
    %s27 = sphi 0, %s26
    %s43 = sphi 0, %s27
    %s49 = sphi 0, %s51
    %s52 = sphi 0, %s49
    %s53 = sphi 0, %s52
    %s69 = sphi 0, %s53
    %s73 = sphi 0, %s73
    %s75 = sphi 0, %s73
    %s76 = sphi 0, %s75
    %s90 = sphi 0, %s76
    %s94 = sphi 0, %s94
    %s96 = sphi 0, %s94
    %s97 = sphi 0, %s96
    %s111 = sphi 0, %s97
    %s115 = sphi 0, %s115
    %s117 = sphi 0, %s115
    %s118 = sphi 0, %s117
    %s132 = sphi 0, %s118
    %s136 = sphi 0, %s136
    %s138 = sphi 0, %s136
    %s139 = sphi 0, %s138
    %s153 = sphi 0, %s139
    %s157 = sphi 0, %s157
    %s159 = sphi 0, %s157
    %s160 = sphi 0, %s159
    %s174 = sphi 0, %s160
  $region4: #{lazy_vae_forward.8} parent=0 // loop_header_branch
    %16 = sbr.rel (%p14) target = $region8
  $region5: #{lazy_vae_forward.8} parent=0 // loop_body
    %s18 = ssub.s32 %s13, 1
    %s19 = ssub.s32 %s13, 2
    %s20 = sadd.s32 %s13, 1
    %s21 = ssub.s32 %s13, %s20
    %p22 = scmp.eq.s32.totalorder %s21, 0
    %s24 = sadd.s32 %s23, 1
    %s25 = scalar_select %p22, %s23, %s24
    %p28 = pneg %p22
    %p29 = scmp.eq.s32.totalorder %s13, 7
    %p30 = por %p28, %p29
    %p31 = scmp.ne.s32.totalorder %s23, %s26
    %p32 = scmp.eq.s32.totalorder %s13, 0
    %p33 = por %p31, %p32
    %p34 = scmp.ne.s32.totalorder %s23, %s26
    %p35 = scmp.eq.s32.totalorder %s18, 7
    %p36 = por %p34, %p35
    %p37 = scmp.ne.s32.totalorder %s26, %s27
    %p38 = scmp.eq.s32.totalorder %s18, 0
    %p39 = por %p37, %p38
    %p40 = scmp.ne.s32.totalorder %s26, %s27
    %p41 = scmp.eq.s32.totalorder %s19, 7
    %p42 = por %p40, %p41
    %p44 = scmp.ne.s32.totalorder %s27, %s43
    %p45 = scmp.eq.s32.totalorder %s19, 0
    %p46 = por %p44, %p45
    %s47 = ssub.s32 %s13, %s20
    %p48 = scmp.eq.s32.totalorder %s47, 0
    %s50 = sadd.s32 %s49, 1
    %s51 = scalar_select %p48, %s49, %s50
    %p54 = pneg %p48
    %p55 = scmp.eq.s32.totalorder %s13, 7
    %p56 = por %p54, %p55
    %p57 = scmp.ne.s32.totalorder %s49, %s52
    %p58 = scmp.eq.s32.totalorder %s13, 0
    %p59 = por %p57, %p58
    %p60 = scmp.ne.s32.totalorder %s49, %s52
    %p61 = scmp.eq.s32.totalorder %s18, 7
    %p62 = por %p60, %p61
    %p63 = scmp.ne.s32.totalorder %s52, %s53
    %p64 = scmp.eq.s32.totalorder %s18, 0
    %p65 = por %p63, %p64
    %p66 = scmp.ne.s32.totalorder %s52, %s53
    %p67 = scmp.eq.s32.totalorder %s19, 7
    %p68 = por %p66, %p67
    %p70 = scmp.ne.s32.totalorder %s53, %s69
    %p71 = scmp.eq.s32.totalorder %s19, 0
    %p72 = por %p70, %p71
    %s74 = sadd.s32 %s73, 1
    %p77 = scmp.eq.s32.totalorder %s13, 7
    %p78 = scmp.ne.s32.totalorder %s73, %s75
    %p79 = scmp.eq.s32.totalorder %s13, 0
    %p80 = por %p78, %p79
    %p81 = scmp.ne.s32.totalorder %s73, %s75
    %p82 = scmp.eq.s32.totalorder %s18, 7
    %p83 = por %p81, %p82
    %p84 = scmp.ne.s32.totalorder %s75, %s76
    %p85 = scmp.eq.s32.totalorder %s18, 0
    %p86 = por %p84, %p85
    %p87 = scmp.ne.s32.totalorder %s75, %s76
    %p88 = scmp.eq.s32.totalorder %s19, 7
    %p89 = por %p87, %p88
    %p91 = scmp.ne.s32.totalorder %s76, %s90
    %p92 = scmp.eq.s32.totalorder %s19, 0
    %p93 = por %p91, %p92
    %s95 = sadd.s32 %s94, 1
    %p98 = scmp.eq.s32.totalorder %s13, 7
    %p99 = scmp.ne.s32.totalorder %s94, %s96
    %p100 = scmp.eq.s32.totalorder %s13, 0
    %p101 = por %p99, %p100
    %p102 = scmp.ne.s32.totalorder %s94, %s96
    %p103 = scmp.eq.s32.totalorder %s18, 7
    %p104 = por %p102, %p103
    %p105 = scmp.ne.s32.totalorder %s96, %s97
    %p106 = scmp.eq.s32.totalorder %s18, 0
    %p107 = por %p105, %p106
    %p108 = scmp.ne.s32.totalorder %s96, %s97
    %p109 = scmp.eq.s32.totalorder %s19, 7
    %p110 = por %p108, %p109
    %p112 = scmp.ne.s32.totalorder %s97, %s111
    %p113 = scmp.eq.s32.totalorder %s19, 0
    %p114 = por %p112, %p113
    %s116 = sadd.s32 %s115, 1
    %p119 = scmp.eq.s32.totalorder %s13, 7
    %p120 = scmp.ne.s32.totalorder %s115, %s117
    %p121 = scmp.eq.s32.totalorder %s13, 0
    %p122 = por %p120, %p121
    %p123 = scmp.ne.s32.totalorder %s115, %s117
    %p124 = scmp.eq.s32.totalorder %s18, 7
    %p125 = por %p123, %p124
    %p126 = scmp.ne.s32.totalorder %s117, %s118
    %p127 = scmp.eq.s32.totalorder %s18, 0
    %p128 = por %p126, %p127
    %p129 = scmp.ne.s32.totalorder %s117, %s118
    %p130 = scmp.eq.s32.totalorder %s19, 7
    %p131 = por %p129, %p130
    %p133 = scmp.ne.s32.totalorder %s118, %s132
    %p134 = scmp.eq.s32.totalorder %s19, 0
    %p135 = por %p133, %p134
    %s137 = sadd.s32 %s136, 1
    %p140 = scmp.eq.s32.totalorder %s13, 7
    %p141 = scmp.ne.s32.totalorder %s136, %s138
    %p142 = scmp.eq.s32.totalorder %s13, 0
    %p143 = por %p141, %p142
    %p144 = scmp.ne.s32.totalorder %s136, %s138
    %p145 = scmp.eq.s32.totalorder %s18, 7
    %p146 = por %p144, %p145
    %p147 = scmp.ne.s32.totalorder %s138, %s139
    %p148 = scmp.eq.s32.totalorder %s18, 0
    %p149 = por %p147, %p148
    %p150 = scmp.ne.s32.totalorder %s138, %s139
    %p151 = scmp.eq.s32.totalorder %s19, 7
    %p152 = por %p150, %p151
    %p154 = scmp.ne.s32.totalorder %s139, %s153
    %p155 = scmp.eq.s32.totalorder %s19, 0
    %p156 = por %p154, %p155
    %s158 = sadd.s32 %s157, 1
    %p161 = scmp.eq.s32.totalorder %s13, 7
    %p162 = scmp.ne.s32.totalorder %s157, %s159
    %p163 = scmp.eq.s32.totalorder %s13, 0
    %p164 = por %p162, %p163
    %p165 = scmp.ne.s32.totalorder %s157, %s159
    %p166 = scmp.eq.s32.totalorder %s18, 7
    %p167 = por %p165, %p166
    %p168 = scmp.ne.s32.totalorder %s159, %s160
    %p169 = scmp.eq.s32.totalorder %s18, 0
    %p170 = por %p168, %p169
    %p171 = scmp.ne.s32.totalorder %s159, %s160
    %p172 = scmp.eq.s32.totalorder %s19, 7
    %p173 = por %p171, %p172
    %p175 = scmp.ne.s32.totalorder %s160, %s174
    %p176 = scmp.eq.s32.totalorder %s19, 0
    %p177 = por %p175, %p176
    %p178 = scmp.le.s32.totalorder 1, %s13
    %p179 = scmp.lt.s32.totalorder %s13, 9
    %p180 = pnand %p178, %p179
    %p181 = pneg %p180
    // Predicated region
    $region9: #{lazy_vae_forward.8} parent=5 // pred_check
      _
    $region10: #{lazy_vae_forward.8} parent=5 // pred_check_branch
      %183 = sbr.rel (%p180) target = $region12
    $region11: #{lazy_vae_forward.8} parent=5 // pred_region
      %s184 = ssub.s32 %s13, 1
      // Predicated region
      $region13: #{lazy_vae_forward.8} parent=11 // pred_check
        %p185 = pneg %p86
      $region14: #{lazy_vae_forward.8} parent=11 // pred_check_branch
        %187 = sbr.rel (%p185) target = $region16
      $region15: #{lazy_vae_forward.8} parent=11 // pred_region
        _
      $region16: #{lazy_vae_forward.8} parent=11 // pred_fallthru
        _
      // Predicated region
      $region17: #{lazy_vae_forward.8} parent=11 // pred_check
        %p188 = pneg %p107
      $region18: #{lazy_vae_forward.8} parent=11 // pred_check_branch
        %190 = sbr.rel (%p188) target = $region20
      $region19: #{lazy_vae_forward.8} parent=11 // pred_region
        _
      $region20: #{lazy_vae_forward.8} parent=11 // pred_fallthru
        _
    $region12: #{lazy_vae_forward.8} parent=5 // pred_fallthru
      _
    %p191 = scmp.lt.s32.totalorder %s13, 8
    // Predicated region
    $region21: #{lazy_vae_forward.8} parent=5 // pred_check
      %p192 = pneg %p191
    $region22: #{lazy_vae_forward.8} parent=5 // pred_check_branch
      %194 = sbr.rel (%p192) target = $region24
    $region23: #{lazy_vae_forward.8} parent=5 // pred_region
      // Predicated region
      $region25: #{lazy_vae_forward.8} parent=23 // pred_check
        %p195 = pneg %p33
      $region26: #{lazy_vae_forward.8} parent=23 // pred_check_branch
        %197 = sbr.rel (%p195) target = $region28
      $region27: #{lazy_vae_forward.8} parent=23 // pred_region
        %s198 = smul.u32 4, %s13
        %p199 = scmp.lt.s32.totalorder %s198, 31
        %s200 = scalar_select %p199, %s198, 31
        %s201 = smul.addr %s200, 4
        %s202 = scalar_lea.vmem %s0, %s201
        %s203 = smul.u32 4, %s13
      $region28: #{lazy_vae_forward.8} parent=23 // pred_fallthru
        _
      // Predicated region
      $region29: #{lazy_vae_forward.8} parent=23 // pred_check
        %p204 = pneg %p59
      $region30: #{lazy_vae_forward.8} parent=23 // pred_check_branch
        %206 = sbr.rel (%p204) target = $region32
      $region31: #{lazy_vae_forward.8} parent=23 // pred_region
        %s207 = smul.u32 64, %s13
        %p208 = scmp.lt.s32.totalorder %s207, 511
        %s209 = scalar_select %p208, %s207, 511
        %s210 = smul.addr %s209, 2
        %s211 = smul.addr %s210, 4
        %s212 = scalar_lea.vmem %s1, %s211
        %s213 = smul.u32 64, %s13
      $region32: #{lazy_vae_forward.8} parent=23 // pred_fallthru
        _
    $region24: #{lazy_vae_forward.8} parent=5 // pred_fallthru
      _
    %p214 = scmp.le.s32.totalorder 1, %s13
    %p215 = scmp.lt.s32.totalorder %s13, 9
    %p216 = pnand %p214, %p215
    %p217 = pneg %p216
    // Predicated region
    $region33: #{lazy_vae_forward.8} parent=5 // pred_check
      _
    $region34: #{lazy_vae_forward.8} parent=5 // pred_check_branch
      %219 = sbr.rel (%p216) target = $region36
    $region35: #{lazy_vae_forward.8} parent=5 // pred_region
      %s220 = ssub.s32 %s13, 1
      %s221 = smul.u32 4, %s18
      %p222 = scmp.lt.s32.totalorder %s221, 31
      %s223 = scalar_select %p222, %s221, 31
      %s224 = smul.addr %s223, 4
      %s225 = scalar_lea.vmem %s0, %s224
      %p226 = pneg %p39
      %p227 = pneg %p36
      %s228 = smul.u32 64, %s18
      %p229 = scmp.lt.s32.totalorder %s228, 511
      %s230 = scalar_select %p229, %s228, 511
      %s231 = smul.addr %s230, 2
      %s232 = smul.addr %s231, 4
      %s233 = scalar_lea.vmem %s1, %s232
      %p234 = pneg %p65
      %p235 = pneg %p62
      %p236 = pneg %p86
      %p237 = pneg %p83
      %p238 = pneg %p107
      %p239 = pneg %p104
      %p240 = pneg %p128
      %p241 = pneg %p125
      %p242 = pneg %p149
      %p243 = pneg %p146
      %p244 = pneg %p170
      %p245 = pneg %p167
      %s246 = smul.u32 4, %s18
      %p247 = scmp.lt.s32.totalorder %s246, 31
      %s248 = scalar_select %p247, %s246, 31
      %s249 = smul.addr %s248, 4
      %s250 = scalar_lea.vmem %s0, %s249
      %s251 = smul.u32 4, %s18
      %s252 = smul.u32 64, %s18
      %p253 = scmp.lt.s32.totalorder %s252, 511
      %s254 = scalar_select %p253, %s252, 511
      %s255 = smul.addr %s254, 2
      %s256 = smul.addr %s255, 4
      %s257 = scalar_lea.vmem %s1, %s256
      %s258 = smul.u32 64, %s18
      %p259 = scmp.eq.s32.totalorder %s18, 0
      // Predicated region
      $region37: #{lazy_vae_forward.8} parent=35 // pred_check
        %p260 = pneg %p259
      $region38: #{lazy_vae_forward.8} parent=35 // pred_check_branch
        %262 = sbr.rel (%p260) target = $region40
      $region39: #{lazy_vae_forward.8} parent=35 // pred_region
        %263 = vst [vmem:[#allocation2] sm:$0xff] 0.0
        %264 = vst [vmem:[#allocation2 + $0x8] sm:$0xff] 0.0
      $region40: #{lazy_vae_forward.8} parent=35 // pred_fallthru
        _
      %v265 = vld [vmem:[#allocation2] sm:$0xff]
      %v266 = vld [vmem:[#allocation2 + $0x8] sm:$0xff]
      %v267 = vld [vmem:[%s250] sm:$0xff]
      %v268 = vld [vmem:[%s250 + $0x8] sm:$0xff]
      %v269 = vld [vmem:[%s257] sm:$0xff]
      %v270 = vld [vmem:[%s257 + $0x8] sm:$0xff]
      %v271 = vld [vmem:[%s257 + $0x10] sm:$0xff]
      %v272 = vld [vmem:[%s257 + $0x18] sm:$0xff]
      %v273 = vld [vmem:[%s257 + $0x20] sm:$0xff]
      %v274 = vld [vmem:[%s257 + $0x28] sm:$0xff]
      %v275 = vld [vmem:[%s257 + $0x30] sm:$0xff]
      %v276 = vld [vmem:[%s257 + $0x38] sm:$0xff]
      %v277 = vld [vmem:[%s257 + $0x40] sm:$0xff]
      %v278 = vld [vmem:[%s257 + $0x48] sm:$0xff]
      %v279 = vld [vmem:[%s257 + $0x50] sm:$0xff]
      %v280 = vld [vmem:[%s257 + $0x58] sm:$0xff]
      %v281 = vld [vmem:[%s257 + $0x60] sm:$0xff]
      %v282 = vld [vmem:[%s257 + $0x68] sm:$0xff]
      %v283 = vld [vmem:[%s257 + $0x70] sm:$0xff]
      %v284 = vld [vmem:[%s257 + $0x78] sm:$0xff]
      %v285 = vld [vmem:[%s257 + $0x80] sm:$0xff]
      %v286 = vld [vmem:[%s257 + $0x88] sm:$0xff]
      %v287 = vld [vmem:[%s257 + $0x90] sm:$0xff]
      %v288 = vld [vmem:[%s257 + $0x98] sm:$0xff]
      %v289 = vld [vmem:[%s257 + $0xa0] sm:$0xff]
      %v290 = vld [vmem:[%s257 + $0xa8] sm:$0xff]
      %v291 = vld [vmem:[%s257 + $0xb0] sm:$0xff]
      %v292 = vld [vmem:[%s257 + $0xb8] sm:$0xff]
      %v293 = vld [vmem:[%s257 + $0xc0] sm:$0xff]
      %v294 = vld [vmem:[%s257 + $0xc8] sm:$0xff]
      %v295 = vld [vmem:[%s257 + $0xd0] sm:$0xff]
      %v296 = vld [vmem:[%s257 + $0xd8] sm:$0xff]
      %v297 = vld [vmem:[%s257 + $0xe0] sm:$0xff]
      %v298 = vld [vmem:[%s257 + $0xe8] sm:$0xff]
      %v299 = vld [vmem:[%s257 + $0xf0] sm:$0xff]
      %v300 = vld [vmem:[%s257 + $0xf8] sm:$0xff]
      %v301 = vld [vmem:[%s257 + $0x100] sm:$0xff]
      %v302 = vld [vmem:[%s257 + $0x108] sm:$0xff]
      %v303 = vld [vmem:[%s257 + $0x110] sm:$0xff]
      %v304 = vld [vmem:[%s257 + $0x118] sm:$0xff]
      %v305 = vld [vmem:[%s257 + $0x120] sm:$0xff]
      %v306 = vld [vmem:[%s257 + $0x128] sm:$0xff]
      %v307 = vld [vmem:[%s257 + $0x130] sm:$0xff]
      %v308 = vld [vmem:[%s257 + $0x138] sm:$0xff]
      %v309 = vld [vmem:[%s257 + $0x140] sm:$0xff]
      %v310 = vld [vmem:[%s257 + $0x148] sm:$0xff]
      %v311 = vld [vmem:[%s257 + $0x150] sm:$0xff]
      %v312 = vld [vmem:[%s257 + $0x158] sm:$0xff]
      %v313 = vld [vmem:[%s257 + $0x160] sm:$0xff]
      %v314 = vld [vmem:[%s257 + $0x168] sm:$0xff]
      %v315 = vld [vmem:[%s257 + $0x170] sm:$0xff]
      %v316 = vld [vmem:[%s257 + $0x178] sm:$0xff]
      %v317 = vld [vmem:[%s257 + $0x180] sm:$0xff]
      %v318 = vld [vmem:[%s257 + $0x188] sm:$0xff]
      %v319 = vld [vmem:[%s257 + $0x190] sm:$0xff]
      %v320 = vld [vmem:[%s257 + $0x198] sm:$0xff]
      %v321 = vld [vmem:[%s257 + $0x1a0] sm:$0xff]
      %v322 = vld [vmem:[%s257 + $0x1a8] sm:$0xff]
      %v323 = vld [vmem:[%s257 + $0x1b0] sm:$0xff]
      %v324 = vld [vmem:[%s257 + $0x1b8] sm:$0xff]
      %v325 = vld [vmem:[%s257 + $0x1c0] sm:$0xff]
      %v326 = vld [vmem:[%s257 + $0x1c8] sm:$0xff]
      %v327 = vld [vmem:[%s257 + $0x1d0] sm:$0xff]
      %v328 = vld [vmem:[%s257 + $0x1d8] sm:$0xff]
      %v329 = vld [vmem:[%s257 + $0x1e0] sm:$0xff]
      %v330 = vld [vmem:[%s257 + $0x1e8] sm:$0xff]
      %v331 = vld [vmem:[%s257 + $0x1f0] sm:$0xff]
      %v332 = vld [vmem:[%s257 + $0x1f8] sm:$0xff]
      %v335 = vunpack.c.l.b16 %v267
      %v336 = vunpack.c.h.b16 %v267
      %v337 = vunpack.c.l.b16 %v268
      %v338 = vunpack.c.h.b16 %v268
      %v339 = vpack.c.b16 %v335, %v335
      %v340 = vpack.c.b16 %v336, %v336
      %v341 = vpack.c.b16 %v337, %v337
      %v342 = vpack.c.b16 %v338, %v338
      %v411 = vunpack.c.l.b16 %v269
      %v412 = vunpack.c.h.b16 %v269
      %v413 = vunpack.c.l.b16 %v270
      %v414 = vunpack.c.h.b16 %v270
      %v415 = vunpack.c.l.b16 %v271
      %v416 = vunpack.c.h.b16 %v271
      %v417 = vunpack.c.l.b16 %v272
      %v418 = vunpack.c.h.b16 %v272
      %v419 = vunpack.c.l.b16 %v273
      %v420 = vunpack.c.h.b16 %v273
      %v421 = vunpack.c.l.b16 %v274
      %v422 = vunpack.c.h.b16 %v274
      %v423 = vunpack.c.l.b16 %v275
      %v424 = vunpack.c.h.b16 %v275
      %v425 = vunpack.c.l.b16 %v276
      %v426 = vunpack.c.h.b16 %v276
      %v427 = vunpack.c.l.b16 %v277
      %v428 = vunpack.c.h.b16 %v277
      %v429 = vunpack.c.l.b16 %v278
      %v430 = vunpack.c.h.b16 %v278
      %v431 = vunpack.c.l.b16 %v279
      %v432 = vunpack.c.h.b16 %v279
      %v433 = vunpack.c.l.b16 %v280
      %v434 = vunpack.c.h.b16 %v280
      %v435 = vunpack.c.l.b16 %v281
      %v436 = vunpack.c.h.b16 %v281
      %v437 = vunpack.c.l.b16 %v282
      %v438 = vunpack.c.h.b16 %v282
      %v439 = vunpack.c.l.b16 %v283
      %v440 = vunpack.c.h.b16 %v283
      %v441 = vunpack.c.l.b16 %v284
      %v442 = vunpack.c.h.b16 %v284
      %v443 = vunpack.c.l.b16 %v285
      %v444 = vunpack.c.h.b16 %v285
      %v445 = vunpack.c.l.b16 %v286
      %v446 = vunpack.c.h.b16 %v286
      %v447 = vunpack.c.l.b16 %v287
      %v448 = vunpack.c.h.b16 %v287
      %v449 = vunpack.c.l.b16 %v288
      %v450 = vunpack.c.h.b16 %v288
      %v451 = vunpack.c.l.b16 %v289
      %v452 = vunpack.c.h.b16 %v289
      %v453 = vunpack.c.l.b16 %v290
      %v454 = vunpack.c.h.b16 %v290
      %v455 = vunpack.c.l.b16 %v291
      %v456 = vunpack.c.h.b16 %v291
      %v457 = vunpack.c.l.b16 %v292
      %v458 = vunpack.c.h.b16 %v292
      %v459 = vunpack.c.l.b16 %v293
      %v460 = vunpack.c.h.b16 %v293
      %v461 = vunpack.c.l.b16 %v294
      %v462 = vunpack.c.h.b16 %v294
      %v463 = vunpack.c.l.b16 %v295
      %v464 = vunpack.c.h.b16 %v295
      %v465 = vunpack.c.l.b16 %v296
      %v466 = vunpack.c.h.b16 %v296
      %v467 = vunpack.c.l.b16 %v297
      %v468 = vunpack.c.h.b16 %v297
      %v469 = vunpack.c.l.b16 %v298
      %v470 = vunpack.c.h.b16 %v298
      %v471 = vunpack.c.l.b16 %v299
      %v472 = vunpack.c.h.b16 %v299
      %v473 = vunpack.c.l.b16 %v300
      %v474 = vunpack.c.h.b16 %v300
      %v475 = vunpack.c.l.b16 %v301
      %v476 = vunpack.c.h.b16 %v301
      %v477 = vunpack.c.l.b16 %v302
      %v478 = vunpack.c.h.b16 %v302
      %v479 = vunpack.c.l.b16 %v303
      %v480 = vunpack.c.h.b16 %v303
      %v481 = vunpack.c.l.b16 %v304
      %v482 = vunpack.c.h.b16 %v304
      %v483 = vunpack.c.l.b16 %v305
      %v484 = vunpack.c.h.b16 %v305
      %v485 = vunpack.c.l.b16 %v306
      %v486 = vunpack.c.h.b16 %v306
      %v487 = vunpack.c.l.b16 %v307
      %v488 = vunpack.c.h.b16 %v307
      %v489 = vunpack.c.l.b16 %v308
      %v490 = vunpack.c.h.b16 %v308
      %v491 = vunpack.c.l.b16 %v309
      %v492 = vunpack.c.h.b16 %v309
      %v493 = vunpack.c.l.b16 %v310
      %v494 = vunpack.c.h.b16 %v310
      %v495 = vunpack.c.l.b16 %v311
      %v496 = vunpack.c.h.b16 %v311
      %v497 = vunpack.c.l.b16 %v312
      %v498 = vunpack.c.h.b16 %v312
      %v499 = vunpack.c.l.b16 %v313
      %v500 = vunpack.c.h.b16 %v313
      %v501 = vunpack.c.l.b16 %v314
      %v502 = vunpack.c.h.b16 %v314
      %v503 = vunpack.c.l.b16 %v315
      %v504 = vunpack.c.h.b16 %v315
      %v505 = vunpack.c.l.b16 %v316
      %v506 = vunpack.c.h.b16 %v316
      %v507 = vunpack.c.l.b16 %v317
      %v508 = vunpack.c.h.b16 %v317
      %v509 = vunpack.c.l.b16 %v318
      %v510 = vunpack.c.h.b16 %v318
      %v511 = vunpack.c.l.b16 %v319
      %v512 = vunpack.c.h.b16 %v319
      %v513 = vunpack.c.l.b16 %v320
      %v514 = vunpack.c.h.b16 %v320
      %v515 = vunpack.c.l.b16 %v321
      %v516 = vunpack.c.h.b16 %v321
      %v517 = vunpack.c.l.b16 %v322
      %v518 = vunpack.c.h.b16 %v322
      %v519 = vunpack.c.l.b16 %v323
      %v520 = vunpack.c.h.b16 %v323
      %v521 = vunpack.c.l.b16 %v324
      %v522 = vunpack.c.h.b16 %v324
      %v523 = vunpack.c.l.b16 %v325
      %v524 = vunpack.c.h.b16 %v325
      %v525 = vunpack.c.l.b16 %v326
      %v526 = vunpack.c.h.b16 %v326
      %v527 = vunpack.c.l.b16 %v327
      %v528 = vunpack.c.h.b16 %v327
      %v529 = vunpack.c.l.b16 %v328
      %v530 = vunpack.c.h.b16 %v328
      %v531 = vunpack.c.l.b16 %v329
      %v532 = vunpack.c.h.b16 %v329
      %v533 = vunpack.c.l.b16 %v330
      %v534 = vunpack.c.h.b16 %v330
      %v535 = vunpack.c.l.b16 %v331
      %v536 = vunpack.c.h.b16 %v331
      %v537 = vunpack.c.l.b16 %v332
      %v538 = vunpack.c.h.b16 %v332
      %v539 = vpack.c.b16 %v413, %v411
      %v540 = vpack.c.b16 %v414, %v412
      %v541 = vpack.c.b16 %v417, %v415
      %v542 = vpack.c.b16 %v418, %v416
      %v543 = vpack.c.b16 %v421, %v419
      %v544 = vpack.c.b16 %v422, %v420
      %v545 = vpack.c.b16 %v425, %v423
      %v546 = vpack.c.b16 %v426, %v424
      %v547 = vpack.c.b16 %v429, %v427
      %v548 = vpack.c.b16 %v430, %v428
      %v549 = vpack.c.b16 %v433, %v431
      %v550 = vpack.c.b16 %v434, %v432
      %v551 = vpack.c.b16 %v437, %v435
      %v552 = vpack.c.b16 %v438, %v436
      %v553 = vpack.c.b16 %v441, %v439
      %v554 = vpack.c.b16 %v442, %v440
      %v555 = vpack.c.b16 %v445, %v443
      %v556 = vpack.c.b16 %v446, %v444
      %v557 = vpack.c.b16 %v449, %v447
      %v558 = vpack.c.b16 %v450, %v448
      %v559 = vpack.c.b16 %v453, %v451
      %v560 = vpack.c.b16 %v454, %v452
      %v561 = vpack.c.b16 %v457, %v455
      %v562 = vpack.c.b16 %v458, %v456
      %v563 = vpack.c.b16 %v461, %v459
      %v564 = vpack.c.b16 %v462, %v460
      %v565 = vpack.c.b16 %v465, %v463
      %v566 = vpack.c.b16 %v466, %v464
      %v567 = vpack.c.b16 %v469, %v467
      %v568 = vpack.c.b16 %v470, %v468
      %v569 = vpack.c.b16 %v473, %v471
      %v570 = vpack.c.b16 %v474, %v472
      %v571 = vpack.c.b16 %v477, %v475
      %v572 = vpack.c.b16 %v478, %v476
      %v573 = vpack.c.b16 %v481, %v479
      %v574 = vpack.c.b16 %v482, %v480
      %v575 = vpack.c.b16 %v485, %v483
      %v576 = vpack.c.b16 %v486, %v484
      %v577 = vpack.c.b16 %v489, %v487
      %v578 = vpack.c.b16 %v490, %v488
      %v579 = vpack.c.b16 %v493, %v491
      %v580 = vpack.c.b16 %v494, %v492
      %v581 = vpack.c.b16 %v497, %v495
      %v582 = vpack.c.b16 %v498, %v496
      %v583 = vpack.c.b16 %v501, %v499
      %v584 = vpack.c.b16 %v502, %v500
      %v585 = vpack.c.b16 %v505, %v503
      %v586 = vpack.c.b16 %v506, %v504
      %v587 = vpack.c.b16 %v509, %v507
      %v588 = vpack.c.b16 %v510, %v508
      %v589 = vpack.c.b16 %v513, %v511
      %v590 = vpack.c.b16 %v514, %v512
      %v591 = vpack.c.b16 %v517, %v515
      %v592 = vpack.c.b16 %v518, %v516
      %v593 = vpack.c.b16 %v521, %v519
      %v594 = vpack.c.b16 %v522, %v520
      %v595 = vpack.c.b16 %v525, %v523
      %v596 = vpack.c.b16 %v526, %v524
      %v597 = vpack.c.b16 %v529, %v527
      %v598 = vpack.c.b16 %v530, %v528
      %v599 = vpack.c.b16 %v533, %v531
      %v600 = vpack.c.b16 %v534, %v532
      %v601 = vpack.c.b16 %v537, %v535
      %v602 = vpack.c.b16 %v538, %v536
      %667 = vmatpush.bf16.msra.mxu0 %v553
      %668 = vmatpush.bf16.msra.mxu0 %v551
      %669 = vmatpush.bf16.msra.mxu0 %v549
      %670 = vmatpush.bf16.msra.mxu0 %v547
      %671 = vmatpush.bf16.msra.mxu0 %v545
      %672 = vmatpush.bf16.msra.mxu0 %v543
      %673 = vmatpush.bf16.msra.mxu0 %v541
      %674 = vmatpush.bf16.msra.mxu0 %v539
      %675 = vmatmul.bf16.gmra.mxu0 %v339
      %v676 = vpop.f32.mrf.mxu0
      %v677 = vadd.f32 0.0, %v676
      %v678 = vpop.f32.mrf.mxu0
      %679 = vdwg.mxu0
      %680 = vmatpush.bf16.msra.mxu0 %v569
      %681 = vmatpush.bf16.msra.mxu0 %v567
      %682 = vmatpush.bf16.msra.mxu0 %v565
      %683 = vmatpush.bf16.msra.mxu0 %v563
      %684 = vmatpush.bf16.msra.mxu0 %v561
      %685 = vmatpush.bf16.msra.mxu0 %v559
      %686 = vmatpush.bf16.msra.mxu0 %v557
      %687 = vmatpush.bf16.msra.mxu0 %v555
      %688 = vmatmul.bf16.gmra.mxu0 %v340
      %v689 = vpop.f32.mrf.mxu0
      %v690 = vadd.f32 %v677, %v689
      %v691 = vpop.f32.mrf.mxu0
      %692 = vdwg.mxu0
      %693 = vmatpush.bf16.msra.mxu0 %v585
      %694 = vmatpush.bf16.msra.mxu0 %v583
      %695 = vmatpush.bf16.msra.mxu0 %v581
      %696 = vmatpush.bf16.msra.mxu0 %v579
      %697 = vmatpush.bf16.msra.mxu0 %v577
      %698 = vmatpush.bf16.msra.mxu0 %v575
      %699 = vmatpush.bf16.msra.mxu0 %v573
      %700 = vmatpush.bf16.msra.mxu0 %v571
      %701 = vmatmul.bf16.gmra.mxu0 %v341
      %v702 = vpop.f32.mrf.mxu0
      %v703 = vadd.f32 %v690, %v702
      %v704 = vpop.f32.mrf.mxu0
      %705 = vdwg.mxu0
      %706 = vmatpush.bf16.msra.mxu0 %v601
      %707 = vmatpush.bf16.msra.mxu0 %v599
      %708 = vmatpush.bf16.msra.mxu0 %v597
      %709 = vmatpush.bf16.msra.mxu0 %v595
      %710 = vmatpush.bf16.msra.mxu0 %v593
      %711 = vmatpush.bf16.msra.mxu0 %v591
      %712 = vmatpush.bf16.msra.mxu0 %v589
      %713 = vmatpush.bf16.msra.mxu0 %v587
      %714 = vmatmul.bf16.gmra.mxu0 %v342
      %v715 = vpop.f32.mrf.mxu0
      %v716 = vadd.f32 %v703, %v715
      %v717 = vpop.f32.mrf.mxu0
      %718 = vdwg.mxu0
      %719 = vmatpush.bf16.msra.mxu0 %v554
      %720 = vmatpush.bf16.msra.mxu0 %v552
      %721 = vmatpush.bf16.msra.mxu0 %v550
      %722 = vmatpush.bf16.msra.mxu0 %v548
      %723 = vmatpush.bf16.msra.mxu0 %v546
      %724 = vmatpush.bf16.msra.mxu0 %v544
      %725 = vmatpush.bf16.msra.mxu0 %v542
      %726 = vmatpush.bf16.msra.mxu0 %v540
      %727 = vmatmul.bf16.gmra.mxu0 %v339
      %v728 = vpop.f32.mrf.mxu0
      %v729 = vadd.f32 0.0, %v728
      %v730 = vpop.f32.mrf.mxu0
      %731 = vdwg.mxu0
      %732 = vmatpush.bf16.msra.mxu0 %v570
      %733 = vmatpush.bf16.msra.mxu0 %v568
      %734 = vmatpush.bf16.msra.mxu0 %v566
      %735 = vmatpush.bf16.msra.mxu0 %v564
      %736 = vmatpush.bf16.msra.mxu0 %v562
      %737 = vmatpush.bf16.msra.mxu0 %v560
      %738 = vmatpush.bf16.msra.mxu0 %v558
      %739 = vmatpush.bf16.msra.mxu0 %v556
      %740 = vmatmul.bf16.gmra.mxu0 %v340
      %v741 = vpop.f32.mrf.mxu0
      %v742 = vadd.f32 %v729, %v741
      %v743 = vpop.f32.mrf.mxu0
      %744 = vdwg.mxu0
      %745 = vmatpush.bf16.msra.mxu0 %v586
      %746 = vmatpush.bf16.msra.mxu0 %v584
      %747 = vmatpush.bf16.msra.mxu0 %v582
      %748 = vmatpush.bf16.msra.mxu0 %v580
      %749 = vmatpush.bf16.msra.mxu0 %v578
      %750 = vmatpush.bf16.msra.mxu0 %v576
      %751 = vmatpush.bf16.msra.mxu0 %v574
      %752 = vmatpush.bf16.msra.mxu0 %v572
      %753 = vmatmul.bf16.gmra.mxu0 %v341
      %v754 = vpop.f32.mrf.mxu0
      %v755 = vadd.f32 %v742, %v754
      %v756 = vpop.f32.mrf.mxu0
      %757 = vdwg.mxu0
      %758 = vmatpush.bf16.msra.mxu0 %v602
      %759 = vmatpush.bf16.msra.mxu0 %v600
      %760 = vmatpush.bf16.msra.mxu0 %v598
      %761 = vmatpush.bf16.msra.mxu0 %v596
      %762 = vmatpush.bf16.msra.mxu0 %v594
      %763 = vmatpush.bf16.msra.mxu0 %v592
      %764 = vmatpush.bf16.msra.mxu0 %v590
      %765 = vmatpush.bf16.msra.mxu0 %v588
      %766 = vmatmul.bf16.gmra.mxu0 %v342
      %v767 = vpop.f32.mrf.mxu0
      %v768 = vadd.f32 %v755, %v767
      %v769 = vpop.f32.mrf.mxu0
      %770 = vdwg.mxu0
      %v771 = vadd.f32 %v265, %v716
      %v772 = vadd.f32 %v266, %v768
      %773 = vst [vmem:[#allocation2] sm:$0xff] %v771
      %774 = vst [vmem:[#allocation2 + $0x8] sm:$0xff] %v772
      %p775 = scmp.eq.s32.totalorder %s18, 7
      // Predicated region
      $region41: #{lazy_vae_forward.8} parent=35 // pred_check
        %p776 = pneg %p775
      $region42: #{lazy_vae_forward.8} parent=35 // pred_check_branch
        %778 = sbr.rel (%p776) target = $region44
      $region43: #{lazy_vae_forward.8} parent=35 // pred_region
        %v779 = vld [vmem:[#allocation2] sm:$0xff]
        %v780 = vld [vmem:[#allocation2 + $0x8] sm:$0xff]
        %v781 = vld [vmem:[%s2] sm:$0x3]
        %v783 = vperm.slane %v781, 0
        %v784 = vperm.slane %v781, 1
        %v787 = vadd.f32 %v779, %v783
        %v788 = vadd.f32 %v780, %v784
        %789 = vst [vmem:[%s4] sm:$0xff] %v787
        %790 = vst [vmem:[%s5] sm:$0xff] %v788
        %v791 = vld [vmem:[%s3] sm:$0xff]
        %v792 = vmul.f32 %v788, 0.5
        %v793 = vmul.f32 %v792, 1.442695
        %v794 = vpow.pop %v793
        %v795 = vmul.f32 %v791, %v794
        %v796 = vadd.f32 %v787, %v795
        %797 = vst [vmem:[%s6] sm:$0xff] %v796
      $region44: #{lazy_vae_forward.8} parent=35 // pred_fallthru
        _
      // Predicated region
      $region45: #{lazy_vae_forward.8} parent=35 // pred_check
        %p798 = pneg %p125
      $region46: #{lazy_vae_forward.8} parent=35 // pred_check_branch
        %800 = sbr.rel (%p798) target = $region48
      $region47: #{lazy_vae_forward.8} parent=35 // pred_region
        _
      $region48: #{lazy_vae_forward.8} parent=35 // pred_fallthru
        _
      // Predicated region
      $region49: #{lazy_vae_forward.8} parent=35 // pred_check
        %p801 = pneg %p146
      $region50: #{lazy_vae_forward.8} parent=35 // pred_check_branch
        %803 = sbr.rel (%p801) target = $region52
      $region51: #{lazy_vae_forward.8} parent=35 // pred_region
        _
      $region52: #{lazy_vae_forward.8} parent=35 // pred_fallthru
        _
      // Predicated region
      $region53: #{lazy_vae_forward.8} parent=35 // pred_check
        %p804 = pneg %p167
      $region54: #{lazy_vae_forward.8} parent=35 // pred_check_branch
        %806 = sbr.rel (%p804) target = $region56
      $region55: #{lazy_vae_forward.8} parent=35 // pred_region
        _
      $region56: #{lazy_vae_forward.8} parent=35 // pred_fallthru
        _
      // Predicated region
      $region57: #{lazy_vae_forward.8} parent=35 // pred_check
        %p807 = pneg %p125
      $region58: #{lazy_vae_forward.8} parent=35 // pred_check_branch
        %809 = sbr.rel (%p807) target = $region60
      $region59: #{lazy_vae_forward.8} parent=35 // pred_region
        _
      $region60: #{lazy_vae_forward.8} parent=35 // pred_fallthru
        _
      // Predicated region
      $region61: #{lazy_vae_forward.8} parent=35 // pred_check
        %p810 = pneg %p146
      $region62: #{lazy_vae_forward.8} parent=35 // pred_check_branch
        %812 = sbr.rel (%p810) target = $region64
      $region63: #{lazy_vae_forward.8} parent=35 // pred_region
        _
      $region64: #{lazy_vae_forward.8} parent=35 // pred_fallthru
        _
      // Predicated region
      $region65: #{lazy_vae_forward.8} parent=35 // pred_check
        %p813 = pneg %p167
      $region66: #{lazy_vae_forward.8} parent=35 // pred_check_branch
        %815 = sbr.rel (%p813) target = $region68
      $region67: #{lazy_vae_forward.8} parent=35 // pred_region
        _
      $region68: #{lazy_vae_forward.8} parent=35 // pred_fallthru
        _
    $region36: #{lazy_vae_forward.8} parent=5 // pred_fallthru
      _
    %p816 = scmp.le.s32.totalorder 2, %s13
    // Predicated region
    $region69: #{lazy_vae_forward.8} parent=5 // pred_check
      %p817 = pneg %p816
    $region70: #{lazy_vae_forward.8} parent=5 // pred_check_branch
      %819 = sbr.rel (%p817) target = $region72
    $region71: #{lazy_vae_forward.8} parent=5 // pred_region
      %s820 = ssub.s32 %s13, 2
    $region72: #{lazy_vae_forward.8} parent=5 // pred_fallthru
      _
  $region6: #{lazy_vae_forward.8} parent=0 // loop_footer
    %s17 = sadd.s32 1, %s13
  $region7: #{lazy_vae_forward.8} parent=0 // loop_footer_branch
    %12 = sbr.rel target = $region3
  $region8: #{lazy_vae_forward.8} parent=0 // loop_exit
    _

// kernel: squeeze.5
$region0: #{squeeze.5}
  %s0 = inlined_call_operand.vmem [shape: bf16[1,2,4096], index: 0, kind: input, shape index: {}]
  %s1 = inlined_call_operand.vmem [shape: bf16[2,64,8,8], index: 1, kind: output, shape index: {}]
  $region1: #{squeeze.5} parent=0
    #allocation0 [shape = 'u8[524288]{0}', space=vmem, size = 0x80000, scoped, tag = 'scoped mem for output reshape']
    #allocation1 [shape = 'u8[131072]{0}', space=vmem, size = 0x20000, scoped, tag = 'scoped mem for input reshape']
    %s3 = ssub.s32 4, 1
    %s4 = scalar_lea.vmem %s0, 31
    %s5 = sshrl.u32 %s3, 1
    %s6 = sor.u32 %s3, %s5
    %s7 = sand.u32 %s6, 85
    %s8 = sshrl.u32 %s7, 1
    %s9 = sor.u32 %s7, %s8
    %s10 = sand.u32 51, %s9
    %s11 = sshrl.u32 %s10, 2
    %s12 = sor.u32 %s10, %s11
    %s13 = sand.u32 15, %s12
    %v14 = vld [vmem:[%s4] sm:%s13]
    %v15 = vunpack.c.l.bf16 %v14
    %v16 = vunpack.c.h.bf16 %v14
    %s17 = scalar_lea.vmem [#allocation1], 248
    %18 = vst [vmem:[%s17] sm:%s3] %v15
    %s19 = scalar_lea.vmem %s0, 30
    %s20 = sshrl.u32 %s3, 1
    %s21 = sor.u32 %s3, %s20
    %s22 = sand.u32 %s21, 85
    %s23 = sshrl.u32 %s22, 1
    %s24 = sor.u32 %s22, %s23
    %s25 = sand.u32 51, %s24
    %s26 = sshrl.u32 %s25, 2
    %s27 = sor.u32 %s25, %s26
    %s28 = sand.u32 15, %s27
    %v29 = vld [vmem:[%s19] sm:%s28]
    %v30 = vunpack.c.l.bf16 %v29
    %v31 = vunpack.c.h.bf16 %v29
    %s32 = scalar_lea.vmem [#allocation1], 240
    %33 = vst [vmem:[%s32] sm:%s3] %v30
    %s34 = scalar_lea.vmem %s0, 29
    %s35 = sshrl.u32 %s3, 1
    %s36 = sor.u32 %s3, %s35
    %s37 = sand.u32 %s36, 85
    %s38 = sshrl.u32 %s37, 1
    %s39 = sor.u32 %s37, %s38
    %s40 = sand.u32 51, %s39
    %s41 = sshrl.u32 %s40, 2
    %s42 = sor.u32 %s40, %s41
    %s43 = sand.u32 15, %s42
    %v44 = vld [vmem:[%s34] sm:%s43]
    %v45 = vunpack.c.l.bf16 %v44
    %v46 = vunpack.c.h.bf16 %v44
    %s47 = scalar_lea.vmem [#allocation1], 232
    %48 = vst [vmem:[%s47] sm:%s3] %v45
    %s49 = scalar_lea.vmem %s0, 28
    %s50 = sshrl.u32 %s3, 1
    %s51 = sor.u32 %s3, %s50
    %s52 = sand.u32 %s51, 85
    %s53 = sshrl.u32 %s52, 1
    %s54 = sor.u32 %s52, %s53
    %s55 = sand.u32 51, %s54
    %s56 = sshrl.u32 %s55, 2
    %s57 = sor.u32 %s55, %s56
    %s58 = sand.u32 15, %s57
    %v59 = vld [vmem:[%s49] sm:%s58]
    %v60 = vunpack.c.l.bf16 %v59
    %v61 = vunpack.c.h.bf16 %v59
    %s62 = scalar_lea.vmem [#allocation1], 224
    %63 = vst [vmem:[%s62] sm:%s3] %v60
    %s64 = scalar_lea.vmem %s0, 27
    %s65 = sshrl.u32 %s3, 1
    %s66 = sor.u32 %s3, %s65
    %s67 = sand.u32 %s66, 85
    %s68 = sshrl.u32 %s67, 1
    %s69 = sor.u32 %s67, %s68
    %s70 = sand.u32 51, %s69
    %s71 = sshrl.u32 %s70, 2
    %s72 = sor.u32 %s70, %s71
    %s73 = sand.u32 15, %s72
    %v74 = vld [vmem:[%s64] sm:%s73]
    %v75 = vunpack.c.l.bf16 %v74
    %v76 = vunpack.c.h.bf16 %v74
    %s77 = scalar_lea.vmem [#allocation1], 216
    %78 = vst [vmem:[%s77] sm:%s3] %v75
    %s79 = scalar_lea.vmem %s0, 26
    %s80 = sshrl.u32 %s3, 1
    %s81 = sor.u32 %s3, %s80
    %s82 = sand.u32 %s81, 85
    %s83 = sshrl.u32 %s82, 1
    %s84 = sor.u32 %s82, %s83
    %s85 = sand.u32 51, %s84
    %s86 = sshrl.u32 %s85, 2
    %s87 = sor.u32 %s85, %s86
    %s88 = sand.u32 15, %s87
    %v89 = vld [vmem:[%s79] sm:%s88]
    %v90 = vunpack.c.l.bf16 %v89
    %v91 = vunpack.c.h.bf16 %v89
    %s92 = scalar_lea.vmem [#allocation1], 208
    %93 = vst [vmem:[%s92] sm:%s3] %v90
    %s94 = scalar_lea.vmem %s0, 25
    %s95 = sshrl.u32 %s3, 1
    %s96 = sor.u32 %s3, %s95
    %s97 = sand.u32 %s96, 85
    %s98 = sshrl.u32 %s97, 1
    %s99 = sor.u32 %s97, %s98
    %s100 = sand.u32 51, %s99
    %s101 = sshrl.u32 %s100, 2
    %s102 = sor.u32 %s100, %s101
    %s103 = sand.u32 15, %s102
    %v104 = vld [vmem:[%s94] sm:%s103]
    %v105 = vunpack.c.l.bf16 %v104
    %v106 = vunpack.c.h.bf16 %v104
    %s107 = scalar_lea.vmem [#allocation1], 200
    %108 = vst [vmem:[%s107] sm:%s3] %v105
    %s109 = scalar_lea.vmem %s0, 24
    %s110 = sshrl.u32 %s3, 1
    %s111 = sor.u32 %s3, %s110
    %s112 = sand.u32 %s111, 85
    %s113 = sshrl.u32 %s112, 1
    %s114 = sor.u32 %s112, %s113
    %s115 = sand.u32 51, %s114
    %s116 = sshrl.u32 %s115, 2
    %s117 = sor.u32 %s115, %s116
    %s118 = sand.u32 15, %s117
    %v119 = vld [vmem:[%s109] sm:%s118]
    %v120 = vunpack.c.l.bf16 %v119
    %v121 = vunpack.c.h.bf16 %v119
    %s122 = scalar_lea.vmem [#allocation1], 192
    %123 = vst [vmem:[%s122] sm:%s3] %v120
    %s124 = scalar_lea.vmem %s0, 23
    %s125 = sshrl.u32 %s3, 1
    %s126 = sor.u32 %s3, %s125
    %s127 = sand.u32 %s126, 85
    %s128 = sshrl.u32 %s127, 1
    %s129 = sor.u32 %s127, %s128
    %s130 = sand.u32 51, %s129
    %s131 = sshrl.u32 %s130, 2
    %s132 = sor.u32 %s130, %s131
    %s133 = sand.u32 15, %s132
    %v134 = vld [vmem:[%s124] sm:%s133]
    %v135 = vunpack.c.l.bf16 %v134
    %v136 = vunpack.c.h.bf16 %v134
    %s137 = scalar_lea.vmem [#allocation1], 184
    %138 = vst [vmem:[%s137] sm:%s3] %v135
    %s139 = scalar_lea.vmem %s0, 22
    %s140 = sshrl.u32 %s3, 1
    %s141 = sor.u32 %s3, %s140
    %s142 = sand.u32 %s141, 85
    %s143 = sshrl.u32 %s142, 1
    %s144 = sor.u32 %s142, %s143
    %s145 = sand.u32 51, %s144
    %s146 = sshrl.u32 %s145, 2
    %s147 = sor.u32 %s145, %s146
    %s148 = sand.u32 15, %s147
    %v149 = vld [vmem:[%s139] sm:%s148]
    %v150 = vunpack.c.l.bf16 %v149
    %v151 = vunpack.c.h.bf16 %v149
    %s152 = scalar_lea.vmem [#allocation1], 176
    %153 = vst [vmem:[%s152] sm:%s3] %v150
    %s154 = scalar_lea.vmem %s0, 21
    %s155 = sshrl.u32 %s3, 1
    %s156 = sor.u32 %s3, %s155
    %s157 = sand.u32 %s156, 85
    %s158 = sshrl.u32 %s157, 1
    %s159 = sor.u32 %s157, %s158
    %s160 = sand.u32 51, %s159
    %s161 = sshrl.u32 %s160, 2
    %s162 = sor.u32 %s160, %s161
    %s163 = sand.u32 15, %s162
    %v164 = vld [vmem:[%s154] sm:%s163]
    %v165 = vunpack.c.l.bf16 %v164
    %v166 = vunpack.c.h.bf16 %v164
    %s167 = scalar_lea.vmem [#allocation1], 168
    %168 = vst [vmem:[%s167] sm:%s3] %v165
    %s169 = scalar_lea.vmem %s0, 20
    %s170 = sshrl.u32 %s3, 1
    %s171 = sor.u32 %s3, %s170
    %s172 = sand.u32 %s171, 85
    %s173 = sshrl.u32 %s172, 1
    %s174 = sor.u32 %s172, %s173
    %s175 = sand.u32 51, %s174
    %s176 = sshrl.u32 %s175, 2
    %s177 = sor.u32 %s175, %s176
    %s178 = sand.u32 15, %s177
    %v179 = vld [vmem:[%s169] sm:%s178]
    %v180 = vunpack.c.l.bf16 %v179
    %v181 = vunpack.c.h.bf16 %v179
    %s182 = scalar_lea.vmem [#allocation1], 160
    %183 = vst [vmem:[%s182] sm:%s3] %v180
    %s184 = scalar_lea.vmem %s0, 19
    %s185 = sshrl.u32 %s3, 1
    %s186 = sor.u32 %s3, %s185
    %s187 = sand.u32 %s186, 85
    %s188 = sshrl.u32 %s187, 1
    %s189 = sor.u32 %s187, %s188
    %s190 = sand.u32 51, %s189
    %s191 = sshrl.u32 %s190, 2
    %s192 = sor.u32 %s190, %s191
    %s193 = sand.u32 15, %s192
    %v194 = vld [vmem:[%s184] sm:%s193]
    %v195 = vunpack.c.l.bf16 %v194
    %v196 = vunpack.c.h.bf16 %v194
    %s197 = scalar_lea.vmem [#allocation1], 152
    %198 = vst [vmem:[%s197] sm:%s3] %v195
    %s199 = scalar_lea.vmem %s0, 18
    %s200 = sshrl.u32 %s3, 1
    %s201 = sor.u32 %s3, %s200
    %s202 = sand.u32 %s201, 85
    %s203 = sshrl.u32 %s202, 1
    %s204 = sor.u32 %s202, %s203
    %s205 = sand.u32 51, %s204
    %s206 = sshrl.u32 %s205, 2
    %s207 = sor.u32 %s205, %s206
    %s208 = sand.u32 15, %s207
    %v209 = vld [vmem:[%s199] sm:%s208]
    %v210 = vunpack.c.l.bf16 %v209
    %v211 = vunpack.c.h.bf16 %v209
    %s212 = scalar_lea.vmem [#allocation1], 144
    %213 = vst [vmem:[%s212] sm:%s3] %v210
    %s214 = scalar_lea.vmem %s0, 17
    %s215 = sshrl.u32 %s3, 1
    %s216 = sor.u32 %s3, %s215
    %s217 = sand.u32 %s216, 85
    %s218 = sshrl.u32 %s217, 1
    %s219 = sor.u32 %s217, %s218
    %s220 = sand.u32 51, %s219
    %s221 = sshrl.u32 %s220, 2
    %s222 = sor.u32 %s220, %s221
    %s223 = sand.u32 15, %s222
    %v224 = vld [vmem:[%s214] sm:%s223]
    %v225 = vunpack.c.l.bf16 %v224
    %v226 = vunpack.c.h.bf16 %v224
    %s227 = scalar_lea.vmem [#allocation1], 136
    %228 = vst [vmem:[%s227] sm:%s3] %v225
    %s229 = scalar_lea.vmem %s0, 16
    %s230 = sshrl.u32 %s3, 1
    %s231 = sor.u32 %s3, %s230
    %s232 = sand.u32 %s231, 85
    %s233 = sshrl.u32 %s232, 1
    %s234 = sor.u32 %s232, %s233
    %s235 = sand.u32 51, %s234
    %s236 = sshrl.u32 %s235, 2
    %s237 = sor.u32 %s235, %s236
    %s238 = sand.u32 15, %s237
    %v239 = vld [vmem:[%s229] sm:%s238]
    %v240 = vunpack.c.l.bf16 %v239
    %v241 = vunpack.c.h.bf16 %v239
    %s242 = scalar_lea.vmem [#allocation1], 128
    %243 = vst [vmem:[%s242] sm:%s3] %v240
    %s244 = scalar_lea.vmem %s0, 15
    %s245 = sshrl.u32 %s3, 1
    %s246 = sor.u32 %s3, %s245
    %s247 = sand.u32 %s246, 85
    %s248 = sshrl.u32 %s247, 1
    %s249 = sor.u32 %s247, %s248
    %s250 = sand.u32 51, %s249
    %s251 = sshrl.u32 %s250, 2
    %s252 = sor.u32 %s250, %s251
    %s253 = sand.u32 15, %s252
    %v254 = vld [vmem:[%s244] sm:%s253]
    %v255 = vunpack.c.l.bf16 %v254
    %v256 = vunpack.c.h.bf16 %v254
    %s257 = scalar_lea.vmem [#allocation1], 120
    %258 = vst [vmem:[%s257] sm:%s3] %v255
    %s259 = scalar_lea.vmem %s0, 14
    %s260 = sshrl.u32 %s3, 1
    %s261 = sor.u32 %s3, %s260
    %s262 = sand.u32 %s261, 85
    %s263 = sshrl.u32 %s262, 1
    %s264 = sor.u32 %s262, %s263
    %s265 = sand.u32 51, %s264
    %s266 = sshrl.u32 %s265, 2
    %s267 = sor.u32 %s265, %s266
    %s268 = sand.u32 15, %s267
    %v269 = vld [vmem:[%s259] sm:%s268]
    %v270 = vunpack.c.l.bf16 %v269
    %v271 = vunpack.c.h.bf16 %v269
    %s272 = scalar_lea.vmem [#allocation1], 112
    %273 = vst [vmem:[%s272] sm:%s3] %v270
    %s274 = scalar_lea.vmem %s0, 13
    %s275 = sshrl.u32 %s3, 1
    %s276 = sor.u32 %s3, %s275
    %s277 = sand.u32 %s276, 85
    %s278 = sshrl.u32 %s277, 1
    %s279 = sor.u32 %s277, %s278
    %s280 = sand.u32 51, %s279
    %s281 = sshrl.u32 %s280, 2
    %s282 = sor.u32 %s280, %s281
    %s283 = sand.u32 15, %s282
    %v284 = vld [vmem:[%s274] sm:%s283]
    %v285 = vunpack.c.l.bf16 %v284
    %v286 = vunpack.c.h.bf16 %v284
    %s287 = scalar_lea.vmem [#allocation1], 104
    %288 = vst [vmem:[%s287] sm:%s3] %v285
    %s289 = scalar_lea.vmem %s0, 12
    %s290 = sshrl.u32 %s3, 1
    %s291 = sor.u32 %s3, %s290
    %s292 = sand.u32 %s291, 85
    %s293 = sshrl.u32 %s292, 1
    %s294 = sor.u32 %s292, %s293
    %s295 = sand.u32 51, %s294
    %s296 = sshrl.u32 %s295, 2
    %s297 = sor.u32 %s295, %s296
    %s298 = sand.u32 15, %s297
    %v299 = vld [vmem:[%s289] sm:%s298]
    %v300 = vunpack.c.l.bf16 %v299
    %v301 = vunpack.c.h.bf16 %v299
    %s302 = scalar_lea.vmem [#allocation1], 96
    %303 = vst [vmem:[%s302] sm:%s3] %v300
    %s304 = scalar_lea.vmem %s0, 11
    %s305 = sshrl.u32 %s3, 1
    %s306 = sor.u32 %s3, %s305
    %s307 = sand.u32 %s306, 85
    %s308 = sshrl.u32 %s307, 1
    %s309 = sor.u32 %s307, %s308
    %s310 = sand.u32 51, %s309
    %s311 = sshrl.u32 %s310, 2
    %s312 = sor.u32 %s310, %s311
    %s313 = sand.u32 15, %s312
    %v314 = vld [vmem:[%s304] sm:%s313]
    %v315 = vunpack.c.l.bf16 %v314
    %v316 = vunpack.c.h.bf16 %v314
    %s317 = scalar_lea.vmem [#allocation1], 88
    %318 = vst [vmem:[%s317] sm:%s3] %v315
    %s319 = scalar_lea.vmem %s0, 10
    %s320 = sshrl.u32 %s3, 1
    %s321 = sor.u32 %s3, %s320
    %s322 = sand.u32 %s321, 85
    %s323 = sshrl.u32 %s322, 1
    %s324 = sor.u32 %s322, %s323
    %s325 = sand.u32 51, %s324
    %s326 = sshrl.u32 %s325, 2
    %s327 = sor.u32 %s325, %s326
    %s328 = sand.u32 15, %s327
    %v329 = vld [vmem:[%s319] sm:%s328]
    %v330 = vunpack.c.l.bf16 %v329
    %v331 = vunpack.c.h.bf16 %v329
    %s332 = scalar_lea.vmem [#allocation1], 80
    %333 = vst [vmem:[%s332] sm:%s3] %v330
    %s334 = scalar_lea.vmem %s0, 9
    %s335 = sshrl.u32 %s3, 1
    %s336 = sor.u32 %s3, %s335
    %s337 = sand.u32 %s336, 85
    %s338 = sshrl.u32 %s337, 1
    %s339 = sor.u32 %s337, %s338
    %s340 = sand.u32 51, %s339
    %s341 = sshrl.u32 %s340, 2
    %s342 = sor.u32 %s340, %s341
    %s343 = sand.u32 15, %s342
    %v344 = vld [vmem:[%s334] sm:%s343]
    %v345 = vunpack.c.l.bf16 %v344
    %v346 = vunpack.c.h.bf16 %v344
    %s347 = scalar_lea.vmem [#allocation1], 72
    %348 = vst [vmem:[%s347] sm:%s3] %v345
    %s349 = scalar_lea.vmem %s0, 8
    %s350 = sshrl.u32 %s3, 1
    %s351 = sor.u32 %s3, %s350
    %s352 = sand.u32 %s351, 85
    %s353 = sshrl.u32 %s352, 1
    %s354 = sor.u32 %s352, %s353
    %s355 = sand.u32 51, %s354
    %s356 = sshrl.u32 %s355, 2
    %s357 = sor.u32 %s355, %s356
    %s358 = sand.u32 15, %s357
    %v359 = vld [vmem:[%s349] sm:%s358]
    %v360 = vunpack.c.l.bf16 %v359
    %v361 = vunpack.c.h.bf16 %v359
    %s362 = scalar_lea.vmem [#allocation1], 64
    %363 = vst [vmem:[%s362] sm:%s3] %v360
    %s364 = scalar_lea.vmem %s0, 7
    %s365 = sshrl.u32 %s3, 1
    %s366 = sor.u32 %s3, %s365
    %s367 = sand.u32 %s366, 85
    %s368 = sshrl.u32 %s367, 1
    %s369 = sor.u32 %s367, %s368
    %s370 = sand.u32 51, %s369
    %s371 = sshrl.u32 %s370, 2
    %s372 = sor.u32 %s370, %s371
    %s373 = sand.u32 15, %s372
    %v374 = vld [vmem:[%s364] sm:%s373]
    %v375 = vunpack.c.l.bf16 %v374
    %v376 = vunpack.c.h.bf16 %v374
    %s377 = scalar_lea.vmem [#allocation1], 56
    %378 = vst [vmem:[%s377] sm:%s3] %v375
    %s379 = scalar_lea.vmem %s0, 6
    %s380 = sshrl.u32 %s3, 1
    %s381 = sor.u32 %s3, %s380
    %s382 = sand.u32 %s381, 85
    %s383 = sshrl.u32 %s382, 1
    %s384 = sor.u32 %s382, %s383
    %s385 = sand.u32 51, %s384
    %s386 = sshrl.u32 %s385, 2
    %s387 = sor.u32 %s385, %s386
    %s388 = sand.u32 15, %s387
    %v389 = vld [vmem:[%s379] sm:%s388]
    %v390 = vunpack.c.l.bf16 %v389
    %v391 = vunpack.c.h.bf16 %v389
    %s392 = scalar_lea.vmem [#allocation1], 48
    %393 = vst [vmem:[%s392] sm:%s3] %v390
    %s394 = scalar_lea.vmem %s0, 5
    %s395 = sshrl.u32 %s3, 1
    %s396 = sor.u32 %s3, %s395
    %s397 = sand.u32 %s396, 85
    %s398 = sshrl.u32 %s397, 1
    %s399 = sor.u32 %s397, %s398
    %s400 = sand.u32 51, %s399
    %s401 = sshrl.u32 %s400, 2
    %s402 = sor.u32 %s400, %s401
    %s403 = sand.u32 15, %s402
    %v404 = vld [vmem:[%s394] sm:%s403]
    %v405 = vunpack.c.l.bf16 %v404
    %v406 = vunpack.c.h.bf16 %v404
    %s407 = scalar_lea.vmem [#allocation1], 40
    %408 = vst [vmem:[%s407] sm:%s3] %v405
    %s409 = scalar_lea.vmem %s0, 4
    %s410 = sshrl.u32 %s3, 1
    %s411 = sor.u32 %s3, %s410
    %s412 = sand.u32 %s411, 85
    %s413 = sshrl.u32 %s412, 1
    %s414 = sor.u32 %s412, %s413
    %s415 = sand.u32 51, %s414
    %s416 = sshrl.u32 %s415, 2
    %s417 = sor.u32 %s415, %s416
    %s418 = sand.u32 15, %s417
    %v419 = vld [vmem:[%s409] sm:%s418]
    %v420 = vunpack.c.l.bf16 %v419
    %v421 = vunpack.c.h.bf16 %v419
    %s422 = scalar_lea.vmem [#allocation1], 32
    %423 = vst [vmem:[%s422] sm:%s3] %v420
    %s424 = scalar_lea.vmem %s0, 3
    %s425 = sshrl.u32 %s3, 1
    %s426 = sor.u32 %s3, %s425
    %s427 = sand.u32 %s426, 85
    %s428 = sshrl.u32 %s427, 1
    %s429 = sor.u32 %s427, %s428
    %s430 = sand.u32 51, %s429
    %s431 = sshrl.u32 %s430, 2
    %s432 = sor.u32 %s430, %s431
    %s433 = sand.u32 15, %s432
    %v434 = vld [vmem:[%s424] sm:%s433]
    %v435 = vunpack.c.l.bf16 %v434
    %v436 = vunpack.c.h.bf16 %v434
    %s437 = scalar_lea.vmem [#allocation1], 24
    %438 = vst [vmem:[%s437] sm:%s3] %v435
    %s439 = scalar_lea.vmem %s0, 2
    %s440 = sshrl.u32 %s3, 1
    %s441 = sor.u32 %s3, %s440
    %s442 = sand.u32 %s441, 85
    %s443 = sshrl.u32 %s442, 1
    %s444 = sor.u32 %s442, %s443
    %s445 = sand.u32 51, %s444
    %s446 = sshrl.u32 %s445, 2
    %s447 = sor.u32 %s445, %s446
    %s448 = sand.u32 15, %s447
    %v449 = vld [vmem:[%s439] sm:%s448]
    %v450 = vunpack.c.l.bf16 %v449
    %v451 = vunpack.c.h.bf16 %v449
    %s452 = scalar_lea.vmem [#allocation1], 16
    %453 = vst [vmem:[%s452] sm:%s3] %v450
    %s454 = scalar_lea.vmem %s0, 1
    %s455 = sshrl.u32 %s3, 1
    %s456 = sor.u32 %s3, %s455
    %s457 = sand.u32 %s456, 85
    %s458 = sshrl.u32 %s457, 1
    %s459 = sor.u32 %s457, %s458
    %s460 = sand.u32 51, %s459
    %s461 = sshrl.u32 %s460, 2
    %s462 = sor.u32 %s460, %s461
    %s463 = sand.u32 15, %s462
    %v464 = vld [vmem:[%s454] sm:%s463]
    %v465 = vunpack.c.l.bf16 %v464
    %v466 = vunpack.c.h.bf16 %v464
    %s467 = scalar_lea.vmem [#allocation1], 8
    %468 = vst [vmem:[%s467] sm:%s3] %v465
    %s469 = sshrl.u32 %s3, 1
    %s470 = sor.u32 %s3, %s469
    %s471 = sand.u32 %s470, 85
    %s472 = sshrl.u32 %s471, 1
    %s473 = sor.u32 %s471, %s472
    %s474 = sand.u32 51, %s473
    %s475 = sshrl.u32 %s474, 2
    %s476 = sor.u32 %s474, %s475
    %s477 = sand.u32 15, %s476
    %v478 = vld [vmem:[%s0] sm:%s477]
    %v479 = vunpack.c.l.bf16 %v478
    %v480 = vunpack.c.h.bf16 %v478
    %481 = vst [vmem:[#allocation1] sm:%s3] %v479
    %v482 = vld [vmem:[#allocation1] sm:$0x3]
    %vm483 = vcmask 64512
    %484 = vst.msk [vmem:[#allocation0] sm:$0x1] %vm483, %v482
    %s485 = scalar_lea.vmem [#allocation0], 511
    %486 = vst.msk [vmem:[%s485] sm:$0x2] %vm483, %v482
    %s487 = scalar_lea.vmem [#allocation1], 8
    %v488 = vld [vmem:[%s487] sm:$0x3]
    %vm489 = vcmask 64512
    %s490 = scalar_lea.vmem [#allocation0], 16
    %491 = vst.msk [vmem:[%s490] sm:$0x1] %vm489, %v488
    %s492 = scalar_lea.vmem [#allocation0], 527
    %493 = vst.msk [vmem:[%s492] sm:$0x2] %vm489, %v488
    %s494 = scalar_lea.vmem [#allocation1], 16
    %v495 = vld [vmem:[%s494] sm:$0x3]
    %vm496 = vcmask 64512
    %s497 = scalar_lea.vmem [#allocation0], 32
    %498 = vst.msk [vmem:[%s497] sm:$0x1] %vm496, %v495
    %s499 = scalar_lea.vmem [#allocation0], 543
    %500 = vst.msk [vmem:[%s499] sm:$0x2] %vm496, %v495
    %s501 = scalar_lea.vmem [#allocation1], 24
    %v502 = vld [vmem:[%s501] sm:$0x3]
    %vm503 = vcmask 64512
    %s504 = scalar_lea.vmem [#allocation0], 48
    %505 = vst.msk [vmem:[%s504] sm:$0x1] %vm503, %v502
    %s506 = scalar_lea.vmem [#allocation0], 559
    %507 = vst.msk [vmem:[%s506] sm:$0x2] %vm503, %v502
    %s508 = scalar_lea.vmem [#allocation1], 32
    %v509 = vld [vmem:[%s508] sm:$0x3]
    %vm510 = vcmask 64512
    %s511 = scalar_lea.vmem [#allocation0], 64
    %512 = vst.msk [vmem:[%s511] sm:$0x1] %vm510, %v509
    %s513 = scalar_lea.vmem [#allocation0], 575
    %514 = vst.msk [vmem:[%s513] sm:$0x2] %vm510, %v509
    %s515 = scalar_lea.vmem [#allocation1], 40
    %v516 = vld [vmem:[%s515] sm:$0x3]
    %vm517 = vcmask 64512
    %s518 = scalar_lea.vmem [#allocation0], 80
    %519 = vst.msk [vmem:[%s518] sm:$0x1] %vm517, %v516
    %s520 = scalar_lea.vmem [#allocation0], 591
    %521 = vst.msk [vmem:[%s520] sm:$0x2] %vm517, %v516
    %s522 = scalar_lea.vmem [#allocation1], 48
    %v523 = vld [vmem:[%s522] sm:$0x3]
    %vm524 = vcmask 64512
    %s525 = scalar_lea.vmem [#allocation0], 96
    %526 = vst.msk [vmem:[%s525] sm:$0x1] %vm524, %v523
    %s527 = scalar_lea.vmem [#allocation0], 607
    %528 = vst.msk [vmem:[%s527] sm:$0x2] %vm524, %v523
    %s529 = scalar_lea.vmem [#allocation1], 56
    %v530 = vld [vmem:[%s529] sm:$0x3]
    %vm531 = vcmask 64512
    %s532 = scalar_lea.vmem [#allocation0], 112
    %533 = vst.msk [vmem:[%s532] sm:$0x1] %vm531, %v530
    %s534 = scalar_lea.vmem [#allocation0], 623
    %535 = vst.msk [vmem:[%s534] sm:$0x2] %vm531, %v530
    %s536 = scalar_lea.vmem [#allocation1], 64
    %v537 = vld [vmem:[%s536] sm:$0x3]
    %vm538 = vcmask 64512
    %s539 = scalar_lea.vmem [#allocation0], 128
    %540 = vst.msk [vmem:[%s539] sm:$0x1] %vm538, %v537
    %s541 = scalar_lea.vmem [#allocation0], 639
    %542 = vst.msk [vmem:[%s541] sm:$0x2] %vm538, %v537
    %s543 = scalar_lea.vmem [#allocation1], 72
    %v544 = vld [vmem:[%s543] sm:$0x3]
    %vm545 = vcmask 64512
    %s546 = scalar_lea.vmem [#allocation0], 144
    %547 = vst.msk [vmem:[%s546] sm:$0x1] %vm545, %v544
    %s548 = scalar_lea.vmem [#allocation0], 655
    %549 = vst.msk [vmem:[%s548] sm:$0x2] %vm545, %v544
    %s550 = scalar_lea.vmem [#allocation1], 80
    %v551 = vld [vmem:[%s550] sm:$0x3]
    %vm552 = vcmask 64512
    %s553 = scalar_lea.vmem [#allocation0], 160
    %554 = vst.msk [vmem:[%s553] sm:$0x1] %vm552, %v551
    %s555 = scalar_lea.vmem [#allocation0], 671
    %556 = vst.msk [vmem:[%s555] sm:$0x2] %vm552, %v551
    %s557 = scalar_lea.vmem [#allocation1], 88
    %v558 = vld [vmem:[%s557] sm:$0x3]
    %vm559 = vcmask 64512
    %s560 = scalar_lea.vmem [#allocation0], 176
    %561 = vst.msk [vmem:[%s560] sm:$0x1] %vm559, %v558
    %s562 = scalar_lea.vmem [#allocation0], 687
    %563 = vst.msk [vmem:[%s562] sm:$0x2] %vm559, %v558
    %s564 = scalar_lea.vmem [#allocation1], 96
    %v565 = vld [vmem:[%s564] sm:$0x3]
    %vm566 = vcmask 64512
    %s567 = scalar_lea.vmem [#allocation0], 192
    %568 = vst.msk [vmem:[%s567] sm:$0x1] %vm566, %v565
    %s569 = scalar_lea.vmem [#allocation0], 703
    %570 = vst.msk [vmem:[%s569] sm:$0x2] %vm566, %v565
    %s571 = scalar_lea.vmem [#allocation1], 104
    %v572 = vld [vmem:[%s571] sm:$0x3]
    %vm573 = vcmask 64512
    %s574 = scalar_lea.vmem [#allocation0], 208
    %575 = vst.msk [vmem:[%s574] sm:$0x1] %vm573, %v572
    %s576 = scalar_lea.vmem [#allocation0], 719
    %577 = vst.msk [vmem:[%s576] sm:$0x2] %vm573, %v572
    %s578 = scalar_lea.vmem [#allocation1], 112
    %v579 = vld [vmem:[%s578] sm:$0x3]
    %vm580 = vcmask 64512
    %s581 = scalar_lea.vmem [#allocation0], 224
    %582 = vst.msk [vmem:[%s581] sm:$0x1] %vm580, %v579
    %s583 = scalar_lea.vmem [#allocation0], 735
    %584 = vst.msk [vmem:[%s583] sm:$0x2] %vm580, %v579
    %s585 = scalar_lea.vmem [#allocation1], 120
    %v586 = vld [vmem:[%s585] sm:$0x3]
    %vm587 = vcmask 64512
    %s588 = scalar_lea.vmem [#allocation0], 240
    %589 = vst.msk [vmem:[%s588] sm:$0x1] %vm587, %v586
    %s590 = scalar_lea.vmem [#allocation0], 751
    %591 = vst.msk [vmem:[%s590] sm:$0x2] %vm587, %v586
    %s592 = scalar_lea.vmem [#allocation1], 128
    %v593 = vld [vmem:[%s592] sm:$0x3]
    %vm594 = vcmask 64512
    %s595 = scalar_lea.vmem [#allocation0], 256
    %596 = vst.msk [vmem:[%s595] sm:$0x1] %vm594, %v593
    %s597 = scalar_lea.vmem [#allocation0], 767
    %598 = vst.msk [vmem:[%s597] sm:$0x2] %vm594, %v593
    %s599 = scalar_lea.vmem [#allocation1], 136
    %v600 = vld [vmem:[%s599] sm:$0x3]
    %vm601 = vcmask 64512
    %s602 = scalar_lea.vmem [#allocation0], 272
    %603 = vst.msk [vmem:[%s602] sm:$0x1] %vm601, %v600
    %s604 = scalar_lea.vmem [#allocation0], 783
    %605 = vst.msk [vmem:[%s604] sm:$0x2] %vm601, %v600
    %s606 = scalar_lea.vmem [#allocation1], 144
    %v607 = vld [vmem:[%s606] sm:$0x3]
    %vm608 = vcmask 64512
    %s609 = scalar_lea.vmem [#allocation0], 288
    %610 = vst.msk [vmem:[%s609] sm:$0x1] %vm608, %v607
    %s611 = scalar_lea.vmem [#allocation0], 799
    %612 = vst.msk [vmem:[%s611] sm:$0x2] %vm608, %v607
    %s613 = scalar_lea.vmem [#allocation1], 152
    %v614 = vld [vmem:[%s613] sm:$0x3]
    %vm615 = vcmask 64512
    %s616 = scalar_lea.vmem [#allocation0], 304
    %617 = vst.msk [vmem:[%s616] sm:$0x1] %vm615, %v614
    %s618 = scalar_lea.vmem [#allocation0], 815
    %619 = vst.msk [vmem:[%s618] sm:$0x2] %vm615, %v614
    %s620 = scalar_lea.vmem [#allocation1], 160
    %v621 = vld [vmem:[%s620] sm:$0x3]
    %vm622 = vcmask 64512
    %s623 = scalar_lea.vmem [#allocation0], 320
    %624 = vst.msk [vmem:[%s623] sm:$0x1] %vm622, %v621
    %s625 = scalar_lea.vmem [#allocation0], 831
    %626 = vst.msk [vmem:[%s625] sm:$0x2] %vm622, %v621
    %s627 = scalar_lea.vmem [#allocation1], 168
    %v628 = vld [vmem:[%s627] sm:$0x3]
    %vm629 = vcmask 64512
    %s630 = scalar_lea.vmem [#allocation0], 336
    %631 = vst.msk [vmem:[%s630] sm:$0x1] %vm629, %v628
    %s632 = scalar_lea.vmem [#allocation0], 847
    %633 = vst.msk [vmem:[%s632] sm:$0x2] %vm629, %v628
    %s634 = scalar_lea.vmem [#allocation1], 176
    %v635 = vld [vmem:[%s634] sm:$0x3]
    %vm636 = vcmask 64512
    %s637 = scalar_lea.vmem [#allocation0], 352
    %638 = vst.msk [vmem:[%s637] sm:$0x1] %vm636, %v635
    %s639 = scalar_lea.vmem [#allocation0], 863
    %640 = vst.msk [vmem:[%s639] sm:$0x2] %vm636, %v635
    %s641 = scalar_lea.vmem [#allocation1], 184
    %v642 = vld [vmem:[%s641] sm:$0x3]
    %vm643 = vcmask 64512
    %s644 = scalar_lea.vmem [#allocation0], 368
    %645 = vst.msk [vmem:[%s644] sm:$0x1] %vm643, %v642
    %s646 = scalar_lea.vmem [#allocation0], 879
    %647 = vst.msk [vmem:[%s646] sm:$0x2] %vm643, %v642
    %s648 = scalar_lea.vmem [#allocation1], 192
    %v649 = vld [vmem:[%s648] sm:$0x3]
    %vm650 = vcmask 64512
    %s651 = scalar_lea.vmem [#allocation0], 384
    %652 = vst.msk [vmem:[%s651] sm:$0x1] %vm650, %v649
    %s653 = scalar_lea.vmem [#allocation0], 895
    %654 = vst.msk [vmem:[%s653] sm:$0x2] %vm650, %v649
    %s655 = scalar_lea.vmem [#allocation1], 200
    %v656 = vld [vmem:[%s655] sm:$0x3]
    %vm657 = vcmask 64512
    %s658 = scalar_lea.vmem [#allocation0], 400
    %659 = vst.msk [vmem:[%s658] sm:$0x1] %vm657, %v656
    %s660 = scalar_lea.vmem [#allocation0], 911
    %661 = vst.msk [vmem:[%s660] sm:$0x2] %vm657, %v656
    %s662 = scalar_lea.vmem [#allocation1], 208
    %v663 = vld [vmem:[%s662] sm:$0x3]
    %vm664 = vcmask 64512
    %s665 = scalar_lea.vmem [#allocation0], 416
    %666 = vst.msk [vmem:[%s665] sm:$0x1] %vm664, %v663
    %s667 = scalar_lea.vmem [#allocation0], 927
    %668 = vst.msk [vmem:[%s667] sm:$0x2] %vm664, %v663
    %s669 = scalar_lea.vmem [#allocation1], 216
    %v670 = vld [vmem:[%s669] sm:$0x3]
    %vm671 = vcmask 64512
    %s672 = scalar_lea.vmem [#allocation0], 432
    %673 = vst.msk [vmem:[%s672] sm:$0x1] %vm671, %v670
    %s674 = scalar_lea.vmem [#allocation0], 943
    %675 = vst.msk [vmem:[%s674] sm:$0x2] %vm671, %v670
    %s676 = scalar_lea.vmem [#allocation1], 224
    %v677 = vld [vmem:[%s676] sm:$0x3]
    %vm678 = vcmask 64512
    %s679 = scalar_lea.vmem [#allocation0], 448
    %680 = vst.msk [vmem:[%s679] sm:$0x1] %vm678, %v677
    %s681 = scalar_lea.vmem [#allocation0], 959
    %682 = vst.msk [vmem:[%s681] sm:$0x2] %vm678, %v677
    %s683 = scalar_lea.vmem [#allocation1], 232
    %v684 = vld [vmem:[%s683] sm:$0x3]
    %vm685 = vcmask 64512
    %s686 = scalar_lea.vmem [#allocation0], 464
    %687 = vst.msk [vmem:[%s686] sm:$0x1] %vm685, %v684
    %s688 = scalar_lea.vmem [#allocation0], 975
    %689 = vst.msk [vmem:[%s688] sm:$0x2] %vm685, %v684
    %s690 = scalar_lea.vmem [#allocation1], 240
    %v691 = vld [vmem:[%s690] sm:$0x3]
    %vm692 = vcmask 64512
    %s693 = scalar_lea.vmem [#allocation0], 480
    %694 = vst.msk [vmem:[%s693] sm:$0x1] %vm692, %v691
    %s695 = scalar_lea.vmem [#allocation0], 991
    %696 = vst.msk [vmem:[%s695] sm:$0x2] %vm692, %v691
    %s697 = scalar_lea.vmem [#allocation1], 248
    %v698 = vld [vmem:[%s697] sm:$0x3]
    %vm699 = vcmask 64512
    %s700 = scalar_lea.vmem [#allocation0], 496
    %701 = vst.msk [vmem:[%s700] sm:$0x1] %vm699, %v698
    %s702 = scalar_lea.vmem [#allocation0], 1007
    %703 = vst.msk [vmem:[%s702] sm:$0x2] %vm699, %v698
    %v704 = vld.sshfl [vmem:[#allocation1] sm:$0xff pattern:$0x99999180]
    %s705 = scalar_lea.vmem [#allocation1], 16
    %v706 = vld.sshfl [vmem:[%s705] sm:$0xff pattern:$0x91800000]
    %vm707 = vcmask 1047556
    %v708 = vsel %vm707, %v706, %v704
    %709 = vrot.lane.b32.xlu0 %v708, 120
    %v710 = vpop.permute.xlu0 %709
    %vm711 = vcmask 64512
    %s712 = scalar_lea.vmem [#allocation0], 1
    %713 = vst.msk [vmem:[%s712] ss:$16 sm:$0x3] %vm711, %v710
    %s714 = scalar_lea.vmem [#allocation0], 481
    %715 = vst.msk [vmem:[%s714] ss:$16 sm:$0xc] %vm711, %v710
    %s716 = scalar_lea.vmem [#allocation0], 4294967265
    %717 = vst.msk [vmem:[%s716] ss:$16 sm:$0x30] %vm711, %v710
    %s718 = scalar_lea.vmem [#allocation0], 449
    %719 = vst.msk [vmem:[%s718] ss:$16 sm:$0xc0] %vm711, %v710
    %s720 = scalar_lea.vmem [#allocation1], 32
    %v721 = vld.sshfl [vmem:[%s720] sm:$0xff pattern:$0x99999180]
    %s722 = scalar_lea.vmem [#allocation1], 48
    %v723 = vld.sshfl [vmem:[%s722] sm:$0xff pattern:$0x91800000]
    %vm724 = vcmask 1047556
    %v725 = vsel %vm724, %v723, %v721
    %726 = vrot.lane.b32.xlu0 %v725, 120
    %v727 = vpop.permute.xlu0 %726
    %vm728 = vcmask 64512
    %s729 = scalar_lea.vmem [#allocation0], 65
    %730 = vst.msk [vmem:[%s729] ss:$16 sm:$0x3] %vm728, %v727
    %s731 = scalar_lea.vmem [#allocation0], 545
    %732 = vst.msk [vmem:[%s731] ss:$16 sm:$0xc] %vm728, %v727
    %s733 = scalar_lea.vmem [#allocation0], 33
    %734 = vst.msk [vmem:[%s733] ss:$16 sm:$0x30] %vm728, %v727
    %s735 = scalar_lea.vmem [#allocation0], 513
    %736 = vst.msk [vmem:[%s735] ss:$16 sm:$0xc0] %vm728, %v727
    %s737 = scalar_lea.vmem [#allocation1], 64
    %v738 = vld.sshfl [vmem:[%s737] sm:$0xff pattern:$0x99999180]
    %s739 = scalar_lea.vmem [#allocation1], 80
    %v740 = vld.sshfl [vmem:[%s739] sm:$0xff pattern:$0x91800000]
    %vm741 = vcmask 1047556
    %v742 = vsel %vm741, %v740, %v738
    %743 = vrot.lane.b32.xlu0 %v742, 120
    %v744 = vpop.permute.xlu0 %743
    %vm745 = vcmask 64512
    %s746 = scalar_lea.vmem [#allocation0], 129
    %747 = vst.msk [vmem:[%s746] ss:$16 sm:$0x3] %vm745, %v744
    %s748 = scalar_lea.vmem [#allocation0], 609
    %749 = vst.msk [vmem:[%s748] ss:$16 sm:$0xc] %vm745, %v744
    %s750 = scalar_lea.vmem [#allocation0], 97
    %751 = vst.msk [vmem:[%s750] ss:$16 sm:$0x30] %vm745, %v744
    %s752 = scalar_lea.vmem [#allocation0], 577
    %753 = vst.msk [vmem:[%s752] ss:$16 sm:$0xc0] %vm745, %v744
    %s754 = scalar_lea.vmem [#allocation1], 96
    %v755 = vld.sshfl [vmem:[%s754] sm:$0xff pattern:$0x99999180]
    %s756 = scalar_lea.vmem [#allocation1], 112
    %v757 = vld.sshfl [vmem:[%s756] sm:$0xff pattern:$0x91800000]
    %vm758 = vcmask 1047556
    %v759 = vsel %vm758, %v757, %v755
    %760 = vrot.lane.b32.xlu0 %v759, 120
    %v761 = vpop.permute.xlu0 %760
    %vm762 = vcmask 64512
    %s763 = scalar_lea.vmem [#allocation0], 193
    %764 = vst.msk [vmem:[%s763] ss:$16 sm:$0x3] %vm762, %v761
    %s765 = scalar_lea.vmem [#allocation0], 673
    %766 = vst.msk [vmem:[%s765] ss:$16 sm:$0xc] %vm762, %v761
    %s767 = scalar_lea.vmem [#allocation0], 161
    %768 = vst.msk [vmem:[%s767] ss:$16 sm:$0x30] %vm762, %v761
    %s769 = scalar_lea.vmem [#allocation0], 641
    %770 = vst.msk [vmem:[%s769] ss:$16 sm:$0xc0] %vm762, %v761
    %s771 = scalar_lea.vmem [#allocation1], 128
    %v772 = vld.sshfl [vmem:[%s771] sm:$0xff pattern:$0x99999180]
    %s773 = scalar_lea.vmem [#allocation1], 144
    %v774 = vld.sshfl [vmem:[%s773] sm:$0xff pattern:$0x91800000]
    %vm775 = vcmask 1047556
    %v776 = vsel %vm775, %v774, %v772
    %777 = vrot.lane.b32.xlu0 %v776, 120
    %v778 = vpop.permute.xlu0 %777
    %vm779 = vcmask 64512
    %s780 = scalar_lea.vmem [#allocation0], 257
    %781 = vst.msk [vmem:[%s780] ss:$16 sm:$0x3] %vm779, %v778
    %s782 = scalar_lea.vmem [#allocation0], 737
    %783 = vst.msk [vmem:[%s782] ss:$16 sm:$0xc] %vm779, %v778
    %s784 = scalar_lea.vmem [#allocation0], 225
    %785 = vst.msk [vmem:[%s784] ss:$16 sm:$0x30] %vm779, %v778
    %s786 = scalar_lea.vmem [#allocation0], 705
    %787 = vst.msk [vmem:[%s786] ss:$16 sm:$0xc0] %vm779, %v778
    %s788 = scalar_lea.vmem [#allocation1], 160
    %v789 = vld.sshfl [vmem:[%s788] sm:$0xff pattern:$0x99999180]
    %s790 = scalar_lea.vmem [#allocation1], 176
    %v791 = vld.sshfl [vmem:[%s790] sm:$0xff pattern:$0x91800000]
    %vm792 = vcmask 1047556
    %v793 = vsel %vm792, %v791, %v789
    %794 = vrot.lane.b32.xlu0 %v793, 120
    %v795 = vpop.permute.xlu0 %794
    %vm796 = vcmask 64512
    %s797 = scalar_lea.vmem [#allocation0], 321
    %798 = vst.msk [vmem:[%s797] ss:$16 sm:$0x3] %vm796, %v795
    %s799 = scalar_lea.vmem [#allocation0], 801
    %800 = vst.msk [vmem:[%s799] ss:$16 sm:$0xc] %vm796, %v795
    %s801 = scalar_lea.vmem [#allocation0], 289
    %802 = vst.msk [vmem:[%s801] ss:$16 sm:$0x30] %vm796, %v795
    %s803 = scalar_lea.vmem [#allocation0], 769
    %804 = vst.msk [vmem:[%s803] ss:$16 sm:$0xc0] %vm796, %v795
    %s805 = scalar_lea.vmem [#allocation1], 192
    %v806 = vld.sshfl [vmem:[%s805] sm:$0xff pattern:$0x99999180]
    %s807 = scalar_lea.vmem [#allocation1], 208
    %v808 = vld.sshfl [vmem:[%s807] sm:$0xff pattern:$0x91800000]
    %vm809 = vcmask 1047556
    %v810 = vsel %vm809, %v808, %v806
    %811 = vrot.lane.b32.xlu0 %v810, 120
    %v812 = vpop.permute.xlu0 %811
    %vm813 = vcmask 64512
    %s814 = scalar_lea.vmem [#allocation0], 385
    %815 = vst.msk [vmem:[%s814] ss:$16 sm:$0x3] %vm813, %v812
    %s816 = scalar_lea.vmem [#allocation0], 865
    %817 = vst.msk [vmem:[%s816] ss:$16 sm:$0xc] %vm813, %v812
    %s818 = scalar_lea.vmem [#allocation0], 353
    %819 = vst.msk [vmem:[%s818] ss:$16 sm:$0x30] %vm813, %v812
    %s820 = scalar_lea.vmem [#allocation0], 833
    %821 = vst.msk [vmem:[%s820] ss:$16 sm:$0xc0] %vm813, %v812
    %s822 = scalar_lea.vmem [#allocation1], 224
    %v823 = vld.sshfl [vmem:[%s822] sm:$0xff pattern:$0x99999180]
    %s824 = scalar_lea.vmem [#allocation1], 240
    %v825 = vld.sshfl [vmem:[%s824] sm:$0xff pattern:$0x91800000]
    %vm826 = vcmask 1047556
    %v827 = vsel %vm826, %v825, %v823
    %828 = vrot.lane.b32.xlu0 %v827, 120
    %v829 = vpop.permute.xlu0 %828
    %vm830 = vcmask 64512
    %s831 = scalar_lea.vmem [#allocation0], 449
    %832 = vst.msk [vmem:[%s831] ss:$16 sm:$0x3] %vm830, %v829
    %s833 = scalar_lea.vmem [#allocation0], 929
    %834 = vst.msk [vmem:[%s833] ss:$16 sm:$0xc] %vm830, %v829
    %s835 = scalar_lea.vmem [#allocation0], 417
    %836 = vst.msk [vmem:[%s835] ss:$16 sm:$0x30] %vm830, %v829
    %s837 = scalar_lea.vmem [#allocation0], 897
    %838 = vst.msk [vmem:[%s837] ss:$16 sm:$0xc0] %vm830, %v829
    %v839 = vld.sshfl [vmem:[#allocation1] sm:$0xff pattern:$0x99999180]
    %s840 = scalar_lea.vmem [#allocation1], 16
    %v841 = vld.sshfl [vmem:[%s840] sm:$0xff pattern:$0x91800000]
    %vm842 = vcmask 1047556
    %v843 = vsel %vm842, %v841, %v839
    %844 = vrot.lane.b32.xlu0 %v843, 112
    %v845 = vpop.permute.xlu0 %844
    %vm846 = vcmask 64512
    %s847 = scalar_lea.vmem [#allocation0], 2
    %848 = vst.msk [vmem:[%s847] ss:$16 sm:$0x3] %vm846, %v845
    %s849 = scalar_lea.vmem [#allocation0], 482
    %850 = vst.msk [vmem:[%s849] ss:$16 sm:$0xc] %vm846, %v845
    %s851 = scalar_lea.vmem [#allocation0], 4294967266
    %852 = vst.msk [vmem:[%s851] ss:$16 sm:$0x30] %vm846, %v845
    %s853 = scalar_lea.vmem [#allocation0], 450
    %854 = vst.msk [vmem:[%s853] ss:$16 sm:$0xc0] %vm846, %v845
    %s855 = scalar_lea.vmem [#allocation1], 32
    %v856 = vld.sshfl [vmem:[%s855] sm:$0xff pattern:$0x99999180]
    %s857 = scalar_lea.vmem [#allocation1], 48
    %v858 = vld.sshfl [vmem:[%s857] sm:$0xff pattern:$0x91800000]
    %vm859 = vcmask 1047556
    %v860 = vsel %vm859, %v858, %v856
    %861 = vrot.lane.b32.xlu0 %v860, 112
    %v862 = vpop.permute.xlu0 %861
    %vm863 = vcmask 64512
    %s864 = scalar_lea.vmem [#allocation0], 66
    %865 = vst.msk [vmem:[%s864] ss:$16 sm:$0x3] %vm863, %v862
    %s866 = scalar_lea.vmem [#allocation0], 546
    %867 = vst.msk [vmem:[%s866] ss:$16 sm:$0xc] %vm863, %v862
    %s868 = scalar_lea.vmem [#allocation0], 34
    %869 = vst.msk [vmem:[%s868] ss:$16 sm:$0x30] %vm863, %v862
    %s870 = scalar_lea.vmem [#allocation0], 514
    %871 = vst.msk [vmem:[%s870] ss:$16 sm:$0xc0] %vm863, %v862
    %s872 = scalar_lea.vmem [#allocation1], 64
    %v873 = vld.sshfl [vmem:[%s872] sm:$0xff pattern:$0x99999180]
    %s874 = scalar_lea.vmem [#allocation1], 80
    %v875 = vld.sshfl [vmem:[%s874] sm:$0xff pattern:$0x91800000]
    %vm876 = vcmask 1047556
    %v877 = vsel %vm876, %v875, %v873
    %878 = vrot.lane.b32.xlu0 %v877, 112
    %v879 = vpop.permute.xlu0 %878
    %vm880 = vcmask 64512
    %s881 = scalar_lea.vmem [#allocation0], 130
    %882 = vst.msk [vmem:[%s881] ss:$16 sm:$0x3] %vm880, %v879
    %s883 = scalar_lea.vmem [#allocation0], 610
    %884 = vst.msk [vmem:[%s883] ss:$16 sm:$0xc] %vm880, %v879
    %s885 = scalar_lea.vmem [#allocation0], 98
    %886 = vst.msk [vmem:[%s885] ss:$16 sm:$0x30] %vm880, %v879
    %s887 = scalar_lea.vmem [#allocation0], 578
    %888 = vst.msk [vmem:[%s887] ss:$16 sm:$0xc0] %vm880, %v879
    %s889 = scalar_lea.vmem [#allocation1], 96
    %v890 = vld.sshfl [vmem:[%s889] sm:$0xff pattern:$0x99999180]
    %s891 = scalar_lea.vmem [#allocation1], 112
    %v892 = vld.sshfl [vmem:[%s891] sm:$0xff pattern:$0x91800000]
    %vm893 = vcmask 1047556
    %v894 = vsel %vm893, %v892, %v890
    %895 = vrot.lane.b32.xlu0 %v894, 112
    %v896 = vpop.permute.xlu0 %895
    %vm897 = vcmask 64512
    %s898 = scalar_lea.vmem [#allocation0], 194
    %899 = vst.msk [vmem:[%s898] ss:$16 sm:$0x3] %vm897, %v896
    %s900 = scalar_lea.vmem [#allocation0], 674
    %901 = vst.msk [vmem:[%s900] ss:$16 sm:$0xc] %vm897, %v896
    %s902 = scalar_lea.vmem [#allocation0], 162
    %903 = vst.msk [vmem:[%s902] ss:$16 sm:$0x30] %vm897, %v896
    %s904 = scalar_lea.vmem [#allocation0], 642
    %905 = vst.msk [vmem:[%s904] ss:$16 sm:$0xc0] %vm897, %v896
    %s906 = scalar_lea.vmem [#allocation1], 128
    %v907 = vld.sshfl [vmem:[%s906] sm:$0xff pattern:$0x99999180]
    %s908 = scalar_lea.vmem [#allocation1], 144
    %v909 = vld.sshfl [vmem:[%s908] sm:$0xff pattern:$0x91800000]
    %vm910 = vcmask 1047556
    %v911 = vsel %vm910, %v909, %v907
    %912 = vrot.lane.b32.xlu0 %v911, 112
    %v913 = vpop.permute.xlu0 %912
    %vm914 = vcmask 64512
    %s915 = scalar_lea.vmem [#allocation0], 258
    %916 = vst.msk [vmem:[%s915] ss:$16 sm:$0x3] %vm914, %v913
    %s917 = scalar_lea.vmem [#allocation0], 738
    %918 = vst.msk [vmem:[%s917] ss:$16 sm:$0xc] %vm914, %v913
    %s919 = scalar_lea.vmem [#allocation0], 226
    %920 = vst.msk [vmem:[%s919] ss:$16 sm:$0x30] %vm914, %v913
    %s921 = scalar_lea.vmem [#allocation0], 706
    %922 = vst.msk [vmem:[%s921] ss:$16 sm:$0xc0] %vm914, %v913
    %s923 = scalar_lea.vmem [#allocation1], 160
    %v924 = vld.sshfl [vmem:[%s923] sm:$0xff pattern:$0x99999180]
    %s925 = scalar_lea.vmem [#allocation1], 176
    %v926 = vld.sshfl [vmem:[%s925] sm:$0xff pattern:$0x91800000]
    %vm927 = vcmask 1047556
    %v928 = vsel %vm927, %v926, %v924
    %929 = vrot.lane.b32.xlu0 %v928, 112
    %v930 = vpop.permute.xlu0 %929
    %vm931 = vcmask 64512
    %s932 = scalar_lea.vmem [#allocation0], 322
    %933 = vst.msk [vmem:[%s932] ss:$16 sm:$0x3] %vm931, %v930
    %s934 = scalar_lea.vmem [#allocation0], 802
    %935 = vst.msk [vmem:[%s934] ss:$16 sm:$0xc] %vm931, %v930
    %s936 = scalar_lea.vmem [#allocation0], 290
    %937 = vst.msk [vmem:[%s936] ss:$16 sm:$0x30] %vm931, %v930
    %s938 = scalar_lea.vmem [#allocation0], 770
    %939 = vst.msk [vmem:[%s938] ss:$16 sm:$0xc0] %vm931, %v930
    %s940 = scalar_lea.vmem [#allocation1], 192
    %v941 = vld.sshfl [vmem:[%s940] sm:$0xff pattern:$0x99999180]
    %s942 = scalar_lea.vmem [#allocation1], 208
    %v943 = vld.sshfl [vmem:[%s942] sm:$0xff pattern:$0x91800000]
    %vm944 = vcmask 1047556
    %v945 = vsel %vm944, %v943, %v941
    %946 = vrot.lane.b32.xlu0 %v945, 112
    %v947 = vpop.permute.xlu0 %946
    %vm948 = vcmask 64512
    %s949 = scalar_lea.vmem [#allocation0], 386
    %950 = vst.msk [vmem:[%s949] ss:$16 sm:$0x3] %vm948, %v947
    %s951 = scalar_lea.vmem [#allocation0], 866
    %952 = vst.msk [vmem:[%s951] ss:$16 sm:$0xc] %vm948, %v947
    %s953 = scalar_lea.vmem [#allocation0], 354
    %954 = vst.msk [vmem:[%s953] ss:$16 sm:$0x30] %vm948, %v947
    %s955 = scalar_lea.vmem [#allocation0], 834
    %956 = vst.msk [vmem:[%s955] ss:$16 sm:$0xc0] %vm948, %v947
    %s957 = scalar_lea.vmem [#allocation1], 224
    %v958 = vld.sshfl [vmem:[%s957] sm:$0xff pattern:$0x99999180]
    %s959 = scalar_lea.vmem [#allocation1], 240
    %v960 = vld.sshfl [vmem:[%s959] sm:$0xff pattern:$0x91800000]
    %vm961 = vcmask 1047556
    %v962 = vsel %vm961, %v960, %v958
    %963 = vrot.lane.b32.xlu0 %v962, 112
    %v964 = vpop.permute.xlu0 %963
    %vm965 = vcmask 64512
    %s966 = scalar_lea.vmem [#allocation0], 450
    %967 = vst.msk [vmem:[%s966] ss:$16 sm:$0x3] %vm965, %v964
    %s968 = scalar_lea.vmem [#allocation0], 930
    %969 = vst.msk [vmem:[%s968] ss:$16 sm:$0xc] %vm965, %v964
    %s970 = scalar_lea.vmem [#allocation0], 418
    %971 = vst.msk [vmem:[%s970] ss:$16 sm:$0x30] %vm965, %v964
    %s972 = scalar_lea.vmem [#allocation0], 898
    %973 = vst.msk [vmem:[%s972] ss:$16 sm:$0xc0] %vm965, %v964
    %v974 = vld.sshfl [vmem:[#allocation1] sm:$0xff pattern:$0x99999180]
    %s975 = scalar_lea.vmem [#allocation1], 16
    %v976 = vld.sshfl [vmem:[%s975] sm:$0xff pattern:$0x91800000]
    %vm977 = vcmask 1047556
    %v978 = vsel %vm977, %v976, %v974
    %979 = vrot.lane.b32.xlu0 %v978, 104
    %v980 = vpop.permute.xlu0 %979
    %vm981 = vcmask 64512
    %s982 = scalar_lea.vmem [#allocation0], 3
    %983 = vst.msk [vmem:[%s982] ss:$16 sm:$0x3] %vm981, %v980
    %s984 = scalar_lea.vmem [#allocation0], 483
    %985 = vst.msk [vmem:[%s984] ss:$16 sm:$0xc] %vm981, %v980
    %s986 = scalar_lea.vmem [#allocation0], 4294967267
    %987 = vst.msk [vmem:[%s986] ss:$16 sm:$0x30] %vm981, %v980
    %s988 = scalar_lea.vmem [#allocation0], 451
    %989 = vst.msk [vmem:[%s988] ss:$16 sm:$0xc0] %vm981, %v980
    %s990 = scalar_lea.vmem [#allocation1], 32
    %v991 = vld.sshfl [vmem:[%s990] sm:$0xff pattern:$0x99999180]
    %s992 = scalar_lea.vmem [#allocation1], 48
    %v993 = vld.sshfl [vmem:[%s992] sm:$0xff pattern:$0x91800000]
    %vm994 = vcmask 1047556
    %v995 = vsel %vm994, %v993, %v991
    %996 = vrot.lane.b32.xlu0 %v995, 104
    %v997 = vpop.permute.xlu0 %996
    %vm998 = vcmask 64512
    %s999 = scalar_lea.vmem [#allocation0], 67
    %1000 = vst.msk [vmem:[%s999] ss:$16 sm:$0x3] %vm998, %v997
    %s1001 = scalar_lea.vmem [#allocation0], 547
    %1002 = vst.msk [vmem:[%s1001] ss:$16 sm:$0xc] %vm998, %v997
    %s1003 = scalar_lea.vmem [#allocation0], 35
    %1004 = vst.msk [vmem:[%s1003] ss:$16 sm:$0x30] %vm998, %v997
    %s1005 = scalar_lea.vmem [#allocation0], 515
    %1006 = vst.msk [vmem:[%s1005] ss:$16 sm:$0xc0] %vm998, %v997
    %s1007 = scalar_lea.vmem [#allocation1], 64
    %v1008 = vld.sshfl [vmem:[%s1007] sm:$0xff pattern:$0x99999180]
    %s1009 = scalar_lea.vmem [#allocation1], 80
    %v1010 = vld.sshfl [vmem:[%s1009] sm:$0xff pattern:$0x91800000]
    %vm1011 = vcmask 1047556
    %v1012 = vsel %vm1011, %v1010, %v1008
    %1013 = vrot.lane.b32.xlu0 %v1012, 104
    %v1014 = vpop.permute.xlu0 %1013
    %vm1015 = vcmask 64512
    %s1016 = scalar_lea.vmem [#allocation0], 131
    %1017 = vst.msk [vmem:[%s1016] ss:$16 sm:$0x3] %vm1015, %v1014
    %s1018 = scalar_lea.vmem [#allocation0], 611
    %1019 = vst.msk [vmem:[%s1018] ss:$16 sm:$0xc] %vm1015, %v1014
    %s1020 = scalar_lea.vmem [#allocation0], 99
    %1021 = vst.msk [vmem:[%s1020] ss:$16 sm:$0x30] %vm1015, %v1014
    %s1022 = scalar_lea.vmem [#allocation0], 579
    %1023 = vst.msk [vmem:[%s1022] ss:$16 sm:$0xc0] %vm1015, %v1014
    %s1024 = scalar_lea.vmem [#allocation1], 96
    %v1025 = vld.sshfl [vmem:[%s1024] sm:$0xff pattern:$0x99999180]
    %s1026 = scalar_lea.vmem [#allocation1], 112
    %v1027 = vld.sshfl [vmem:[%s1026] sm:$0xff pattern:$0x91800000]
    %vm1028 = vcmask 1047556
    %v1029 = vsel %vm1028, %v1027, %v1025
    %1030 = vrot.lane.b32.xlu0 %v1029, 104
    %v1031 = vpop.permute.xlu0 %1030
    %vm1032 = vcmask 64512
    %s1033 = scalar_lea.vmem [#allocation0], 195
    %1034 = vst.msk [vmem:[%s1033] ss:$16 sm:$0x3] %vm1032, %v1031
    %s1035 = scalar_lea.vmem [#allocation0], 675
    %1036 = vst.msk [vmem:[%s1035] ss:$16 sm:$0xc] %vm1032, %v1031
    %s1037 = scalar_lea.vmem [#allocation0], 163
    %1038 = vst.msk [vmem:[%s1037] ss:$16 sm:$0x30] %vm1032, %v1031
    %s1039 = scalar_lea.vmem [#allocation0], 643
    %1040 = vst.msk [vmem:[%s1039] ss:$16 sm:$0xc0] %vm1032, %v1031
    %s1041 = scalar_lea.vmem [#allocation1], 128
    %v1042 = vld.sshfl [vmem:[%s1041] sm:$0xff pattern:$0x99999180]
    %s1043 = scalar_lea.vmem [#allocation1], 144
    %v1044 = vld.sshfl [vmem:[%s1043] sm:$0xff pattern:$0x91800000]
    %vm1045 = vcmask 1047556
    %v1046 = vsel %vm1045, %v1044, %v1042
    %1047 = vrot.lane.b32.xlu0 %v1046, 104
    %v1048 = vpop.permute.xlu0 %1047
    %vm1049 = vcmask 64512
    %s1050 = scalar_lea.vmem [#allocation0], 259
    %1051 = vst.msk [vmem:[%s1050] ss:$16 sm:$0x3] %vm1049, %v1048
    %s1052 = scalar_lea.vmem [#allocation0], 739
    %1053 = vst.msk [vmem:[%s1052] ss:$16 sm:$0xc] %vm1049, %v1048
    %s1054 = scalar_lea.vmem [#allocation0], 227
    %1055 = vst.msk [vmem:[%s1054] ss:$16 sm:$0x30] %vm1049, %v1048
    %s1056 = scalar_lea.vmem [#allocation0], 707
    %1057 = vst.msk [vmem:[%s1056] ss:$16 sm:$0xc0] %vm1049, %v1048
    %s1058 = scalar_lea.vmem [#allocation1], 160
    %v1059 = vld.sshfl [vmem:[%s1058] sm:$0xff pattern:$0x99999180]
    %s1060 = scalar_lea.vmem [#allocation1], 176
    %v1061 = vld.sshfl [vmem:[%s1060] sm:$0xff pattern:$0x91800000]
    %vm1062 = vcmask 1047556
    %v1063 = vsel %vm1062, %v1061, %v1059
    %1064 = vrot.lane.b32.xlu0 %v1063, 104
    %v1065 = vpop.permute.xlu0 %1064
    %vm1066 = vcmask 64512
    %s1067 = scalar_lea.vmem [#allocation0], 323
    %1068 = vst.msk [vmem:[%s1067] ss:$16 sm:$0x3] %vm1066, %v1065
    %s1069 = scalar_lea.vmem [#allocation0], 803
    %1070 = vst.msk [vmem:[%s1069] ss:$16 sm:$0xc] %vm1066, %v1065
    %s1071 = scalar_lea.vmem [#allocation0], 291
    %1072 = vst.msk [vmem:[%s1071] ss:$16 sm:$0x30] %vm1066, %v1065
    %s1073 = scalar_lea.vmem [#allocation0], 771
    %1074 = vst.msk [vmem:[%s1073] ss:$16 sm:$0xc0] %vm1066, %v1065
    %s1075 = scalar_lea.vmem [#allocation1], 192
    %v1076 = vld.sshfl [vmem:[%s1075] sm:$0xff pattern:$0x99999180]
    %s1077 = scalar_lea.vmem [#allocation1], 208
    %v1078 = vld.sshfl [vmem:[%s1077] sm:$0xff pattern:$0x91800000]
    %vm1079 = vcmask 1047556
    %v1080 = vsel %vm1079, %v1078, %v1076
    %1081 = vrot.lane.b32.xlu0 %v1080, 104
    %v1082 = vpop.permute.xlu0 %1081
    %vm1083 = vcmask 64512
    %s1084 = scalar_lea.vmem [#allocation0], 387
    %1085 = vst.msk [vmem:[%s1084] ss:$16 sm:$0x3] %vm1083, %v1082
    %s1086 = scalar_lea.vmem [#allocation0], 867
    %1087 = vst.msk [vmem:[%s1086] ss:$16 sm:$0xc] %vm1083, %v1082
    %s1088 = scalar_lea.vmem [#allocation0], 355
    %1089 = vst.msk [vmem:[%s1088] ss:$16 sm:$0x30] %vm1083, %v1082
    %s1090 = scalar_lea.vmem [#allocation0], 835
    %1091 = vst.msk [vmem:[%s1090] ss:$16 sm:$0xc0] %vm1083, %v1082
    %s1092 = scalar_lea.vmem [#allocation1], 224
    %v1093 = vld.sshfl [vmem:[%s1092] sm:$0xff pattern:$0x99999180]
    %s1094 = scalar_lea.vmem [#allocation1], 240
    %v1095 = vld.sshfl [vmem:[%s1094] sm:$0xff pattern:$0x91800000]
    %vm1096 = vcmask 1047556
    %v1097 = vsel %vm1096, %v1095, %v1093
    %1098 = vrot.lane.b32.xlu0 %v1097, 104
    %v1099 = vpop.permute.xlu0 %1098
    %vm1100 = vcmask 64512
    %s1101 = scalar_lea.vmem [#allocation0], 451
    %1102 = vst.msk [vmem:[%s1101] ss:$16 sm:$0x3] %vm1100, %v1099
    %s1103 = scalar_lea.vmem [#allocation0], 931
    %1104 = vst.msk [vmem:[%s1103] ss:$16 sm:$0xc] %vm1100, %v1099
    %s1105 = scalar_lea.vmem [#allocation0], 419
    %1106 = vst.msk [vmem:[%s1105] ss:$16 sm:$0x30] %vm1100, %v1099
    %s1107 = scalar_lea.vmem [#allocation0], 899
    %1108 = vst.msk [vmem:[%s1107] ss:$16 sm:$0xc0] %vm1100, %v1099
    %v1109 = vld.sshfl [vmem:[#allocation1] sm:$0xff pattern:$0x99999180]
    %s1110 = scalar_lea.vmem [#allocation1], 16
    %v1111 = vld.sshfl [vmem:[%s1110] sm:$0xff pattern:$0x91800000]
    %vm1112 = vcmask 1047556
    %v1113 = vsel %vm1112, %v1111, %v1109
    %1114 = vrot.lane.b32.xlu0 %v1113, 96
    %v1115 = vpop.permute.xlu0 %1114
    %vm1116 = vcmask 64512
    %s1117 = scalar_lea.vmem [#allocation0], 4
    %1118 = vst.msk [vmem:[%s1117] ss:$16 sm:$0x3] %vm1116, %v1115
    %s1119 = scalar_lea.vmem [#allocation0], 484
    %1120 = vst.msk [vmem:[%s1119] ss:$16 sm:$0xc] %vm1116, %v1115
    %s1121 = scalar_lea.vmem [#allocation0], 4294967268
    %1122 = vst.msk [vmem:[%s1121] ss:$16 sm:$0x30] %vm1116, %v1115
    %s1123 = scalar_lea.vmem [#allocation0], 452
    %1124 = vst.msk [vmem:[%s1123] ss:$16 sm:$0xc0] %vm1116, %v1115
    %s1125 = scalar_lea.vmem [#allocation1], 32
    %v1126 = vld.sshfl [vmem:[%s1125] sm:$0xff pattern:$0x99999180]
    %s1127 = scalar_lea.vmem [#allocation1], 48
    %v1128 = vld.sshfl [vmem:[%s1127] sm:$0xff pattern:$0x91800000]
    %vm1129 = vcmask 1047556
    %v1130 = vsel %vm1129, %v1128, %v1126
    %1131 = vrot.lane.b32.xlu0 %v1130, 96
    %v1132 = vpop.permute.xlu0 %1131
    %vm1133 = vcmask 64512
    %s1134 = scalar_lea.vmem [#allocation0], 68
    %1135 = vst.msk [vmem:[%s1134] ss:$16 sm:$0x3] %vm1133, %v1132
    %s1136 = scalar_lea.vmem [#allocation0], 548
    %1137 = vst.msk [vmem:[%s1136] ss:$16 sm:$0xc] %vm1133, %v1132
    %s1138 = scalar_lea.vmem [#allocation0], 36
    %1139 = vst.msk [vmem:[%s1138] ss:$16 sm:$0x30] %vm1133, %v1132
    %s1140 = scalar_lea.vmem [#allocation0], 516
    %1141 = vst.msk [vmem:[%s1140] ss:$16 sm:$0xc0] %vm1133, %v1132
    %s1142 = scalar_lea.vmem [#allocation1], 64
    %v1143 = vld.sshfl [vmem:[%s1142] sm:$0xff pattern:$0x99999180]
    %s1144 = scalar_lea.vmem [#allocation1], 80
    %v1145 = vld.sshfl [vmem:[%s1144] sm:$0xff pattern:$0x91800000]
    %vm1146 = vcmask 1047556
    %v1147 = vsel %vm1146, %v1145, %v1143
    %1148 = vrot.lane.b32.xlu0 %v1147, 96
    %v1149 = vpop.permute.xlu0 %1148
    %vm1150 = vcmask 64512
    %s1151 = scalar_lea.vmem [#allocation0], 132
    %1152 = vst.msk [vmem:[%s1151] ss:$16 sm:$0x3] %vm1150, %v1149
    %s1153 = scalar_lea.vmem [#allocation0], 612
    %1154 = vst.msk [vmem:[%s1153] ss:$16 sm:$0xc] %vm1150, %v1149
    %s1155 = scalar_lea.vmem [#allocation0], 100
    %1156 = vst.msk [vmem:[%s1155] ss:$16 sm:$0x30] %vm1150, %v1149
    %s1157 = scalar_lea.vmem [#allocation0], 580
    %1158 = vst.msk [vmem:[%s1157] ss:$16 sm:$0xc0] %vm1150, %v1149
    %s1159 = scalar_lea.vmem [#allocation1], 96
    %v1160 = vld.sshfl [vmem:[%s1159] sm:$0xff pattern:$0x99999180]
    %s1161 = scalar_lea.vmem [#allocation1], 112
    %v1162 = vld.sshfl [vmem:[%s1161] sm:$0xff pattern:$0x91800000]
    %vm1163 = vcmask 1047556
    %v1164 = vsel %vm1163, %v1162, %v1160
    %1165 = vrot.lane.b32.xlu0 %v1164, 96
    %v1166 = vpop.permute.xlu0 %1165
    %vm1167 = vcmask 64512
    %s1168 = scalar_lea.vmem [#allocation0], 196
    %1169 = vst.msk [vmem:[%s1168] ss:$16 sm:$0x3] %vm1167, %v1166
    %s1170 = scalar_lea.vmem [#allocation0], 676
    %1171 = vst.msk [vmem:[%s1170] ss:$16 sm:$0xc] %vm1167, %v1166
    %s1172 = scalar_lea.vmem [#allocation0], 164
    %1173 = vst.msk [vmem:[%s1172] ss:$16 sm:$0x30] %vm1167, %v1166
    %s1174 = scalar_lea.vmem [#allocation0], 644
    %1175 = vst.msk [vmem:[%s1174] ss:$16 sm:$0xc0] %vm1167, %v1166
    %s1176 = scalar_lea.vmem [#allocation1], 128
    %v1177 = vld.sshfl [vmem:[%s1176] sm:$0xff pattern:$0x99999180]
    %s1178 = scalar_lea.vmem [#allocation1], 144
    %v1179 = vld.sshfl [vmem:[%s1178] sm:$0xff pattern:$0x91800000]
    %vm1180 = vcmask 1047556
    %v1181 = vsel %vm1180, %v1179, %v1177
    %1182 = vrot.lane.b32.xlu0 %v1181, 96
    %v1183 = vpop.permute.xlu0 %1182
    %vm1184 = vcmask 64512
    %s1185 = scalar_lea.vmem [#allocation0], 260
    %1186 = vst.msk [vmem:[%s1185] ss:$16 sm:$0x3] %vm1184, %v1183
    %s1187 = scalar_lea.vmem [#allocation0], 740
    %1188 = vst.msk [vmem:[%s1187] ss:$16 sm:$0xc] %vm1184, %v1183
    %s1189 = scalar_lea.vmem [#allocation0], 228
    %1190 = vst.msk [vmem:[%s1189] ss:$16 sm:$0x30] %vm1184, %v1183
    %s1191 = scalar_lea.vmem [#allocation0], 708
    %1192 = vst.msk [vmem:[%s1191] ss:$16 sm:$0xc0] %vm1184, %v1183
    %s1193 = scalar_lea.vmem [#allocation1], 160
    %v1194 = vld.sshfl [vmem:[%s1193] sm:$0xff pattern:$0x99999180]
    %s1195 = scalar_lea.vmem [#allocation1], 176
    %v1196 = vld.sshfl [vmem:[%s1195] sm:$0xff pattern:$0x91800000]
    %vm1197 = vcmask 1047556
    %v1198 = vsel %vm1197, %v1196, %v1194
    %1199 = vrot.lane.b32.xlu0 %v1198, 96
    %v1200 = vpop.permute.xlu0 %1199
    %vm1201 = vcmask 64512
    %s1202 = scalar_lea.vmem [#allocation0], 324
    %1203 = vst.msk [vmem:[%s1202] ss:$16 sm:$0x3] %vm1201, %v1200
    %s1204 = scalar_lea.vmem [#allocation0], 804
    %1205 = vst.msk [vmem:[%s1204] ss:$16 sm:$0xc] %vm1201, %v1200
    %s1206 = scalar_lea.vmem [#allocation0], 292
    %1207 = vst.msk [vmem:[%s1206] ss:$16 sm:$0x30] %vm1201, %v1200
    %s1208 = scalar_lea.vmem [#allocation0], 772
    %1209 = vst.msk [vmem:[%s1208] ss:$16 sm:$0xc0] %vm1201, %v1200
    %s1210 = scalar_lea.vmem [#allocation1], 192
    %v1211 = vld.sshfl [vmem:[%s1210] sm:$0xff pattern:$0x99999180]
    %s1212 = scalar_lea.vmem [#allocation1], 208
    %v1213 = vld.sshfl [vmem:[%s1212] sm:$0xff pattern:$0x91800000]
    %vm1214 = vcmask 1047556
    %v1215 = vsel %vm1214, %v1213, %v1211
    %1216 = vrot.lane.b32.xlu0 %v1215, 96
    %v1217 = vpop.permute.xlu0 %1216
    %vm1218 = vcmask 64512
    %s1219 = scalar_lea.vmem [#allocation0], 388
    %1220 = vst.msk [vmem:[%s1219] ss:$16 sm:$0x3] %vm1218, %v1217
    %s1221 = scalar_lea.vmem [#allocation0], 868
    %1222 = vst.msk [vmem:[%s1221] ss:$16 sm:$0xc] %vm1218, %v1217
    %s1223 = scalar_lea.vmem [#allocation0], 356
    %1224 = vst.msk [vmem:[%s1223] ss:$16 sm:$0x30] %vm1218, %v1217
    %s1225 = scalar_lea.vmem [#allocation0], 836
    %1226 = vst.msk [vmem:[%s1225] ss:$16 sm:$0xc0] %vm1218, %v1217
    %s1227 = scalar_lea.vmem [#allocation1], 224
    %v1228 = vld.sshfl [vmem:[%s1227] sm:$0xff pattern:$0x99999180]
    %s1229 = scalar_lea.vmem [#allocation1], 240
    %v1230 = vld.sshfl [vmem:[%s1229] sm:$0xff pattern:$0x91800000]
    %vm1231 = vcmask 1047556
    %v1232 = vsel %vm1231, %v1230, %v1228
    %1233 = vrot.lane.b32.xlu0 %v1232, 96
    %v1234 = vpop.permute.xlu0 %1233
    %vm1235 = vcmask 64512
    %s1236 = scalar_lea.vmem [#allocation0], 452
    %1237 = vst.msk [vmem:[%s1236] ss:$16 sm:$0x3] %vm1235, %v1234
    %s1238 = scalar_lea.vmem [#allocation0], 932
    %1239 = vst.msk [vmem:[%s1238] ss:$16 sm:$0xc] %vm1235, %v1234
    %s1240 = scalar_lea.vmem [#allocation0], 420
    %1241 = vst.msk [vmem:[%s1240] ss:$16 sm:$0x30] %vm1235, %v1234
    %s1242 = scalar_lea.vmem [#allocation0], 900
    %1243 = vst.msk [vmem:[%s1242] ss:$16 sm:$0xc0] %vm1235, %v1234
    %v1244 = vld.sshfl [vmem:[#allocation1] sm:$0xff pattern:$0x99999180]
    %s1245 = scalar_lea.vmem [#allocation1], 16
    %v1246 = vld.sshfl [vmem:[%s1245] sm:$0xff pattern:$0x91800000]
    %vm1247 = vcmask 1047556
    %v1248 = vsel %vm1247, %v1246, %v1244
    %1249 = vrot.lane.b32.xlu0 %v1248, 88
    %v1250 = vpop.permute.xlu0 %1249
    %vm1251 = vcmask 64512
    %s1252 = scalar_lea.vmem [#allocation0], 5
    %1253 = vst.msk [vmem:[%s1252] ss:$16 sm:$0x3] %vm1251, %v1250
    %s1254 = scalar_lea.vmem [#allocation0], 485
    %1255 = vst.msk [vmem:[%s1254] ss:$16 sm:$0xc] %vm1251, %v1250
    %s1256 = scalar_lea.vmem [#allocation0], 4294967269
    %1257 = vst.msk [vmem:[%s1256] ss:$16 sm:$0x30] %vm1251, %v1250
    %s1258 = scalar_lea.vmem [#allocation0], 453
    %1259 = vst.msk [vmem:[%s1258] ss:$16 sm:$0xc0] %vm1251, %v1250
    %s1260 = scalar_lea.vmem [#allocation1], 32
    %v1261 = vld.sshfl [vmem:[%s1260] sm:$0xff pattern:$0x99999180]
    %s1262 = scalar_lea.vmem [#allocation1], 48
    %v1263 = vld.sshfl [vmem:[%s1262] sm:$0xff pattern:$0x91800000]
    %vm1264 = vcmask 1047556
    %v1265 = vsel %vm1264, %v1263, %v1261
    %1266 = vrot.lane.b32.xlu0 %v1265, 88
    %v1267 = vpop.permute.xlu0 %1266
    %vm1268 = vcmask 64512
    %s1269 = scalar_lea.vmem [#allocation0], 69
    %1270 = vst.msk [vmem:[%s1269] ss:$16 sm:$0x3] %vm1268, %v1267
    %s1271 = scalar_lea.vmem [#allocation0], 549
    %1272 = vst.msk [vmem:[%s1271] ss:$16 sm:$0xc] %vm1268, %v1267
    %s1273 = scalar_lea.vmem [#allocation0], 37
    %1274 = vst.msk [vmem:[%s1273] ss:$16 sm:$0x30] %vm1268, %v1267
    %s1275 = scalar_lea.vmem [#allocation0], 517
    %1276 = vst.msk [vmem:[%s1275] ss:$16 sm:$0xc0] %vm1268, %v1267
    %s1277 = scalar_lea.vmem [#allocation1], 64
    %v1278 = vld.sshfl [vmem:[%s1277] sm:$0xff pattern:$0x99999180]
    %s1279 = scalar_lea.vmem [#allocation1], 80
    %v1280 = vld.sshfl [vmem:[%s1279] sm:$0xff pattern:$0x91800000]
    %vm1281 = vcmask 1047556
    %v1282 = vsel %vm1281, %v1280, %v1278
    %1283 = vrot.lane.b32.xlu0 %v1282, 88
    %v1284 = vpop.permute.xlu0 %1283
    %vm1285 = vcmask 64512
    %s1286 = scalar_lea.vmem [#allocation0], 133
    %1287 = vst.msk [vmem:[%s1286] ss:$16 sm:$0x3] %vm1285, %v1284
    %s1288 = scalar_lea.vmem [#allocation0], 613
    %1289 = vst.msk [vmem:[%s1288] ss:$16 sm:$0xc] %vm1285, %v1284
    %s1290 = scalar_lea.vmem [#allocation0], 101
    %1291 = vst.msk [vmem:[%s1290] ss:$16 sm:$0x30] %vm1285, %v1284
    %s1292 = scalar_lea.vmem [#allocation0], 581
    %1293 = vst.msk [vmem:[%s1292] ss:$16 sm:$0xc0] %vm1285, %v1284
    %s1294 = scalar_lea.vmem [#allocation1], 96
    %v1295 = vld.sshfl [vmem:[%s1294] sm:$0xff pattern:$0x99999180]
    %s1296 = scalar_lea.vmem [#allocation1], 112
    %v1297 = vld.sshfl [vmem:[%s1296] sm:$0xff pattern:$0x91800000]
    %vm1298 = vcmask 1047556
    %v1299 = vsel %vm1298, %v1297, %v1295
    %1300 = vrot.lane.b32.xlu0 %v1299, 88
    %v1301 = vpop.permute.xlu0 %1300
    %vm1302 = vcmask 64512
    %s1303 = scalar_lea.vmem [#allocation0], 197
    %1304 = vst.msk [vmem:[%s1303] ss:$16 sm:$0x3] %vm1302, %v1301
    %s1305 = scalar_lea.vmem [#allocation0], 677
    %1306 = vst.msk [vmem:[%s1305] ss:$16 sm:$0xc] %vm1302, %v1301
    %s1307 = scalar_lea.vmem [#allocation0], 165
    %1308 = vst.msk [vmem:[%s1307] ss:$16 sm:$0x30] %vm1302, %v1301
    %s1309 = scalar_lea.vmem [#allocation0], 645
    %1310 = vst.msk [vmem:[%s1309] ss:$16 sm:$0xc0] %vm1302, %v1301
    %s1311 = scalar_lea.vmem [#allocation1], 128
    %v1312 = vld.sshfl [vmem:[%s1311] sm:$0xff pattern:$0x99999180]
    %s1313 = scalar_lea.vmem [#allocation1], 144
    %v1314 = vld.sshfl [vmem:[%s1313] sm:$0xff pattern:$0x91800000]
    %vm1315 = vcmask 1047556
    %v1316 = vsel %vm1315, %v1314, %v1312
    %1317 = vrot.lane.b32.xlu0 %v1316, 88
    %v1318 = vpop.permute.xlu0 %1317
    %vm1319 = vcmask 64512
    %s1320 = scalar_lea.vmem [#allocation0], 261
    %1321 = vst.msk [vmem:[%s1320] ss:$16 sm:$0x3] %vm1319, %v1318
    %s1322 = scalar_lea.vmem [#allocation0], 741
    %1323 = vst.msk [vmem:[%s1322] ss:$16 sm:$0xc] %vm1319, %v1318
    %s1324 = scalar_lea.vmem [#allocation0], 229
    %1325 = vst.msk [vmem:[%s1324] ss:$16 sm:$0x30] %vm1319, %v1318
    %s1326 = scalar_lea.vmem [#allocation0], 709
    %1327 = vst.msk [vmem:[%s1326] ss:$16 sm:$0xc0] %vm1319, %v1318
    %s1328 = scalar_lea.vmem [#allocation1], 160
    %v1329 = vld.sshfl [vmem:[%s1328] sm:$0xff pattern:$0x99999180]
    %s1330 = scalar_lea.vmem [#allocation1], 176
    %v1331 = vld.sshfl [vmem:[%s1330] sm:$0xff pattern:$0x91800000]
    %vm1332 = vcmask 1047556
    %v1333 = vsel %vm1332, %v1331, %v1329
    %1334 = vrot.lane.b32.xlu0 %v1333, 88
    %v1335 = vpop.permute.xlu0 %1334
    %vm1336 = vcmask 64512
    %s1337 = scalar_lea.vmem [#allocation0], 325
    %1338 = vst.msk [vmem:[%s1337] ss:$16 sm:$0x3] %vm1336, %v1335
    %s1339 = scalar_lea.vmem [#allocation0], 805
    %1340 = vst.msk [vmem:[%s1339] ss:$16 sm:$0xc] %vm1336, %v1335
    %s1341 = scalar_lea.vmem [#allocation0], 293
    %1342 = vst.msk [vmem:[%s1341] ss:$16 sm:$0x30] %vm1336, %v1335
    %s1343 = scalar_lea.vmem [#allocation0], 773
    %1344 = vst.msk [vmem:[%s1343] ss:$16 sm:$0xc0] %vm1336, %v1335
    %s1345 = scalar_lea.vmem [#allocation1], 192
    %v1346 = vld.sshfl [vmem:[%s1345] sm:$0xff pattern:$0x99999180]
    %s1347 = scalar_lea.vmem [#allocation1], 208
    %v1348 = vld.sshfl [vmem:[%s1347] sm:$0xff pattern:$0x91800000]
    %vm1349 = vcmask 1047556
    %v1350 = vsel %vm1349, %v1348, %v1346
    %1351 = vrot.lane.b32.xlu0 %v1350, 88
    %v1352 = vpop.permute.xlu0 %1351
    %vm1353 = vcmask 64512
    %s1354 = scalar_lea.vmem [#allocation0], 389
    %1355 = vst.msk [vmem:[%s1354] ss:$16 sm:$0x3] %vm1353, %v1352
    %s1356 = scalar_lea.vmem [#allocation0], 869
    %1357 = vst.msk [vmem:[%s1356] ss:$16 sm:$0xc] %vm1353, %v1352
    %s1358 = scalar_lea.vmem [#allocation0], 357
    %1359 = vst.msk [vmem:[%s1358] ss:$16 sm:$0x30] %vm1353, %v1352
    %s1360 = scalar_lea.vmem [#allocation0], 837
    %1361 = vst.msk [vmem:[%s1360] ss:$16 sm:$0xc0] %vm1353, %v1352
    %s1362 = scalar_lea.vmem [#allocation1], 224
    %v1363 = vld.sshfl [vmem:[%s1362] sm:$0xff pattern:$0x99999180]
    %s1364 = scalar_lea.vmem [#allocation1], 240
    %v1365 = vld.sshfl [vmem:[%s1364] sm:$0xff pattern:$0x91800000]
    %vm1366 = vcmask 1047556
    %v1367 = vsel %vm1366, %v1365, %v1363
    %1368 = vrot.lane.b32.xlu0 %v1367, 88
    %v1369 = vpop.permute.xlu0 %1368
    %vm1370 = vcmask 64512
    %s1371 = scalar_lea.vmem [#allocation0], 453
    %1372 = vst.msk [vmem:[%s1371] ss:$16 sm:$0x3] %vm1370, %v1369
    %s1373 = scalar_lea.vmem [#allocation0], 933
    %1374 = vst.msk [vmem:[%s1373] ss:$16 sm:$0xc] %vm1370, %v1369
    %s1375 = scalar_lea.vmem [#allocation0], 421
    %1376 = vst.msk [vmem:[%s1375] ss:$16 sm:$0x30] %vm1370, %v1369
    %s1377 = scalar_lea.vmem [#allocation0], 901
    %1378 = vst.msk [vmem:[%s1377] ss:$16 sm:$0xc0] %vm1370, %v1369
    %v1379 = vld.sshfl [vmem:[#allocation1] sm:$0xff pattern:$0x99999180]
    %s1380 = scalar_lea.vmem [#allocation1], 16
    %v1381 = vld.sshfl [vmem:[%s1380] sm:$0xff pattern:$0x91800000]
    %vm1382 = vcmask 1047556
    %v1383 = vsel %vm1382, %v1381, %v1379
    %1384 = vrot.lane.b32.xlu0 %v1383, 80
    %v1385 = vpop.permute.xlu0 %1384
    %vm1386 = vcmask 64512
    %s1387 = scalar_lea.vmem [#allocation0], 6
    %1388 = vst.msk [vmem:[%s1387] ss:$16 sm:$0x3] %vm1386, %v1385
    %s1389 = scalar_lea.vmem [#allocation0], 486
    %1390 = vst.msk [vmem:[%s1389] ss:$16 sm:$0xc] %vm1386, %v1385
    %s1391 = scalar_lea.vmem [#allocation0], 4294967270
    %1392 = vst.msk [vmem:[%s1391] ss:$16 sm:$0x30] %vm1386, %v1385
    %s1393 = scalar_lea.vmem [#allocation0], 454
    %1394 = vst.msk [vmem:[%s1393] ss:$16 sm:$0xc0] %vm1386, %v1385
    %s1395 = scalar_lea.vmem [#allocation1], 32
    %v1396 = vld.sshfl [vmem:[%s1395] sm:$0xff pattern:$0x99999180]
    %s1397 = scalar_lea.vmem [#allocation1], 48
    %v1398 = vld.sshfl [vmem:[%s1397] sm:$0xff pattern:$0x91800000]
    %vm1399 = vcmask 1047556
    %v1400 = vsel %vm1399, %v1398, %v1396
    %1401 = vrot.lane.b32.xlu0 %v1400, 80
    %v1402 = vpop.permute.xlu0 %1401
    %vm1403 = vcmask 64512
    %s1404 = scalar_lea.vmem [#allocation0], 70
    %1405 = vst.msk [vmem:[%s1404] ss:$16 sm:$0x3] %vm1403, %v1402
    %s1406 = scalar_lea.vmem [#allocation0], 550
    %1407 = vst.msk [vmem:[%s1406] ss:$16 sm:$0xc] %vm1403, %v1402
    %s1408 = scalar_lea.vmem [#allocation0], 38
    %1409 = vst.msk [vmem:[%s1408] ss:$16 sm:$0x30] %vm1403, %v1402
    %s1410 = scalar_lea.vmem [#allocation0], 518
    %1411 = vst.msk [vmem:[%s1410] ss:$16 sm:$0xc0] %vm1403, %v1402
    %s1412 = scalar_lea.vmem [#allocation1], 64
    %v1413 = vld.sshfl [vmem:[%s1412] sm:$0xff pattern:$0x99999180]
    %s1414 = scalar_lea.vmem [#allocation1], 80
    %v1415 = vld.sshfl [vmem:[%s1414] sm:$0xff pattern:$0x91800000]
    %vm1416 = vcmask 1047556
    %v1417 = vsel %vm1416, %v1415, %v1413
    %1418 = vrot.lane.b32.xlu0 %v1417, 80
    %v1419 = vpop.permute.xlu0 %1418
    %vm1420 = vcmask 64512
    %s1421 = scalar_lea.vmem [#allocation0], 134
    %1422 = vst.msk [vmem:[%s1421] ss:$16 sm:$0x3] %vm1420, %v1419
    %s1423 = scalar_lea.vmem [#allocation0], 614
    %1424 = vst.msk [vmem:[%s1423] ss:$16 sm:$0xc] %vm1420, %v1419
    %s1425 = scalar_lea.vmem [#allocation0], 102
    %1426 = vst.msk [vmem:[%s1425] ss:$16 sm:$0x30] %vm1420, %v1419
    %s1427 = scalar_lea.vmem [#allocation0], 582
    %1428 = vst.msk [vmem:[%s1427] ss:$16 sm:$0xc0] %vm1420, %v1419
    %s1429 = scalar_lea.vmem [#allocation1], 96
    %v1430 = vld.sshfl [vmem:[%s1429] sm:$0xff pattern:$0x99999180]
    %s1431 = scalar_lea.vmem [#allocation1], 112
    %v1432 = vld.sshfl [vmem:[%s1431] sm:$0xff pattern:$0x91800000]
    %vm1433 = vcmask 1047556
    %v1434 = vsel %vm1433, %v1432, %v1430
    %1435 = vrot.lane.b32.xlu0 %v1434, 80
    %v1436 = vpop.permute.xlu0 %1435
    %vm1437 = vcmask 64512
    %s1438 = scalar_lea.vmem [#allocation0], 198
    %1439 = vst.msk [vmem:[%s1438] ss:$16 sm:$0x3] %vm1437, %v1436
    %s1440 = scalar_lea.vmem [#allocation0], 678
    %1441 = vst.msk [vmem:[%s1440] ss:$16 sm:$0xc] %vm1437, %v1436
    %s1442 = scalar_lea.vmem [#allocation0], 166
    %1443 = vst.msk [vmem:[%s1442] ss:$16 sm:$0x30] %vm1437, %v1436
    %s1444 = scalar_lea.vmem [#allocation0], 646
    %1445 = vst.msk [vmem:[%s1444] ss:$16 sm:$0xc0] %vm1437, %v1436
    %s1446 = scalar_lea.vmem [#allocation1], 128
    %v1447 = vld.sshfl [vmem:[%s1446] sm:$0xff pattern:$0x99999180]
    %s1448 = scalar_lea.vmem [#allocation1], 144
    %v1449 = vld.sshfl [vmem:[%s1448] sm:$0xff pattern:$0x91800000]
    %vm1450 = vcmask 1047556
    %v1451 = vsel %vm1450, %v1449, %v1447
    %1452 = vrot.lane.b32.xlu0 %v1451, 80
    %v1453 = vpop.permute.xlu0 %1452
    %vm1454 = vcmask 64512
    %s1455 = scalar_lea.vmem [#allocation0], 262
    %1456 = vst.msk [vmem:[%s1455] ss:$16 sm:$0x3] %vm1454, %v1453
    %s1457 = scalar_lea.vmem [#allocation0], 742
    %1458 = vst.msk [vmem:[%s1457] ss:$16 sm:$0xc] %vm1454, %v1453
    %s1459 = scalar_lea.vmem [#allocation0], 230
    %1460 = vst.msk [vmem:[%s1459] ss:$16 sm:$0x30] %vm1454, %v1453
    %s1461 = scalar_lea.vmem [#allocation0], 710
    %1462 = vst.msk [vmem:[%s1461] ss:$16 sm:$0xc0] %vm1454, %v1453
    %s1463 = scalar_lea.vmem [#allocation1], 160
    %v1464 = vld.sshfl [vmem:[%s1463] sm:$0xff pattern:$0x99999180]
    %s1465 = scalar_lea.vmem [#allocation1], 176
    %v1466 = vld.sshfl [vmem:[%s1465] sm:$0xff pattern:$0x91800000]
    %vm1467 = vcmask 1047556
    %v1468 = vsel %vm1467, %v1466, %v1464
    %1469 = vrot.lane.b32.xlu0 %v1468, 80
    %v1470 = vpop.permute.xlu0 %1469
    %vm1471 = vcmask 64512
    %s1472 = scalar_lea.vmem [#allocation0], 326
    %1473 = vst.msk [vmem:[%s1472] ss:$16 sm:$0x3] %vm1471, %v1470
    %s1474 = scalar_lea.vmem [#allocation0], 806
    %1475 = vst.msk [vmem:[%s1474] ss:$16 sm:$0xc] %vm1471, %v1470
    %s1476 = scalar_lea.vmem [#allocation0], 294
    %1477 = vst.msk [vmem:[%s1476] ss:$16 sm:$0x30] %vm1471, %v1470
    %s1478 = scalar_lea.vmem [#allocation0], 774
    %1479 = vst.msk [vmem:[%s1478] ss:$16 sm:$0xc0] %vm1471, %v1470
    %s1480 = scalar_lea.vmem [#allocation1], 192
    %v1481 = vld.sshfl [vmem:[%s1480] sm:$0xff pattern:$0x99999180]
    %s1482 = scalar_lea.vmem [#allocation1], 208
    %v1483 = vld.sshfl [vmem:[%s1482] sm:$0xff pattern:$0x91800000]
    %vm1484 = vcmask 1047556
    %v1485 = vsel %vm1484, %v1483, %v1481
    %1486 = vrot.lane.b32.xlu0 %v1485, 80
    %v1487 = vpop.permute.xlu0 %1486
    %vm1488 = vcmask 64512
    %s1489 = scalar_lea.vmem [#allocation0], 390
    %1490 = vst.msk [vmem:[%s1489] ss:$16 sm:$0x3] %vm1488, %v1487
    %s1491 = scalar_lea.vmem [#allocation0], 870
    %1492 = vst.msk [vmem:[%s1491] ss:$16 sm:$0xc] %vm1488, %v1487
    %s1493 = scalar_lea.vmem [#allocation0], 358
    %1494 = vst.msk [vmem:[%s1493] ss:$16 sm:$0x30] %vm1488, %v1487
    %s1495 = scalar_lea.vmem [#allocation0], 838
    %1496 = vst.msk [vmem:[%s1495] ss:$16 sm:$0xc0] %vm1488, %v1487
    %s1497 = scalar_lea.vmem [#allocation1], 224
    %v1498 = vld.sshfl [vmem:[%s1497] sm:$0xff pattern:$0x99999180]
    %s1499 = scalar_lea.vmem [#allocation1], 240
    %v1500 = vld.sshfl [vmem:[%s1499] sm:$0xff pattern:$0x91800000]
    %vm1501 = vcmask 1047556
    %v1502 = vsel %vm1501, %v1500, %v1498
    %1503 = vrot.lane.b32.xlu0 %v1502, 80
    %v1504 = vpop.permute.xlu0 %1503
    %vm1505 = vcmask 64512
    %s1506 = scalar_lea.vmem [#allocation0], 454
    %1507 = vst.msk [vmem:[%s1506] ss:$16 sm:$0x3] %vm1505, %v1504
    %s1508 = scalar_lea.vmem [#allocation0], 934
    %1509 = vst.msk [vmem:[%s1508] ss:$16 sm:$0xc] %vm1505, %v1504
    %s1510 = scalar_lea.vmem [#allocation0], 422
    %1511 = vst.msk [vmem:[%s1510] ss:$16 sm:$0x30] %vm1505, %v1504
    %s1512 = scalar_lea.vmem [#allocation0], 902
    %1513 = vst.msk [vmem:[%s1512] ss:$16 sm:$0xc0] %vm1505, %v1504
    %v1514 = vld.sshfl [vmem:[#allocation1] sm:$0xff pattern:$0x99999180]
    %s1515 = scalar_lea.vmem [#allocation1], 16
    %v1516 = vld.sshfl [vmem:[%s1515] sm:$0xff pattern:$0x91800000]
    %vm1517 = vcmask 1047556
    %v1518 = vsel %vm1517, %v1516, %v1514
    %1519 = vrot.lane.b32.xlu0 %v1518, 72
    %v1520 = vpop.permute.xlu0 %1519
    %vm1521 = vcmask 64512
    %s1522 = scalar_lea.vmem [#allocation0], 7
    %1523 = vst.msk [vmem:[%s1522] ss:$16 sm:$0x3] %vm1521, %v1520
    %s1524 = scalar_lea.vmem [#allocation0], 487
    %1525 = vst.msk [vmem:[%s1524] ss:$16 sm:$0xc] %vm1521, %v1520
    %s1526 = scalar_lea.vmem [#allocation0], 4294967271
    %1527 = vst.msk [vmem:[%s1526] ss:$16 sm:$0x30] %vm1521, %v1520
    %s1528 = scalar_lea.vmem [#allocation0], 455
    %1529 = vst.msk [vmem:[%s1528] ss:$16 sm:$0xc0] %vm1521, %v1520
    %s1530 = scalar_lea.vmem [#allocation1], 32
    %v1531 = vld.sshfl [vmem:[%s1530] sm:$0xff pattern:$0x99999180]
    %s1532 = scalar_lea.vmem [#allocation1], 48
    %v1533 = vld.sshfl [vmem:[%s1532] sm:$0xff pattern:$0x91800000]
    %vm1534 = vcmask 1047556
    %v1535 = vsel %vm1534, %v1533, %v1531
    %1536 = vrot.lane.b32.xlu0 %v1535, 72
    %v1537 = vpop.permute.xlu0 %1536
    %vm1538 = vcmask 64512
    %s1539 = scalar_lea.vmem [#allocation0], 71
    %1540 = vst.msk [vmem:[%s1539] ss:$16 sm:$0x3] %vm1538, %v1537
    %s1541 = scalar_lea.vmem [#allocation0], 551
    %1542 = vst.msk [vmem:[%s1541] ss:$16 sm:$0xc] %vm1538, %v1537
    %s1543 = scalar_lea.vmem [#allocation0], 39
    %1544 = vst.msk [vmem:[%s1543] ss:$16 sm:$0x30] %vm1538, %v1537
    %s1545 = scalar_lea.vmem [#allocation0], 519
    %1546 = vst.msk [vmem:[%s1545] ss:$16 sm:$0xc0] %vm1538, %v1537
    %s1547 = scalar_lea.vmem [#allocation1], 64
    %v1548 = vld.sshfl [vmem:[%s1547] sm:$0xff pattern:$0x99999180]
    %s1549 = scalar_lea.vmem [#allocation1], 80
    %v1550 = vld.sshfl [vmem:[%s1549] sm:$0xff pattern:$0x91800000]
    %vm1551 = vcmask 1047556
    %v1552 = vsel %vm1551, %v1550, %v1548
    %1553 = vrot.lane.b32.xlu0 %v1552, 72
    %v1554 = vpop.permute.xlu0 %1553
    %vm1555 = vcmask 64512
    %s1556 = scalar_lea.vmem [#allocation0], 135
    %1557 = vst.msk [vmem:[%s1556] ss:$16 sm:$0x3] %vm1555, %v1554
    %s1558 = scalar_lea.vmem [#allocation0], 615
    %1559 = vst.msk [vmem:[%s1558] ss:$16 sm:$0xc] %vm1555, %v1554
    %s1560 = scalar_lea.vmem [#allocation0], 103
    %1561 = vst.msk [vmem:[%s1560] ss:$16 sm:$0x30] %vm1555, %v1554
    %s1562 = scalar_lea.vmem [#allocation0], 583
    %1563 = vst.msk [vmem:[%s1562] ss:$16 sm:$0xc0] %vm1555, %v1554
    %s1564 = scalar_lea.vmem [#allocation1], 96
    %v1565 = vld.sshfl [vmem:[%s1564] sm:$0xff pattern:$0x99999180]
    %s1566 = scalar_lea.vmem [#allocation1], 112
    %v1567 = vld.sshfl [vmem:[%s1566] sm:$0xff pattern:$0x91800000]
    %vm1568 = vcmask 1047556
    %v1569 = vsel %vm1568, %v1567, %v1565
    %1570 = vrot.lane.b32.xlu0 %v1569, 72
    %v1571 = vpop.permute.xlu0 %1570
    %vm1572 = vcmask 64512
    %s1573 = scalar_lea.vmem [#allocation0], 199
    %1574 = vst.msk [vmem:[%s1573] ss:$16 sm:$0x3] %vm1572, %v1571
    %s1575 = scalar_lea.vmem [#allocation0], 679
    %1576 = vst.msk [vmem:[%s1575] ss:$16 sm:$0xc] %vm1572, %v1571
    %s1577 = scalar_lea.vmem [#allocation0], 167
    %1578 = vst.msk [vmem:[%s1577] ss:$16 sm:$0x30] %vm1572, %v1571
    %s1579 = scalar_lea.vmem [#allocation0], 647
    %1580 = vst.msk [vmem:[%s1579] ss:$16 sm:$0xc0] %vm1572, %v1571
    %s1581 = scalar_lea.vmem [#allocation1], 128
    %v1582 = vld.sshfl [vmem:[%s1581] sm:$0xff pattern:$0x99999180]
    %s1583 = scalar_lea.vmem [#allocation1], 144
    %v1584 = vld.sshfl [vmem:[%s1583] sm:$0xff pattern:$0x91800000]
    %vm1585 = vcmask 1047556
    %v1586 = vsel %vm1585, %v1584, %v1582
    %1587 = vrot.lane.b32.xlu0 %v1586, 72
    %v1588 = vpop.permute.xlu0 %1587
    %vm1589 = vcmask 64512
    %s1590 = scalar_lea.vmem [#allocation0], 263
    %1591 = vst.msk [vmem:[%s1590] ss:$16 sm:$0x3] %vm1589, %v1588
    %s1592 = scalar_lea.vmem [#allocation0], 743
    %1593 = vst.msk [vmem:[%s1592] ss:$16 sm:$0xc] %vm1589, %v1588
    %s1594 = scalar_lea.vmem [#allocation0], 231
    %1595 = vst.msk [vmem:[%s1594] ss:$16 sm:$0x30] %vm1589, %v1588
    %s1596 = scalar_lea.vmem [#allocation0], 711
    %1597 = vst.msk [vmem:[%s1596] ss:$16 sm:$0xc0] %vm1589, %v1588
    %s1598 = scalar_lea.vmem [#allocation1], 160
    %v1599 = vld.sshfl [vmem:[%s1598] sm:$0xff pattern:$0x99999180]
    %s1600 = scalar_lea.vmem [#allocation1], 176
    %v1601 = vld.sshfl [vmem:[%s1600] sm:$0xff pattern:$0x91800000]
    %vm1602 = vcmask 1047556
    %v1603 = vsel %vm1602, %v1601, %v1599
    %1604 = vrot.lane.b32.xlu0 %v1603, 72
    %v1605 = vpop.permute.xlu0 %1604
    %vm1606 = vcmask 64512
    %s1607 = scalar_lea.vmem [#allocation0], 327
    %1608 = vst.msk [vmem:[%s1607] ss:$16 sm:$0x3] %vm1606, %v1605
    %s1609 = scalar_lea.vmem [#allocation0], 807
    %1610 = vst.msk [vmem:[%s1609] ss:$16 sm:$0xc] %vm1606, %v1605
    %s1611 = scalar_lea.vmem [#allocation0], 295
    %1612 = vst.msk [vmem:[%s1611] ss:$16 sm:$0x30] %vm1606, %v1605
    %s1613 = scalar_lea.vmem [#allocation0], 775
    %1614 = vst.msk [vmem:[%s1613] ss:$16 sm:$0xc0] %vm1606, %v1605
    %s1615 = scalar_lea.vmem [#allocation1], 192
    %v1616 = vld.sshfl [vmem:[%s1615] sm:$0xff pattern:$0x99999180]
    %s1617 = scalar_lea.vmem [#allocation1], 208
    %v1618 = vld.sshfl [vmem:[%s1617] sm:$0xff pattern:$0x91800000]
    %vm1619 = vcmask 1047556
    %v1620 = vsel %vm1619, %v1618, %v1616
    %1621 = vrot.lane.b32.xlu0 %v1620, 72
    %v1622 = vpop.permute.xlu0 %1621
    %vm1623 = vcmask 64512
    %s1624 = scalar_lea.vmem [#allocation0], 391
    %1625 = vst.msk [vmem:[%s1624] ss:$16 sm:$0x3] %vm1623, %v1622
    %s1626 = scalar_lea.vmem [#allocation0], 871
    %1627 = vst.msk [vmem:[%s1626] ss:$16 sm:$0xc] %vm1623, %v1622
    %s1628 = scalar_lea.vmem [#allocation0], 359
    %1629 = vst.msk [vmem:[%s1628] ss:$16 sm:$0x30] %vm1623, %v1622
    %s1630 = scalar_lea.vmem [#allocation0], 839
    %1631 = vst.msk [vmem:[%s1630] ss:$16 sm:$0xc0] %vm1623, %v1622
    %s1632 = scalar_lea.vmem [#allocation1], 224
    %v1633 = vld.sshfl [vmem:[%s1632] sm:$0xff pattern:$0x99999180]
    %s1634 = scalar_lea.vmem [#allocation1], 240
    %v1635 = vld.sshfl [vmem:[%s1634] sm:$0xff pattern:$0x91800000]
    %vm1636 = vcmask 1047556
    %v1637 = vsel %vm1636, %v1635, %v1633
    %1638 = vrot.lane.b32.xlu0 %v1637, 72
    %v1639 = vpop.permute.xlu0 %1638
    %vm1640 = vcmask 64512
    %s1641 = scalar_lea.vmem [#allocation0], 455
    %1642 = vst.msk [vmem:[%s1641] ss:$16 sm:$0x3] %vm1640, %v1639
    %s1643 = scalar_lea.vmem [#allocation0], 935
    %1644 = vst.msk [vmem:[%s1643] ss:$16 sm:$0xc] %vm1640, %v1639
    %s1645 = scalar_lea.vmem [#allocation0], 423
    %1646 = vst.msk [vmem:[%s1645] ss:$16 sm:$0x30] %vm1640, %v1639
    %s1647 = scalar_lea.vmem [#allocation0], 903
    %1648 = vst.msk [vmem:[%s1647] ss:$16 sm:$0xc0] %vm1640, %v1639
    %v1649 = vld.sshfl [vmem:[#allocation1] sm:$0xff pattern:$0x99999180]
    %s1650 = scalar_lea.vmem [#allocation1], 16
    %v1651 = vld.sshfl [vmem:[%s1650] sm:$0xff pattern:$0x91800000]
    %vm1652 = vcmask 1047556
    %v1653 = vsel %vm1652, %v1651, %v1649
    %1654 = vrot.lane.b32.xlu0 %v1653, 64
    %v1655 = vpop.permute.xlu0 %1654
    %vm1656 = vcmask 64512
    %s1657 = scalar_lea.vmem [#allocation0], 8
    %1658 = vst.msk [vmem:[%s1657] ss:$16 sm:$0x3] %vm1656, %v1655
    %s1659 = scalar_lea.vmem [#allocation0], 488
    %1660 = vst.msk [vmem:[%s1659] ss:$16 sm:$0xc] %vm1656, %v1655
    %s1661 = scalar_lea.vmem [#allocation0], 4294967272
    %1662 = vst.msk [vmem:[%s1661] ss:$16 sm:$0x30] %vm1656, %v1655
    %s1663 = scalar_lea.vmem [#allocation0], 456
    %1664 = vst.msk [vmem:[%s1663] ss:$16 sm:$0xc0] %vm1656, %v1655
    %s1665 = scalar_lea.vmem [#allocation1], 32
    %v1666 = vld.sshfl [vmem:[%s1665] sm:$0xff pattern:$0x99999180]
    %s1667 = scalar_lea.vmem [#allocation1], 48
    %v1668 = vld.sshfl [vmem:[%s1667] sm:$0xff pattern:$0x91800000]
    %vm1669 = vcmask 1047556
    %v1670 = vsel %vm1669, %v1668, %v1666
    %1671 = vrot.lane.b32.xlu0 %v1670, 64
    %v1672 = vpop.permute.xlu0 %1671
    %vm1673 = vcmask 64512
    %s1674 = scalar_lea.vmem [#allocation0], 72
    %1675 = vst.msk [vmem:[%s1674] ss:$16 sm:$0x3] %vm1673, %v1672
    %s1676 = scalar_lea.vmem [#allocation0], 552
    %1677 = vst.msk [vmem:[%s1676] ss:$16 sm:$0xc] %vm1673, %v1672
    %s1678 = scalar_lea.vmem [#allocation0], 40
    %1679 = vst.msk [vmem:[%s1678] ss:$16 sm:$0x30] %vm1673, %v1672
    %s1680 = scalar_lea.vmem [#allocation0], 520
    %1681 = vst.msk [vmem:[%s1680] ss:$16 sm:$0xc0] %vm1673, %v1672
    %s1682 = scalar_lea.vmem [#allocation1], 64
    %v1683 = vld.sshfl [vmem:[%s1682] sm:$0xff pattern:$0x99999180]
    %s1684 = scalar_lea.vmem [#allocation1], 80
    %v1685 = vld.sshfl [vmem:[%s1684] sm:$0xff pattern:$0x91800000]
    %vm1686 = vcmask 1047556
    %v1687 = vsel %vm1686, %v1685, %v1683
    %1688 = vrot.lane.b32.xlu0 %v1687, 64
    %v1689 = vpop.permute.xlu0 %1688
    %vm1690 = vcmask 64512
    %s1691 = scalar_lea.vmem [#allocation0], 136
    %1692 = vst.msk [vmem:[%s1691] ss:$16 sm:$0x3] %vm1690, %v1689
    %s1693 = scalar_lea.vmem [#allocation0], 616
    %1694 = vst.msk [vmem:[%s1693] ss:$16 sm:$0xc] %vm1690, %v1689
    %s1695 = scalar_lea.vmem [#allocation0], 104
    %1696 = vst.msk [vmem:[%s1695] ss:$16 sm:$0x30] %vm1690, %v1689
    %s1697 = scalar_lea.vmem [#allocation0], 584
    %1698 = vst.msk [vmem:[%s1697] ss:$16 sm:$0xc0] %vm1690, %v1689
    %s1699 = scalar_lea.vmem [#allocation1], 96
    %v1700 = vld.sshfl [vmem:[%s1699] sm:$0xff pattern:$0x99999180]
    %s1701 = scalar_lea.vmem [#allocation1], 112
    %v1702 = vld.sshfl [vmem:[%s1701] sm:$0xff pattern:$0x91800000]
    %vm1703 = vcmask 1047556
    %v1704 = vsel %vm1703, %v1702, %v1700
    %1705 = vrot.lane.b32.xlu0 %v1704, 64
    %v1706 = vpop.permute.xlu0 %1705
    %vm1707 = vcmask 64512
    %s1708 = scalar_lea.vmem [#allocation0], 200
    %1709 = vst.msk [vmem:[%s1708] ss:$16 sm:$0x3] %vm1707, %v1706
    %s1710 = scalar_lea.vmem [#allocation0], 680
    %1711 = vst.msk [vmem:[%s1710] ss:$16 sm:$0xc] %vm1707, %v1706
    %s1712 = scalar_lea.vmem [#allocation0], 168
    %1713 = vst.msk [vmem:[%s1712] ss:$16 sm:$0x30] %vm1707, %v1706
    %s1714 = scalar_lea.vmem [#allocation0], 648
    %1715 = vst.msk [vmem:[%s1714] ss:$16 sm:$0xc0] %vm1707, %v1706
    %s1716 = scalar_lea.vmem [#allocation1], 128
    %v1717 = vld.sshfl [vmem:[%s1716] sm:$0xff pattern:$0x99999180]
    %s1718 = scalar_lea.vmem [#allocation1], 144
    %v1719 = vld.sshfl [vmem:[%s1718] sm:$0xff pattern:$0x91800000]
    %vm1720 = vcmask 1047556
    %v1721 = vsel %vm1720, %v1719, %v1717
    %1722 = vrot.lane.b32.xlu0 %v1721, 64
    %v1723 = vpop.permute.xlu0 %1722
    %vm1724 = vcmask 64512
    %s1725 = scalar_lea.vmem [#allocation0], 264
    %1726 = vst.msk [vmem:[%s1725] ss:$16 sm:$0x3] %vm1724, %v1723
    %s1727 = scalar_lea.vmem [#allocation0], 744
    %1728 = vst.msk [vmem:[%s1727] ss:$16 sm:$0xc] %vm1724, %v1723
    %s1729 = scalar_lea.vmem [#allocation0], 232
    %1730 = vst.msk [vmem:[%s1729] ss:$16 sm:$0x30] %vm1724, %v1723
    %s1731 = scalar_lea.vmem [#allocation0], 712
    %1732 = vst.msk [vmem:[%s1731] ss:$16 sm:$0xc0] %vm1724, %v1723
    %s1733 = scalar_lea.vmem [#allocation1], 160
    %v1734 = vld.sshfl [vmem:[%s1733] sm:$0xff pattern:$0x99999180]
    %s1735 = scalar_lea.vmem [#allocation1], 176
    %v1736 = vld.sshfl [vmem:[%s1735] sm:$0xff pattern:$0x91800000]
    %vm1737 = vcmask 1047556
    %v1738 = vsel %vm1737, %v1736, %v1734
    %1739 = vrot.lane.b32.xlu0 %v1738, 64
    %v1740 = vpop.permute.xlu0 %1739
    %vm1741 = vcmask 64512
    %s1742 = scalar_lea.vmem [#allocation0], 328
    %1743 = vst.msk [vmem:[%s1742] ss:$16 sm:$0x3] %vm1741, %v1740
    %s1744 = scalar_lea.vmem [#allocation0], 808
    %1745 = vst.msk [vmem:[%s1744] ss:$16 sm:$0xc] %vm1741, %v1740
    %s1746 = scalar_lea.vmem [#allocation0], 296
    %1747 = vst.msk [vmem:[%s1746] ss:$16 sm:$0x30] %vm1741, %v1740
    %s1748 = scalar_lea.vmem [#allocation0], 776
    %1749 = vst.msk [vmem:[%s1748] ss:$16 sm:$0xc0] %vm1741, %v1740
    %s1750 = scalar_lea.vmem [#allocation1], 192
    %v1751 = vld.sshfl [vmem:[%s1750] sm:$0xff pattern:$0x99999180]
    %s1752 = scalar_lea.vmem [#allocation1], 208
    %v1753 = vld.sshfl [vmem:[%s1752] sm:$0xff pattern:$0x91800000]
    %vm1754 = vcmask 1047556
    %v1755 = vsel %vm1754, %v1753, %v1751
    %1756 = vrot.lane.b32.xlu0 %v1755, 64
    %v1757 = vpop.permute.xlu0 %1756
    %vm1758 = vcmask 64512
    %s1759 = scalar_lea.vmem [#allocation0], 392
    %1760 = vst.msk [vmem:[%s1759] ss:$16 sm:$0x3] %vm1758, %v1757
    %s1761 = scalar_lea.vmem [#allocation0], 872
    %1762 = vst.msk [vmem:[%s1761] ss:$16 sm:$0xc] %vm1758, %v1757
    %s1763 = scalar_lea.vmem [#allocation0], 360
    %1764 = vst.msk [vmem:[%s1763] ss:$16 sm:$0x30] %vm1758, %v1757
    %s1765 = scalar_lea.vmem [#allocation0], 840
    %1766 = vst.msk [vmem:[%s1765] ss:$16 sm:$0xc0] %vm1758, %v1757
    %s1767 = scalar_lea.vmem [#allocation1], 224
    %v1768 = vld.sshfl [vmem:[%s1767] sm:$0xff pattern:$0x99999180]
    %s1769 = scalar_lea.vmem [#allocation1], 240
    %v1770 = vld.sshfl [vmem:[%s1769] sm:$0xff pattern:$0x91800000]
    %vm1771 = vcmask 1047556
    %v1772 = vsel %vm1771, %v1770, %v1768
    %1773 = vrot.lane.b32.xlu0 %v1772, 64
    %v1774 = vpop.permute.xlu0 %1773
    %vm1775 = vcmask 64512
    %s1776 = scalar_lea.vmem [#allocation0], 456
    %1777 = vst.msk [vmem:[%s1776] ss:$16 sm:$0x3] %vm1775, %v1774
    %s1778 = scalar_lea.vmem [#allocation0], 936
    %1779 = vst.msk [vmem:[%s1778] ss:$16 sm:$0xc] %vm1775, %v1774
    %s1780 = scalar_lea.vmem [#allocation0], 424
    %1781 = vst.msk [vmem:[%s1780] ss:$16 sm:$0x30] %vm1775, %v1774
    %s1782 = scalar_lea.vmem [#allocation0], 904
    %1783 = vst.msk [vmem:[%s1782] ss:$16 sm:$0xc0] %vm1775, %v1774
    %v1784 = vld.sshfl [vmem:[#allocation1] sm:$0xff pattern:$0x99999180]
    %s1785 = scalar_lea.vmem [#allocation1], 16
    %v1786 = vld.sshfl [vmem:[%s1785] sm:$0xff pattern:$0x91800000]
    %vm1787 = vcmask 1047556
    %v1788 = vsel %vm1787, %v1786, %v1784
    %1789 = vrot.lane.b32.xlu0 %v1788, 56
    %v1790 = vpop.permute.xlu0 %1789
    %vm1791 = vcmask 64512
    %s1792 = scalar_lea.vmem [#allocation0], 9
    %1793 = vst.msk [vmem:[%s1792] ss:$16 sm:$0x3] %vm1791, %v1790
    %s1794 = scalar_lea.vmem [#allocation0], 489
    %1795 = vst.msk [vmem:[%s1794] ss:$16 sm:$0xc] %vm1791, %v1790
    %s1796 = scalar_lea.vmem [#allocation0], 4294967273
    %1797 = vst.msk [vmem:[%s1796] ss:$16 sm:$0x30] %vm1791, %v1790
    %s1798 = scalar_lea.vmem [#allocation0], 457
    %1799 = vst.msk [vmem:[%s1798] ss:$16 sm:$0xc0] %vm1791, %v1790
    %s1800 = scalar_lea.vmem [#allocation1], 32
    %v1801 = vld.sshfl [vmem:[%s1800] sm:$0xff pattern:$0x99999180]
    %s1802 = scalar_lea.vmem [#allocation1], 48
    %v1803 = vld.sshfl [vmem:[%s1802] sm:$0xff pattern:$0x91800000]
    %vm1804 = vcmask 1047556
    %v1805 = vsel %vm1804, %v1803, %v1801
    %1806 = vrot.lane.b32.xlu0 %v1805, 56
    %v1807 = vpop.permute.xlu0 %1806
    %vm1808 = vcmask 64512
    %s1809 = scalar_lea.vmem [#allocation0], 73
    %1810 = vst.msk [vmem:[%s1809] ss:$16 sm:$0x3] %vm1808, %v1807
    %s1811 = scalar_lea.vmem [#allocation0], 553
    %1812 = vst.msk [vmem:[%s1811] ss:$16 sm:$0xc] %vm1808, %v1807
    %s1813 = scalar_lea.vmem [#allocation0], 41
    %1814 = vst.msk [vmem:[%s1813] ss:$16 sm:$0x30] %vm1808, %v1807
    %s1815 = scalar_lea.vmem [#allocation0], 521
    %1816 = vst.msk [vmem:[%s1815] ss:$16 sm:$0xc0] %vm1808, %v1807
    %s1817 = scalar_lea.vmem [#allocation1], 64
    %v1818 = vld.sshfl [vmem:[%s1817] sm:$0xff pattern:$0x99999180]
    %s1819 = scalar_lea.vmem [#allocation1], 80
    %v1820 = vld.sshfl [vmem:[%s1819] sm:$0xff pattern:$0x91800000]
    %vm1821 = vcmask 1047556
    %v1822 = vsel %vm1821, %v1820, %v1818
    %1823 = vrot.lane.b32.xlu0 %v1822, 56
    %v1824 = vpop.permute.xlu0 %1823
    %vm1825 = vcmask 64512
    %s1826 = scalar_lea.vmem [#allocation0], 137
    %1827 = vst.msk [vmem:[%s1826] ss:$16 sm:$0x3] %vm1825, %v1824
    %s1828 = scalar_lea.vmem [#allocation0], 617
    %1829 = vst.msk [vmem:[%s1828] ss:$16 sm:$0xc] %vm1825, %v1824
    %s1830 = scalar_lea.vmem [#allocation0], 105
    %1831 = vst.msk [vmem:[%s1830] ss:$16 sm:$0x30] %vm1825, %v1824
    %s1832 = scalar_lea.vmem [#allocation0], 585
    %1833 = vst.msk [vmem:[%s1832] ss:$16 sm:$0xc0] %vm1825, %v1824
    %s1834 = scalar_lea.vmem [#allocation1], 96
    %v1835 = vld.sshfl [vmem:[%s1834] sm:$0xff pattern:$0x99999180]
    %s1836 = scalar_lea.vmem [#allocation1], 112
    %v1837 = vld.sshfl [vmem:[%s1836] sm:$0xff pattern:$0x91800000]
    %vm1838 = vcmask 1047556
    %v1839 = vsel %vm1838, %v1837, %v1835
    %1840 = vrot.lane.b32.xlu0 %v1839, 56
    %v1841 = vpop.permute.xlu0 %1840
    %vm1842 = vcmask 64512
    %s1843 = scalar_lea.vmem [#allocation0], 201
    %1844 = vst.msk [vmem:[%s1843] ss:$16 sm:$0x3] %vm1842, %v1841
    %s1845 = scalar_lea.vmem [#allocation0], 681
    %1846 = vst.msk [vmem:[%s1845] ss:$16 sm:$0xc] %vm1842, %v1841
    %s1847 = scalar_lea.vmem [#allocation0], 169
    %1848 = vst.msk [vmem:[%s1847] ss:$16 sm:$0x30] %vm1842, %v1841
    %s1849 = scalar_lea.vmem [#allocation0], 649
    %1850 = vst.msk [vmem:[%s1849] ss:$16 sm:$0xc0] %vm1842, %v1841
    %s1851 = scalar_lea.vmem [#allocation1], 128
    %v1852 = vld.sshfl [vmem:[%s1851] sm:$0xff pattern:$0x99999180]
    %s1853 = scalar_lea.vmem [#allocation1], 144
    %v1854 = vld.sshfl [vmem:[%s1853] sm:$0xff pattern:$0x91800000]
    %vm1855 = vcmask 1047556
    %v1856 = vsel %vm1855, %v1854, %v1852
    %1857 = vrot.lane.b32.xlu0 %v1856, 56
    %v1858 = vpop.permute.xlu0 %1857
    %vm1859 = vcmask 64512
    %s1860 = scalar_lea.vmem [#allocation0], 265
    %1861 = vst.msk [vmem:[%s1860] ss:$16 sm:$0x3] %vm1859, %v1858
    %s1862 = scalar_lea.vmem [#allocation0], 745
    %1863 = vst.msk [vmem:[%s1862] ss:$16 sm:$0xc] %vm1859, %v1858
    %s1864 = scalar_lea.vmem [#allocation0], 233
    %1865 = vst.msk [vmem:[%s1864] ss:$16 sm:$0x30] %vm1859, %v1858
    %s1866 = scalar_lea.vmem [#allocation0], 713
    %1867 = vst.msk [vmem:[%s1866] ss:$16 sm:$0xc0] %vm1859, %v1858
    %s1868 = scalar_lea.vmem [#allocation1], 160
    %v1869 = vld.sshfl [vmem:[%s1868] sm:$0xff pattern:$0x99999180]
    %s1870 = scalar_lea.vmem [#allocation1], 176
    %v1871 = vld.sshfl [vmem:[%s1870] sm:$0xff pattern:$0x91800000]
    %vm1872 = vcmask 1047556
    %v1873 = vsel %vm1872, %v1871, %v1869
    %1874 = vrot.lane.b32.xlu0 %v1873, 56
    %v1875 = vpop.permute.xlu0 %1874
    %vm1876 = vcmask 64512
    %s1877 = scalar_lea.vmem [#allocation0], 329
    %1878 = vst.msk [vmem:[%s1877] ss:$16 sm:$0x3] %vm1876, %v1875
    %s1879 = scalar_lea.vmem [#allocation0], 809
    %1880 = vst.msk [vmem:[%s1879] ss:$16 sm:$0xc] %vm1876, %v1875
    %s1881 = scalar_lea.vmem [#allocation0], 297
    %1882 = vst.msk [vmem:[%s1881] ss:$16 sm:$0x30] %vm1876, %v1875
    %s1883 = scalar_lea.vmem [#allocation0], 777
    %1884 = vst.msk [vmem:[%s1883] ss:$16 sm:$0xc0] %vm1876, %v1875
    %s1885 = scalar_lea.vmem [#allocation1], 192
    %v1886 = vld.sshfl [vmem:[%s1885] sm:$0xff pattern:$0x99999180]
    %s1887 = scalar_lea.vmem [#allocation1], 208
    %v1888 = vld.sshfl [vmem:[%s1887] sm:$0xff pattern:$0x91800000]
    %vm1889 = vcmask 1047556
    %v1890 = vsel %vm1889, %v1888, %v1886
    %1891 = vrot.lane.b32.xlu0 %v1890, 56
    %v1892 = vpop.permute.xlu0 %1891
    %vm1893 = vcmask 64512
    %s1894 = scalar_lea.vmem [#allocation0], 393
    %1895 = vst.msk [vmem:[%s1894] ss:$16 sm:$0x3] %vm1893, %v1892
    %s1896 = scalar_lea.vmem [#allocation0], 873
    %1897 = vst.msk [vmem:[%s1896] ss:$16 sm:$0xc] %vm1893, %v1892
    %s1898 = scalar_lea.vmem [#allocation0], 361
    %1899 = vst.msk [vmem:[%s1898] ss:$16 sm:$0x30] %vm1893, %v1892
    %s1900 = scalar_lea.vmem [#allocation0], 841
    %1901 = vst.msk [vmem:[%s1900] ss:$16 sm:$0xc0] %vm1893, %v1892
    %s1902 = scalar_lea.vmem [#allocation1], 224
    %v1903 = vld.sshfl [vmem:[%s1902] sm:$0xff pattern:$0x99999180]
    %s1904 = scalar_lea.vmem [#allocation1], 240
    %v1905 = vld.sshfl [vmem:[%s1904] sm:$0xff pattern:$0x91800000]
    %vm1906 = vcmask 1047556
    %v1907 = vsel %vm1906, %v1905, %v1903
    %1908 = vrot.lane.b32.xlu0 %v1907, 56
    %v1909 = vpop.permute.xlu0 %1908
    %vm1910 = vcmask 64512
    %s1911 = scalar_lea.vmem [#allocation0], 457
    %1912 = vst.msk [vmem:[%s1911] ss:$16 sm:$0x3] %vm1910, %v1909
    %s1913 = scalar_lea.vmem [#allocation0], 937
    %1914 = vst.msk [vmem:[%s1913] ss:$16 sm:$0xc] %vm1910, %v1909
    %s1915 = scalar_lea.vmem [#allocation0], 425
    %1916 = vst.msk [vmem:[%s1915] ss:$16 sm:$0x30] %vm1910, %v1909
    %s1917 = scalar_lea.vmem [#allocation0], 905
    %1918 = vst.msk [vmem:[%s1917] ss:$16 sm:$0xc0] %vm1910, %v1909
    %v1919 = vld.sshfl [vmem:[#allocation1] sm:$0xff pattern:$0x99999180]
    %s1920 = scalar_lea.vmem [#allocation1], 16
    %v1921 = vld.sshfl [vmem:[%s1920] sm:$0xff pattern:$0x91800000]
    %vm1922 = vcmask 1047556
    %v1923 = vsel %vm1922, %v1921, %v1919
    %1924 = vrot.lane.b32.xlu0 %v1923, 48
    %v1925 = vpop.permute.xlu0 %1924
    %vm1926 = vcmask 64512
    %s1927 = scalar_lea.vmem [#allocation0], 10
    %1928 = vst.msk [vmem:[%s1927] ss:$16 sm:$0x3] %vm1926, %v1925
    %s1929 = scalar_lea.vmem [#allocation0], 490
    %1930 = vst.msk [vmem:[%s1929] ss:$16 sm:$0xc] %vm1926, %v1925
    %s1931 = scalar_lea.vmem [#allocation0], 4294967274
    %1932 = vst.msk [vmem:[%s1931] ss:$16 sm:$0x30] %vm1926, %v1925
    %s1933 = scalar_lea.vmem [#allocation0], 458
    %1934 = vst.msk [vmem:[%s1933] ss:$16 sm:$0xc0] %vm1926, %v1925
    %s1935 = scalar_lea.vmem [#allocation1], 32
    %v1936 = vld.sshfl [vmem:[%s1935] sm:$0xff pattern:$0x99999180]
    %s1937 = scalar_lea.vmem [#allocation1], 48
    %v1938 = vld.sshfl [vmem:[%s1937] sm:$0xff pattern:$0x91800000]
    %vm1939 = vcmask 1047556
    %v1940 = vsel %vm1939, %v1938, %v1936
    %1941 = vrot.lane.b32.xlu0 %v1940, 48
    %v1942 = vpop.permute.xlu0 %1941
    %vm1943 = vcmask 64512
    %s1944 = scalar_lea.vmem [#allocation0], 74
    %1945 = vst.msk [vmem:[%s1944] ss:$16 sm:$0x3] %vm1943, %v1942
    %s1946 = scalar_lea.vmem [#allocation0], 554
    %1947 = vst.msk [vmem:[%s1946] ss:$16 sm:$0xc] %vm1943, %v1942
    %s1948 = scalar_lea.vmem [#allocation0], 42
    %1949 = vst.msk [vmem:[%s1948] ss:$16 sm:$0x30] %vm1943, %v1942
    %s1950 = scalar_lea.vmem [#allocation0], 522
    %1951 = vst.msk [vmem:[%s1950] ss:$16 sm:$0xc0] %vm1943, %v1942
    %s1952 = scalar_lea.vmem [#allocation1], 64
    %v1953 = vld.sshfl [vmem:[%s1952] sm:$0xff pattern:$0x99999180]
    %s1954 = scalar_lea.vmem [#allocation1], 80
    %v1955 = vld.sshfl [vmem:[%s1954] sm:$0xff pattern:$0x91800000]
    %vm1956 = vcmask 1047556
    %v1957 = vsel %vm1956, %v1955, %v1953
    %1958 = vrot.lane.b32.xlu0 %v1957, 48
    %v1959 = vpop.permute.xlu0 %1958
    %vm1960 = vcmask 64512
    %s1961 = scalar_lea.vmem [#allocation0], 138
    %1962 = vst.msk [vmem:[%s1961] ss:$16 sm:$0x3] %vm1960, %v1959
    %s1963 = scalar_lea.vmem [#allocation0], 618
    %1964 = vst.msk [vmem:[%s1963] ss:$16 sm:$0xc] %vm1960, %v1959
    %s1965 = scalar_lea.vmem [#allocation0], 106
    %1966 = vst.msk [vmem:[%s1965] ss:$16 sm:$0x30] %vm1960, %v1959
    %s1967 = scalar_lea.vmem [#allocation0], 586
    %1968 = vst.msk [vmem:[%s1967] ss:$16 sm:$0xc0] %vm1960, %v1959
    %s1969 = scalar_lea.vmem [#allocation1], 96
    %v1970 = vld.sshfl [vmem:[%s1969] sm:$0xff pattern:$0x99999180]
    %s1971 = scalar_lea.vmem [#allocation1], 112
    %v1972 = vld.sshfl [vmem:[%s1971] sm:$0xff pattern:$0x91800000]
    %vm1973 = vcmask 1047556
    %v1974 = vsel %vm1973, %v1972, %v1970
    %1975 = vrot.lane.b32.xlu0 %v1974, 48
    %v1976 = vpop.permute.xlu0 %1975
    %vm1977 = vcmask 64512
    %s1978 = scalar_lea.vmem [#allocation0], 202
    %1979 = vst.msk [vmem:[%s1978] ss:$16 sm:$0x3] %vm1977, %v1976
    %s1980 = scalar_lea.vmem [#allocation0], 682
    %1981 = vst.msk [vmem:[%s1980] ss:$16 sm:$0xc] %vm1977, %v1976
    %s1982 = scalar_lea.vmem [#allocation0], 170
    %1983 = vst.msk [vmem:[%s1982] ss:$16 sm:$0x30] %vm1977, %v1976
    %s1984 = scalar_lea.vmem [#allocation0], 650
    %1985 = vst.msk [vmem:[%s1984] ss:$16 sm:$0xc0] %vm1977, %v1976
    %s1986 = scalar_lea.vmem [#allocation1], 128
    %v1987 = vld.sshfl [vmem:[%s1986] sm:$0xff pattern:$0x99999180]
    %s1988 = scalar_lea.vmem [#allocation1], 144
    %v1989 = vld.sshfl [vmem:[%s1988] sm:$0xff pattern:$0x91800000]
    %vm1990 = vcmask 1047556
    %v1991 = vsel %vm1990, %v1989, %v1987
    %1992 = vrot.lane.b32.xlu0 %v1991, 48
    %v1993 = vpop.permute.xlu0 %1992
    %vm1994 = vcmask 64512
    %s1995 = scalar_lea.vmem [#allocation0], 266
    %1996 = vst.msk [vmem:[%s1995] ss:$16 sm:$0x3] %vm1994, %v1993
    %s1997 = scalar_lea.vmem [#allocation0], 746
    %1998 = vst.msk [vmem:[%s1997] ss:$16 sm:$0xc] %vm1994, %v1993
    %s1999 = scalar_lea.vmem [#allocation0], 234
    %2000 = vst.msk [vmem:[%s1999] ss:$16 sm:$0x30] %vm1994, %v1993
    %s2001 = scalar_lea.vmem [#allocation0], 714
    %2002 = vst.msk [vmem:[%s2001] ss:$16 sm:$0xc0] %vm1994, %v1993
    %s2003 = scalar_lea.vmem [#allocation1], 160
    %v2004 = vld.sshfl [vmem:[%s2003] sm:$0xff pattern:$0x99999180]
    %s2005 = scalar_lea.vmem [#allocation1], 176
    %v2006 = vld.sshfl [vmem:[%s2005] sm:$0xff pattern:$0x91800000]
    %vm2007 = vcmask 1047556
    %v2008 = vsel %vm2007, %v2006, %v2004
    %2009 = vrot.lane.b32.xlu0 %v2008, 48
    %v2010 = vpop.permute.xlu0 %2009
    %vm2011 = vcmask 64512
    %s2012 = scalar_lea.vmem [#allocation0], 330
    %2013 = vst.msk [vmem:[%s2012] ss:$16 sm:$0x3] %vm2011, %v2010
    %s2014 = scalar_lea.vmem [#allocation0], 810
    %2015 = vst.msk [vmem:[%s2014] ss:$16 sm:$0xc] %vm2011, %v2010
    %s2016 = scalar_lea.vmem [#allocation0], 298
    %2017 = vst.msk [vmem:[%s2016] ss:$16 sm:$0x30] %vm2011, %v2010
    %s2018 = scalar_lea.vmem [#allocation0], 778
    %2019 = vst.msk [vmem:[%s2018] ss:$16 sm:$0xc0] %vm2011, %v2010
    %s2020 = scalar_lea.vmem [#allocation1], 192
    %v2021 = vld.sshfl [vmem:[%s2020] sm:$0xff pattern:$0x99999180]
    %s2022 = scalar_lea.vmem [#allocation1], 208
    %v2023 = vld.sshfl [vmem:[%s2022] sm:$0xff pattern:$0x91800000]
    %vm2024 = vcmask 1047556
    %v2025 = vsel %vm2024, %v2023, %v2021
    %2026 = vrot.lane.b32.xlu0 %v2025, 48
    %v2027 = vpop.permute.xlu0 %2026
    %vm2028 = vcmask 64512
    %s2029 = scalar_lea.vmem [#allocation0], 394
    %2030 = vst.msk [vmem:[%s2029] ss:$16 sm:$0x3] %vm2028, %v2027
    %s2031 = scalar_lea.vmem [#allocation0], 874
    %2032 = vst.msk [vmem:[%s2031] ss:$16 sm:$0xc] %vm2028, %v2027
    %s2033 = scalar_lea.vmem [#allocation0], 362
    %2034 = vst.msk [vmem:[%s2033] ss:$16 sm:$0x30] %vm2028, %v2027
    %s2035 = scalar_lea.vmem [#allocation0], 842
    %2036 = vst.msk [vmem:[%s2035] ss:$16 sm:$0xc0] %vm2028, %v2027
    %s2037 = scalar_lea.vmem [#allocation1], 224
    %v2038 = vld.sshfl [vmem:[%s2037] sm:$0xff pattern:$0x99999180]
    %s2039 = scalar_lea.vmem [#allocation1], 240
    %v2040 = vld.sshfl [vmem:[%s2039] sm:$0xff pattern:$0x91800000]
    %vm2041 = vcmask 1047556
    %v2042 = vsel %vm2041, %v2040, %v2038
    %2043 = vrot.lane.b32.xlu0 %v2042, 48
    %v2044 = vpop.permute.xlu0 %2043
    %vm2045 = vcmask 64512
    %s2046 = scalar_lea.vmem [#allocation0], 458
    %2047 = vst.msk [vmem:[%s2046] ss:$16 sm:$0x3] %vm2045, %v2044
    %s2048 = scalar_lea.vmem [#allocation0], 938
    %2049 = vst.msk [vmem:[%s2048] ss:$16 sm:$0xc] %vm2045, %v2044
    %s2050 = scalar_lea.vmem [#allocation0], 426
    %2051 = vst.msk [vmem:[%s2050] ss:$16 sm:$0x30] %vm2045, %v2044
    %s2052 = scalar_lea.vmem [#allocation0], 906
    %2053 = vst.msk [vmem:[%s2052] ss:$16 sm:$0xc0] %vm2045, %v2044
    %v2054 = vld.sshfl [vmem:[#allocation1] sm:$0xff pattern:$0x99999180]
    %s2055 = scalar_lea.vmem [#allocation1], 16
    %v2056 = vld.sshfl [vmem:[%s2055] sm:$0xff pattern:$0x91800000]
    %vm2057 = vcmask 1047556
    %v2058 = vsel %vm2057, %v2056, %v2054
    %2059 = vrot.lane.b32.xlu0 %v2058, 40
    %v2060 = vpop.permute.xlu0 %2059
    %vm2061 = vcmask 64512
    %s2062 = scalar_lea.vmem [#allocation0], 11
    %2063 = vst.msk [vmem:[%s2062] ss:$16 sm:$0x3] %vm2061, %v2060
    %s2064 = scalar_lea.vmem [#allocation0], 491
    %2065 = vst.msk [vmem:[%s2064] ss:$16 sm:$0xc] %vm2061, %v2060
    %s2066 = scalar_lea.vmem [#allocation0], 4294967275
    %2067 = vst.msk [vmem:[%s2066] ss:$16 sm:$0x30] %vm2061, %v2060
    %s2068 = scalar_lea.vmem [#allocation0], 459
    %2069 = vst.msk [vmem:[%s2068] ss:$16 sm:$0xc0] %vm2061, %v2060
    %s2070 = scalar_lea.vmem [#allocation1], 32
    %v2071 = vld.sshfl [vmem:[%s2070] sm:$0xff pattern:$0x99999180]
    %s2072 = scalar_lea.vmem [#allocation1], 48
    %v2073 = vld.sshfl [vmem:[%s2072] sm:$0xff pattern:$0x91800000]
    %vm2074 = vcmask 1047556
    %v2075 = vsel %vm2074, %v2073, %v2071
    %2076 = vrot.lane.b32.xlu0 %v2075, 40
    %v2077 = vpop.permute.xlu0 %2076
    %vm2078 = vcmask 64512
    %s2079 = scalar_lea.vmem [#allocation0], 75
    %2080 = vst.msk [vmem:[%s2079] ss:$16 sm:$0x3] %vm2078, %v2077
    %s2081 = scalar_lea.vmem [#allocation0], 555
    %2082 = vst.msk [vmem:[%s2081] ss:$16 sm:$0xc] %vm2078, %v2077
    %s2083 = scalar_lea.vmem [#allocation0], 43
    %2084 = vst.msk [vmem:[%s2083] ss:$16 sm:$0x30] %vm2078, %v2077
    %s2085 = scalar_lea.vmem [#allocation0], 523
    %2086 = vst.msk [vmem:[%s2085] ss:$16 sm:$0xc0] %vm2078, %v2077
    %s2087 = scalar_lea.vmem [#allocation1], 64
    %v2088 = vld.sshfl [vmem:[%s2087] sm:$0xff pattern:$0x99999180]
    %s2089 = scalar_lea.vmem [#allocation1], 80
    %v2090 = vld.sshfl [vmem:[%s2089] sm:$0xff pattern:$0x91800000]
    %vm2091 = vcmask 1047556
    %v2092 = vsel %vm2091, %v2090, %v2088
    %2093 = vrot.lane.b32.xlu0 %v2092, 40
    %v2094 = vpop.permute.xlu0 %2093
    %vm2095 = vcmask 64512
    %s2096 = scalar_lea.vmem [#allocation0], 139
    %2097 = vst.msk [vmem:[%s2096] ss:$16 sm:$0x3] %vm2095, %v2094
    %s2098 = scalar_lea.vmem [#allocation0], 619
    %2099 = vst.msk [vmem:[%s2098] ss:$16 sm:$0xc] %vm2095, %v2094
    %s2100 = scalar_lea.vmem [#allocation0], 107
    %2101 = vst.msk [vmem:[%s2100] ss:$16 sm:$0x30] %vm2095, %v2094
    %s2102 = scalar_lea.vmem [#allocation0], 587
    %2103 = vst.msk [vmem:[%s2102] ss:$16 sm:$0xc0] %vm2095, %v2094
    %s2104 = scalar_lea.vmem [#allocation1], 96
    %v2105 = vld.sshfl [vmem:[%s2104] sm:$0xff pattern:$0x99999180]
    %s2106 = scalar_lea.vmem [#allocation1], 112
    %v2107 = vld.sshfl [vmem:[%s2106] sm:$0xff pattern:$0x91800000]
    %vm2108 = vcmask 1047556
    %v2109 = vsel %vm2108, %v2107, %v2105
    %2110 = vrot.lane.b32.xlu0 %v2109, 40
    %v2111 = vpop.permute.xlu0 %2110
    %vm2112 = vcmask 64512
    %s2113 = scalar_lea.vmem [#allocation0], 203
    %2114 = vst.msk [vmem:[%s2113] ss:$16 sm:$0x3] %vm2112, %v2111
    %s2115 = scalar_lea.vmem [#allocation0], 683
    %2116 = vst.msk [vmem:[%s2115] ss:$16 sm:$0xc] %vm2112, %v2111
    %s2117 = scalar_lea.vmem [#allocation0], 171
    %2118 = vst.msk [vmem:[%s2117] ss:$16 sm:$0x30] %vm2112, %v2111
    %s2119 = scalar_lea.vmem [#allocation0], 651
    %2120 = vst.msk [vmem:[%s2119] ss:$16 sm:$0xc0] %vm2112, %v2111
    %s2121 = scalar_lea.vmem [#allocation1], 128
    %v2122 = vld.sshfl [vmem:[%s2121] sm:$0xff pattern:$0x99999180]
    %s2123 = scalar_lea.vmem [#allocation1], 144
    %v2124 = vld.sshfl [vmem:[%s2123] sm:$0xff pattern:$0x91800000]
    %vm2125 = vcmask 1047556
    %v2126 = vsel %vm2125, %v2124, %v2122
    %2127 = vrot.lane.b32.xlu0 %v2126, 40
    %v2128 = vpop.permute.xlu0 %2127
    %vm2129 = vcmask 64512
    %s2130 = scalar_lea.vmem [#allocation0], 267
    %2131 = vst.msk [vmem:[%s2130] ss:$16 sm:$0x3] %vm2129, %v2128
    %s2132 = scalar_lea.vmem [#allocation0], 747
    %2133 = vst.msk [vmem:[%s2132] ss:$16 sm:$0xc] %vm2129, %v2128
    %s2134 = scalar_lea.vmem [#allocation0], 235
    %2135 = vst.msk [vmem:[%s2134] ss:$16 sm:$0x30] %vm2129, %v2128
    %s2136 = scalar_lea.vmem [#allocation0], 715
    %2137 = vst.msk [vmem:[%s2136] ss:$16 sm:$0xc0] %vm2129, %v2128
    %s2138 = scalar_lea.vmem [#allocation1], 160
    %v2139 = vld.sshfl [vmem:[%s2138] sm:$0xff pattern:$0x99999180]
    %s2140 = scalar_lea.vmem [#allocation1], 176
    %v2141 = vld.sshfl [vmem:[%s2140] sm:$0xff pattern:$0x91800000]
    %vm2142 = vcmask 1047556
    %v2143 = vsel %vm2142, %v2141, %v2139
    %2144 = vrot.lane.b32.xlu0 %v2143, 40
    %v2145 = vpop.permute.xlu0 %2144
    %vm2146 = vcmask 64512
    %s2147 = scalar_lea.vmem [#allocation0], 331
    %2148 = vst.msk [vmem:[%s2147] ss:$16 sm:$0x3] %vm2146, %v2145
    %s2149 = scalar_lea.vmem [#allocation0], 811
    %2150 = vst.msk [vmem:[%s2149] ss:$16 sm:$0xc] %vm2146, %v2145
    %s2151 = scalar_lea.vmem [#allocation0], 299
    %2152 = vst.msk [vmem:[%s2151] ss:$16 sm:$0x30] %vm2146, %v2145
    %s2153 = scalar_lea.vmem [#allocation0], 779
    %2154 = vst.msk [vmem:[%s2153] ss:$16 sm:$0xc0] %vm2146, %v2145
    %s2155 = scalar_lea.vmem [#allocation1], 192
    %v2156 = vld.sshfl [vmem:[%s2155] sm:$0xff pattern:$0x99999180]
    %s2157 = scalar_lea.vmem [#allocation1], 208
    %v2158 = vld.sshfl [vmem:[%s2157] sm:$0xff pattern:$0x91800000]
    %vm2159 = vcmask 1047556
    %v2160 = vsel %vm2159, %v2158, %v2156
    %2161 = vrot.lane.b32.xlu0 %v2160, 40
    %v2162 = vpop.permute.xlu0 %2161
    %vm2163 = vcmask 64512
    %s2164 = scalar_lea.vmem [#allocation0], 395
    %2165 = vst.msk [vmem:[%s2164] ss:$16 sm:$0x3] %vm2163, %v2162
    %s2166 = scalar_lea.vmem [#allocation0], 875
    %2167 = vst.msk [vmem:[%s2166] ss:$16 sm:$0xc] %vm2163, %v2162
    %s2168 = scalar_lea.vmem [#allocation0], 363
    %2169 = vst.msk [vmem:[%s2168] ss:$16 sm:$0x30] %vm2163, %v2162
    %s2170 = scalar_lea.vmem [#allocation0], 843
    %2171 = vst.msk [vmem:[%s2170] ss:$16 sm:$0xc0] %vm2163, %v2162
    %s2172 = scalar_lea.vmem [#allocation1], 224
    %v2173 = vld.sshfl [vmem:[%s2172] sm:$0xff pattern:$0x99999180]
    %s2174 = scalar_lea.vmem [#allocation1], 240
    %v2175 = vld.sshfl [vmem:[%s2174] sm:$0xff pattern:$0x91800000]
    %vm2176 = vcmask 1047556
    %v2177 = vsel %vm2176, %v2175, %v2173
    %2178 = vrot.lane.b32.xlu0 %v2177, 40
    %v2179 = vpop.permute.xlu0 %2178
    %vm2180 = vcmask 64512
    %s2181 = scalar_lea.vmem [#allocation0], 459
    %2182 = vst.msk [vmem:[%s2181] ss:$16 sm:$0x3] %vm2180, %v2179
    %s2183 = scalar_lea.vmem [#allocation0], 939
    %2184 = vst.msk [vmem:[%s2183] ss:$16 sm:$0xc] %vm2180, %v2179
    %s2185 = scalar_lea.vmem [#allocation0], 427
    %2186 = vst.msk [vmem:[%s2185] ss:$16 sm:$0x30] %vm2180, %v2179
    %s2187 = scalar_lea.vmem [#allocation0], 907
    %2188 = vst.msk [vmem:[%s2187] ss:$16 sm:$0xc0] %vm2180, %v2179
    %v2189 = vld.sshfl [vmem:[#allocation1] sm:$0xff pattern:$0x99999180]
    %s2190 = scalar_lea.vmem [#allocation1], 16
    %v2191 = vld.sshfl [vmem:[%s2190] sm:$0xff pattern:$0x91800000]
    %vm2192 = vcmask 1047556
    %v2193 = vsel %vm2192, %v2191, %v2189
    %2194 = vrot.lane.b32.xlu0 %v2193, 32
    %v2195 = vpop.permute.xlu0 %2194
    %vm2196 = vcmask 64512
    %s2197 = scalar_lea.vmem [#allocation0], 12
    %2198 = vst.msk [vmem:[%s2197] ss:$16 sm:$0x3] %vm2196, %v2195
    %s2199 = scalar_lea.vmem [#allocation0], 492
    %2200 = vst.msk [vmem:[%s2199] ss:$16 sm:$0xc] %vm2196, %v2195
    %s2201 = scalar_lea.vmem [#allocation0], 4294967276
    %2202 = vst.msk [vmem:[%s2201] ss:$16 sm:$0x30] %vm2196, %v2195
    %s2203 = scalar_lea.vmem [#allocation0], 460
    %2204 = vst.msk [vmem:[%s2203] ss:$16 sm:$0xc0] %vm2196, %v2195
    %s2205 = scalar_lea.vmem [#allocation1], 32
    %v2206 = vld.sshfl [vmem:[%s2205] sm:$0xff pattern:$0x99999180]
    %s2207 = scalar_lea.vmem [#allocation1], 48
    %v2208 = vld.sshfl [vmem:[%s2207] sm:$0xff pattern:$0x91800000]
    %vm2209 = vcmask 1047556
    %v2210 = vsel %vm2209, %v2208, %v2206
    %2211 = vrot.lane.b32.xlu0 %v2210, 32
    %v2212 = vpop.permute.xlu0 %2211
    %vm2213 = vcmask 64512
    %s2214 = scalar_lea.vmem [#allocation0], 76
    %2215 = vst.msk [vmem:[%s2214] ss:$16 sm:$0x3] %vm2213, %v2212
    %s2216 = scalar_lea.vmem [#allocation0], 556
    %2217 = vst.msk [vmem:[%s2216] ss:$16 sm:$0xc] %vm2213, %v2212
    %s2218 = scalar_lea.vmem [#allocation0], 44
    %2219 = vst.msk [vmem:[%s2218] ss:$16 sm:$0x30] %vm2213, %v2212
    %s2220 = scalar_lea.vmem [#allocation0], 524
    %2221 = vst.msk [vmem:[%s2220] ss:$16 sm:$0xc0] %vm2213, %v2212
    %s2222 = scalar_lea.vmem [#allocation1], 64
    %v2223 = vld.sshfl [vmem:[%s2222] sm:$0xff pattern:$0x99999180]
    %s2224 = scalar_lea.vmem [#allocation1], 80
    %v2225 = vld.sshfl [vmem:[%s2224] sm:$0xff pattern:$0x91800000]
    %vm2226 = vcmask 1047556
    %v2227 = vsel %vm2226, %v2225, %v2223
    %2228 = vrot.lane.b32.xlu0 %v2227, 32
    %v2229 = vpop.permute.xlu0 %2228
    %vm2230 = vcmask 64512
    %s2231 = scalar_lea.vmem [#allocation0], 140
    %2232 = vst.msk [vmem:[%s2231] ss:$16 sm:$0x3] %vm2230, %v2229
    %s2233 = scalar_lea.vmem [#allocation0], 620
    %2234 = vst.msk [vmem:[%s2233] ss:$16 sm:$0xc] %vm2230, %v2229
    %s2235 = scalar_lea.vmem [#allocation0], 108
    %2236 = vst.msk [vmem:[%s2235] ss:$16 sm:$0x30] %vm2230, %v2229
    %s2237 = scalar_lea.vmem [#allocation0], 588
    %2238 = vst.msk [vmem:[%s2237] ss:$16 sm:$0xc0] %vm2230, %v2229
    %s2239 = scalar_lea.vmem [#allocation1], 96
    %v2240 = vld.sshfl [vmem:[%s2239] sm:$0xff pattern:$0x99999180]
    %s2241 = scalar_lea.vmem [#allocation1], 112
    %v2242 = vld.sshfl [vmem:[%s2241] sm:$0xff pattern:$0x91800000]
    %vm2243 = vcmask 1047556
    %v2244 = vsel %vm2243, %v2242, %v2240
    %2245 = vrot.lane.b32.xlu0 %v2244, 32
    %v2246 = vpop.permute.xlu0 %2245
    %vm2247 = vcmask 64512
    %s2248 = scalar_lea.vmem [#allocation0], 204
    %2249 = vst.msk [vmem:[%s2248] ss:$16 sm:$0x3] %vm2247, %v2246
    %s2250 = scalar_lea.vmem [#allocation0], 684
    %2251 = vst.msk [vmem:[%s2250] ss:$16 sm:$0xc] %vm2247, %v2246
    %s2252 = scalar_lea.vmem [#allocation0], 172
    %2253 = vst.msk [vmem:[%s2252] ss:$16 sm:$0x30] %vm2247, %v2246
    %s2254 = scalar_lea.vmem [#allocation0], 652
    %2255 = vst.msk [vmem:[%s2254] ss:$16 sm:$0xc0] %vm2247, %v2246
    %s2256 = scalar_lea.vmem [#allocation1], 128
    %v2257 = vld.sshfl [vmem:[%s2256] sm:$0xff pattern:$0x99999180]
    %s2258 = scalar_lea.vmem [#allocation1], 144
    %v2259 = vld.sshfl [vmem:[%s2258] sm:$0xff pattern:$0x91800000]
    %vm2260 = vcmask 1047556
    %v2261 = vsel %vm2260, %v2259, %v2257
    %2262 = vrot.lane.b32.xlu0 %v2261, 32
    %v2263 = vpop.permute.xlu0 %2262
    %vm2264 = vcmask 64512
    %s2265 = scalar_lea.vmem [#allocation0], 268
    %2266 = vst.msk [vmem:[%s2265] ss:$16 sm:$0x3] %vm2264, %v2263
    %s2267 = scalar_lea.vmem [#allocation0], 748
    %2268 = vst.msk [vmem:[%s2267] ss:$16 sm:$0xc] %vm2264, %v2263
    %s2269 = scalar_lea.vmem [#allocation0], 236
    %2270 = vst.msk [vmem:[%s2269] ss:$16 sm:$0x30] %vm2264, %v2263
    %s2271 = scalar_lea.vmem [#allocation0], 716
    %2272 = vst.msk [vmem:[%s2271] ss:$16 sm:$0xc0] %vm2264, %v2263
    %s2273 = scalar_lea.vmem [#allocation1], 160
    %v2274 = vld.sshfl [vmem:[%s2273] sm:$0xff pattern:$0x99999180]
    %s2275 = scalar_lea.vmem [#allocation1], 176
    %v2276 = vld.sshfl [vmem:[%s2275] sm:$0xff pattern:$0x91800000]
    %vm2277 = vcmask 1047556
    %v2278 = vsel %vm2277, %v2276, %v2274
    %2279 = vrot.lane.b32.xlu0 %v2278, 32
    %v2280 = vpop.permute.xlu0 %2279
    %vm2281 = vcmask 64512
    %s2282 = scalar_lea.vmem [#allocation0], 332
    %2283 = vst.msk [vmem:[%s2282] ss:$16 sm:$0x3] %vm2281, %v2280
    %s2284 = scalar_lea.vmem [#allocation0], 812
    %2285 = vst.msk [vmem:[%s2284] ss:$16 sm:$0xc] %vm2281, %v2280
    %s2286 = scalar_lea.vmem [#allocation0], 300
    %2287 = vst.msk [vmem:[%s2286] ss:$16 sm:$0x30] %vm2281, %v2280
    %s2288 = scalar_lea.vmem [#allocation0], 780
    %2289 = vst.msk [vmem:[%s2288] ss:$16 sm:$0xc0] %vm2281, %v2280
    %s2290 = scalar_lea.vmem [#allocation1], 192
    %v2291 = vld.sshfl [vmem:[%s2290] sm:$0xff pattern:$0x99999180]
    %s2292 = scalar_lea.vmem [#allocation1], 208
    %v2293 = vld.sshfl [vmem:[%s2292] sm:$0xff pattern:$0x91800000]
    %vm2294 = vcmask 1047556
    %v2295 = vsel %vm2294, %v2293, %v2291
    %2296 = vrot.lane.b32.xlu0 %v2295, 32
    %v2297 = vpop.permute.xlu0 %2296
    %vm2298 = vcmask 64512
    %s2299 = scalar_lea.vmem [#allocation0], 396
    %2300 = vst.msk [vmem:[%s2299] ss:$16 sm:$0x3] %vm2298, %v2297
    %s2301 = scalar_lea.vmem [#allocation0], 876
    %2302 = vst.msk [vmem:[%s2301] ss:$16 sm:$0xc] %vm2298, %v2297
    %s2303 = scalar_lea.vmem [#allocation0], 364
    %2304 = vst.msk [vmem:[%s2303] ss:$16 sm:$0x30] %vm2298, %v2297
    %s2305 = scalar_lea.vmem [#allocation0], 844
    %2306 = vst.msk [vmem:[%s2305] ss:$16 sm:$0xc0] %vm2298, %v2297
    %s2307 = scalar_lea.vmem [#allocation1], 224
    %v2308 = vld.sshfl [vmem:[%s2307] sm:$0xff pattern:$0x99999180]
    %s2309 = scalar_lea.vmem [#allocation1], 240
    %v2310 = vld.sshfl [vmem:[%s2309] sm:$0xff pattern:$0x91800000]
    %vm2311 = vcmask 1047556
    %v2312 = vsel %vm2311, %v2310, %v2308
    %2313 = vrot.lane.b32.xlu0 %v2312, 32
    %v2314 = vpop.permute.xlu0 %2313
    %vm2315 = vcmask 64512
    %s2316 = scalar_lea.vmem [#allocation0], 460
    %2317 = vst.msk [vmem:[%s2316] ss:$16 sm:$0x3] %vm2315, %v2314
    %s2318 = scalar_lea.vmem [#allocation0], 940
    %2319 = vst.msk [vmem:[%s2318] ss:$16 sm:$0xc] %vm2315, %v2314
    %s2320 = scalar_lea.vmem [#allocation0], 428
    %2321 = vst.msk [vmem:[%s2320] ss:$16 sm:$0x30] %vm2315, %v2314
    %s2322 = scalar_lea.vmem [#allocation0], 908
    %2323 = vst.msk [vmem:[%s2322] ss:$16 sm:$0xc0] %vm2315, %v2314
    %v2324 = vld.sshfl [vmem:[#allocation1] sm:$0xff pattern:$0x99999180]
    %s2325 = scalar_lea.vmem [#allocation1], 16
    %v2326 = vld.sshfl [vmem:[%s2325] sm:$0xff pattern:$0x91800000]
    %vm2327 = vcmask 1047556
    %v2328 = vsel %vm2327, %v2326, %v2324
    %2329 = vrot.lane.b32.xlu0 %v2328, 24
    %v2330 = vpop.permute.xlu0 %2329
    %vm2331 = vcmask 64512
    %s2332 = scalar_lea.vmem [#allocation0], 13
    %2333 = vst.msk [vmem:[%s2332] ss:$16 sm:$0x3] %vm2331, %v2330
    %s2334 = scalar_lea.vmem [#allocation0], 493
    %2335 = vst.msk [vmem:[%s2334] ss:$16 sm:$0xc] %vm2331, %v2330
    %s2336 = scalar_lea.vmem [#allocation0], 4294967277
    %2337 = vst.msk [vmem:[%s2336] ss:$16 sm:$0x30] %vm2331, %v2330
    %s2338 = scalar_lea.vmem [#allocation0], 461
    %2339 = vst.msk [vmem:[%s2338] ss:$16 sm:$0xc0] %vm2331, %v2330
    %s2340 = scalar_lea.vmem [#allocation1], 32
    %v2341 = vld.sshfl [vmem:[%s2340] sm:$0xff pattern:$0x99999180]
    %s2342 = scalar_lea.vmem [#allocation1], 48
    %v2343 = vld.sshfl [vmem:[%s2342] sm:$0xff pattern:$0x91800000]
    %vm2344 = vcmask 1047556
    %v2345 = vsel %vm2344, %v2343, %v2341
    %2346 = vrot.lane.b32.xlu0 %v2345, 24
    %v2347 = vpop.permute.xlu0 %2346
    %vm2348 = vcmask 64512
    %s2349 = scalar_lea.vmem [#allocation0], 77
    %2350 = vst.msk [vmem:[%s2349] ss:$16 sm:$0x3] %vm2348, %v2347
    %s2351 = scalar_lea.vmem [#allocation0], 557
    %2352 = vst.msk [vmem:[%s2351] ss:$16 sm:$0xc] %vm2348, %v2347
    %s2353 = scalar_lea.vmem [#allocation0], 45
    %2354 = vst.msk [vmem:[%s2353] ss:$16 sm:$0x30] %vm2348, %v2347
    %s2355 = scalar_lea.vmem [#allocation0], 525
    %2356 = vst.msk [vmem:[%s2355] ss:$16 sm:$0xc0] %vm2348, %v2347
    %s2357 = scalar_lea.vmem [#allocation1], 64
    %v2358 = vld.sshfl [vmem:[%s2357] sm:$0xff pattern:$0x99999180]
    %s2359 = scalar_lea.vmem [#allocation1], 80
    %v2360 = vld.sshfl [vmem:[%s2359] sm:$0xff pattern:$0x91800000]
    %vm2361 = vcmask 1047556
    %v2362 = vsel %vm2361, %v2360, %v2358
    %2363 = vrot.lane.b32.xlu0 %v2362, 24
    %v2364 = vpop.permute.xlu0 %2363
    %vm2365 = vcmask 64512
    %s2366 = scalar_lea.vmem [#allocation0], 141
    %2367 = vst.msk [vmem:[%s2366] ss:$16 sm:$0x3] %vm2365, %v2364
    %s2368 = scalar_lea.vmem [#allocation0], 621
    %2369 = vst.msk [vmem:[%s2368] ss:$16 sm:$0xc] %vm2365, %v2364
    %s2370 = scalar_lea.vmem [#allocation0], 109
    %2371 = vst.msk [vmem:[%s2370] ss:$16 sm:$0x30] %vm2365, %v2364
    %s2372 = scalar_lea.vmem [#allocation0], 589
    %2373 = vst.msk [vmem:[%s2372] ss:$16 sm:$0xc0] %vm2365, %v2364
    %s2374 = scalar_lea.vmem [#allocation1], 96
    %v2375 = vld.sshfl [vmem:[%s2374] sm:$0xff pattern:$0x99999180]
    %s2376 = scalar_lea.vmem [#allocation1], 112
    %v2377 = vld.sshfl [vmem:[%s2376] sm:$0xff pattern:$0x91800000]
    %vm2378 = vcmask 1047556
    %v2379 = vsel %vm2378, %v2377, %v2375
    %2380 = vrot.lane.b32.xlu0 %v2379, 24
    %v2381 = vpop.permute.xlu0 %2380
    %vm2382 = vcmask 64512
    %s2383 = scalar_lea.vmem [#allocation0], 205
    %2384 = vst.msk [vmem:[%s2383] ss:$16 sm:$0x3] %vm2382, %v2381
    %s2385 = scalar_lea.vmem [#allocation0], 685
    %2386 = vst.msk [vmem:[%s2385] ss:$16 sm:$0xc] %vm2382, %v2381
    %s2387 = scalar_lea.vmem [#allocation0], 173
    %2388 = vst.msk [vmem:[%s2387] ss:$16 sm:$0x30] %vm2382, %v2381
    %s2389 = scalar_lea.vmem [#allocation0], 653
    %2390 = vst.msk [vmem:[%s2389] ss:$16 sm:$0xc0] %vm2382, %v2381
    %s2391 = scalar_lea.vmem [#allocation1], 128
    %v2392 = vld.sshfl [vmem:[%s2391] sm:$0xff pattern:$0x99999180]
    %s2393 = scalar_lea.vmem [#allocation1], 144
    %v2394 = vld.sshfl [vmem:[%s2393] sm:$0xff pattern:$0x91800000]
    %vm2395 = vcmask 1047556
    %v2396 = vsel %vm2395, %v2394, %v2392
    %2397 = vrot.lane.b32.xlu0 %v2396, 24
    %v2398 = vpop.permute.xlu0 %2397
    %vm2399 = vcmask 64512
    %s2400 = scalar_lea.vmem [#allocation0], 269
    %2401 = vst.msk [vmem:[%s2400] ss:$16 sm:$0x3] %vm2399, %v2398
    %s2402 = scalar_lea.vmem [#allocation0], 749
    %2403 = vst.msk [vmem:[%s2402] ss:$16 sm:$0xc] %vm2399, %v2398
    %s2404 = scalar_lea.vmem [#allocation0], 237
    %2405 = vst.msk [vmem:[%s2404] ss:$16 sm:$0x30] %vm2399, %v2398
    %s2406 = scalar_lea.vmem [#allocation0], 717
    %2407 = vst.msk [vmem:[%s2406] ss:$16 sm:$0xc0] %vm2399, %v2398
    %s2408 = scalar_lea.vmem [#allocation1], 160
    %v2409 = vld.sshfl [vmem:[%s2408] sm:$0xff pattern:$0x99999180]
    %s2410 = scalar_lea.vmem [#allocation1], 176
    %v2411 = vld.sshfl [vmem:[%s2410] sm:$0xff pattern:$0x91800000]
    %vm2412 = vcmask 1047556
    %v2413 = vsel %vm2412, %v2411, %v2409
    %2414 = vrot.lane.b32.xlu0 %v2413, 24
    %v2415 = vpop.permute.xlu0 %2414
    %vm2416 = vcmask 64512
    %s2417 = scalar_lea.vmem [#allocation0], 333
    %2418 = vst.msk [vmem:[%s2417] ss:$16 sm:$0x3] %vm2416, %v2415
    %s2419 = scalar_lea.vmem [#allocation0], 813
    %2420 = vst.msk [vmem:[%s2419] ss:$16 sm:$0xc] %vm2416, %v2415
    %s2421 = scalar_lea.vmem [#allocation0], 301
    %2422 = vst.msk [vmem:[%s2421] ss:$16 sm:$0x30] %vm2416, %v2415
    %s2423 = scalar_lea.vmem [#allocation0], 781
    %2424 = vst.msk [vmem:[%s2423] ss:$16 sm:$0xc0] %vm2416, %v2415
    %s2425 = scalar_lea.vmem [#allocation1], 192
    %v2426 = vld.sshfl [vmem:[%s2425] sm:$0xff pattern:$0x99999180]
    %s2427 = scalar_lea.vmem [#allocation1], 208
    %v2428 = vld.sshfl [vmem:[%s2427] sm:$0xff pattern:$0x91800000]
    %vm2429 = vcmask 1047556
    %v2430 = vsel %vm2429, %v2428, %v2426
    %2431 = vrot.lane.b32.xlu0 %v2430, 24
    %v2432 = vpop.permute.xlu0 %2431
    %vm2433 = vcmask 64512
    %s2434 = scalar_lea.vmem [#allocation0], 397
    %2435 = vst.msk [vmem:[%s2434] ss:$16 sm:$0x3] %vm2433, %v2432
    %s2436 = scalar_lea.vmem [#allocation0], 877
    %2437 = vst.msk [vmem:[%s2436] ss:$16 sm:$0xc] %vm2433, %v2432
    %s2438 = scalar_lea.vmem [#allocation0], 365
    %2439 = vst.msk [vmem:[%s2438] ss:$16 sm:$0x30] %vm2433, %v2432
    %s2440 = scalar_lea.vmem [#allocation0], 845
    %2441 = vst.msk [vmem:[%s2440] ss:$16 sm:$0xc0] %vm2433, %v2432
    %s2442 = scalar_lea.vmem [#allocation1], 224
    %v2443 = vld.sshfl [vmem:[%s2442] sm:$0xff pattern:$0x99999180]
    %s2444 = scalar_lea.vmem [#allocation1], 240
    %v2445 = vld.sshfl [vmem:[%s2444] sm:$0xff pattern:$0x91800000]
    %vm2446 = vcmask 1047556
    %v2447 = vsel %vm2446, %v2445, %v2443
    %2448 = vrot.lane.b32.xlu0 %v2447, 24
    %v2449 = vpop.permute.xlu0 %2448
    %vm2450 = vcmask 64512
    %s2451 = scalar_lea.vmem [#allocation0], 461
    %2452 = vst.msk [vmem:[%s2451] ss:$16 sm:$0x3] %vm2450, %v2449
    %s2453 = scalar_lea.vmem [#allocation0], 941
    %2454 = vst.msk [vmem:[%s2453] ss:$16 sm:$0xc] %vm2450, %v2449
    %s2455 = scalar_lea.vmem [#allocation0], 429
    %2456 = vst.msk [vmem:[%s2455] ss:$16 sm:$0x30] %vm2450, %v2449
    %s2457 = scalar_lea.vmem [#allocation0], 909
    %2458 = vst.msk [vmem:[%s2457] ss:$16 sm:$0xc0] %vm2450, %v2449
    %v2459 = vld.sshfl [vmem:[#allocation1] sm:$0xff pattern:$0x99999180]
    %s2460 = scalar_lea.vmem [#allocation1], 16
    %v2461 = vld.sshfl [vmem:[%s2460] sm:$0xff pattern:$0x91800000]
    %vm2462 = vcmask 1047556
    %v2463 = vsel %vm2462, %v2461, %v2459
    %2464 = vrot.lane.b32.xlu0 %v2463, 16
    %v2465 = vpop.permute.xlu0 %2464
    %vm2466 = vcmask 64512
    %s2467 = scalar_lea.vmem [#allocation0], 14
    %2468 = vst.msk [vmem:[%s2467] ss:$16 sm:$0x3] %vm2466, %v2465
    %s2469 = scalar_lea.vmem [#allocation0], 494
    %2470 = vst.msk [vmem:[%s2469] ss:$16 sm:$0xc] %vm2466, %v2465
    %s2471 = scalar_lea.vmem [#allocation0], 4294967278
    %2472 = vst.msk [vmem:[%s2471] ss:$16 sm:$0x30] %vm2466, %v2465
    %s2473 = scalar_lea.vmem [#allocation0], 462
    %2474 = vst.msk [vmem:[%s2473] ss:$16 sm:$0xc0] %vm2466, %v2465
    %s2475 = scalar_lea.vmem [#allocation1], 32
    %v2476 = vld.sshfl [vmem:[%s2475] sm:$0xff pattern:$0x99999180]
    %s2477 = scalar_lea.vmem [#allocation1], 48
    %v2478 = vld.sshfl [vmem:[%s2477] sm:$0xff pattern:$0x91800000]
    %vm2479 = vcmask 1047556
    %v2480 = vsel %vm2479, %v2478, %v2476
    %2481 = vrot.lane.b32.xlu0 %v2480, 16
    %v2482 = vpop.permute.xlu0 %2481
    %vm2483 = vcmask 64512
    %s2484 = scalar_lea.vmem [#allocation0], 78
    %2485 = vst.msk [vmem:[%s2484] ss:$16 sm:$0x3] %vm2483, %v2482
    %s2486 = scalar_lea.vmem [#allocation0], 558
    %2487 = vst.msk [vmem:[%s2486] ss:$16 sm:$0xc] %vm2483, %v2482
    %s2488 = scalar_lea.vmem [#allocation0], 46
    %2489 = vst.msk [vmem:[%s2488] ss:$16 sm:$0x30] %vm2483, %v2482
    %s2490 = scalar_lea.vmem [#allocation0], 526
    %2491 = vst.msk [vmem:[%s2490] ss:$16 sm:$0xc0] %vm2483, %v2482
    %s2492 = scalar_lea.vmem [#allocation1], 64
    %v2493 = vld.sshfl [vmem:[%s2492] sm:$0xff pattern:$0x99999180]
    %s2494 = scalar_lea.vmem [#allocation1], 80
    %v2495 = vld.sshfl [vmem:[%s2494] sm:$0xff pattern:$0x91800000]
    %vm2496 = vcmask 1047556
    %v2497 = vsel %vm2496, %v2495, %v2493
    %2498 = vrot.lane.b32.xlu0 %v2497, 16
    %v2499 = vpop.permute.xlu0 %2498
    %vm2500 = vcmask 64512
    %s2501 = scalar_lea.vmem [#allocation0], 142
    %2502 = vst.msk [vmem:[%s2501] ss:$16 sm:$0x3] %vm2500, %v2499
    %s2503 = scalar_lea.vmem [#allocation0], 622
    %2504 = vst.msk [vmem:[%s2503] ss:$16 sm:$0xc] %vm2500, %v2499
    %s2505 = scalar_lea.vmem [#allocation0], 110
    %2506 = vst.msk [vmem:[%s2505] ss:$16 sm:$0x30] %vm2500, %v2499
    %s2507 = scalar_lea.vmem [#allocation0], 590
    %2508 = vst.msk [vmem:[%s2507] ss:$16 sm:$0xc0] %vm2500, %v2499
    %s2509 = scalar_lea.vmem [#allocation1], 96
    %v2510 = vld.sshfl [vmem:[%s2509] sm:$0xff pattern:$0x99999180]
    %s2511 = scalar_lea.vmem [#allocation1], 112
    %v2512 = vld.sshfl [vmem:[%s2511] sm:$0xff pattern:$0x91800000]
    %vm2513 = vcmask 1047556
    %v2514 = vsel %vm2513, %v2512, %v2510
    %2515 = vrot.lane.b32.xlu0 %v2514, 16
    %v2516 = vpop.permute.xlu0 %2515
    %vm2517 = vcmask 64512
    %s2518 = scalar_lea.vmem [#allocation0], 206
    %2519 = vst.msk [vmem:[%s2518] ss:$16 sm:$0x3] %vm2517, %v2516
    %s2520 = scalar_lea.vmem [#allocation0], 686
    %2521 = vst.msk [vmem:[%s2520] ss:$16 sm:$0xc] %vm2517, %v2516
    %s2522 = scalar_lea.vmem [#allocation0], 174
    %2523 = vst.msk [vmem:[%s2522] ss:$16 sm:$0x30] %vm2517, %v2516
    %s2524 = scalar_lea.vmem [#allocation0], 654
    %2525 = vst.msk [vmem:[%s2524] ss:$16 sm:$0xc0] %vm2517, %v2516
    %s2526 = scalar_lea.vmem [#allocation1], 128
    %v2527 = vld.sshfl [vmem:[%s2526] sm:$0xff pattern:$0x99999180]
    %s2528 = scalar_lea.vmem [#allocation1], 144
    %v2529 = vld.sshfl [vmem:[%s2528] sm:$0xff pattern:$0x91800000]
    %vm2530 = vcmask 1047556
    %v2531 = vsel %vm2530, %v2529, %v2527
    %2532 = vrot.lane.b32.xlu0 %v2531, 16
    %v2533 = vpop.permute.xlu0 %2532
    %vm2534 = vcmask 64512
    %s2535 = scalar_lea.vmem [#allocation0], 270
    %2536 = vst.msk [vmem:[%s2535] ss:$16 sm:$0x3] %vm2534, %v2533
    %s2537 = scalar_lea.vmem [#allocation0], 750
    %2538 = vst.msk [vmem:[%s2537] ss:$16 sm:$0xc] %vm2534, %v2533
    %s2539 = scalar_lea.vmem [#allocation0], 238
    %2540 = vst.msk [vmem:[%s2539] ss:$16 sm:$0x30] %vm2534, %v2533
    %s2541 = scalar_lea.vmem [#allocation0], 718
    %2542 = vst.msk [vmem:[%s2541] ss:$16 sm:$0xc0] %vm2534, %v2533
    %s2543 = scalar_lea.vmem [#allocation1], 160
    %v2544 = vld.sshfl [vmem:[%s2543] sm:$0xff pattern:$0x99999180]
    %s2545 = scalar_lea.vmem [#allocation1], 176
    %v2546 = vld.sshfl [vmem:[%s2545] sm:$0xff pattern:$0x91800000]
    %vm2547 = vcmask 1047556
    %v2548 = vsel %vm2547, %v2546, %v2544
    %2549 = vrot.lane.b32.xlu0 %v2548, 16
    %v2550 = vpop.permute.xlu0 %2549
    %vm2551 = vcmask 64512
    %s2552 = scalar_lea.vmem [#allocation0], 334
    %2553 = vst.msk [vmem:[%s2552] ss:$16 sm:$0x3] %vm2551, %v2550
    %s2554 = scalar_lea.vmem [#allocation0], 814
    %2555 = vst.msk [vmem:[%s2554] ss:$16 sm:$0xc] %vm2551, %v2550
    %s2556 = scalar_lea.vmem [#allocation0], 302
    %2557 = vst.msk [vmem:[%s2556] ss:$16 sm:$0x30] %vm2551, %v2550
    %s2558 = scalar_lea.vmem [#allocation0], 782
    %2559 = vst.msk [vmem:[%s2558] ss:$16 sm:$0xc0] %vm2551, %v2550
    %s2560 = scalar_lea.vmem [#allocation1], 192
    %v2561 = vld.sshfl [vmem:[%s2560] sm:$0xff pattern:$0x99999180]
    %s2562 = scalar_lea.vmem [#allocation1], 208
    %v2563 = vld.sshfl [vmem:[%s2562] sm:$0xff pattern:$0x91800000]
    %vm2564 = vcmask 1047556
    %v2565 = vsel %vm2564, %v2563, %v2561
    %2566 = vrot.lane.b32.xlu0 %v2565, 16
    %v2567 = vpop.permute.xlu0 %2566
    %vm2568 = vcmask 64512
    %s2569 = scalar_lea.vmem [#allocation0], 398
    %2570 = vst.msk [vmem:[%s2569] ss:$16 sm:$0x3] %vm2568, %v2567
    %s2571 = scalar_lea.vmem [#allocation0], 878
    %2572 = vst.msk [vmem:[%s2571] ss:$16 sm:$0xc] %vm2568, %v2567
    %s2573 = scalar_lea.vmem [#allocation0], 366
    %2574 = vst.msk [vmem:[%s2573] ss:$16 sm:$0x30] %vm2568, %v2567
    %s2575 = scalar_lea.vmem [#allocation0], 846
    %2576 = vst.msk [vmem:[%s2575] ss:$16 sm:$0xc0] %vm2568, %v2567
    %s2577 = scalar_lea.vmem [#allocation1], 224
    %v2578 = vld.sshfl [vmem:[%s2577] sm:$0xff pattern:$0x99999180]
    %s2579 = scalar_lea.vmem [#allocation1], 240
    %v2580 = vld.sshfl [vmem:[%s2579] sm:$0xff pattern:$0x91800000]
    %vm2581 = vcmask 1047556
    %v2582 = vsel %vm2581, %v2580, %v2578
    %2583 = vrot.lane.b32.xlu0 %v2582, 16
    %v2584 = vpop.permute.xlu0 %2583
    %vm2585 = vcmask 64512
    %s2586 = scalar_lea.vmem [#allocation0], 462
    %2587 = vst.msk [vmem:[%s2586] ss:$16 sm:$0x3] %vm2585, %v2584
    %s2588 = scalar_lea.vmem [#allocation0], 942
    %2589 = vst.msk [vmem:[%s2588] ss:$16 sm:$0xc] %vm2585, %v2584
    %s2590 = scalar_lea.vmem [#allocation0], 430
    %2591 = vst.msk [vmem:[%s2590] ss:$16 sm:$0x30] %vm2585, %v2584
    %s2592 = scalar_lea.vmem [#allocation0], 910
    %2593 = vst.msk [vmem:[%s2592] ss:$16 sm:$0xc0] %vm2585, %v2584
    %v2594 = vld.sshfl [vmem:[#allocation1] sm:$0xff pattern:$0x99999180]
    %s2595 = scalar_lea.vmem [#allocation1], 16
    %v2596 = vld.sshfl [vmem:[%s2595] sm:$0xff pattern:$0x91800000]
    %vm2597 = vcmask 1047556
    %v2598 = vsel %vm2597, %v2596, %v2594
    %2599 = vrot.lane.b32.xlu0 %v2598, 8
    %v2600 = vpop.permute.xlu0 %2599
    %vm2601 = vcmask 64512
    %s2602 = scalar_lea.vmem [#allocation0], 15
    %2603 = vst.msk [vmem:[%s2602] ss:$16 sm:$0x3] %vm2601, %v2600
    %s2604 = scalar_lea.vmem [#allocation0], 495
    %2605 = vst.msk [vmem:[%s2604] ss:$16 sm:$0xc] %vm2601, %v2600
    %s2606 = scalar_lea.vmem [#allocation0], 4294967279
    %2607 = vst.msk [vmem:[%s2606] ss:$16 sm:$0x30] %vm2601, %v2600
    %s2608 = scalar_lea.vmem [#allocation0], 463
    %2609 = vst.msk [vmem:[%s2608] ss:$16 sm:$0xc0] %vm2601, %v2600
    %s2610 = scalar_lea.vmem [#allocation1], 32
    %v2611 = vld.sshfl [vmem:[%s2610] sm:$0xff pattern:$0x99999180]
    %s2612 = scalar_lea.vmem [#allocation1], 48
    %v2613 = vld.sshfl [vmem:[%s2612] sm:$0xff pattern:$0x91800000]
    %vm2614 = vcmask 1047556
    %v2615 = vsel %vm2614, %v2613, %v2611
    %2616 = vrot.lane.b32.xlu0 %v2615, 8
    %v2617 = vpop.permute.xlu0 %2616
    %vm2618 = vcmask 64512
    %s2619 = scalar_lea.vmem [#allocation0], 79
    %2620 = vst.msk [vmem:[%s2619] ss:$16 sm:$0x3] %vm2618, %v2617
    %s2621 = scalar_lea.vmem [#allocation0], 559
    %2622 = vst.msk [vmem:[%s2621] ss:$16 sm:$0xc] %vm2618, %v2617
    %s2623 = scalar_lea.vmem [#allocation0], 47
    %2624 = vst.msk [vmem:[%s2623] ss:$16 sm:$0x30] %vm2618, %v2617
    %s2625 = scalar_lea.vmem [#allocation0], 527
    %2626 = vst.msk [vmem:[%s2625] ss:$16 sm:$0xc0] %vm2618, %v2617
    %s2627 = scalar_lea.vmem [#allocation1], 64
    %v2628 = vld.sshfl [vmem:[%s2627] sm:$0xff pattern:$0x99999180]
    %s2629 = scalar_lea.vmem [#allocation1], 80
    %v2630 = vld.sshfl [vmem:[%s2629] sm:$0xff pattern:$0x91800000]
    %vm2631 = vcmask 1047556
    %v2632 = vsel %vm2631, %v2630, %v2628
    %2633 = vrot.lane.b32.xlu0 %v2632, 8
    %v2634 = vpop.permute.xlu0 %2633
    %vm2635 = vcmask 64512
    %s2636 = scalar_lea.vmem [#allocation0], 143
    %2637 = vst.msk [vmem:[%s2636] ss:$16 sm:$0x3] %vm2635, %v2634
    %s2638 = scalar_lea.vmem [#allocation0], 623
    %2639 = vst.msk [vmem:[%s2638] ss:$16 sm:$0xc] %vm2635, %v2634
    %s2640 = scalar_lea.vmem [#allocation0], 111
    %2641 = vst.msk [vmem:[%s2640] ss:$16 sm:$0x30] %vm2635, %v2634
    %s2642 = scalar_lea.vmem [#allocation0], 591
    %2643 = vst.msk [vmem:[%s2642] ss:$16 sm:$0xc0] %vm2635, %v2634
    %s2644 = scalar_lea.vmem [#allocation1], 96
    %v2645 = vld.sshfl [vmem:[%s2644] sm:$0xff pattern:$0x99999180]
    %s2646 = scalar_lea.vmem [#allocation1], 112
    %v2647 = vld.sshfl [vmem:[%s2646] sm:$0xff pattern:$0x91800000]
    %vm2648 = vcmask 1047556
    %v2649 = vsel %vm2648, %v2647, %v2645
    %2650 = vrot.lane.b32.xlu0 %v2649, 8
    %v2651 = vpop.permute.xlu0 %2650
    %vm2652 = vcmask 64512
    %s2653 = scalar_lea.vmem [#allocation0], 207
    %2654 = vst.msk [vmem:[%s2653] ss:$16 sm:$0x3] %vm2652, %v2651
    %s2655 = scalar_lea.vmem [#allocation0], 687
    %2656 = vst.msk [vmem:[%s2655] ss:$16 sm:$0xc] %vm2652, %v2651
    %s2657 = scalar_lea.vmem [#allocation0], 175
    %2658 = vst.msk [vmem:[%s2657] ss:$16 sm:$0x30] %vm2652, %v2651
    %s2659 = scalar_lea.vmem [#allocation0], 655
    %2660 = vst.msk [vmem:[%s2659] ss:$16 sm:$0xc0] %vm2652, %v2651
    %s2661 = scalar_lea.vmem [#allocation1], 128
    %v2662 = vld.sshfl [vmem:[%s2661] sm:$0xff pattern:$0x99999180]
    %s2663 = scalar_lea.vmem [#allocation1], 144
    %v2664 = vld.sshfl [vmem:[%s2663] sm:$0xff pattern:$0x91800000]
    %vm2665 = vcmask 1047556
    %v2666 = vsel %vm2665, %v2664, %v2662
    %2667 = vrot.lane.b32.xlu0 %v2666, 8
    %v2668 = vpop.permute.xlu0 %2667
    %vm2669 = vcmask 64512
    %s2670 = scalar_lea.vmem [#allocation0], 271
    %2671 = vst.msk [vmem:[%s2670] ss:$16 sm:$0x3] %vm2669, %v2668
    %s2672 = scalar_lea.vmem [#allocation0], 751
    %2673 = vst.msk [vmem:[%s2672] ss:$16 sm:$0xc] %vm2669, %v2668
    %s2674 = scalar_lea.vmem [#allocation0], 239
    %2675 = vst.msk [vmem:[%s2674] ss:$16 sm:$0x30] %vm2669, %v2668
    %s2676 = scalar_lea.vmem [#allocation0], 719
    %2677 = vst.msk [vmem:[%s2676] ss:$16 sm:$0xc0] %vm2669, %v2668
    %s2678 = scalar_lea.vmem [#allocation1], 160
    %v2679 = vld.sshfl [vmem:[%s2678] sm:$0xff pattern:$0x99999180]
    %s2680 = scalar_lea.vmem [#allocation1], 176
    %v2681 = vld.sshfl [vmem:[%s2680] sm:$0xff pattern:$0x91800000]
    %vm2682 = vcmask 1047556
    %v2683 = vsel %vm2682, %v2681, %v2679
    %2684 = vrot.lane.b32.xlu0 %v2683, 8
    %v2685 = vpop.permute.xlu0 %2684
    %vm2686 = vcmask 64512
    %s2687 = scalar_lea.vmem [#allocation0], 335
    %2688 = vst.msk [vmem:[%s2687] ss:$16 sm:$0x3] %vm2686, %v2685
    %s2689 = scalar_lea.vmem [#allocation0], 815
    %2690 = vst.msk [vmem:[%s2689] ss:$16 sm:$0xc] %vm2686, %v2685
    %s2691 = scalar_lea.vmem [#allocation0], 303
    %2692 = vst.msk [vmem:[%s2691] ss:$16 sm:$0x30] %vm2686, %v2685
    %s2693 = scalar_lea.vmem [#allocation0], 783
    %2694 = vst.msk [vmem:[%s2693] ss:$16 sm:$0xc0] %vm2686, %v2685
    %s2695 = scalar_lea.vmem [#allocation1], 192
    %v2696 = vld.sshfl [vmem:[%s2695] sm:$0xff pattern:$0x99999180]
    %s2697 = scalar_lea.vmem [#allocation1], 208
    %v2698 = vld.sshfl [vmem:[%s2697] sm:$0xff pattern:$0x91800000]
    %vm2699 = vcmask 1047556
    %v2700 = vsel %vm2699, %v2698, %v2696
    %2701 = vrot.lane.b32.xlu0 %v2700, 8
    %v2702 = vpop.permute.xlu0 %2701
    %vm2703 = vcmask 64512
    %s2704 = scalar_lea.vmem [#allocation0], 399
    %2705 = vst.msk [vmem:[%s2704] ss:$16 sm:$0x3] %vm2703, %v2702
    %s2706 = scalar_lea.vmem [#allocation0], 879
    %2707 = vst.msk [vmem:[%s2706] ss:$16 sm:$0xc] %vm2703, %v2702
    %s2708 = scalar_lea.vmem [#allocation0], 367
    %2709 = vst.msk [vmem:[%s2708] ss:$16 sm:$0x30] %vm2703, %v2702
    %s2710 = scalar_lea.vmem [#allocation0], 847
    %2711 = vst.msk [vmem:[%s2710] ss:$16 sm:$0xc0] %vm2703, %v2702
    %s2712 = scalar_lea.vmem [#allocation1], 224
    %v2713 = vld.sshfl [vmem:[%s2712] sm:$0xff pattern:$0x99999180]
    %s2714 = scalar_lea.vmem [#allocation1], 240
    %v2715 = vld.sshfl [vmem:[%s2714] sm:$0xff pattern:$0x91800000]
    %vm2716 = vcmask 1047556
    %v2717 = vsel %vm2716, %v2715, %v2713
    %2718 = vrot.lane.b32.xlu0 %v2717, 8
    %v2719 = vpop.permute.xlu0 %2718
    %vm2720 = vcmask 64512
    %s2721 = scalar_lea.vmem [#allocation0], 463
    %2722 = vst.msk [vmem:[%s2721] ss:$16 sm:$0x3] %vm2720, %v2719
    %s2723 = scalar_lea.vmem [#allocation0], 943
    %2724 = vst.msk [vmem:[%s2723] ss:$16 sm:$0xc] %vm2720, %v2719
    %s2725 = scalar_lea.vmem [#allocation0], 431
    %2726 = vst.msk [vmem:[%s2725] ss:$16 sm:$0x30] %vm2720, %v2719
    %s2727 = scalar_lea.vmem [#allocation0], 911
    %2728 = vst.msk [vmem:[%s2727] ss:$16 sm:$0xc0] %vm2720, %v2719
    %s2730 = ssub.s32 256, 1
    %v2731 = vld [vmem:[#allocation0] sm:%s2730]
    %v2732 = vpack.c.bf16 0.0, %v2731
    %s2734 = ssub.s32 16, 1
    %2735 = vst [vmem:[%s1] sm:%s2734] %v2732
    %s2736 = scalar_lea.vmem [#allocation0], 8
    %v2737 = vld [vmem:[%s2736] sm:%s2730]
    %v2738 = vpack.c.bf16 0.0, %v2737
    %s2740 = ssub.s32 16, 1
    %s2741 = scalar_lea.vmem %s1, 4
    %2742 = vst [vmem:[%s2741] sm:%s2740] %v2738
    %s2743 = scalar_lea.vmem [#allocation0], 16
    %v2744 = vld [vmem:[%s2743] sm:%s2730]
    %v2745 = vpack.c.bf16 0.0, %v2744
    %s2747 = ssub.s32 16, 1
    %s2748 = scalar_lea.vmem %s1, 8
    %2749 = vst [vmem:[%s2748] sm:%s2747] %v2745
    %s2750 = scalar_lea.vmem [#allocation0], 24
    %v2751 = vld [vmem:[%s2750] sm:%s2730]
    %v2752 = vpack.c.bf16 0.0, %v2751
    %s2754 = ssub.s32 16, 1
    %s2755 = scalar_lea.vmem %s1, 12
    %2756 = vst [vmem:[%s2755] sm:%s2754] %v2752
    %s2757 = scalar_lea.vmem [#allocation0], 32
    %v2758 = vld [vmem:[%s2757] sm:%s2730]
    %v2759 = vpack.c.bf16 0.0, %v2758
    %s2761 = ssub.s32 16, 1
    %s2762 = scalar_lea.vmem %s1, 16
    %2763 = vst [vmem:[%s2762] sm:%s2761] %v2759
    %s2764 = scalar_lea.vmem [#allocation0], 40
    %v2765 = vld [vmem:[%s2764] sm:%s2730]
    %v2766 = vpack.c.bf16 0.0, %v2765
    %s2768 = ssub.s32 16, 1
    %s2769 = scalar_lea.vmem %s1, 20
    %2770 = vst [vmem:[%s2769] sm:%s2768] %v2766
    %s2771 = scalar_lea.vmem [#allocation0], 48
    %v2772 = vld [vmem:[%s2771] sm:%s2730]
    %v2773 = vpack.c.bf16 0.0, %v2772
    %s2775 = ssub.s32 16, 1
    %s2776 = scalar_lea.vmem %s1, 24
    %2777 = vst [vmem:[%s2776] sm:%s2775] %v2773
    %s2778 = scalar_lea.vmem [#allocation0], 56
    %v2779 = vld [vmem:[%s2778] sm:%s2730]
    %v2780 = vpack.c.bf16 0.0, %v2779
    %s2782 = ssub.s32 16, 1
    %s2783 = scalar_lea.vmem %s1, 28
    %2784 = vst [vmem:[%s2783] sm:%s2782] %v2780
    %s2785 = scalar_lea.vmem [#allocation0], 64
    %v2786 = vld [vmem:[%s2785] sm:%s2730]
    %v2787 = vpack.c.bf16 0.0, %v2786
    %s2789 = ssub.s32 16, 1
    %s2790 = scalar_lea.vmem %s1, 32
    %2791 = vst [vmem:[%s2790] sm:%s2789] %v2787
    %s2792 = scalar_lea.vmem [#allocation0], 72
    %v2793 = vld [vmem:[%s2792] sm:%s2730]
    %v2794 = vpack.c.bf16 0.0, %v2793
    %s2796 = ssub.s32 16, 1
    %s2797 = scalar_lea.vmem %s1, 36
    %2798 = vst [vmem:[%s2797] sm:%s2796] %v2794
    %s2799 = scalar_lea.vmem [#allocation0], 80
    %v2800 = vld [vmem:[%s2799] sm:%s2730]
    %v2801 = vpack.c.bf16 0.0, %v2800
    %s2803 = ssub.s32 16, 1
    %s2804 = scalar_lea.vmem %s1, 40
    %2805 = vst [vmem:[%s2804] sm:%s2803] %v2801
    %s2806 = scalar_lea.vmem [#allocation0], 88
    %v2807 = vld [vmem:[%s2806] sm:%s2730]
    %v2808 = vpack.c.bf16 0.0, %v2807
    %s2810 = ssub.s32 16, 1
    %s2811 = scalar_lea.vmem %s1, 44
    %2812 = vst [vmem:[%s2811] sm:%s2810] %v2808
    %s2813 = scalar_lea.vmem [#allocation0], 96
    %v2814 = vld [vmem:[%s2813] sm:%s2730]
    %v2815 = vpack.c.bf16 0.0, %v2814
    %s2817 = ssub.s32 16, 1
    %s2818 = scalar_lea.vmem %s1, 48
    %2819 = vst [vmem:[%s2818] sm:%s2817] %v2815
    %s2820 = scalar_lea.vmem [#allocation0], 104
    %v2821 = vld [vmem:[%s2820] sm:%s2730]
    %v2822 = vpack.c.bf16 0.0, %v2821
    %s2824 = ssub.s32 16, 1
    %s2825 = scalar_lea.vmem %s1, 52
    %2826 = vst [vmem:[%s2825] sm:%s2824] %v2822
    %s2827 = scalar_lea.vmem [#allocation0], 112
    %v2828 = vld [vmem:[%s2827] sm:%s2730]
    %v2829 = vpack.c.bf16 0.0, %v2828
    %s2831 = ssub.s32 16, 1
    %s2832 = scalar_lea.vmem %s1, 56
    %2833 = vst [vmem:[%s2832] sm:%s2831] %v2829
    %s2834 = scalar_lea.vmem [#allocation0], 120
    %v2835 = vld [vmem:[%s2834] sm:%s2730]
    %v2836 = vpack.c.bf16 0.0, %v2835
    %s2838 = ssub.s32 16, 1
    %s2839 = scalar_lea.vmem %s1, 60
    %2840 = vst [vmem:[%s2839] sm:%s2838] %v2836
    %s2841 = scalar_lea.vmem [#allocation0], 128
    %v2842 = vld [vmem:[%s2841] sm:%s2730]
    %v2843 = vpack.c.bf16 0.0, %v2842
    %s2845 = ssub.s32 16, 1
    %s2846 = scalar_lea.vmem %s1, 64
    %2847 = vst [vmem:[%s2846] sm:%s2845] %v2843
    %s2848 = scalar_lea.vmem [#allocation0], 136
    %v2849 = vld [vmem:[%s2848] sm:%s2730]
    %v2850 = vpack.c.bf16 0.0, %v2849
    %s2852 = ssub.s32 16, 1
    %s2853 = scalar_lea.vmem %s1, 68
    %2854 = vst [vmem:[%s2853] sm:%s2852] %v2850
    %s2855 = scalar_lea.vmem [#allocation0], 144
    %v2856 = vld [vmem:[%s2855] sm:%s2730]
    %v2857 = vpack.c.bf16 0.0, %v2856
    %s2859 = ssub.s32 16, 1
    %s2860 = scalar_lea.vmem %s1, 72
    %2861 = vst [vmem:[%s2860] sm:%s2859] %v2857
    %s2862 = scalar_lea.vmem [#allocation0], 152
    %v2863 = vld [vmem:[%s2862] sm:%s2730]
    %v2864 = vpack.c.bf16 0.0, %v2863
    %s2866 = ssub.s32 16, 1
    %s2867 = scalar_lea.vmem %s1, 76
    %2868 = vst [vmem:[%s2867] sm:%s2866] %v2864
    %s2869 = scalar_lea.vmem [#allocation0], 160
    %v2870 = vld [vmem:[%s2869] sm:%s2730]
    %v2871 = vpack.c.bf16 0.0, %v2870
    %s2873 = ssub.s32 16, 1
    %s2874 = scalar_lea.vmem %s1, 80
    %2875 = vst [vmem:[%s2874] sm:%s2873] %v2871
    %s2876 = scalar_lea.vmem [#allocation0], 168
    %v2877 = vld [vmem:[%s2876] sm:%s2730]
    %v2878 = vpack.c.bf16 0.0, %v2877
    %s2880 = ssub.s32 16, 1
    %s2881 = scalar_lea.vmem %s1, 84
    %2882 = vst [vmem:[%s2881] sm:%s2880] %v2878
    %s2883 = scalar_lea.vmem [#allocation0], 176
    %v2884 = vld [vmem:[%s2883] sm:%s2730]
    %v2885 = vpack.c.bf16 0.0, %v2884
    %s2887 = ssub.s32 16, 1
    %s2888 = scalar_lea.vmem %s1, 88
    %2889 = vst [vmem:[%s2888] sm:%s2887] %v2885
    %s2890 = scalar_lea.vmem [#allocation0], 184
    %v2891 = vld [vmem:[%s2890] sm:%s2730]
    %v2892 = vpack.c.bf16 0.0, %v2891
    %s2894 = ssub.s32 16, 1
    %s2895 = scalar_lea.vmem %s1, 92
    %2896 = vst [vmem:[%s2895] sm:%s2894] %v2892
    %s2897 = scalar_lea.vmem [#allocation0], 192
    %v2898 = vld [vmem:[%s2897] sm:%s2730]
    %v2899 = vpack.c.bf16 0.0, %v2898
    %s2901 = ssub.s32 16, 1
    %s2902 = scalar_lea.vmem %s1, 96
    %2903 = vst [vmem:[%s2902] sm:%s2901] %v2899
    %s2904 = scalar_lea.vmem [#allocation0], 200
    %v2905 = vld [vmem:[%s2904] sm:%s2730]
    %v2906 = vpack.c.bf16 0.0, %v2905
    %s2908 = ssub.s32 16, 1
    %s2909 = scalar_lea.vmem %s1, 100
    %2910 = vst [vmem:[%s2909] sm:%s2908] %v2906
    %s2911 = scalar_lea.vmem [#allocation0], 208
    %v2912 = vld [vmem:[%s2911] sm:%s2730]
    %v2913 = vpack.c.bf16 0.0, %v2912
    %s2915 = ssub.s32 16, 1
    %s2916 = scalar_lea.vmem %s1, 104
    %2917 = vst [vmem:[%s2916] sm:%s2915] %v2913
    %s2918 = scalar_lea.vmem [#allocation0], 216
    %v2919 = vld [vmem:[%s2918] sm:%s2730]
    %v2920 = vpack.c.bf16 0.0, %v2919
    %s2922 = ssub.s32 16, 1
    %s2923 = scalar_lea.vmem %s1, 108
    %2924 = vst [vmem:[%s2923] sm:%s2922] %v2920
    %s2925 = scalar_lea.vmem [#allocation0], 224
    %v2926 = vld [vmem:[%s2925] sm:%s2730]
    %v2927 = vpack.c.bf16 0.0, %v2926
    %s2929 = ssub.s32 16, 1
    %s2930 = scalar_lea.vmem %s1, 112
    %2931 = vst [vmem:[%s2930] sm:%s2929] %v2927
    %s2932 = scalar_lea.vmem [#allocation0], 232
    %v2933 = vld [vmem:[%s2932] sm:%s2730]
    %v2934 = vpack.c.bf16 0.0, %v2933
    %s2936 = ssub.s32 16, 1
    %s2937 = scalar_lea.vmem %s1, 116
    %2938 = vst [vmem:[%s2937] sm:%s2936] %v2934
    %s2939 = scalar_lea.vmem [#allocation0], 240
    %v2940 = vld [vmem:[%s2939] sm:%s2730]
    %v2941 = vpack.c.bf16 0.0, %v2940
    %s2943 = ssub.s32 16, 1
    %s2944 = scalar_lea.vmem %s1, 120
    %2945 = vst [vmem:[%s2944] sm:%s2943] %v2941
    %s2946 = scalar_lea.vmem [#allocation0], 248
    %v2947 = vld [vmem:[%s2946] sm:%s2730]
    %v2948 = vpack.c.bf16 0.0, %v2947
    %s2950 = ssub.s32 16, 1
    %s2951 = scalar_lea.vmem %s1, 124
    %2952 = vst [vmem:[%s2951] sm:%s2950] %v2948
    %s2953 = scalar_lea.vmem [#allocation0], 256
    %v2954 = vld [vmem:[%s2953] sm:%s2730]
    %v2955 = vpack.c.bf16 0.0, %v2954
    %s2957 = ssub.s32 16, 1
    %s2958 = scalar_lea.vmem %s1, 128
    %2959 = vst [vmem:[%s2958] sm:%s2957] %v2955
    %s2960 = scalar_lea.vmem [#allocation0], 264
    %v2961 = vld [vmem:[%s2960] sm:%s2730]
    %v2962 = vpack.c.bf16 0.0, %v2961
    %s2964 = ssub.s32 16, 1
    %s2965 = scalar_lea.vmem %s1, 132
    %2966 = vst [vmem:[%s2965] sm:%s2964] %v2962
    %s2967 = scalar_lea.vmem [#allocation0], 272
    %v2968 = vld [vmem:[%s2967] sm:%s2730]
    %v2969 = vpack.c.bf16 0.0, %v2968
    %s2971 = ssub.s32 16, 1
    %s2972 = scalar_lea.vmem %s1, 136
    %2973 = vst [vmem:[%s2972] sm:%s2971] %v2969
    %s2974 = scalar_lea.vmem [#allocation0], 280
    %v2975 = vld [vmem:[%s2974] sm:%s2730]
    %v2976 = vpack.c.bf16 0.0, %v2975
    %s2978 = ssub.s32 16, 1
    %s2979 = scalar_lea.vmem %s1, 140
    %2980 = vst [vmem:[%s2979] sm:%s2978] %v2976
    %s2981 = scalar_lea.vmem [#allocation0], 288
    %v2982 = vld [vmem:[%s2981] sm:%s2730]
    %v2983 = vpack.c.bf16 0.0, %v2982
    %s2985 = ssub.s32 16, 1
    %s2986 = scalar_lea.vmem %s1, 144
    %2987 = vst [vmem:[%s2986] sm:%s2985] %v2983
    %s2988 = scalar_lea.vmem [#allocation0], 296
    %v2989 = vld [vmem:[%s2988] sm:%s2730]
    %v2990 = vpack.c.bf16 0.0, %v2989
    %s2992 = ssub.s32 16, 1
    %s2993 = scalar_lea.vmem %s1, 148
    %2994 = vst [vmem:[%s2993] sm:%s2992] %v2990
    %s2995 = scalar_lea.vmem [#allocation0], 304
    %v2996 = vld [vmem:[%s2995] sm:%s2730]
    %v2997 = vpack.c.bf16 0.0, %v2996
    %s2999 = ssub.s32 16, 1
    %s3000 = scalar_lea.vmem %s1, 152
    %3001 = vst [vmem:[%s3000] sm:%s2999] %v2997
    %s3002 = scalar_lea.vmem [#allocation0], 312
    %v3003 = vld [vmem:[%s3002] sm:%s2730]
    %v3004 = vpack.c.bf16 0.0, %v3003
    %s3006 = ssub.s32 16, 1
    %s3007 = scalar_lea.vmem %s1, 156
    %3008 = vst [vmem:[%s3007] sm:%s3006] %v3004
    %s3009 = scalar_lea.vmem [#allocation0], 320
    %v3010 = vld [vmem:[%s3009] sm:%s2730]
    %v3011 = vpack.c.bf16 0.0, %v3010
    %s3013 = ssub.s32 16, 1
    %s3014 = scalar_lea.vmem %s1, 160
    %3015 = vst [vmem:[%s3014] sm:%s3013] %v3011
    %s3016 = scalar_lea.vmem [#allocation0], 328
    %v3017 = vld [vmem:[%s3016] sm:%s2730]
    %v3018 = vpack.c.bf16 0.0, %v3017
    %s3020 = ssub.s32 16, 1
    %s3021 = scalar_lea.vmem %s1, 164
    %3022 = vst [vmem:[%s3021] sm:%s3020] %v3018
    %s3023 = scalar_lea.vmem [#allocation0], 336
    %v3024 = vld [vmem:[%s3023] sm:%s2730]
    %v3025 = vpack.c.bf16 0.0, %v3024
    %s3027 = ssub.s32 16, 1
    %s3028 = scalar_lea.vmem %s1, 168
    %3029 = vst [vmem:[%s3028] sm:%s3027] %v3025
    %s3030 = scalar_lea.vmem [#allocation0], 344
    %v3031 = vld [vmem:[%s3030] sm:%s2730]
    %v3032 = vpack.c.bf16 0.0, %v3031
    %s3034 = ssub.s32 16, 1
    %s3035 = scalar_lea.vmem %s1, 172
    %3036 = vst [vmem:[%s3035] sm:%s3034] %v3032
    %s3037 = scalar_lea.vmem [#allocation0], 352
    %v3038 = vld [vmem:[%s3037] sm:%s2730]
    %v3039 = vpack.c.bf16 0.0, %v3038
    %s3041 = ssub.s32 16, 1
    %s3042 = scalar_lea.vmem %s1, 176
    %3043 = vst [vmem:[%s3042] sm:%s3041] %v3039
    %s3044 = scalar_lea.vmem [#allocation0], 360
    %v3045 = vld [vmem:[%s3044] sm:%s2730]
    %v3046 = vpack.c.bf16 0.0, %v3045
    %s3048 = ssub.s32 16, 1
    %s3049 = scalar_lea.vmem %s1, 180
    %3050 = vst [vmem:[%s3049] sm:%s3048] %v3046
    %s3051 = scalar_lea.vmem [#allocation0], 368
    %v3052 = vld [vmem:[%s3051] sm:%s2730]
    %v3053 = vpack.c.bf16 0.0, %v3052
    %s3055 = ssub.s32 16, 1
    %s3056 = scalar_lea.vmem %s1, 184
    %3057 = vst [vmem:[%s3056] sm:%s3055] %v3053
    %s3058 = scalar_lea.vmem [#allocation0], 376
    %v3059 = vld [vmem:[%s3058] sm:%s2730]
    %v3060 = vpack.c.bf16 0.0, %v3059
    %s3062 = ssub.s32 16, 1
    %s3063 = scalar_lea.vmem %s1, 188
    %3064 = vst [vmem:[%s3063] sm:%s3062] %v3060
    %s3065 = scalar_lea.vmem [#allocation0], 384
    %v3066 = vld [vmem:[%s3065] sm:%s2730]
    %v3067 = vpack.c.bf16 0.0, %v3066
    %s3069 = ssub.s32 16, 1
    %s3070 = scalar_lea.vmem %s1, 192
    %3071 = vst [vmem:[%s3070] sm:%s3069] %v3067
    %s3072 = scalar_lea.vmem [#allocation0], 392
    %v3073 = vld [vmem:[%s3072] sm:%s2730]
    %v3074 = vpack.c.bf16 0.0, %v3073
    %s3076 = ssub.s32 16, 1
    %s3077 = scalar_lea.vmem %s1, 196
    %3078 = vst [vmem:[%s3077] sm:%s3076] %v3074
    %s3079 = scalar_lea.vmem [#allocation0], 400
    %v3080 = vld [vmem:[%s3079] sm:%s2730]
    %v3081 = vpack.c.bf16 0.0, %v3080
    %s3083 = ssub.s32 16, 1
    %s3084 = scalar_lea.vmem %s1, 200
    %3085 = vst [vmem:[%s3084] sm:%s3083] %v3081
    %s3086 = scalar_lea.vmem [#allocation0], 408
    %v3087 = vld [vmem:[%s3086] sm:%s2730]
    %v3088 = vpack.c.bf16 0.0, %v3087
    %s3090 = ssub.s32 16, 1
    %s3091 = scalar_lea.vmem %s1, 204
    %3092 = vst [vmem:[%s3091] sm:%s3090] %v3088
    %s3093 = scalar_lea.vmem [#allocation0], 416
    %v3094 = vld [vmem:[%s3093] sm:%s2730]
    %v3095 = vpack.c.bf16 0.0, %v3094
    %s3097 = ssub.s32 16, 1
    %s3098 = scalar_lea.vmem %s1, 208
    %3099 = vst [vmem:[%s3098] sm:%s3097] %v3095
    %s3100 = scalar_lea.vmem [#allocation0], 424
    %v3101 = vld [vmem:[%s3100] sm:%s2730]
    %v3102 = vpack.c.bf16 0.0, %v3101
    %s3104 = ssub.s32 16, 1
    %s3105 = scalar_lea.vmem %s1, 212
    %3106 = vst [vmem:[%s3105] sm:%s3104] %v3102
    %s3107 = scalar_lea.vmem [#allocation0], 432
    %v3108 = vld [vmem:[%s3107] sm:%s2730]
    %v3109 = vpack.c.bf16 0.0, %v3108
    %s3111 = ssub.s32 16, 1
    %s3112 = scalar_lea.vmem %s1, 216
    %3113 = vst [vmem:[%s3112] sm:%s3111] %v3109
    %s3114 = scalar_lea.vmem [#allocation0], 440
    %v3115 = vld [vmem:[%s3114] sm:%s2730]
    %v3116 = vpack.c.bf16 0.0, %v3115
    %s3118 = ssub.s32 16, 1
    %s3119 = scalar_lea.vmem %s1, 220
    %3120 = vst [vmem:[%s3119] sm:%s3118] %v3116
    %s3121 = scalar_lea.vmem [#allocation0], 448
    %v3122 = vld [vmem:[%s3121] sm:%s2730]
    %v3123 = vpack.c.bf16 0.0, %v3122
    %s3125 = ssub.s32 16, 1
    %s3126 = scalar_lea.vmem %s1, 224
    %3127 = vst [vmem:[%s3126] sm:%s3125] %v3123
    %s3128 = scalar_lea.vmem [#allocation0], 456
    %v3129 = vld [vmem:[%s3128] sm:%s2730]
    %v3130 = vpack.c.bf16 0.0, %v3129
    %s3132 = ssub.s32 16, 1
    %s3133 = scalar_lea.vmem %s1, 228
    %3134 = vst [vmem:[%s3133] sm:%s3132] %v3130
    %s3135 = scalar_lea.vmem [#allocation0], 464
    %v3136 = vld [vmem:[%s3135] sm:%s2730]
    %v3137 = vpack.c.bf16 0.0, %v3136
    %s3139 = ssub.s32 16, 1
    %s3140 = scalar_lea.vmem %s1, 232
    %3141 = vst [vmem:[%s3140] sm:%s3139] %v3137
    %s3142 = scalar_lea.vmem [#allocation0], 472
    %v3143 = vld [vmem:[%s3142] sm:%s2730]
    %v3144 = vpack.c.bf16 0.0, %v3143
    %s3146 = ssub.s32 16, 1
    %s3147 = scalar_lea.vmem %s1, 236
    %3148 = vst [vmem:[%s3147] sm:%s3146] %v3144
    %s3149 = scalar_lea.vmem [#allocation0], 480
    %v3150 = vld [vmem:[%s3149] sm:%s2730]
    %v3151 = vpack.c.bf16 0.0, %v3150
    %s3153 = ssub.s32 16, 1
    %s3154 = scalar_lea.vmem %s1, 240
    %3155 = vst [vmem:[%s3154] sm:%s3153] %v3151
    %s3156 = scalar_lea.vmem [#allocation0], 488
    %v3157 = vld [vmem:[%s3156] sm:%s2730]
    %v3158 = vpack.c.bf16 0.0, %v3157
    %s3160 = ssub.s32 16, 1
    %s3161 = scalar_lea.vmem %s1, 244
    %3162 = vst [vmem:[%s3161] sm:%s3160] %v3158
    %s3163 = scalar_lea.vmem [#allocation0], 496
    %v3164 = vld [vmem:[%s3163] sm:%s2730]
    %v3165 = vpack.c.bf16 0.0, %v3164
    %s3167 = ssub.s32 16, 1
    %s3168 = scalar_lea.vmem %s1, 248
    %3169 = vst [vmem:[%s3168] sm:%s3167] %v3165
    %s3170 = scalar_lea.vmem [#allocation0], 504
    %v3171 = vld [vmem:[%s3170] sm:%s2730]
    %v3172 = vpack.c.bf16 0.0, %v3171
    %s3174 = ssub.s32 16, 1
    %s3175 = scalar_lea.vmem %s1, 252
    %3176 = vst [vmem:[%s3175] sm:%s3174] %v3172
    %s3177 = scalar_lea.vmem [#allocation0], 512
    %v3178 = vld [vmem:[%s3177] sm:%s2730]
    %v3179 = vpack.c.bf16 0.0, %v3178
    %s3181 = ssub.s32 16, 1
    %s3182 = scalar_lea.vmem %s1, 256
    %3183 = vst [vmem:[%s3182] sm:%s3181] %v3179
    %s3184 = scalar_lea.vmem [#allocation0], 520
    %v3185 = vld [vmem:[%s3184] sm:%s2730]
    %v3186 = vpack.c.bf16 0.0, %v3185
    %s3188 = ssub.s32 16, 1
    %s3189 = scalar_lea.vmem %s1, 260
    %3190 = vst [vmem:[%s3189] sm:%s3188] %v3186
    %s3191 = scalar_lea.vmem [#allocation0], 528
    %v3192 = vld [vmem:[%s3191] sm:%s2730]
    %v3193 = vpack.c.bf16 0.0, %v3192
    %s3195 = ssub.s32 16, 1
    %s3196 = scalar_lea.vmem %s1, 264
    %3197 = vst [vmem:[%s3196] sm:%s3195] %v3193
    %s3198 = scalar_lea.vmem [#allocation0], 536
    %v3199 = vld [vmem:[%s3198] sm:%s2730]
    %v3200 = vpack.c.bf16 0.0, %v3199
    %s3202 = ssub.s32 16, 1
    %s3203 = scalar_lea.vmem %s1, 268
    %3204 = vst [vmem:[%s3203] sm:%s3202] %v3200
    %s3205 = scalar_lea.vmem [#allocation0], 544
    %v3206 = vld [vmem:[%s3205] sm:%s2730]
    %v3207 = vpack.c.bf16 0.0, %v3206
    %s3209 = ssub.s32 16, 1
    %s3210 = scalar_lea.vmem %s1, 272
    %3211 = vst [vmem:[%s3210] sm:%s3209] %v3207
    %s3212 = scalar_lea.vmem [#allocation0], 552
    %v3213 = vld [vmem:[%s3212] sm:%s2730]
    %v3214 = vpack.c.bf16 0.0, %v3213
    %s3216 = ssub.s32 16, 1
    %s3217 = scalar_lea.vmem %s1, 276
    %3218 = vst [vmem:[%s3217] sm:%s3216] %v3214
    %s3219 = scalar_lea.vmem [#allocation0], 560
    %v3220 = vld [vmem:[%s3219] sm:%s2730]
    %v3221 = vpack.c.bf16 0.0, %v3220
    %s3223 = ssub.s32 16, 1
    %s3224 = scalar_lea.vmem %s1, 280
    %3225 = vst [vmem:[%s3224] sm:%s3223] %v3221
    %s3226 = scalar_lea.vmem [#allocation0], 568
    %v3227 = vld [vmem:[%s3226] sm:%s2730]
    %v3228 = vpack.c.bf16 0.0, %v3227
    %s3230 = ssub.s32 16, 1
    %s3231 = scalar_lea.vmem %s1, 284
    %3232 = vst [vmem:[%s3231] sm:%s3230] %v3228
    %s3233 = scalar_lea.vmem [#allocation0], 576
    %v3234 = vld [vmem:[%s3233] sm:%s2730]
    %v3235 = vpack.c.bf16 0.0, %v3234
    %s3237 = ssub.s32 16, 1
    %s3238 = scalar_lea.vmem %s1, 288
    %3239 = vst [vmem:[%s3238] sm:%s3237] %v3235
    %s3240 = scalar_lea.vmem [#allocation0], 584
    %v3241 = vld [vmem:[%s3240] sm:%s2730]
    %v3242 = vpack.c.bf16 0.0, %v3241
    %s3244 = ssub.s32 16, 1
    %s3245 = scalar_lea.vmem %s1, 292
    %3246 = vst [vmem:[%s3245] sm:%s3244] %v3242
    %s3247 = scalar_lea.vmem [#allocation0], 592
    %v3248 = vld [vmem:[%s3247] sm:%s2730]
    %v3249 = vpack.c.bf16 0.0, %v3248
    %s3251 = ssub.s32 16, 1
    %s3252 = scalar_lea.vmem %s1, 296
    %3253 = vst [vmem:[%s3252] sm:%s3251] %v3249
    %s3254 = scalar_lea.vmem [#allocation0], 600
    %v3255 = vld [vmem:[%s3254] sm:%s2730]
    %v3256 = vpack.c.bf16 0.0, %v3255
    %s3258 = ssub.s32 16, 1
    %s3259 = scalar_lea.vmem %s1, 300
    %3260 = vst [vmem:[%s3259] sm:%s3258] %v3256
    %s3261 = scalar_lea.vmem [#allocation0], 608
    %v3262 = vld [vmem:[%s3261] sm:%s2730]
    %v3263 = vpack.c.bf16 0.0, %v3262
    %s3265 = ssub.s32 16, 1
    %s3266 = scalar_lea.vmem %s1, 304
    %3267 = vst [vmem:[%s3266] sm:%s3265] %v3263
    %s3268 = scalar_lea.vmem [#allocation0], 616
    %v3269 = vld [vmem:[%s3268] sm:%s2730]
    %v3270 = vpack.c.bf16 0.0, %v3269
    %s3272 = ssub.s32 16, 1
    %s3273 = scalar_lea.vmem %s1, 308
    %3274 = vst [vmem:[%s3273] sm:%s3272] %v3270
    %s3275 = scalar_lea.vmem [#allocation0], 624
    %v3276 = vld [vmem:[%s3275] sm:%s2730]
    %v3277 = vpack.c.bf16 0.0, %v3276
    %s3279 = ssub.s32 16, 1
    %s3280 = scalar_lea.vmem %s1, 312
    %3281 = vst [vmem:[%s3280] sm:%s3279] %v3277
    %s3282 = scalar_lea.vmem [#allocation0], 632
    %v3283 = vld [vmem:[%s3282] sm:%s2730]
    %v3284 = vpack.c.bf16 0.0, %v3283
    %s3286 = ssub.s32 16, 1
    %s3287 = scalar_lea.vmem %s1, 316
    %3288 = vst [vmem:[%s3287] sm:%s3286] %v3284
    %s3289 = scalar_lea.vmem [#allocation0], 640
    %v3290 = vld [vmem:[%s3289] sm:%s2730]
    %v3291 = vpack.c.bf16 0.0, %v3290
    %s3293 = ssub.s32 16, 1
    %s3294 = scalar_lea.vmem %s1, 320
    %3295 = vst [vmem:[%s3294] sm:%s3293] %v3291
    %s3296 = scalar_lea.vmem [#allocation0], 648
    %v3297 = vld [vmem:[%s3296] sm:%s2730]
    %v3298 = vpack.c.bf16 0.0, %v3297
    %s3300 = ssub.s32 16, 1
    %s3301 = scalar_lea.vmem %s1, 324
    %3302 = vst [vmem:[%s3301] sm:%s3300] %v3298
    %s3303 = scalar_lea.vmem [#allocation0], 656
    %v3304 = vld [vmem:[%s3303] sm:%s2730]
    %v3305 = vpack.c.bf16 0.0, %v3304
    %s3307 = ssub.s32 16, 1
    %s3308 = scalar_lea.vmem %s1, 328
    %3309 = vst [vmem:[%s3308] sm:%s3307] %v3305
    %s3310 = scalar_lea.vmem [#allocation0], 664
    %v3311 = vld [vmem:[%s3310] sm:%s2730]
    %v3312 = vpack.c.bf16 0.0, %v3311
    %s3314 = ssub.s32 16, 1
    %s3315 = scalar_lea.vmem %s1, 332
    %3316 = vst [vmem:[%s3315] sm:%s3314] %v3312
    %s3317 = scalar_lea.vmem [#allocation0], 672
    %v3318 = vld [vmem:[%s3317] sm:%s2730]
    %v3319 = vpack.c.bf16 0.0, %v3318
    %s3321 = ssub.s32 16, 1
    %s3322 = scalar_lea.vmem %s1, 336
    %3323 = vst [vmem:[%s3322] sm:%s3321] %v3319
    %s3324 = scalar_lea.vmem [#allocation0], 680
    %v3325 = vld [vmem:[%s3324] sm:%s2730]
    %v3326 = vpack.c.bf16 0.0, %v3325
    %s3328 = ssub.s32 16, 1
    %s3329 = scalar_lea.vmem %s1, 340
    %3330 = vst [vmem:[%s3329] sm:%s3328] %v3326
    %s3331 = scalar_lea.vmem [#allocation0], 688
    %v3332 = vld [vmem:[%s3331] sm:%s2730]
    %v3333 = vpack.c.bf16 0.0, %v3332
    %s3335 = ssub.s32 16, 1
    %s3336 = scalar_lea.vmem %s1, 344
    %3337 = vst [vmem:[%s3336] sm:%s3335] %v3333
    %s3338 = scalar_lea.vmem [#allocation0], 696
    %v3339 = vld [vmem:[%s3338] sm:%s2730]
    %v3340 = vpack.c.bf16 0.0, %v3339
    %s3342 = ssub.s32 16, 1
    %s3343 = scalar_lea.vmem %s1, 348
    %3344 = vst [vmem:[%s3343] sm:%s3342] %v3340
    %s3345 = scalar_lea.vmem [#allocation0], 704
    %v3346 = vld [vmem:[%s3345] sm:%s2730]
    %v3347 = vpack.c.bf16 0.0, %v3346
    %s3349 = ssub.s32 16, 1
    %s3350 = scalar_lea.vmem %s1, 352
    %3351 = vst [vmem:[%s3350] sm:%s3349] %v3347
    %s3352 = scalar_lea.vmem [#allocation0], 712
    %v3353 = vld [vmem:[%s3352] sm:%s2730]
    %v3354 = vpack.c.bf16 0.0, %v3353
    %s3356 = ssub.s32 16, 1
    %s3357 = scalar_lea.vmem %s1, 356
    %3358 = vst [vmem:[%s3357] sm:%s3356] %v3354
    %s3359 = scalar_lea.vmem [#allocation0], 720
    %v3360 = vld [vmem:[%s3359] sm:%s2730]
    %v3361 = vpack.c.bf16 0.0, %v3360
    %s3363 = ssub.s32 16, 1
    %s3364 = scalar_lea.vmem %s1, 360
    %3365 = vst [vmem:[%s3364] sm:%s3363] %v3361
    %s3366 = scalar_lea.vmem [#allocation0], 728
    %v3367 = vld [vmem:[%s3366] sm:%s2730]
    %v3368 = vpack.c.bf16 0.0, %v3367
    %s3370 = ssub.s32 16, 1
    %s3371 = scalar_lea.vmem %s1, 364
    %3372 = vst [vmem:[%s3371] sm:%s3370] %v3368
    %s3373 = scalar_lea.vmem [#allocation0], 736
    %v3374 = vld [vmem:[%s3373] sm:%s2730]
    %v3375 = vpack.c.bf16 0.0, %v3374
    %s3377 = ssub.s32 16, 1
    %s3378 = scalar_lea.vmem %s1, 368
    %3379 = vst [vmem:[%s3378] sm:%s3377] %v3375
    %s3380 = scalar_lea.vmem [#allocation0], 744
    %v3381 = vld [vmem:[%s3380] sm:%s2730]
    %v3382 = vpack.c.bf16 0.0, %v3381
    %s3384 = ssub.s32 16, 1
    %s3385 = scalar_lea.vmem %s1, 372
    %3386 = vst [vmem:[%s3385] sm:%s3384] %v3382
    %s3387 = scalar_lea.vmem [#allocation0], 752
    %v3388 = vld [vmem:[%s3387] sm:%s2730]
    %v3389 = vpack.c.bf16 0.0, %v3388
    %s3391 = ssub.s32 16, 1
    %s3392 = scalar_lea.vmem %s1, 376
    %3393 = vst [vmem:[%s3392] sm:%s3391] %v3389
    %s3394 = scalar_lea.vmem [#allocation0], 760
    %v3395 = vld [vmem:[%s3394] sm:%s2730]
    %v3396 = vpack.c.bf16 0.0, %v3395
    %s3398 = ssub.s32 16, 1
    %s3399 = scalar_lea.vmem %s1, 380
    %3400 = vst [vmem:[%s3399] sm:%s3398] %v3396
    %s3401 = scalar_lea.vmem [#allocation0], 768
    %v3402 = vld [vmem:[%s3401] sm:%s2730]
    %v3403 = vpack.c.bf16 0.0, %v3402
    %s3405 = ssub.s32 16, 1
    %s3406 = scalar_lea.vmem %s1, 384
    %3407 = vst [vmem:[%s3406] sm:%s3405] %v3403
    %s3408 = scalar_lea.vmem [#allocation0], 776
    %v3409 = vld [vmem:[%s3408] sm:%s2730]
    %v3410 = vpack.c.bf16 0.0, %v3409
    %s3412 = ssub.s32 16, 1
    %s3413 = scalar_lea.vmem %s1, 388
    %3414 = vst [vmem:[%s3413] sm:%s3412] %v3410
    %s3415 = scalar_lea.vmem [#allocation0], 784
    %v3416 = vld [vmem:[%s3415] sm:%s2730]
    %v3417 = vpack.c.bf16 0.0, %v3416
    %s3419 = ssub.s32 16, 1
    %s3420 = scalar_lea.vmem %s1, 392
    %3421 = vst [vmem:[%s3420] sm:%s3419] %v3417
    %s3422 = scalar_lea.vmem [#allocation0], 792
    %v3423 = vld [vmem:[%s3422] sm:%s2730]
    %v3424 = vpack.c.bf16 0.0, %v3423
    %s3426 = ssub.s32 16, 1
    %s3427 = scalar_lea.vmem %s1, 396
    %3428 = vst [vmem:[%s3427] sm:%s3426] %v3424
    %s3429 = scalar_lea.vmem [#allocation0], 800
    %v3430 = vld [vmem:[%s3429] sm:%s2730]
    %v3431 = vpack.c.bf16 0.0, %v3430
    %s3433 = ssub.s32 16, 1
    %s3434 = scalar_lea.vmem %s1, 400
    %3435 = vst [vmem:[%s3434] sm:%s3433] %v3431
    %s3436 = scalar_lea.vmem [#allocation0], 808
    %v3437 = vld [vmem:[%s3436] sm:%s2730]
    %v3438 = vpack.c.bf16 0.0, %v3437
    %s3440 = ssub.s32 16, 1
    %s3441 = scalar_lea.vmem %s1, 404
    %3442 = vst [vmem:[%s3441] sm:%s3440] %v3438
    %s3443 = scalar_lea.vmem [#allocation0], 816
    %v3444 = vld [vmem:[%s3443] sm:%s2730]
    %v3445 = vpack.c.bf16 0.0, %v3444
    %s3447 = ssub.s32 16, 1
    %s3448 = scalar_lea.vmem %s1, 408
    %3449 = vst [vmem:[%s3448] sm:%s3447] %v3445
    %s3450 = scalar_lea.vmem [#allocation0], 824
    %v3451 = vld [vmem:[%s3450] sm:%s2730]
    %v3452 = vpack.c.bf16 0.0, %v3451
    %s3454 = ssub.s32 16, 1
    %s3455 = scalar_lea.vmem %s1, 412
    %3456 = vst [vmem:[%s3455] sm:%s3454] %v3452
    %s3457 = scalar_lea.vmem [#allocation0], 832
    %v3458 = vld [vmem:[%s3457] sm:%s2730]
    %v3459 = vpack.c.bf16 0.0, %v3458
    %s3461 = ssub.s32 16, 1
    %s3462 = scalar_lea.vmem %s1, 416
    %3463 = vst [vmem:[%s3462] sm:%s3461] %v3459
    %s3464 = scalar_lea.vmem [#allocation0], 840
    %v3465 = vld [vmem:[%s3464] sm:%s2730]
    %v3466 = vpack.c.bf16 0.0, %v3465
    %s3468 = ssub.s32 16, 1
    %s3469 = scalar_lea.vmem %s1, 420
    %3470 = vst [vmem:[%s3469] sm:%s3468] %v3466
    %s3471 = scalar_lea.vmem [#allocation0], 848
    %v3472 = vld [vmem:[%s3471] sm:%s2730]
    %v3473 = vpack.c.bf16 0.0, %v3472
    %s3475 = ssub.s32 16, 1
    %s3476 = scalar_lea.vmem %s1, 424
    %3477 = vst [vmem:[%s3476] sm:%s3475] %v3473
    %s3478 = scalar_lea.vmem [#allocation0], 856
    %v3479 = vld [vmem:[%s3478] sm:%s2730]
    %v3480 = vpack.c.bf16 0.0, %v3479
    %s3482 = ssub.s32 16, 1
    %s3483 = scalar_lea.vmem %s1, 428
    %3484 = vst [vmem:[%s3483] sm:%s3482] %v3480
    %s3485 = scalar_lea.vmem [#allocation0], 864
    %v3486 = vld [vmem:[%s3485] sm:%s2730]
    %v3487 = vpack.c.bf16 0.0, %v3486
    %s3489 = ssub.s32 16, 1
    %s3490 = scalar_lea.vmem %s1, 432
    %3491 = vst [vmem:[%s3490] sm:%s3489] %v3487
    %s3492 = scalar_lea.vmem [#allocation0], 872
    %v3493 = vld [vmem:[%s3492] sm:%s2730]
    %v3494 = vpack.c.bf16 0.0, %v3493
    %s3496 = ssub.s32 16, 1
    %s3497 = scalar_lea.vmem %s1, 436
    %3498 = vst [vmem:[%s3497] sm:%s3496] %v3494
    %s3499 = scalar_lea.vmem [#allocation0], 880
    %v3500 = vld [vmem:[%s3499] sm:%s2730]
    %v3501 = vpack.c.bf16 0.0, %v3500
    %s3503 = ssub.s32 16, 1
    %s3504 = scalar_lea.vmem %s1, 440
    %3505 = vst [vmem:[%s3504] sm:%s3503] %v3501
    %s3506 = scalar_lea.vmem [#allocation0], 888
    %v3507 = vld [vmem:[%s3506] sm:%s2730]
    %v3508 = vpack.c.bf16 0.0, %v3507
    %s3510 = ssub.s32 16, 1
    %s3511 = scalar_lea.vmem %s1, 444
    %3512 = vst [vmem:[%s3511] sm:%s3510] %v3508
    %s3513 = scalar_lea.vmem [#allocation0], 896
    %v3514 = vld [vmem:[%s3513] sm:%s2730]
    %v3515 = vpack.c.bf16 0.0, %v3514
    %s3517 = ssub.s32 16, 1
    %s3518 = scalar_lea.vmem %s1, 448
    %3519 = vst [vmem:[%s3518] sm:%s3517] %v3515
    %s3520 = scalar_lea.vmem [#allocation0], 904
    %v3521 = vld [vmem:[%s3520] sm:%s2730]
    %v3522 = vpack.c.bf16 0.0, %v3521
    %s3524 = ssub.s32 16, 1
    %s3525 = scalar_lea.vmem %s1, 452
    %3526 = vst [vmem:[%s3525] sm:%s3524] %v3522
    %s3527 = scalar_lea.vmem [#allocation0], 912
    %v3528 = vld [vmem:[%s3527] sm:%s2730]
    %v3529 = vpack.c.bf16 0.0, %v3528
    %s3531 = ssub.s32 16, 1
    %s3532 = scalar_lea.vmem %s1, 456
    %3533 = vst [vmem:[%s3532] sm:%s3531] %v3529
    %s3534 = scalar_lea.vmem [#allocation0], 920
    %v3535 = vld [vmem:[%s3534] sm:%s2730]
    %v3536 = vpack.c.bf16 0.0, %v3535
    %s3538 = ssub.s32 16, 1
    %s3539 = scalar_lea.vmem %s1, 460
    %3540 = vst [vmem:[%s3539] sm:%s3538] %v3536
    %s3541 = scalar_lea.vmem [#allocation0], 928
    %v3542 = vld [vmem:[%s3541] sm:%s2730]
    %v3543 = vpack.c.bf16 0.0, %v3542
    %s3545 = ssub.s32 16, 1
    %s3546 = scalar_lea.vmem %s1, 464
    %3547 = vst [vmem:[%s3546] sm:%s3545] %v3543
    %s3548 = scalar_lea.vmem [#allocation0], 936
    %v3549 = vld [vmem:[%s3548] sm:%s2730]
    %v3550 = vpack.c.bf16 0.0, %v3549
    %s3552 = ssub.s32 16, 1
    %s3553 = scalar_lea.vmem %s1, 468
    %3554 = vst [vmem:[%s3553] sm:%s3552] %v3550
    %s3555 = scalar_lea.vmem [#allocation0], 944
    %v3556 = vld [vmem:[%s3555] sm:%s2730]
    %v3557 = vpack.c.bf16 0.0, %v3556
    %s3559 = ssub.s32 16, 1
    %s3560 = scalar_lea.vmem %s1, 472
    %3561 = vst [vmem:[%s3560] sm:%s3559] %v3557
    %s3562 = scalar_lea.vmem [#allocation0], 952
    %v3563 = vld [vmem:[%s3562] sm:%s2730]
    %v3564 = vpack.c.bf16 0.0, %v3563
    %s3566 = ssub.s32 16, 1
    %s3567 = scalar_lea.vmem %s1, 476
    %3568 = vst [vmem:[%s3567] sm:%s3566] %v3564
    %s3569 = scalar_lea.vmem [#allocation0], 960
    %v3570 = vld [vmem:[%s3569] sm:%s2730]
    %v3571 = vpack.c.bf16 0.0, %v3570
    %s3573 = ssub.s32 16, 1
    %s3574 = scalar_lea.vmem %s1, 480
    %3575 = vst [vmem:[%s3574] sm:%s3573] %v3571
    %s3576 = scalar_lea.vmem [#allocation0], 968
    %v3577 = vld [vmem:[%s3576] sm:%s2730]
    %v3578 = vpack.c.bf16 0.0, %v3577
    %s3580 = ssub.s32 16, 1
    %s3581 = scalar_lea.vmem %s1, 484
    %3582 = vst [vmem:[%s3581] sm:%s3580] %v3578
    %s3583 = scalar_lea.vmem [#allocation0], 976
    %v3584 = vld [vmem:[%s3583] sm:%s2730]
    %v3585 = vpack.c.bf16 0.0, %v3584
    %s3587 = ssub.s32 16, 1
    %s3588 = scalar_lea.vmem %s1, 488
    %3589 = vst [vmem:[%s3588] sm:%s3587] %v3585
    %s3590 = scalar_lea.vmem [#allocation0], 984
    %v3591 = vld [vmem:[%s3590] sm:%s2730]
    %v3592 = vpack.c.bf16 0.0, %v3591
    %s3594 = ssub.s32 16, 1
    %s3595 = scalar_lea.vmem %s1, 492
    %3596 = vst [vmem:[%s3595] sm:%s3594] %v3592
    %s3597 = scalar_lea.vmem [#allocation0], 992
    %v3598 = vld [vmem:[%s3597] sm:%s2730]
    %v3599 = vpack.c.bf16 0.0, %v3598
    %s3601 = ssub.s32 16, 1
    %s3602 = scalar_lea.vmem %s1, 496
    %3603 = vst [vmem:[%s3602] sm:%s3601] %v3599
    %s3604 = scalar_lea.vmem [#allocation0], 1000
    %v3605 = vld [vmem:[%s3604] sm:%s2730]
    %v3606 = vpack.c.bf16 0.0, %v3605
    %s3608 = ssub.s32 16, 1
    %s3609 = scalar_lea.vmem %s1, 500
    %3610 = vst [vmem:[%s3609] sm:%s3608] %v3606
    %s3611 = scalar_lea.vmem [#allocation0], 1008
    %v3612 = vld [vmem:[%s3611] sm:%s2730]
    %v3613 = vpack.c.bf16 0.0, %v3612
    %s3615 = ssub.s32 16, 1
    %s3616 = scalar_lea.vmem %s1, 504
    %3617 = vst [vmem:[%s3616] sm:%s3615] %v3613
    %s3618 = scalar_lea.vmem [#allocation0], 1016
    %v3619 = vld [vmem:[%s3618] sm:%s2730]
    %v3620 = vpack.c.bf16 0.0, %v3619
    %s3622 = ssub.s32 16, 1
    %s3623 = scalar_lea.vmem %s1, 508
    %3624 = vst [vmem:[%s3623] sm:%s3622] %v3620

// kernel: lazy_vae_forward.9
$region0: #{lazy_vae_forward.9}
  #allocation0 [shape = 'u32[]', space=smem, size = 0x4, offset = 0x4, fixed_abs, tag = 'smem constant byte address 0x4 - core index']
  #allocation1 [shape = 'u32[72,128]{1,0:T(1,128)}', space=vmem, size = 0x9000, scoped, tag = 'internal scratch']
  #allocation2 [shape = 'f32[8,512]{1,0:T(8,128)}', space=vmem, size = 0x4000, scoped, tag = 'scratch operand']
  %s0 = inlined_call_operand.vmem [shape: bf16[1,8,128], index: 0, kind: input, shape index: {}]
  %s1 = inlined_call_operand.vmem [shape: bf16[1,128,4096], index: 1, kind: input, shape index: {}]
  %s2 = inlined_call_operand.vmem [shape: f32[1,1,4096], index: 2, kind: input, shape index: {}]
  %s3 = inlined_call_operand.vmem [shape: bf16[1,8,4096], index: 3, kind: output, shape index: {}]
  %s4 = sld [smem:[#allocation0]]
  $region76: #{lazy_vae_forward.9} parent=0
    _
  %s6 = ssub.s32 1, %s4
  %s7 = scalar_select 0, %s6, %s4
  $region1: #{lazy_vae_forward.9} parent=0
    #allocation3 [shape = 'u8[262144]{0}', space=vmem, size = 0x40000, scoped, tag = 'input window, operand 1']
    loop: start=0, step=1, limit=10
    $region2: #{lazy_vae_forward.9} parent=1 // loop_pre_header
      _
    $region3: #{lazy_vae_forward.9} parent=1 // loop_header
      %s9 = sphi 0, %s13
      %p10 = scmp.ge.s32.totalorder %s9, 10
      %s16 = sphi 0, %s42
      %s17 = sphi 0, %s38
      %s18 = sphi 0, %s34
      %s19 = sphi 0, %s30
      %s20 = sphi 0, %s16
      %s21 = sphi 0, %s17
      %s22 = sphi 0, %s18
      %s23 = sphi 0, %s19
      %s24 = sphi 0, %s20
      %s25 = sphi 0, %s21
      %s26 = sphi 0, %s22
      %s27 = sphi 0, %s23
      %s49 = sphi 0, %s51
      %s52 = sphi 0, %s49
      %s53 = sphi 0, %s52
      %s69 = sphi 0, %s53
      %s79 = sphi 0, %s81
      %s82 = sphi 0, %s79
      %s83 = sphi 0, %s82
      %s99 = sphi 0, %s83
      %s107 = sphi 0, %s109
      %s110 = sphi 0, %s107
      %s111 = sphi 0, %s110
      %s127 = sphi 0, %s111
      %s137 = sphi 0, %s139
      %s140 = sphi 0, %s137
      %s141 = sphi 0, %s140
      %s157 = sphi 0, %s141
    $region4: #{lazy_vae_forward.9} parent=1 // loop_header_branch
      %12 = sbr.rel (%p10) target = $region8
    $region5: #{lazy_vae_forward.9} parent=1 // loop_body
      %s14 = ssub.s32 %s9, 1
      %s15 = ssub.s32 %s9, 2
      %s28 = sadd.s32 1, %s19
      %p29 = scmp.ge.s32.totalorder %s28, 1
      %s30 = scalar_select %p29, 0, %s28
      %s31 = sadd.s32 1, %s18
      %s32 = scalar_select %p29, %s31, %s18
      %p33 = scmp.ge.s32.totalorder %s32, 8
      %s34 = scalar_select %p33, 0, %s32
      %s35 = sadd.s32 1, %s17
      %s36 = scalar_select %p33, %s35, %s17
      %p37 = scmp.ge.s32.totalorder %s36, 1
      %s38 = scalar_select %p37, 0, %s36
      %s39 = sadd.s32 1, %s16
      %s40 = scalar_select %p37, %s39, %s16
      %p41 = scmp.ge.s32.totalorder %s40, 1
      %s42 = scalar_select %p41, 0, %s40
      %s43 = ssub.s32 %s16, %s42
      %s44 = ssub.s32 %s17, %s38
      %s45 = sor.u32 %s43, %s44
      %s46 = ssub.s32 %s19, %s30
      %s47 = sor.u32 %s45, %s46
      %p48 = scmp.eq.s32.totalorder %s47, 0
      %s50 = sadd.s32 %s49, 1
      %s51 = scalar_select %p48, %s49, %s50
      %p54 = pneg %p48
      %p55 = scmp.eq.s32.totalorder %s9, 7
      %p56 = por %p54, %p55
      %p57 = scmp.ne.s32.totalorder %s49, %s52
      %p58 = scmp.eq.s32.totalorder %s9, 0
      %p59 = por %p57, %p58
      %p60 = scmp.ne.s32.totalorder %s49, %s52
      %p61 = scmp.eq.s32.totalorder %s14, 7
      %p62 = por %p60, %p61
      %p63 = scmp.ne.s32.totalorder %s52, %s53
      %p64 = scmp.eq.s32.totalorder %s14, 0
      %p65 = por %p63, %p64
      %p66 = scmp.ne.s32.totalorder %s52, %s53
      %p67 = scmp.eq.s32.totalorder %s15, 7
      %p68 = por %p66, %p67
      %p70 = scmp.ne.s32.totalorder %s53, %s69
      %p71 = scmp.eq.s32.totalorder %s15, 0
      %p72 = por %p70, %p71
      %s73 = ssub.s32 %s16, %s42
      %s74 = ssub.s32 %s19, %s30
      %s75 = sor.u32 %s73, %s74
      %s76 = ssub.s32 %s18, %s34
      %s77 = sor.u32 %s75, %s76
      %p78 = scmp.eq.s32.totalorder %s77, 0
      %s80 = sadd.s32 %s79, 1
      %s81 = scalar_select %p78, %s79, %s80
      %p84 = pneg %p78
      %p85 = scmp.eq.s32.totalorder %s9, 7
      %p86 = por %p84, %p85
      %p87 = scmp.ne.s32.totalorder %s79, %s82
      %p88 = scmp.eq.s32.totalorder %s9, 0
      %p89 = por %p87, %p88
      %p90 = scmp.ne.s32.totalorder %s79, %s82
      %p91 = scmp.eq.s32.totalorder %s14, 7
      %p92 = por %p90, %p91
      %p93 = scmp.ne.s32.totalorder %s82, %s83
      %p94 = scmp.eq.s32.totalorder %s14, 0
      %p95 = por %p93, %p94
      %p96 = scmp.ne.s32.totalorder %s82, %s83
      %p97 = scmp.eq.s32.totalorder %s15, 7
      %p98 = por %p96, %p97
      %p100 = scmp.ne.s32.totalorder %s83, %s99
      %p101 = scmp.eq.s32.totalorder %s15, 0
      %p102 = por %p100, %p101
      %s103 = ssub.s32 %s16, %s42
      %s104 = ssub.s32 %s18, %s34
      %s105 = sor.u32 %s103, %s104
      %p106 = scmp.eq.s32.totalorder %s105, 0
      %s108 = sadd.s32 %s107, 1
      %s109 = scalar_select %p106, %s107, %s108
      %p112 = pneg %p106
      %p113 = scmp.eq.s32.totalorder %s9, 7
      %p114 = por %p112, %p113
      %p115 = scmp.ne.s32.totalorder %s107, %s110
      %p116 = scmp.eq.s32.totalorder %s9, 0
      %p117 = por %p115, %p116
      %p118 = scmp.ne.s32.totalorder %s107, %s110
      %p119 = scmp.eq.s32.totalorder %s14, 7
      %p120 = por %p118, %p119
      %p121 = scmp.ne.s32.totalorder %s110, %s111
      %p122 = scmp.eq.s32.totalorder %s14, 0
      %p123 = por %p121, %p122
      %p124 = scmp.ne.s32.totalorder %s110, %s111
      %p125 = scmp.eq.s32.totalorder %s15, 7
      %p126 = por %p124, %p125
      %p128 = scmp.ne.s32.totalorder %s111, %s127
      %p129 = scmp.eq.s32.totalorder %s15, 0
      %p130 = por %p128, %p129
      %s131 = ssub.s32 %s16, %s42
      %s132 = ssub.s32 %s17, %s38
      %s133 = sor.u32 %s131, %s132
      %s134 = ssub.s32 %s18, %s34
      %s135 = sor.u32 %s133, %s134
      %p136 = scmp.eq.s32.totalorder %s135, 0
      %s138 = sadd.s32 %s137, 1
      %s139 = scalar_select %p136, %s137, %s138
      %p142 = pneg %p136
      %p143 = scmp.eq.s32.totalorder %s9, 7
      %p144 = por %p142, %p143
      %p145 = scmp.ne.s32.totalorder %s137, %s140
      %p146 = scmp.eq.s32.totalorder %s9, 0
      %p147 = por %p145, %p146
      %p148 = scmp.ne.s32.totalorder %s137, %s140
      %p149 = scmp.eq.s32.totalorder %s14, 7
      %p150 = por %p148, %p149
      %p151 = scmp.ne.s32.totalorder %s140, %s141
      %p152 = scmp.eq.s32.totalorder %s14, 0
      %p153 = por %p151, %p152
      %p154 = scmp.ne.s32.totalorder %s140, %s141
      %p155 = scmp.eq.s32.totalorder %s15, 7
      %p156 = por %p154, %p155
      %p158 = scmp.ne.s32.totalorder %s141, %s157
      %p159 = scmp.eq.s32.totalorder %s15, 0
      %p160 = por %p158, %p159
      %p161 = scmp.le.s32.totalorder 1, %s9
      %p162 = scmp.lt.s32.totalorder %s9, 9
      %p163 = pnand %p161, %p162
      %p164 = pneg %p163
      // Predicated region
      $region9: #{lazy_vae_forward.9} parent=5 // pred_check
        _
      $region10: #{lazy_vae_forward.9} parent=5 // pred_check_branch
        %166 = sbr.rel (%p163) target = $region12
      $region11: #{lazy_vae_forward.9} parent=5 // pred_region
        %s167 = ssub.s32 %s9, 1
        // Predicated region
        $region13: #{lazy_vae_forward.9} parent=11 // pred_check
          %p168 = pneg %p65
        $region14: #{lazy_vae_forward.9} parent=11 // pred_check_branch
          %170 = sbr.rel (%p168) target = $region16
        $region15: #{lazy_vae_forward.9} parent=11 // pred_region
          %p171 = scmp.lt.s32.totalorder %s20, 0
          %s172 = scalar_select %p171, %s20, 0
          %p173 = scmp.lt.s32.totalorder %s21, 0
          %s174 = scalar_select %p173, %s21, 0
          %p175 = scmp.lt.s32.totalorder %s23, 0
          %s176 = scalar_select %p175, %s23, 0
          %s177 = sadd.s32 %s176, %s174
          %s178 = sadd.s32 %s177, %s172
          %s179 = smul.addr %s178, 4
          %s180 = scalar_lea.vmem %s0, %s179
        $region16: #{lazy_vae_forward.9} parent=11 // pred_fallthru
          _
      $region12: #{lazy_vae_forward.9} parent=5 // pred_fallthru
        _
      %p181 = scmp.lt.s32.totalorder %s9, 8
      // Predicated region
      $region17: #{lazy_vae_forward.9} parent=5 // pred_check
        %p182 = pneg %p181
      $region18: #{lazy_vae_forward.9} parent=5 // pred_check_branch
        %184 = sbr.rel (%p182) target = $region20
      $region19: #{lazy_vae_forward.9} parent=5 // pred_region
        // Predicated region
        $region21: #{lazy_vae_forward.9} parent=19 // pred_check
          %p185 = pneg %p89
        $region22: #{lazy_vae_forward.9} parent=19 // pred_check_branch
          %187 = sbr.rel (%p185) target = $region24
        $region23: #{lazy_vae_forward.9} parent=19 // pred_region
          %s188 = sand.u32 %s79, 1
          %s189 = sand.u32 %s79, 1
          %s190 = smul.addr %s189, 256
          %s191 = scalar_lea.vmem [#allocation3], %s190
          %s192 = smul.u32 16, %s19
          %s193 = smul.u32 4, %s18
          %s194 = smul.addr %s192, 32
          %s195 = sadd.s32 %s193, %s194
          %s196 = smul.addr %s16, 512
          %s197 = sadd.s32 %s195, %s196
          %s198 = smul.addr %s197, 4
          %s199 = scalar_lea.vmem %s1, %s198
          // Predicated region
          $region25: #{lazy_vae_forward.9} parent=23 // pred_check
            _
          $region26: #{lazy_vae_forward.9} parent=23 // pred_check_branch
            %201 = sbr.rel (0) target = $region28
          $region27: #{lazy_vae_forward.9} parent=23 // pred_region
            // Predicated region
            $region29: #{lazy_vae_forward.9} parent=27 // pred_check
              _
            $region30: #{lazy_vae_forward.9} parent=27 // pred_check_branch
              %203 = sbr.rel (0) target = $region32
            $region31: #{lazy_vae_forward.9} parent=27 // pred_region
              loop: start=0, step=1, limit=1
              $region33: #{lazy_vae_forward.9} parent=31 // loop_pre_header
                _
              $region34: #{lazy_vae_forward.9} parent=31 // loop_header
                %s205 = sphi 0, %s209
                %p206 = scmp.ge.s32.totalorder %s205, 1
                %s210 = sphi %s199, %s199
                %s211 = sphi %s191, %s191
              $region35: #{lazy_vae_forward.9} parent=31 // loop_header_branch
                %208 = sbr.rel (%p206) target = $region39
              $region36: #{lazy_vae_forward.9} parent=31 // loop_body
                %v212 = vld [vmem:[%s210] sm:$0xff]
                %213 = vst [vmem:[%s211] sm:$0xff] %v212
                %v214 = vld [vmem:[%s210 + $0x8] sm:$0xff]
                %215 = vst [vmem:[%s211 + $0x8] sm:$0xff] %v214
                %v216 = vld [vmem:[%s210 + $0x80] sm:$0xff]
                %217 = vst [vmem:[%s211 + $0x10] sm:$0xff] %v216
                %v218 = vld [vmem:[%s210 + $0x88] sm:$0xff]
                %219 = vst [vmem:[%s211 + $0x18] sm:$0xff] %v218
                %v220 = vld [vmem:[%s210 + $0x100] sm:$0xff]
                %221 = vst [vmem:[%s211 + $0x20] sm:$0xff] %v220
                %v222 = vld [vmem:[%s210 + $0x108] sm:$0xff]
                %223 = vst [vmem:[%s211 + $0x28] sm:$0xff] %v222
                %v224 = vld [vmem:[%s210 + $0x180] sm:$0xff]
                %225 = vst [vmem:[%s211 + $0x30] sm:$0xff] %v224
                %v226 = vld [vmem:[%s210 + $0x188] sm:$0xff]
                %227 = vst [vmem:[%s211 + $0x38] sm:$0xff] %v226
                %v228 = vld [vmem:[%s210 + $0x200] sm:$0xff]
                %229 = vst [vmem:[%s211 + $0x40] sm:$0xff] %v228
                %v230 = vld [vmem:[%s210 + $0x208] sm:$0xff]
                %231 = vst [vmem:[%s211 + $0x48] sm:$0xff] %v230
                %v232 = vld [vmem:[%s210 + $0x280] sm:$0xff]
                %233 = vst [vmem:[%s211 + $0x50] sm:$0xff] %v232
                %v234 = vld [vmem:[%s210 + $0x288] sm:$0xff]
                %235 = vst [vmem:[%s211 + $0x58] sm:$0xff] %v234
                %v236 = vld [vmem:[%s210 + $0x300] sm:$0xff]
                %237 = vst [vmem:[%s211 + $0x60] sm:$0xff] %v236
                %v238 = vld [vmem:[%s210 + $0x308] sm:$0xff]
                %239 = vst [vmem:[%s211 + $0x68] sm:$0xff] %v238
                %v240 = vld [vmem:[%s210 + $0x380] sm:$0xff]
                %241 = vst [vmem:[%s211 + $0x70] sm:$0xff] %v240
                %v242 = vld [vmem:[%s210 + $0x388] sm:$0xff]
                %243 = vst [vmem:[%s211 + $0x78] sm:$0xff] %v242
                %v244 = vld [vmem:[%s210 + $0x400] sm:$0xff]
                %245 = vst [vmem:[%s211 + $0x80] sm:$0xff] %v244
                %v246 = vld [vmem:[%s210 + $0x408] sm:$0xff]
                %247 = vst [vmem:[%s211 + $0x88] sm:$0xff] %v246
                %v248 = vld [vmem:[%s210 + $0x480] sm:$0xff]
                %249 = vst [vmem:[%s211 + $0x90] sm:$0xff] %v248
                %v250 = vld [vmem:[%s210 + $0x488] sm:$0xff]
                %251 = vst [vmem:[%s211 + $0x98] sm:$0xff] %v250
                %v252 = vld [vmem:[%s210 + $0x500] sm:$0xff]
                %253 = vst [vmem:[%s211 + $0xa0] sm:$0xff] %v252
                %v254 = vld [vmem:[%s210 + $0x508] sm:$0xff]
                %255 = vst [vmem:[%s211 + $0xa8] sm:$0xff] %v254
                %v256 = vld [vmem:[%s210 + $0x580] sm:$0xff]
                %257 = vst [vmem:[%s211 + $0xb0] sm:$0xff] %v256
                %v258 = vld [vmem:[%s210 + $0x588] sm:$0xff]
                %259 = vst [vmem:[%s211 + $0xb8] sm:$0xff] %v258
                %v260 = vld [vmem:[%s210 + $0x600] sm:$0xff]
                %261 = vst [vmem:[%s211 + $0xc0] sm:$0xff] %v260
                %v262 = vld [vmem:[%s210 + $0x608] sm:$0xff]
                %263 = vst [vmem:[%s211 + $0xc8] sm:$0xff] %v262
                %v264 = vld [vmem:[%s210 + $0x680] sm:$0xff]
                %265 = vst [vmem:[%s211 + $0xd0] sm:$0xff] %v264
                %v266 = vld [vmem:[%s210 + $0x688] sm:$0xff]
                %267 = vst [vmem:[%s211 + $0xd8] sm:$0xff] %v266
                %v268 = vld [vmem:[%s210 + $0x700] sm:$0xff]
                %269 = vst [vmem:[%s211 + $0xe0] sm:$0xff] %v268
                %v270 = vld [vmem:[%s210 + $0x708] sm:$0xff]
                %271 = vst [vmem:[%s211 + $0xe8] sm:$0xff] %v270
                %v272 = vld [vmem:[%s210 + $0x780] sm:$0xff]
                %273 = vst [vmem:[%s211 + $0xf0] sm:$0xff] %v272
                %v274 = vld [vmem:[%s210 + $0x788] sm:$0xff]
                %275 = vst [vmem:[%s211 + $0xf8] sm:$0xff] %v274
              $region37: #{lazy_vae_forward.9} parent=31 // loop_footer
                %s209 = sadd.s32 1, %s205
              $region38: #{lazy_vae_forward.9} parent=31 // loop_footer_branch
                %204 = sbr.rel target = $region34
              $region39: #{lazy_vae_forward.9} parent=31 // loop_exit
                _
            $region32: #{lazy_vae_forward.9} parent=27 // pred_fallthru
              _
            // Predicated region
            $region40: #{lazy_vae_forward.9} parent=27 // pred_check
              _
            $region41: #{lazy_vae_forward.9} parent=27 // pred_check_branch
              %277 = sbr.rel target = $region43
            $region42: #{lazy_vae_forward.9} parent=27 // pred_region
              _
            $region43: #{lazy_vae_forward.9} parent=27 // pred_fallthru
              _
          $region28: #{lazy_vae_forward.9} parent=23 // pred_fallthru
            _
          %278 = vnop
        $region24: #{lazy_vae_forward.9} parent=19 // pred_fallthru
          _
        // Predicated region
        $region44: #{lazy_vae_forward.9} parent=19 // pred_check
          %p279 = pneg %p117
        $region45: #{lazy_vae_forward.9} parent=19 // pred_check_branch
          %281 = sbr.rel (%p279) target = $region47
        $region46: #{lazy_vae_forward.9} parent=19 // pred_region
          %s282 = smul.u32 4, %s18
          %p283 = scmp.lt.s32.totalorder %s16, 0
          %s284 = scalar_select %p283, %s16, 0
          %p285 = scmp.lt.s32.totalorder %s282, 31
          %s286 = scalar_select %p285, %s282, 31
          %s287 = smul.addr %s284, 32
          %s288 = sadd.s32 %s286, %s287
          %s289 = scalar_lea.vmem %s2, %s288
          %s290 = smul.u32 4, %s18
        $region47: #{lazy_vae_forward.9} parent=19 // pred_fallthru
          _
      $region20: #{lazy_vae_forward.9} parent=5 // pred_fallthru
        _
      %p291 = scmp.le.s32.totalorder 1, %s9
      %p292 = scmp.lt.s32.totalorder %s9, 9
      %p293 = pnand %p291, %p292
      %p294 = pneg %p293
      // Predicated region
      $region48: #{lazy_vae_forward.9} parent=5 // pred_check
        _
      $region49: #{lazy_vae_forward.9} parent=5 // pred_check_branch
        %296 = sbr.rel (%p293) target = $region51
      $region50: #{lazy_vae_forward.9} parent=5 // pred_region
        %s297 = ssub.s32 %s9, 1
        %s298 = sand.u32 %s82, 1
        %s299 = sand.u32 %s82, 1
        %s300 = smul.addr %s299, 256
        %s301 = scalar_lea.vmem [#allocation3], %s300
        // Predicated region
        $region52: #{lazy_vae_forward.9} parent=50 // pred_check
          %p302 = pneg %p95
        $region53: #{lazy_vae_forward.9} parent=50 // pred_check_branch
          %304 = sbr.rel (%p302) target = $region55
        $region54: #{lazy_vae_forward.9} parent=50 // pred_region
          _
        $region55: #{lazy_vae_forward.9} parent=50 // pred_fallthru
          _
        %p305 = scmp.lt.s32.totalorder %s20, 0
        %s306 = scalar_select %p305, %s20, 0
        %p307 = scmp.lt.s32.totalorder %s21, 0
        %s308 = scalar_select %p307, %s21, 0
        %p309 = scmp.lt.s32.totalorder %s23, 0
        %s310 = scalar_select %p309, %s23, 0
        %s311 = sadd.s32 %s310, %s308
        %s312 = sadd.s32 %s311, %s306
        %s313 = smul.addr %s312, 4
        %s314 = scalar_lea.vmem %s0, %s313
        %p315 = pneg %p65
        %p316 = pneg %p62
        %s317 = sand.u32 %s82, 1
        %s318 = sand.u32 %s82, 1
        %s319 = smul.addr %s318, 256
        %s320 = scalar_lea.vmem [#allocation3], %s319
        %p321 = pneg %p95
        %p322 = pneg %p92
        %s323 = smul.u32 4, %s22
        %p324 = scmp.lt.s32.totalorder %s20, 0
        %s325 = scalar_select %p324, %s20, 0
        %p326 = scmp.lt.s32.totalorder %s323, 31
        %s327 = scalar_select %p326, %s323, 31
        %s328 = smul.addr %s325, 32
        %s329 = sadd.s32 %s327, %s328
        %s330 = scalar_lea.vmem %s2, %s329
        %p331 = pneg %p123
        %p332 = pneg %p120
        %p333 = pneg %p153
        %p334 = pneg %p150
        %s335 = smul.u32 4, %s22
        %p336 = scmp.lt.s32.totalorder %s20, 0
        %s337 = scalar_select %p336, %s20, 0
        %p338 = scmp.lt.s32.totalorder %s21, 0
        %s339 = scalar_select %p338, %s21, 0
        %p340 = scmp.lt.s32.totalorder %s335, 31
        %s341 = scalar_select %p340, %s335, 31
        %s342 = smul.addr %s339, 32
        %s343 = sadd.s32 %s341, %s342
        %s344 = smul.addr %s337, 32
        %s345 = sadd.s32 %s343, %s344
        %s346 = smul.addr %s345, 4
        %s347 = scalar_lea.vmem %s3, %s346
        %p348 = scmp.lt.s32.totalorder %s20, 0
        %s349 = scalar_select %p348, %s20, 0
        %p350 = scmp.lt.s32.totalorder %s21, 0
        %s351 = scalar_select %p350, %s21, 0
        %p352 = scmp.lt.s32.totalorder %s23, 0
        %s353 = scalar_select %p352, %s23, 0
        %s354 = sadd.s32 %s353, %s351
        %s355 = sadd.s32 %s354, %s349
        %s356 = smul.addr %s355, 4
        %s357 = scalar_lea.vmem %s0, %s356
        %s358 = smul.u32 16, %s23
        %s359 = smul.u32 4, %s22
        %s360 = smul.u32 4, %s22
        %p361 = scmp.lt.s32.totalorder %s20, 0
        %s362 = scalar_select %p361, %s20, 0
        %p363 = scmp.lt.s32.totalorder %s360, 31
        %s364 = scalar_select %p363, %s360, 31
        %s365 = smul.addr %s362, 32
        %s366 = sadd.s32 %s364, %s365
        %s367 = scalar_lea.vmem %s2, %s366
        %s368 = smul.u32 4, %s22
        %s369 = smul.u32 4, %s22
        %p370 = scmp.lt.s32.totalorder %s20, 0
        %s371 = scalar_select %p370, %s20, 0
        %p372 = scmp.lt.s32.totalorder %s21, 0
        %s373 = scalar_select %p372, %s21, 0
        %p374 = scmp.lt.s32.totalorder %s369, 31
        %s375 = scalar_select %p374, %s369, 31
        %s376 = smul.addr %s373, 32
        %s377 = sadd.s32 %s375, %s376
        %s378 = smul.addr %s371, 32
        %s379 = sadd.s32 %s377, %s378
        %s380 = smul.addr %s379, 4
        %s381 = scalar_lea.vmem %s3, %s380
        %s382 = smul.u32 4, %s22
        %p383 = scmp.eq.s32.totalorder %s23, 0
        // Predicated region
        $region56: #{lazy_vae_forward.9} parent=50 // pred_check
          %p384 = pneg %p383
        $region57: #{lazy_vae_forward.9} parent=50 // pred_check_branch
          %386 = sbr.rel (%p384) target = $region59
        $region58: #{lazy_vae_forward.9} parent=50 // pred_region
          %387 = vst [vmem:[#allocation2] sm:$0xff] 0.0
          %388 = vst [vmem:[#allocation2 + $0x8] sm:$0xff] 0.0
          %389 = vst [vmem:[#allocation2 + $0x10] sm:$0xff] 0.0
          %390 = vst [vmem:[#allocation2 + $0x18] sm:$0xff] 0.0
        $region59: #{lazy_vae_forward.9} parent=50 // pred_fallthru
          _
        %v391 = vld [vmem:[#allocation2] sm:$0xff]
        %v392 = vld [vmem:[#allocation2 + $0x8] sm:$0xff]
        %v393 = vld [vmem:[#allocation2 + $0x10] sm:$0xff]
        %v394 = vld [vmem:[#allocation2 + $0x18] sm:$0xff]
        %v395 = vld [vmem:[%s357] sm:$0xf]
        %v396 = vld [vmem:[%s301] sm:$0xff]
        %v397 = vld [vmem:[%s301 + $0x8] sm:$0xff]
        %v398 = vld [vmem:[%s301 + $0x10] sm:$0xff]
        %v399 = vld [vmem:[%s301 + $0x18] sm:$0xff]
        %v400 = vld [vmem:[%s301 + $0x20] sm:$0xff]
        %v401 = vld [vmem:[%s301 + $0x28] sm:$0xff]
        %v402 = vld [vmem:[%s301 + $0x30] sm:$0xff]
        %v403 = vld [vmem:[%s301 + $0x38] sm:$0xff]
        %v404 = vld [vmem:[%s301 + $0x40] sm:$0xff]
        %v405 = vld [vmem:[%s301 + $0x48] sm:$0xff]
        %v406 = vld [vmem:[%s301 + $0x50] sm:$0xff]
        %v407 = vld [vmem:[%s301 + $0x58] sm:$0xff]
        %v408 = vld [vmem:[%s301 + $0x60] sm:$0xff]
        %v409 = vld [vmem:[%s301 + $0x68] sm:$0xff]
        %v410 = vld [vmem:[%s301 + $0x70] sm:$0xff]
        %v411 = vld [vmem:[%s301 + $0x78] sm:$0xff]
        %v412 = vld [vmem:[%s301 + $0x80] sm:$0xff]
        %v413 = vld [vmem:[%s301 + $0x88] sm:$0xff]
        %v414 = vld [vmem:[%s301 + $0x90] sm:$0xff]
        %v415 = vld [vmem:[%s301 + $0x98] sm:$0xff]
        %v416 = vld [vmem:[%s301 + $0xa0] sm:$0xff]
        %v417 = vld [vmem:[%s301 + $0xa8] sm:$0xff]
        %v418 = vld [vmem:[%s301 + $0xb0] sm:$0xff]
        %v419 = vld [vmem:[%s301 + $0xb8] sm:$0xff]
        %v420 = vld [vmem:[%s301 + $0xc0] sm:$0xff]
        %v421 = vld [vmem:[%s301 + $0xc8] sm:$0xff]
        %v422 = vld [vmem:[%s301 + $0xd0] sm:$0xff]
        %v423 = vld [vmem:[%s301 + $0xd8] sm:$0xff]
        %v424 = vld [vmem:[%s301 + $0xe0] sm:$0xff]
        %v425 = vld [vmem:[%s301 + $0xe8] sm:$0xff]
        %v426 = vld [vmem:[%s301 + $0xf0] sm:$0xff]
        %v427 = vld [vmem:[%s301 + $0xf8] sm:$0xff]
        %v460 = vunpack.c.l.b16 %v396
        %v461 = vunpack.c.h.b16 %v396
        %v462 = vunpack.c.l.b16 %v397
        %v463 = vunpack.c.h.b16 %v397
        %v464 = vunpack.c.l.b16 %v398
        %v465 = vunpack.c.h.b16 %v398
        %v466 = vunpack.c.l.b16 %v399
        %v467 = vunpack.c.h.b16 %v399
        %v468 = vunpack.c.l.b16 %v400
        %v469 = vunpack.c.h.b16 %v400
        %v470 = vunpack.c.l.b16 %v401
        %v471 = vunpack.c.h.b16 %v401
        %v472 = vunpack.c.l.b16 %v402
        %v473 = vunpack.c.h.b16 %v402
        %v474 = vunpack.c.l.b16 %v403
        %v475 = vunpack.c.h.b16 %v403
        %v476 = vunpack.c.l.b16 %v404
        %v477 = vunpack.c.h.b16 %v404
        %v478 = vunpack.c.l.b16 %v405
        %v479 = vunpack.c.h.b16 %v405
        %v480 = vunpack.c.l.b16 %v406
        %v481 = vunpack.c.h.b16 %v406
        %v482 = vunpack.c.l.b16 %v407
        %v483 = vunpack.c.h.b16 %v407
        %v484 = vunpack.c.l.b16 %v408
        %v485 = vunpack.c.h.b16 %v408
        %v486 = vunpack.c.l.b16 %v409
        %v487 = vunpack.c.h.b16 %v409
        %v488 = vunpack.c.l.b16 %v410
        %v489 = vunpack.c.h.b16 %v410
        %v490 = vunpack.c.l.b16 %v411
        %v491 = vunpack.c.h.b16 %v411
        %v492 = vunpack.c.l.b16 %v412
        %v493 = vunpack.c.h.b16 %v412
        %v494 = vunpack.c.l.b16 %v413
        %v495 = vunpack.c.h.b16 %v413
        %v496 = vunpack.c.l.b16 %v414
        %v497 = vunpack.c.h.b16 %v414
        %v498 = vunpack.c.l.b16 %v415
        %v499 = vunpack.c.h.b16 %v415
        %v500 = vunpack.c.l.b16 %v416
        %v501 = vunpack.c.h.b16 %v416
        %v502 = vunpack.c.l.b16 %v417
        %v503 = vunpack.c.h.b16 %v417
        %v504 = vunpack.c.l.b16 %v418
        %v505 = vunpack.c.h.b16 %v418
        %v506 = vunpack.c.l.b16 %v419
        %v507 = vunpack.c.h.b16 %v419
        %v508 = vunpack.c.l.b16 %v420
        %v509 = vunpack.c.h.b16 %v420
        %v510 = vunpack.c.l.b16 %v421
        %v511 = vunpack.c.h.b16 %v421
        %v512 = vunpack.c.l.b16 %v422
        %v513 = vunpack.c.h.b16 %v422
        %v514 = vunpack.c.l.b16 %v423
        %v515 = vunpack.c.h.b16 %v423
        %v516 = vunpack.c.l.b16 %v424
        %v517 = vunpack.c.h.b16 %v424
        %v518 = vunpack.c.l.b16 %v425
        %v519 = vunpack.c.h.b16 %v425
        %v520 = vunpack.c.l.b16 %v426
        %v521 = vunpack.c.h.b16 %v426
        %v522 = vunpack.c.l.b16 %v427
        %v523 = vunpack.c.h.b16 %v427
        %v524 = vpack.c.b16 %v464, %v460
        %v525 = vpack.c.b16 %v465, %v461
        %v526 = vpack.c.b16 %v466, %v462
        %v527 = vpack.c.b16 %v467, %v463
        %v528 = vpack.c.b16 %v472, %v468
        %v529 = vpack.c.b16 %v473, %v469
        %v530 = vpack.c.b16 %v474, %v470
        %v531 = vpack.c.b16 %v475, %v471
        %v532 = vpack.c.b16 %v480, %v476
        %v533 = vpack.c.b16 %v481, %v477
        %v534 = vpack.c.b16 %v482, %v478
        %v535 = vpack.c.b16 %v483, %v479
        %v536 = vpack.c.b16 %v488, %v484
        %v537 = vpack.c.b16 %v489, %v485
        %v538 = vpack.c.b16 %v490, %v486
        %v539 = vpack.c.b16 %v491, %v487
        %v540 = vpack.c.b16 %v496, %v492
        %v541 = vpack.c.b16 %v497, %v493
        %v542 = vpack.c.b16 %v498, %v494
        %v543 = vpack.c.b16 %v499, %v495
        %v544 = vpack.c.b16 %v504, %v500
        %v545 = vpack.c.b16 %v505, %v501
        %v546 = vpack.c.b16 %v506, %v502
        %v547 = vpack.c.b16 %v507, %v503
        %v548 = vpack.c.b16 %v512, %v508
        %v549 = vpack.c.b16 %v513, %v509
        %v550 = vpack.c.b16 %v514, %v510
        %v551 = vpack.c.b16 %v515, %v511
        %v552 = vpack.c.b16 %v520, %v516
        %v553 = vpack.c.b16 %v521, %v517
        %v554 = vpack.c.b16 %v522, %v518
        %v555 = vpack.c.b16 %v523, %v519
        %588 = vmatpush.bf16.msra.mxu0 %v552
        %589 = vmatpush.bf16.msra.mxu0 %v548
        %590 = vmatpush.bf16.msra.mxu0 %v544
        %591 = vmatpush.bf16.msra.mxu0 %v540
        %592 = vmatpush.bf16.msra.mxu0 %v536
        %593 = vmatpush.bf16.msra.mxu0 %v532
        %594 = vmatpush.bf16.msra.mxu0 %v528
        %595 = vmatpush.bf16.msra.mxu0 %v524
        %596 = vmatmul.bf16.gmra.mxu0 %v395
        %v597 = vpop.f32.mrf.mxu0
        %v598 = vadd.f32 0.0, %v597
        %v599 = vpop.f32.mrf.mxu0
        %600 = vdwg.mxu0
        %601 = vmatpush.bf16.msra.mxu0 %v553
        %602 = vmatpush.bf16.msra.mxu0 %v549
        %603 = vmatpush.bf16.msra.mxu0 %v545
        %604 = vmatpush.bf16.msra.mxu0 %v541
        %605 = vmatpush.bf16.msra.mxu0 %v537
        %606 = vmatpush.bf16.msra.mxu0 %v533
        %607 = vmatpush.bf16.msra.mxu0 %v529
        %608 = vmatpush.bf16.msra.mxu0 %v525
        %609 = vmatmul.bf16.gmra.mxu0 %v395
        %v610 = vpop.f32.mrf.mxu0
        %v611 = vadd.f32 0.0, %v610
        %v612 = vpop.f32.mrf.mxu0
        %613 = vdwg.mxu0
        %614 = vmatpush.bf16.msra.mxu0 %v554
        %615 = vmatpush.bf16.msra.mxu0 %v550
        %616 = vmatpush.bf16.msra.mxu0 %v546
        %617 = vmatpush.bf16.msra.mxu0 %v542
        %618 = vmatpush.bf16.msra.mxu0 %v538
        %619 = vmatpush.bf16.msra.mxu0 %v534
        %620 = vmatpush.bf16.msra.mxu0 %v530
        %621 = vmatpush.bf16.msra.mxu0 %v526
        %622 = vmatmul.bf16.gmra.mxu0 %v395
        %v623 = vpop.f32.mrf.mxu0
        %v624 = vadd.f32 0.0, %v623
        %v625 = vpop.f32.mrf.mxu0
        %626 = vdwg.mxu0
        %627 = vmatpush.bf16.msra.mxu0 %v555
        %628 = vmatpush.bf16.msra.mxu0 %v551
        %629 = vmatpush.bf16.msra.mxu0 %v547
        %630 = vmatpush.bf16.msra.mxu0 %v543
        %631 = vmatpush.bf16.msra.mxu0 %v539
        %632 = vmatpush.bf16.msra.mxu0 %v535
        %633 = vmatpush.bf16.msra.mxu0 %v531
        %634 = vmatpush.bf16.msra.mxu0 %v527
        %635 = vmatmul.bf16.gmra.mxu0 %v395
        %v636 = vpop.f32.mrf.mxu0
        %v637 = vadd.f32 0.0, %v636
        %v638 = vpop.f32.mrf.mxu0
        %639 = vdwg.mxu0
        %v640 = vadd.f32 %v391, %v598
        %v641 = vadd.f32 %v392, %v611
        %v642 = vadd.f32 %v393, %v624
        %v643 = vadd.f32 %v394, %v637
        %644 = vst [vmem:[#allocation2] sm:$0xff] %v640
        %645 = vst [vmem:[#allocation2 + $0x8] sm:$0xff] %v641
        %646 = vst [vmem:[#allocation2 + $0x10] sm:$0xff] %v642
        %647 = vst [vmem:[#allocation2 + $0x18] sm:$0xff] %v643
        // Predicated region
        $region60: #{lazy_vae_forward.9} parent=50 // pred_check
          %p648 = pneg %p383
        $region61: #{lazy_vae_forward.9} parent=50 // pred_check_branch
          %650 = sbr.rel (%p648) target = $region63
        $region62: #{lazy_vae_forward.9} parent=50 // pred_region
          %v651 = vld [vmem:[#allocation2] sm:$0xff]
          %v652 = vld [vmem:[#allocation2 + $0x8] sm:$0xff]
          %v653 = vld [vmem:[#allocation2 + $0x10] sm:$0xff]
          %v654 = vld [vmem:[#allocation2 + $0x18] sm:$0xff]
          %v655 = vld [vmem:[%s367] sm:$0xf]
          %v657 = vperm.slane %v655, 0
          %v658 = vperm.slane %v655, 1
          %v659 = vperm.slane %v655, 2
          %v660 = vperm.slane %v655, 3
          %v665 = vadd.f32 %v651, %v657
          %v666 = vadd.f32 %v652, %v658
          %v667 = vadd.f32 %v653, %v659
          %v668 = vadd.f32 %v654, %v660
          %v669 = vpack.c.bf16 %v666, %v665
          %v670 = vpack.c.bf16 %v668, %v667
          %671 = vst [vmem:[%s381] sm:$0xff] %v669
          %672 = vst [vmem:[%s381 + $0x8] sm:$0xff] %v670
        $region63: #{lazy_vae_forward.9} parent=50 // pred_fallthru
          _
        %s673 = smul.u32 4, %s22
        %p674 = scmp.lt.s32.totalorder %s20, 0
        %s675 = scalar_select %p674, %s20, 0
        %p676 = scmp.lt.s32.totalorder %s21, 0
        %s677 = scalar_select %p676, %s21, 0
        %p678 = scmp.lt.s32.totalorder %s673, 31
        %s679 = scalar_select %p678, %s673, 31
        %s680 = smul.addr %s677, 32
        %s681 = sadd.s32 %s679, %s680
        %s682 = smul.addr %s675, 32
        %s683 = sadd.s32 %s681, %s682
        %s684 = smul.addr %s683, 4
        %s685 = scalar_lea.vmem %s3, %s684
        // Predicated region
        $region64: #{lazy_vae_forward.9} parent=50 // pred_check
          %p686 = pneg %p150
        $region65: #{lazy_vae_forward.9} parent=50 // pred_check_branch
          %688 = sbr.rel (%p686) target = $region67
        $region66: #{lazy_vae_forward.9} parent=50 // pred_region
          %s689 = smul.u32 4, %s22
        $region67: #{lazy_vae_forward.9} parent=50 // pred_fallthru
          _
      $region51: #{lazy_vae_forward.9} parent=5 // pred_fallthru
        _
      %p690 = scmp.le.s32.totalorder 2, %s9
      // Predicated region
      $region68: #{lazy_vae_forward.9} parent=5 // pred_check
        %p691 = pneg %p690
      $region69: #{lazy_vae_forward.9} parent=5 // pred_check_branch
        %693 = sbr.rel (%p691) target = $region71
      $region70: #{lazy_vae_forward.9} parent=5 // pred_region
        %s694 = ssub.s32 %s9, 2
        // Predicated region
        $region72: #{lazy_vae_forward.9} parent=70 // pred_check
          %p695 = pneg %p156
        $region73: #{lazy_vae_forward.9} parent=70 // pred_check_branch
          %697 = sbr.rel (%p695) target = $region75
        $region74: #{lazy_vae_forward.9} parent=70 // pred_region
          %s698 = smul.u32 4, %s26
          %p699 = scmp.lt.s32.totalorder %s24, 0
          %s700 = scalar_select %p699, %s24, 0
          %p701 = scmp.lt.s32.totalorder %s25, 0
          %s702 = scalar_select %p701, %s25, 0
          %p703 = scmp.lt.s32.totalorder %s698, 31
          %s704 = scalar_select %p703, %s698, 31
          %s705 = smul.addr %s702, 32
          %s706 = sadd.s32 %s704, %s705
          %s707 = smul.addr %s700, 32
          %s708 = sadd.s32 %s706, %s707
          %s709 = smul.addr %s708, 4
          %s710 = scalar_lea.vmem %s3, %s709
        $region75: #{lazy_vae_forward.9} parent=70 // pred_fallthru
          _
      $region71: #{lazy_vae_forward.9} parent=5 // pred_fallthru
        _
    $region6: #{lazy_vae_forward.9} parent=1 // loop_footer
      %s13 = sadd.s32 1, %s9
    $region7: #{lazy_vae_forward.9} parent=1 // loop_footer_branch
      %8 = sbr.rel target = $region3
    $region8: #{lazy_vae_forward.9} parent=1 // loop_exit
      _

// kernel: lazy_vae_forward.10
$region0: #{lazy_vae_forward.10}
  #allocation0 [shape = 'u32[]', space=smem, size = 0x4, offset = 0x4, fixed_abs, tag = 'smem constant byte address 0x4 - core index']
  #allocation1 [shape = 'u32[72,128]{1,0:T(1,128)}', space=vmem, size = 0x9000, scoped, tag = 'internal scratch']
  #allocation2 [shape = 'f32[32,128]{1,0:T(8,128)}', space=vmem, size = 0x4000, scoped, tag = 'scratch operand']
  %s0 = inlined_call_operand.vmem [shape: bf16[4,32,256], index: 0, kind: input, shape index: {}]
  %s1 = inlined_call_operand.vmem [shape: bf16[4,256,128], index: 1, kind: input, shape index: {}]
  %s2 = inlined_call_operand.vmem [shape: f32[4,32,1], index: 2, kind: input, shape index: {}]
  %s3 = inlined_call_operand.vmem [shape: bf16[4,32,128], index: 3, kind: output, shape index: {}]
  %s4 = sld [smem:[#allocation0]]
  $region53: #{lazy_vae_forward.10} parent=0
    _
  %s6 = ssub.s32 1, %s4
  %s7 = scalar_select 0, %s6, %s4
  loop: start=0, step=1, limit=6
  $region2: #{lazy_vae_forward.10} parent=0 // loop_pre_header
    _
  $region3: #{lazy_vae_forward.10} parent=0 // loop_header
    %s9 = sphi 0, %s13
    %p10 = scmp.ge.s32.totalorder %s9, 6
    %s16 = sphi 0, %s42
    %s17 = sphi 0, %s38
    %s18 = sphi 0, %s34
    %s19 = sphi 0, %s30
    %s20 = sphi 0, %s16
    %s21 = sphi 0, %s17
    %s22 = sphi 0, %s18
    %s23 = sphi 0, %s19
    %s24 = sphi 0, %s20
    %s25 = sphi 0, %s21
    %s26 = sphi 0, %s22
    %s27 = sphi 0, %s23
    %s49 = sphi 0, %s51
    %s52 = sphi 0, %s49
    %s53 = sphi 0, %s52
    %s69 = sphi 0, %s53
    %s79 = sphi 0, %s81
    %s82 = sphi 0, %s79
    %s83 = sphi 0, %s82
    %s99 = sphi 0, %s83
    %s107 = sphi 0, %s109
    %s110 = sphi 0, %s107
    %s111 = sphi 0, %s110
    %s127 = sphi 0, %s111
    %s137 = sphi 0, %s139
    %s140 = sphi 0, %s137
    %s141 = sphi 0, %s140
    %s157 = sphi 0, %s141
  $region4: #{lazy_vae_forward.10} parent=0 // loop_header_branch
    %12 = sbr.rel (%p10) target = $region8
  $region5: #{lazy_vae_forward.10} parent=0 // loop_body
    %s14 = ssub.s32 %s9, 1
    %s15 = ssub.s32 %s9, 2
    %s28 = sadd.s32 1, %s19
    %p29 = scmp.ge.s32.totalorder %s28, 1
    %s30 = scalar_select %p29, 0, %s28
    %s31 = sadd.s32 1, %s18
    %s32 = scalar_select %p29, %s31, %s18
    %p33 = scmp.ge.s32.totalorder %s32, 1
    %s34 = scalar_select %p33, 0, %s32
    %s35 = sadd.s32 1, %s17
    %s36 = scalar_select %p33, %s35, %s17
    %p37 = scmp.ge.s32.totalorder %s36, 1
    %s38 = scalar_select %p37, 0, %s36
    %s39 = sadd.s32 1, %s16
    %s40 = scalar_select %p37, %s39, %s16
    %p41 = scmp.ge.s32.totalorder %s40, 4
    %s42 = scalar_select %p41, 0, %s40
    %s43 = ssub.s32 %s16, %s42
    %s44 = ssub.s32 %s17, %s38
    %s45 = sor.u32 %s43, %s44
    %s46 = ssub.s32 %s19, %s30
    %s47 = sor.u32 %s45, %s46
    %p48 = scmp.eq.s32.totalorder %s47, 0
    %s50 = sadd.s32 %s49, 1
    %s51 = scalar_select %p48, %s49, %s50
    %p54 = pneg %p48
    %p55 = scmp.eq.s32.totalorder %s9, 3
    %p56 = por %p54, %p55
    %p57 = scmp.ne.s32.totalorder %s49, %s52
    %p58 = scmp.eq.s32.totalorder %s9, 0
    %p59 = por %p57, %p58
    %p60 = scmp.ne.s32.totalorder %s49, %s52
    %p61 = scmp.eq.s32.totalorder %s14, 3
    %p62 = por %p60, %p61
    %p63 = scmp.ne.s32.totalorder %s52, %s53
    %p64 = scmp.eq.s32.totalorder %s14, 0
    %p65 = por %p63, %p64
    %p66 = scmp.ne.s32.totalorder %s52, %s53
    %p67 = scmp.eq.s32.totalorder %s15, 3
    %p68 = por %p66, %p67
    %p70 = scmp.ne.s32.totalorder %s53, %s69
    %p71 = scmp.eq.s32.totalorder %s15, 0
    %p72 = por %p70, %p71
    %s73 = ssub.s32 %s16, %s42
    %s74 = ssub.s32 %s19, %s30
    %s75 = sor.u32 %s73, %s74
    %s76 = ssub.s32 %s18, %s34
    %s77 = sor.u32 %s75, %s76
    %p78 = scmp.eq.s32.totalorder %s77, 0
    %s80 = sadd.s32 %s79, 1
    %s81 = scalar_select %p78, %s79, %s80
    %p84 = pneg %p78
    %p85 = scmp.eq.s32.totalorder %s9, 3
    %p86 = por %p84, %p85
    %p87 = scmp.ne.s32.totalorder %s79, %s82
    %p88 = scmp.eq.s32.totalorder %s9, 0
    %p89 = por %p87, %p88
    %p90 = scmp.ne.s32.totalorder %s79, %s82
    %p91 = scmp.eq.s32.totalorder %s14, 3
    %p92 = por %p90, %p91
    %p93 = scmp.ne.s32.totalorder %s82, %s83
    %p94 = scmp.eq.s32.totalorder %s14, 0
    %p95 = por %p93, %p94
    %p96 = scmp.ne.s32.totalorder %s82, %s83
    %p97 = scmp.eq.s32.totalorder %s15, 3
    %p98 = por %p96, %p97
    %p100 = scmp.ne.s32.totalorder %s83, %s99
    %p101 = scmp.eq.s32.totalorder %s15, 0
    %p102 = por %p100, %p101
    %s103 = ssub.s32 %s16, %s42
    %s104 = ssub.s32 %s17, %s38
    %s105 = sor.u32 %s103, %s104
    %p106 = scmp.eq.s32.totalorder %s105, 0
    %s108 = sadd.s32 %s107, 1
    %s109 = scalar_select %p106, %s107, %s108
    %p112 = pneg %p106
    %p113 = scmp.eq.s32.totalorder %s9, 3
    %p114 = por %p112, %p113
    %p115 = scmp.ne.s32.totalorder %s107, %s110
    %p116 = scmp.eq.s32.totalorder %s9, 0
    %p117 = por %p115, %p116
    %p118 = scmp.ne.s32.totalorder %s107, %s110
    %p119 = scmp.eq.s32.totalorder %s14, 3
    %p120 = por %p118, %p119
    %p121 = scmp.ne.s32.totalorder %s110, %s111
    %p122 = scmp.eq.s32.totalorder %s14, 0
    %p123 = por %p121, %p122
    %p124 = scmp.ne.s32.totalorder %s110, %s111
    %p125 = scmp.eq.s32.totalorder %s15, 3
    %p126 = por %p124, %p125
    %p128 = scmp.ne.s32.totalorder %s111, %s127
    %p129 = scmp.eq.s32.totalorder %s15, 0
    %p130 = por %p128, %p129
    %s131 = ssub.s32 %s16, %s42
    %s132 = ssub.s32 %s17, %s38
    %s133 = sor.u32 %s131, %s132
    %s134 = ssub.s32 %s18, %s34
    %s135 = sor.u32 %s133, %s134
    %p136 = scmp.eq.s32.totalorder %s135, 0
    %s138 = sadd.s32 %s137, 1
    %s139 = scalar_select %p136, %s137, %s138
    %p142 = pneg %p136
    %p143 = scmp.eq.s32.totalorder %s9, 3
    %p144 = por %p142, %p143
    %p145 = scmp.ne.s32.totalorder %s137, %s140
    %p146 = scmp.eq.s32.totalorder %s9, 0
    %p147 = por %p145, %p146
    %p148 = scmp.ne.s32.totalorder %s137, %s140
    %p149 = scmp.eq.s32.totalorder %s14, 3
    %p150 = por %p148, %p149
    %p151 = scmp.ne.s32.totalorder %s140, %s141
    %p152 = scmp.eq.s32.totalorder %s14, 0
    %p153 = por %p151, %p152
    %p154 = scmp.ne.s32.totalorder %s140, %s141
    %p155 = scmp.eq.s32.totalorder %s15, 3
    %p156 = por %p154, %p155
    %p158 = scmp.ne.s32.totalorder %s141, %s157
    %p159 = scmp.eq.s32.totalorder %s15, 0
    %p160 = por %p158, %p159
    %p161 = scmp.le.s32.totalorder 1, %s9
    %p162 = scmp.lt.s32.totalorder %s9, 5
    %p163 = pnand %p161, %p162
    %p164 = pneg %p163
    // Predicated region
    $region9: #{lazy_vae_forward.10} parent=5 // pred_check
      _
    $region10: #{lazy_vae_forward.10} parent=5 // pred_check_branch
      %166 = sbr.rel (%p163) target = $region12
    $region11: #{lazy_vae_forward.10} parent=5 // pred_region
      %s167 = ssub.s32 %s9, 1
    $region12: #{lazy_vae_forward.10} parent=5 // pred_fallthru
      _
    %p168 = scmp.lt.s32.totalorder %s9, 4
    // Predicated region
    $region13: #{lazy_vae_forward.10} parent=5 // pred_check
      %p169 = pneg %p168
    $region14: #{lazy_vae_forward.10} parent=5 // pred_check_branch
      %171 = sbr.rel (%p169) target = $region16
    $region15: #{lazy_vae_forward.10} parent=5 // pred_region
      // Predicated region
      $region17: #{lazy_vae_forward.10} parent=15 // pred_check
        %p172 = pneg %p59
      $region18: #{lazy_vae_forward.10} parent=15 // pred_check_branch
        %174 = sbr.rel (%p172) target = $region20
      $region19: #{lazy_vae_forward.10} parent=15 // pred_region
        %s175 = smul.u32 4, %s17
        %s176 = smul.u32 2, %s19
        %p177 = scmp.lt.s32.totalorder %s16, 3
        %s178 = scalar_select %p177, %s16, 3
        %p179 = scmp.lt.s32.totalorder %s175, 3
        %s180 = scalar_select %p179, %s175, 3
        %p181 = scmp.lt.s32.totalorder %s176, 1
        %s182 = scalar_select %p181, %s176, 1
        %s183 = smul.addr %s180, 2
        %s184 = sadd.s32 %s182, %s183
        %s185 = smul.addr %s178, 8
        %s186 = sadd.s32 %s184, %s185
        %s187 = smul.addr %s186, 4
        %s188 = scalar_lea.vmem %s0, %s187
        %s189 = smul.u32 4, %s17
        %s190 = smul.u32 2, %s19
      $region20: #{lazy_vae_forward.10} parent=15 // pred_fallthru
        _
      // Predicated region
      $region21: #{lazy_vae_forward.10} parent=15 // pred_check
        %p191 = pneg %p89
      $region22: #{lazy_vae_forward.10} parent=15 // pred_check_branch
        %193 = sbr.rel (%p191) target = $region24
      $region23: #{lazy_vae_forward.10} parent=15 // pred_region
        %s194 = smul.u32 32, %s19
        %p195 = scmp.lt.s32.totalorder %s16, 3
        %s196 = scalar_select %p195, %s16, 3
        %p197 = scmp.lt.s32.totalorder %s194, 31
        %s198 = scalar_select %p197, %s194, 31
        %p199 = scmp.lt.s32.totalorder %s18, 0
        %s200 = scalar_select %p199, %s18, 0
        %s201 = sadd.s32 %s200, %s198
        %s202 = smul.addr %s196, 32
        %s203 = sadd.s32 %s201, %s202
        %s204 = smul.addr %s203, 4
        %s205 = scalar_lea.vmem %s1, %s204
        %s206 = smul.u32 32, %s19
      $region24: #{lazy_vae_forward.10} parent=15 // pred_fallthru
        _
      // Predicated region
      $region25: #{lazy_vae_forward.10} parent=15 // pred_check
        %p207 = pneg %p117
      $region26: #{lazy_vae_forward.10} parent=15 // pred_check_branch
        %209 = sbr.rel (%p207) target = $region28
      $region27: #{lazy_vae_forward.10} parent=15 // pred_region
        %s210 = smul.u32 4, %s17
        %p211 = scmp.lt.s32.totalorder %s16, 3
        %s212 = scalar_select %p211, %s16, 3
        %p213 = scmp.lt.s32.totalorder %s210, 3
        %s214 = scalar_select %p213, %s210, 3
        %s215 = smul.addr %s212, 4
        %s216 = sadd.s32 %s214, %s215
        %s217 = smul.addr %s216, 8
        %s218 = scalar_lea.vmem %s2, %s217
        %s219 = smul.u32 4, %s17
      $region28: #{lazy_vae_forward.10} parent=15 // pred_fallthru
        _
    $region16: #{lazy_vae_forward.10} parent=5 // pred_fallthru
      _
    %p220 = scmp.le.s32.totalorder 1, %s9
    %p221 = scmp.lt.s32.totalorder %s9, 5
    %p222 = pnand %p220, %p221
    %p223 = pneg %p222
    // Predicated region
    $region29: #{lazy_vae_forward.10} parent=5 // pred_check
      _
    $region30: #{lazy_vae_forward.10} parent=5 // pred_check_branch
      %225 = sbr.rel (%p222) target = $region32
    $region31: #{lazy_vae_forward.10} parent=5 // pred_region
      %s226 = ssub.s32 %s9, 1
      %s227 = smul.u32 4, %s21
      %s228 = smul.u32 2, %s23
      %p229 = scmp.lt.s32.totalorder %s20, 3
      %s230 = scalar_select %p229, %s20, 3
      %p231 = scmp.lt.s32.totalorder %s227, 3
      %s232 = scalar_select %p231, %s227, 3
      %p233 = scmp.lt.s32.totalorder %s228, 1
      %s234 = scalar_select %p233, %s228, 1
      %s235 = smul.addr %s232, 2
      %s236 = sadd.s32 %s234, %s235
      %s237 = smul.addr %s230, 8
      %s238 = sadd.s32 %s236, %s237
      %s239 = smul.addr %s238, 4
      %s240 = scalar_lea.vmem %s0, %s239
      %p241 = pneg %p65
      %p242 = pneg %p62
      %s243 = smul.u32 32, %s23
      %p244 = scmp.lt.s32.totalorder %s20, 3
      %s245 = scalar_select %p244, %s20, 3
      %p246 = scmp.lt.s32.totalorder %s243, 31
      %s247 = scalar_select %p246, %s243, 31
      %p248 = scmp.lt.s32.totalorder %s22, 0
      %s249 = scalar_select %p248, %s22, 0
      %s250 = sadd.s32 %s249, %s247
      %s251 = smul.addr %s245, 32
      %s252 = sadd.s32 %s250, %s251
      %s253 = smul.addr %s252, 4
      %s254 = scalar_lea.vmem %s1, %s253
      %p255 = pneg %p95
      %p256 = pneg %p92
      %s257 = smul.u32 4, %s21
      %p258 = scmp.lt.s32.totalorder %s20, 3
      %s259 = scalar_select %p258, %s20, 3
      %p260 = scmp.lt.s32.totalorder %s257, 3
      %s261 = scalar_select %p260, %s257, 3
      %s262 = smul.addr %s259, 4
      %s263 = sadd.s32 %s261, %s262
      %s264 = smul.addr %s263, 8
      %s265 = scalar_lea.vmem %s2, %s264
      %p266 = pneg %p123
      %p267 = pneg %p120
      %p268 = pneg %p153
      %p269 = pneg %p150
      %s270 = smul.u32 4, %s21
      %p271 = scmp.lt.s32.totalorder %s20, 3
      %s272 = scalar_select %p271, %s20, 3
      %p273 = scmp.lt.s32.totalorder %s270, 3
      %s274 = scalar_select %p273, %s270, 3
      %p275 = scmp.lt.s32.totalorder %s22, 0
      %s276 = scalar_select %p275, %s22, 0
      %s277 = sadd.s32 %s276, %s274
      %s278 = smul.addr %s272, 4
      %s279 = sadd.s32 %s277, %s278
      %s280 = smul.addr %s279, 4
      %s281 = scalar_lea.vmem %s3, %s280
      %s282 = smul.u32 4, %s21
      %s283 = smul.u32 2, %s23
      %p284 = scmp.lt.s32.totalorder %s20, 3
      %s285 = scalar_select %p284, %s20, 3
      %p286 = scmp.lt.s32.totalorder %s282, 3
      %s287 = scalar_select %p286, %s282, 3
      %p288 = scmp.lt.s32.totalorder %s283, 1
      %s289 = scalar_select %p288, %s283, 1
      %s290 = smul.addr %s287, 2
      %s291 = sadd.s32 %s289, %s290
      %s292 = smul.addr %s285, 8
      %s293 = sadd.s32 %s291, %s292
      %s294 = smul.addr %s293, 4
      %s295 = scalar_lea.vmem %s0, %s294
      %s296 = smul.u32 4, %s21
      %s297 = smul.u32 2, %s23
      %s298 = smul.u32 32, %s23
      %p299 = scmp.lt.s32.totalorder %s20, 3
      %s300 = scalar_select %p299, %s20, 3
      %p301 = scmp.lt.s32.totalorder %s298, 31
      %s302 = scalar_select %p301, %s298, 31
      %p303 = scmp.lt.s32.totalorder %s22, 0
      %s304 = scalar_select %p303, %s22, 0
      %s305 = sadd.s32 %s304, %s302
      %s306 = smul.addr %s300, 32
      %s307 = sadd.s32 %s305, %s306
      %s308 = smul.addr %s307, 4
      %s309 = scalar_lea.vmem %s1, %s308
      %s310 = smul.u32 32, %s23
      %s311 = smul.u32 4, %s21
      %p312 = scmp.lt.s32.totalorder %s20, 3
      %s313 = scalar_select %p312, %s20, 3
      %p314 = scmp.lt.s32.totalorder %s311, 3
      %s315 = scalar_select %p314, %s311, 3
      %s316 = smul.addr %s313, 4
      %s317 = sadd.s32 %s315, %s316
      %s318 = smul.addr %s317, 8
      %s319 = scalar_lea.vmem %s2, %s318
      %s320 = smul.u32 4, %s21
      %s321 = smul.u32 4, %s21
      %p322 = scmp.lt.s32.totalorder %s20, 3
      %s323 = scalar_select %p322, %s20, 3
      %p324 = scmp.lt.s32.totalorder %s321, 3
      %s325 = scalar_select %p324, %s321, 3
      %p326 = scmp.lt.s32.totalorder %s22, 0
      %s327 = scalar_select %p326, %s22, 0
      %s328 = sadd.s32 %s327, %s325
      %s329 = smul.addr %s323, 4
      %s330 = sadd.s32 %s328, %s329
      %s331 = smul.addr %s330, 4
      %s332 = scalar_lea.vmem %s3, %s331
      %s333 = smul.u32 4, %s21
      %p334 = scmp.eq.s32.totalorder %s23, 0
      // Predicated region
      $region33: #{lazy_vae_forward.10} parent=31 // pred_check
        %p335 = pneg %p334
      $region34: #{lazy_vae_forward.10} parent=31 // pred_check_branch
        %337 = sbr.rel (%p335) target = $region36
      $region35: #{lazy_vae_forward.10} parent=31 // pred_region
        %338 = vst [vmem:[#allocation2] sm:$0xff] 0.0
        %339 = vst [vmem:[#allocation2 + $0x8] sm:$0xff] 0.0
        %340 = vst [vmem:[#allocation2 + $0x10] sm:$0xff] 0.0
        %341 = vst [vmem:[#allocation2 + $0x18] sm:$0xff] 0.0
      $region36: #{lazy_vae_forward.10} parent=31 // pred_fallthru
        _
      %v342 = vld [vmem:[#allocation2] sm:$0xff]
      %v343 = vld [vmem:[#allocation2 + $0x8] sm:$0xff]
      %v344 = vld [vmem:[#allocation2 + $0x10] sm:$0xff]
      %v345 = vld [vmem:[#allocation2 + $0x18] sm:$0xff]
      %v346 = vld [vmem:[%s295] sm:$0xff]
      %v347 = vld [vmem:[%s295 + $0x8] sm:$0xff]
      %v348 = vld [vmem:[%s295 + $0x10] sm:$0xff]
      %v349 = vld [vmem:[%s295 + $0x18] sm:$0xff]
      %v350 = vld [vmem:[%s309] sm:$0xf]
      %v351 = vld [vmem:[%s309 + $0x4] sm:$0xf]
      %v352 = vld [vmem:[%s309 + $0x8] sm:$0xf]
      %v353 = vld [vmem:[%s309 + $0xc] sm:$0xf]
      %v354 = vld [vmem:[%s309 + $0x10] sm:$0xf]
      %v355 = vld [vmem:[%s309 + $0x14] sm:$0xf]
      %v356 = vld [vmem:[%s309 + $0x18] sm:$0xf]
      %v357 = vld [vmem:[%s309 + $0x1c] sm:$0xf]
      %v358 = vld [vmem:[%s309 + $0x20] sm:$0xf]
      %v359 = vld [vmem:[%s309 + $0x24] sm:$0xf]
      %v360 = vld [vmem:[%s309 + $0x28] sm:$0xf]
      %v361 = vld [vmem:[%s309 + $0x2c] sm:$0xf]
      %v362 = vld [vmem:[%s309 + $0x30] sm:$0xf]
      %v363 = vld [vmem:[%s309 + $0x34] sm:$0xf]
      %v364 = vld [vmem:[%s309 + $0x38] sm:$0xf]
      %v365 = vld [vmem:[%s309 + $0x3c] sm:$0xf]
      %v366 = vld [vmem:[%s309 + $0x40] sm:$0xf]
      %v367 = vld [vmem:[%s309 + $0x44] sm:$0xf]
      %v368 = vld [vmem:[%s309 + $0x48] sm:$0xf]
      %v369 = vld [vmem:[%s309 + $0x4c] sm:$0xf]
      %v370 = vld [vmem:[%s309 + $0x50] sm:$0xf]
      %v371 = vld [vmem:[%s309 + $0x54] sm:$0xf]
      %v372 = vld [vmem:[%s309 + $0x58] sm:$0xf]
      %v373 = vld [vmem:[%s309 + $0x5c] sm:$0xf]
      %v374 = vld [vmem:[%s309 + $0x60] sm:$0xf]
      %v375 = vld [vmem:[%s309 + $0x64] sm:$0xf]
      %v376 = vld [vmem:[%s309 + $0x68] sm:$0xf]
      %v377 = vld [vmem:[%s309 + $0x6c] sm:$0xf]
      %v378 = vld [vmem:[%s309 + $0x70] sm:$0xf]
      %v379 = vld [vmem:[%s309 + $0x74] sm:$0xf]
      %v380 = vld [vmem:[%s309 + $0x78] sm:$0xf]
      %v381 = vld [vmem:[%s309 + $0x7c] sm:$0xf]
      %v386 = vunpack.c.l.b16 %v346
      %v387 = vunpack.c.h.b16 %v346
      %v388 = vunpack.c.l.b16 %v347
      %v389 = vunpack.c.h.b16 %v347
      %v390 = vunpack.c.l.b16 %v348
      %v391 = vunpack.c.h.b16 %v348
      %v392 = vunpack.c.l.b16 %v349
      %v393 = vunpack.c.h.b16 %v349
      %v394 = vpack.c.b16 %v388, %v386
      %v395 = vpack.c.b16 %v389, %v387
      %v396 = vpack.c.b16 %v392, %v390
      %v397 = vpack.c.b16 %v393, %v391
      %v434 = vunpack.c.l.b16 %v350
      %v435 = vunpack.c.l.b16 %v351
      %v436 = vunpack.c.l.b16 %v352
      %v437 = vunpack.c.l.b16 %v353
      %v438 = vunpack.c.l.b16 %v354
      %v439 = vunpack.c.l.b16 %v355
      %v440 = vunpack.c.l.b16 %v356
      %v441 = vunpack.c.l.b16 %v357
      %v442 = vunpack.c.l.b16 %v358
      %v443 = vunpack.c.l.b16 %v359
      %v444 = vunpack.c.l.b16 %v360
      %v445 = vunpack.c.l.b16 %v361
      %v446 = vunpack.c.l.b16 %v362
      %v447 = vunpack.c.l.b16 %v363
      %v448 = vunpack.c.l.b16 %v364
      %v449 = vunpack.c.l.b16 %v365
      %v450 = vunpack.c.l.b16 %v366
      %v451 = vunpack.c.l.b16 %v367
      %v452 = vunpack.c.l.b16 %v368
      %v453 = vunpack.c.l.b16 %v369
      %v454 = vunpack.c.l.b16 %v370
      %v455 = vunpack.c.l.b16 %v371
      %v456 = vunpack.c.l.b16 %v372
      %v457 = vunpack.c.l.b16 %v373
      %v458 = vunpack.c.l.b16 %v374
      %v459 = vunpack.c.l.b16 %v375
      %v460 = vunpack.c.l.b16 %v376
      %v461 = vunpack.c.l.b16 %v377
      %v462 = vunpack.c.l.b16 %v378
      %v463 = vunpack.c.l.b16 %v379
      %v464 = vunpack.c.l.b16 %v380
      %v465 = vunpack.c.l.b16 %v381
      %v466 = vpack.c.b16 %v435, %v434
      %v467 = vpack.c.b16 %v437, %v436
      %v468 = vpack.c.b16 %v439, %v438
      %v469 = vpack.c.b16 %v441, %v440
      %v470 = vpack.c.b16 %v443, %v442
      %v471 = vpack.c.b16 %v445, %v444
      %v472 = vpack.c.b16 %v447, %v446
      %v473 = vpack.c.b16 %v449, %v448
      %v474 = vpack.c.b16 %v451, %v450
      %v475 = vpack.c.b16 %v453, %v452
      %v476 = vpack.c.b16 %v455, %v454
      %v477 = vpack.c.b16 %v457, %v456
      %v478 = vpack.c.b16 %v459, %v458
      %v479 = vpack.c.b16 %v461, %v460
      %v480 = vpack.c.b16 %v463, %v462
      %v481 = vpack.c.b16 %v465, %v464
      %498 = vmatpush.bf16.msra.mxu0 %v473
      %499 = vmatpush.bf16.msra.mxu0 %v472
      %500 = vmatpush.bf16.msra.mxu0 %v471
      %501 = vmatpush.bf16.msra.mxu0 %v470
      %502 = vmatpush.bf16.msra.mxu0 %v469
      %503 = vmatpush.bf16.msra.mxu0 %v468
      %504 = vmatpush.bf16.msra.mxu0 %v467
      %505 = vmatpush.bf16.msra.mxu0 %v466
      %506 = vmatmul.bf16.gmra.mxu0 %v394
      %v507 = vpop.f32.mrf.mxu0
      %v508 = vadd.f32 0.0, %v507
      %v509 = vpop.f32.mrf.mxu0
      %v510 = vadd.f32 0.0, %v509
      %511 = vmatmul.bf16.gmra.mxu0 %v396
      %v512 = vpop.f32.mrf.mxu0
      %v513 = vadd.f32 0.0, %v512
      %v514 = vpop.f32.mrf.mxu0
      %v515 = vadd.f32 0.0, %v514
      %516 = vdwg.mxu0
      %517 = vmatpush.bf16.msra.mxu0 %v481
      %518 = vmatpush.bf16.msra.mxu0 %v480
      %519 = vmatpush.bf16.msra.mxu0 %v479
      %520 = vmatpush.bf16.msra.mxu0 %v478
      %521 = vmatpush.bf16.msra.mxu0 %v477
      %522 = vmatpush.bf16.msra.mxu0 %v476
      %523 = vmatpush.bf16.msra.mxu0 %v475
      %524 = vmatpush.bf16.msra.mxu0 %v474
      %525 = vmatmul.bf16.gmra.mxu0 %v395
      %v526 = vpop.f32.mrf.mxu0
      %v527 = vadd.f32 %v508, %v526
      %v528 = vpop.f32.mrf.mxu0
      %v529 = vadd.f32 %v510, %v528
      %530 = vmatmul.bf16.gmra.mxu0 %v397
      %v531 = vpop.f32.mrf.mxu0
      %v532 = vadd.f32 %v513, %v531
      %v533 = vpop.f32.mrf.mxu0
      %v534 = vadd.f32 %v515, %v533
      %535 = vdwg.mxu0
      %v536 = vadd.f32 %v342, %v527
      %v537 = vadd.f32 %v343, %v529
      %v538 = vadd.f32 %v344, %v532
      %v539 = vadd.f32 %v345, %v534
      %540 = vst [vmem:[#allocation2] sm:$0xff] %v536
      %541 = vst [vmem:[#allocation2 + $0x8] sm:$0xff] %v537
      %542 = vst [vmem:[#allocation2 + $0x10] sm:$0xff] %v538
      %543 = vst [vmem:[#allocation2 + $0x18] sm:$0xff] %v539
      // Predicated region
      $region37: #{lazy_vae_forward.10} parent=31 // pred_check
        %p544 = pneg %p334
      $region38: #{lazy_vae_forward.10} parent=31 // pred_check_branch
        %546 = sbr.rel (%p544) target = $region40
      $region39: #{lazy_vae_forward.10} parent=31 // pred_region
        %v547 = vld [vmem:[#allocation2] sm:$0xff]
        %v548 = vld [vmem:[#allocation2 + $0x8] sm:$0xff]
        %v549 = vld [vmem:[#allocation2 + $0x10] sm:$0xff]
        %v550 = vld [vmem:[#allocation2 + $0x18] sm:$0xff]
        %v551 = vld [vmem:[%s319] sm:$0xff]
        %v552 = vld [vmem:[%s319 + $0x8] sm:$0xff]
        %v553 = vld [vmem:[%s319 + $0x10] sm:$0xff]
        %v554 = vld [vmem:[%s319 + $0x18] sm:$0xff]
        %556 = vset.pattern.permute.xlu0 0
        %557 = vperm.xlu0 %556, %v551
        %v558 = vpop.permute.xlu0 %557
        %561 = vset.pattern.permute.xlu0 0
        %562 = vperm.xlu0 %561, %v552
        %v563 = vpop.permute.xlu0 %562
        %566 = vset.pattern.permute.xlu0 0
        %567 = vperm.xlu0 %566, %v553
        %v568 = vpop.permute.xlu0 %567
        %571 = vset.pattern.permute.xlu0 0
        %572 = vperm.xlu0 %571, %v554
        %v573 = vpop.permute.xlu0 %572
        %v575 = vadd.f32 %v547, %v558
        %v576 = vadd.f32 %v548, %v563
        %v577 = vadd.f32 %v549, %v568
        %v578 = vadd.f32 %v550, %v573
        %v579 = vmax.f32 %v575, 0.0
        %v580 = vmax.f32 %v576, 0.0
        %v581 = vmax.f32 %v577, 0.0
        %v582 = vmax.f32 %v578, 0.0
        %v583 = vpack.c.bf16 %v579, %v579
        %v584 = vpack.c.bf16 %v580, %v580
        %v585 = vpack.c.bf16 %v581, %v581
        %v586 = vpack.c.bf16 %v582, %v582
        %587 = vst [vmem:[%s332] sm:$0xf] %v583
        %588 = vst [vmem:[%s332 + $0x4] sm:$0xf] %v584
        %589 = vst [vmem:[%s332 + $0x8] sm:$0xf] %v585
        %590 = vst [vmem:[%s332 + $0xc] sm:$0xf] %v586
      $region40: #{lazy_vae_forward.10} parent=31 // pred_fallthru
        _
      %s591 = smul.u32 4, %s21
      %p592 = scmp.lt.s32.totalorder %s20, 3
      %s593 = scalar_select %p592, %s20, 3
      %p594 = scmp.lt.s32.totalorder %s591, 3
      %s595 = scalar_select %p594, %s591, 3
      %p596 = scmp.lt.s32.totalorder %s22, 0
      %s597 = scalar_select %p596, %s22, 0
      %s598 = sadd.s32 %s597, %s595
      %s599 = smul.addr %s593, 4
      %s600 = sadd.s32 %s598, %s599
      %s601 = smul.addr %s600, 4
      %s602 = scalar_lea.vmem %s3, %s601
      // Predicated region
      $region41: #{lazy_vae_forward.10} parent=31 // pred_check
        %p603 = pneg %p150
      $region42: #{lazy_vae_forward.10} parent=31 // pred_check_branch
        %605 = sbr.rel (%p603) target = $region44
      $region43: #{lazy_vae_forward.10} parent=31 // pred_region
        %s606 = smul.u32 4, %s21
      $region44: #{lazy_vae_forward.10} parent=31 // pred_fallthru
        _
    $region32: #{lazy_vae_forward.10} parent=5 // pred_fallthru
      _
    %p607 = scmp.le.s32.totalorder 2, %s9
    // Predicated region
    $region45: #{lazy_vae_forward.10} parent=5 // pred_check
      %p608 = pneg %p607
    $region46: #{lazy_vae_forward.10} parent=5 // pred_check_branch
      %610 = sbr.rel (%p608) target = $region48
    $region47: #{lazy_vae_forward.10} parent=5 // pred_region
      %s611 = ssub.s32 %s9, 2
      // Predicated region
      $region49: #{lazy_vae_forward.10} parent=47 // pred_check
        %p612 = pneg %p156
      $region50: #{lazy_vae_forward.10} parent=47 // pred_check_branch
        %614 = sbr.rel (%p612) target = $region52
      $region51: #{lazy_vae_forward.10} parent=47 // pred_region
        %s615 = smul.u32 4, %s25
        %p616 = scmp.lt.s32.totalorder %s24, 3
        %s617 = scalar_select %p616, %s24, 3
        %p618 = scmp.lt.s32.totalorder %s615, 3
        %s619 = scalar_select %p618, %s615, 3
        %p620 = scmp.lt.s32.totalorder %s26, 0
        %s621 = scalar_select %p620, %s26, 0
        %s622 = sadd.s32 %s621, %s619
        %s623 = smul.addr %s617, 4
        %s624 = sadd.s32 %s622, %s623
        %s625 = smul.addr %s624, 4
        %s626 = scalar_lea.vmem %s3, %s625
      $region52: #{lazy_vae_forward.10} parent=47 // pred_fallthru
        _
    $region48: #{lazy_vae_forward.10} parent=5 // pred_fallthru
      _
  $region6: #{lazy_vae_forward.10} parent=0 // loop_footer
    %s13 = sadd.s32 1, %s9
  $region7: #{lazy_vae_forward.10} parent=0 // loop_footer_branch
    %8 = sbr.rel target = $region3
  $region8: #{lazy_vae_forward.10} parent=0 // loop_exit
    _

// kernel: lazy_vae_forward.11
$region0: #{lazy_vae_forward.11}
  #allocation0 [shape = 'u32[]', space=smem, size = 0x4, offset = 0x4, fixed_abs, tag = 'smem constant byte address 0x4 - core index']
  #allocation1 [shape = 'u32[72,128]{1,0:T(1,128)}', space=vmem, size = 0x9000, scoped, tag = 'internal scratch']
  #allocation2 [shape = 'f32[8,512]{1,0:T(8,128)}', space=vmem, size = 0x4000, scoped, tag = 'scratch operand']
  %s0 = inlined_call_operand.vmem [shape: bf16[4,8,128], index: 0, kind: input, shape index: {}]
  %s1 = inlined_call_operand.vmem [shape: bf16[4,128,512], index: 1, kind: input, shape index: {}]
  %s2 = inlined_call_operand.vmem [shape: f32[4,8,1], index: 2, kind: input, shape index: {}]
  %s3 = inlined_call_operand.vmem [shape: f32[4,8,512], index: 3, kind: output, shape index: {}]
  %s4 = sld [smem:[#allocation0]]
  $region53: #{lazy_vae_forward.11} parent=0
    _
  %s6 = ssub.s32 1, %s4
  %s7 = scalar_select 0, %s6, %s4
  loop: start=0, step=1, limit=6
  $region2: #{lazy_vae_forward.11} parent=0 // loop_pre_header
    _
  $region3: #{lazy_vae_forward.11} parent=0 // loop_header
    %s9 = sphi 0, %s13
    %p10 = scmp.ge.s32.totalorder %s9, 6
    %s16 = sphi 0, %s42
    %s17 = sphi 0, %s38
    %s18 = sphi 0, %s34
    %s19 = sphi 0, %s30
    %s20 = sphi 0, %s16
    %s21 = sphi 0, %s17
    %s22 = sphi 0, %s18
    %s23 = sphi 0, %s19
    %s24 = sphi 0, %s20
    %s25 = sphi 0, %s21
    %s26 = sphi 0, %s22
    %s27 = sphi 0, %s23
    %s49 = sphi 0, %s51
    %s52 = sphi 0, %s49
    %s53 = sphi 0, %s52
    %s69 = sphi 0, %s53
    %s79 = sphi 0, %s81
    %s82 = sphi 0, %s79
    %s83 = sphi 0, %s82
    %s99 = sphi 0, %s83
    %s107 = sphi 0, %s109
    %s110 = sphi 0, %s107
    %s111 = sphi 0, %s110
    %s127 = sphi 0, %s111
    %s137 = sphi 0, %s139
    %s140 = sphi 0, %s137
    %s141 = sphi 0, %s140
    %s157 = sphi 0, %s141
  $region4: #{lazy_vae_forward.11} parent=0 // loop_header_branch
    %12 = sbr.rel (%p10) target = $region8
  $region5: #{lazy_vae_forward.11} parent=0 // loop_body
    %s14 = ssub.s32 %s9, 1
    %s15 = ssub.s32 %s9, 2
    %s28 = sadd.s32 1, %s19
    %p29 = scmp.ge.s32.totalorder %s28, 1
    %s30 = scalar_select %p29, 0, %s28
    %s31 = sadd.s32 1, %s18
    %s32 = scalar_select %p29, %s31, %s18
    %p33 = scmp.ge.s32.totalorder %s32, 1
    %s34 = scalar_select %p33, 0, %s32
    %s35 = sadd.s32 1, %s17
    %s36 = scalar_select %p33, %s35, %s17
    %p37 = scmp.ge.s32.totalorder %s36, 1
    %s38 = scalar_select %p37, 0, %s36
    %s39 = sadd.s32 1, %s16
    %s40 = scalar_select %p37, %s39, %s16
    %p41 = scmp.ge.s32.totalorder %s40, 4
    %s42 = scalar_select %p41, 0, %s40
    %s43 = ssub.s32 %s16, %s42
    %s44 = ssub.s32 %s17, %s38
    %s45 = sor.u32 %s43, %s44
    %s46 = ssub.s32 %s19, %s30
    %s47 = sor.u32 %s45, %s46
    %p48 = scmp.eq.s32.totalorder %s47, 0
    %s50 = sadd.s32 %s49, 1
    %s51 = scalar_select %p48, %s49, %s50
    %p54 = pneg %p48
    %p55 = scmp.eq.s32.totalorder %s9, 3
    %p56 = por %p54, %p55
    %p57 = scmp.ne.s32.totalorder %s49, %s52
    %p58 = scmp.eq.s32.totalorder %s9, 0
    %p59 = por %p57, %p58
    %p60 = scmp.ne.s32.totalorder %s49, %s52
    %p61 = scmp.eq.s32.totalorder %s14, 3
    %p62 = por %p60, %p61
    %p63 = scmp.ne.s32.totalorder %s52, %s53
    %p64 = scmp.eq.s32.totalorder %s14, 0
    %p65 = por %p63, %p64
    %p66 = scmp.ne.s32.totalorder %s52, %s53
    %p67 = scmp.eq.s32.totalorder %s15, 3
    %p68 = por %p66, %p67
    %p70 = scmp.ne.s32.totalorder %s53, %s69
    %p71 = scmp.eq.s32.totalorder %s15, 0
    %p72 = por %p70, %p71
    %s73 = ssub.s32 %s16, %s42
    %s74 = ssub.s32 %s19, %s30
    %s75 = sor.u32 %s73, %s74
    %s76 = ssub.s32 %s18, %s34
    %s77 = sor.u32 %s75, %s76
    %p78 = scmp.eq.s32.totalorder %s77, 0
    %s80 = sadd.s32 %s79, 1
    %s81 = scalar_select %p78, %s79, %s80
    %p84 = pneg %p78
    %p85 = scmp.eq.s32.totalorder %s9, 3
    %p86 = por %p84, %p85
    %p87 = scmp.ne.s32.totalorder %s79, %s82
    %p88 = scmp.eq.s32.totalorder %s9, 0
    %p89 = por %p87, %p88
    %p90 = scmp.ne.s32.totalorder %s79, %s82
    %p91 = scmp.eq.s32.totalorder %s14, 3
    %p92 = por %p90, %p91
    %p93 = scmp.ne.s32.totalorder %s82, %s83
    %p94 = scmp.eq.s32.totalorder %s14, 0
    %p95 = por %p93, %p94
    %p96 = scmp.ne.s32.totalorder %s82, %s83
    %p97 = scmp.eq.s32.totalorder %s15, 3
    %p98 = por %p96, %p97
    %p100 = scmp.ne.s32.totalorder %s83, %s99
    %p101 = scmp.eq.s32.totalorder %s15, 0
    %p102 = por %p100, %p101
    %s103 = ssub.s32 %s16, %s42
    %s104 = ssub.s32 %s17, %s38
    %s105 = sor.u32 %s103, %s104
    %p106 = scmp.eq.s32.totalorder %s105, 0
    %s108 = sadd.s32 %s107, 1
    %s109 = scalar_select %p106, %s107, %s108
    %p112 = pneg %p106
    %p113 = scmp.eq.s32.totalorder %s9, 3
    %p114 = por %p112, %p113
    %p115 = scmp.ne.s32.totalorder %s107, %s110
    %p116 = scmp.eq.s32.totalorder %s9, 0
    %p117 = por %p115, %p116
    %p118 = scmp.ne.s32.totalorder %s107, %s110
    %p119 = scmp.eq.s32.totalorder %s14, 3
    %p120 = por %p118, %p119
    %p121 = scmp.ne.s32.totalorder %s110, %s111
    %p122 = scmp.eq.s32.totalorder %s14, 0
    %p123 = por %p121, %p122
    %p124 = scmp.ne.s32.totalorder %s110, %s111
    %p125 = scmp.eq.s32.totalorder %s15, 3
    %p126 = por %p124, %p125
    %p128 = scmp.ne.s32.totalorder %s111, %s127
    %p129 = scmp.eq.s32.totalorder %s15, 0
    %p130 = por %p128, %p129
    %s131 = ssub.s32 %s16, %s42
    %s132 = ssub.s32 %s17, %s38
    %s133 = sor.u32 %s131, %s132
    %s134 = ssub.s32 %s18, %s34
    %s135 = sor.u32 %s133, %s134
    %p136 = scmp.eq.s32.totalorder %s135, 0
    %s138 = sadd.s32 %s137, 1
    %s139 = scalar_select %p136, %s137, %s138
    %p142 = pneg %p136
    %p143 = scmp.eq.s32.totalorder %s9, 3
    %p144 = por %p142, %p143
    %p145 = scmp.ne.s32.totalorder %s137, %s140
    %p146 = scmp.eq.s32.totalorder %s9, 0
    %p147 = por %p145, %p146
    %p148 = scmp.ne.s32.totalorder %s137, %s140
    %p149 = scmp.eq.s32.totalorder %s14, 3
    %p150 = por %p148, %p149
    %p151 = scmp.ne.s32.totalorder %s140, %s141
    %p152 = scmp.eq.s32.totalorder %s14, 0
    %p153 = por %p151, %p152
    %p154 = scmp.ne.s32.totalorder %s140, %s141
    %p155 = scmp.eq.s32.totalorder %s15, 3
    %p156 = por %p154, %p155
    %p158 = scmp.ne.s32.totalorder %s141, %s157
    %p159 = scmp.eq.s32.totalorder %s15, 0
    %p160 = por %p158, %p159
    %p161 = scmp.le.s32.totalorder 1, %s9
    %p162 = scmp.lt.s32.totalorder %s9, 5
    %p163 = pnand %p161, %p162
    %p164 = pneg %p163
    // Predicated region
    $region9: #{lazy_vae_forward.11} parent=5 // pred_check
      _
    $region10: #{lazy_vae_forward.11} parent=5 // pred_check_branch
      %166 = sbr.rel (%p163) target = $region12
    $region11: #{lazy_vae_forward.11} parent=5 // pred_region
      %s167 = ssub.s32 %s9, 1
    $region12: #{lazy_vae_forward.11} parent=5 // pred_fallthru
      _
    %p168 = scmp.lt.s32.totalorder %s9, 4
    // Predicated region
    $region13: #{lazy_vae_forward.11} parent=5 // pred_check
      %p169 = pneg %p168
    $region14: #{lazy_vae_forward.11} parent=5 // pred_check_branch
      %171 = sbr.rel (%p169) target = $region16
    $region15: #{lazy_vae_forward.11} parent=5 // pred_region
      // Predicated region
      $region17: #{lazy_vae_forward.11} parent=15 // pred_check
        %p172 = pneg %p59
      $region18: #{lazy_vae_forward.11} parent=15 // pred_check_branch
        %174 = sbr.rel (%p172) target = $region20
      $region19: #{lazy_vae_forward.11} parent=15 // pred_region
        %p175 = scmp.lt.s32.totalorder %s16, 3
        %s176 = scalar_select %p175, %s16, 3
        %p177 = scmp.lt.s32.totalorder %s17, 0
        %s178 = scalar_select %p177, %s17, 0
        %p179 = scmp.lt.s32.totalorder %s19, 0
        %s180 = scalar_select %p179, %s19, 0
        %s181 = sadd.s32 %s180, %s178
        %s182 = sadd.s32 %s181, %s176
        %s183 = smul.addr %s182, 4
        %s184 = scalar_lea.vmem %s0, %s183
      $region20: #{lazy_vae_forward.11} parent=15 // pred_fallthru
        _
      // Predicated region
      $region21: #{lazy_vae_forward.11} parent=15 // pred_check
        %p185 = pneg %p89
      $region22: #{lazy_vae_forward.11} parent=15 // pred_check_branch
        %187 = sbr.rel (%p185) target = $region24
      $region23: #{lazy_vae_forward.11} parent=15 // pred_region
        %s188 = smul.u32 16, %s19
        %s189 = smul.u32 4, %s18
        %p190 = scmp.lt.s32.totalorder %s16, 3
        %s191 = scalar_select %p190, %s16, 3
        %p192 = scmp.lt.s32.totalorder %s188, 15
        %s193 = scalar_select %p192, %s188, 15
        %p194 = scmp.lt.s32.totalorder %s189, 3
        %s195 = scalar_select %p194, %s189, 3
        %s196 = smul.addr %s193, 4
        %s197 = sadd.s32 %s195, %s196
        %s198 = smul.addr %s191, 64
        %s199 = sadd.s32 %s197, %s198
        %s200 = smul.addr %s199, 4
        %s201 = scalar_lea.vmem %s1, %s200
        %s202 = smul.u32 16, %s19
        %s203 = smul.u32 4, %s18
      $region24: #{lazy_vae_forward.11} parent=15 // pred_fallthru
        _
      // Predicated region
      $region25: #{lazy_vae_forward.11} parent=15 // pred_check
        %p204 = pneg %p117
      $region26: #{lazy_vae_forward.11} parent=15 // pred_check_branch
        %206 = sbr.rel (%p204) target = $region28
      $region27: #{lazy_vae_forward.11} parent=15 // pred_region
        %p207 = scmp.lt.s32.totalorder %s16, 3
        %s208 = scalar_select %p207, %s16, 3
        %p209 = scmp.lt.s32.totalorder %s17, 0
        %s210 = scalar_select %p209, %s17, 0
        %s211 = sadd.s32 %s210, %s208
        %s212 = smul.addr %s211, 8
        %s213 = scalar_lea.vmem %s2, %s212
      $region28: #{lazy_vae_forward.11} parent=15 // pred_fallthru
        _
    $region16: #{lazy_vae_forward.11} parent=5 // pred_fallthru
      _
    %p214 = scmp.le.s32.totalorder 1, %s9
    %p215 = scmp.lt.s32.totalorder %s9, 5
    %p216 = pnand %p214, %p215
    %p217 = pneg %p216
    // Predicated region
    $region29: #{lazy_vae_forward.11} parent=5 // pred_check
      _
    $region30: #{lazy_vae_forward.11} parent=5 // pred_check_branch
      %219 = sbr.rel (%p216) target = $region32
    $region31: #{lazy_vae_forward.11} parent=5 // pred_region
      %s220 = ssub.s32 %s9, 1
      %p221 = scmp.lt.s32.totalorder %s20, 3
      %s222 = scalar_select %p221, %s20, 3
      %p223 = scmp.lt.s32.totalorder %s21, 0
      %s224 = scalar_select %p223, %s21, 0
      %p225 = scmp.lt.s32.totalorder %s23, 0
      %s226 = scalar_select %p225, %s23, 0
      %s227 = sadd.s32 %s226, %s224
      %s228 = sadd.s32 %s227, %s222
      %s229 = smul.addr %s228, 4
      %s230 = scalar_lea.vmem %s0, %s229
      %p231 = pneg %p65
      %p232 = pneg %p62
      %s233 = smul.u32 16, %s23
      %s234 = smul.u32 4, %s22
      %p235 = scmp.lt.s32.totalorder %s20, 3
      %s236 = scalar_select %p235, %s20, 3
      %p237 = scmp.lt.s32.totalorder %s233, 15
      %s238 = scalar_select %p237, %s233, 15
      %p239 = scmp.lt.s32.totalorder %s234, 3
      %s240 = scalar_select %p239, %s234, 3
      %s241 = smul.addr %s238, 4
      %s242 = sadd.s32 %s240, %s241
      %s243 = smul.addr %s236, 64
      %s244 = sadd.s32 %s242, %s243
      %s245 = smul.addr %s244, 4
      %s246 = scalar_lea.vmem %s1, %s245
      %p247 = pneg %p95
      %p248 = pneg %p92
      %p249 = scmp.lt.s32.totalorder %s20, 3
      %s250 = scalar_select %p249, %s20, 3
      %p251 = scmp.lt.s32.totalorder %s21, 0
      %s252 = scalar_select %p251, %s21, 0
      %s253 = sadd.s32 %s252, %s250
      %s254 = smul.addr %s253, 8
      %s255 = scalar_lea.vmem %s2, %s254
      %p256 = pneg %p123
      %p257 = pneg %p120
      %p258 = pneg %p153
      %p259 = pneg %p150
      %s260 = smul.u32 4, %s22
      %p261 = scmp.lt.s32.totalorder %s20, 3
      %s262 = scalar_select %p261, %s20, 3
      %p263 = scmp.lt.s32.totalorder %s21, 0
      %s264 = scalar_select %p263, %s21, 0
      %p265 = scmp.lt.s32.totalorder %s260, 3
      %s266 = scalar_select %p265, %s260, 3
      %s267 = smul.addr %s264, 4
      %s268 = sadd.s32 %s266, %s267
      %s269 = smul.addr %s262, 4
      %s270 = sadd.s32 %s268, %s269
      %s271 = smul.addr %s270, 8
      %s272 = scalar_lea.vmem %s3, %s271
      %p273 = scmp.lt.s32.totalorder %s20, 3
      %s274 = scalar_select %p273, %s20, 3
      %p275 = scmp.lt.s32.totalorder %s21, 0
      %s276 = scalar_select %p275, %s21, 0
      %p277 = scmp.lt.s32.totalorder %s23, 0
      %s278 = scalar_select %p277, %s23, 0
      %s279 = sadd.s32 %s278, %s276
      %s280 = sadd.s32 %s279, %s274
      %s281 = smul.addr %s280, 4
      %s282 = scalar_lea.vmem %s0, %s281
      %s283 = smul.u32 16, %s23
      %s284 = smul.u32 4, %s22
      %p285 = scmp.lt.s32.totalorder %s20, 3
      %s286 = scalar_select %p285, %s20, 3
      %p287 = scmp.lt.s32.totalorder %s283, 15
      %s288 = scalar_select %p287, %s283, 15
      %p289 = scmp.lt.s32.totalorder %s284, 3
      %s290 = scalar_select %p289, %s284, 3
      %s291 = smul.addr %s288, 4
      %s292 = sadd.s32 %s290, %s291
      %s293 = smul.addr %s286, 64
      %s294 = sadd.s32 %s292, %s293
      %s295 = smul.addr %s294, 4
      %s296 = scalar_lea.vmem %s1, %s295
      %s297 = smul.u32 16, %s23
      %s298 = smul.u32 4, %s22
      %p299 = scmp.lt.s32.totalorder %s20, 3
      %s300 = scalar_select %p299, %s20, 3
      %p301 = scmp.lt.s32.totalorder %s21, 0
      %s302 = scalar_select %p301, %s21, 0
      %s303 = sadd.s32 %s302, %s300
      %s304 = smul.addr %s303, 8
      %s305 = scalar_lea.vmem %s2, %s304
      %s306 = smul.u32 4, %s22
      %p307 = scmp.lt.s32.totalorder %s20, 3
      %s308 = scalar_select %p307, %s20, 3
      %p309 = scmp.lt.s32.totalorder %s21, 0
      %s310 = scalar_select %p309, %s21, 0
      %p311 = scmp.lt.s32.totalorder %s306, 3
      %s312 = scalar_select %p311, %s306, 3
      %s313 = smul.addr %s310, 4
      %s314 = sadd.s32 %s312, %s313
      %s315 = smul.addr %s308, 4
      %s316 = sadd.s32 %s314, %s315
      %s317 = smul.addr %s316, 8
      %s318 = scalar_lea.vmem %s3, %s317
      %s319 = smul.u32 4, %s22
      %p320 = scmp.eq.s32.totalorder %s23, 0
      // Predicated region
      $region33: #{lazy_vae_forward.11} parent=31 // pred_check
        %p321 = pneg %p320
      $region34: #{lazy_vae_forward.11} parent=31 // pred_check_branch
        %323 = sbr.rel (%p321) target = $region36
      $region35: #{lazy_vae_forward.11} parent=31 // pred_region
        %324 = vst [vmem:[#allocation2] sm:$0xff] 0.0
        %325 = vst [vmem:[#allocation2 + $0x8] sm:$0xff] 0.0
        %326 = vst [vmem:[#allocation2 + $0x10] sm:$0xff] 0.0
        %327 = vst [vmem:[#allocation2 + $0x18] sm:$0xff] 0.0
      $region36: #{lazy_vae_forward.11} parent=31 // pred_fallthru
        _
      %v328 = vld [vmem:[#allocation2] sm:$0xff]
      %v329 = vld [vmem:[#allocation2 + $0x8] sm:$0xff]
      %v330 = vld [vmem:[#allocation2 + $0x10] sm:$0xff]
      %v331 = vld [vmem:[#allocation2 + $0x18] sm:$0xff]
      %v332 = vld [vmem:[%s282] sm:$0xf]
      %v333 = vld [vmem:[%s296] sm:$0xff]
      %v334 = vld [vmem:[%s296 + $0x8] sm:$0xff]
      %v335 = vld [vmem:[%s296 + $0x10] sm:$0xff]
      %v336 = vld [vmem:[%s296 + $0x18] sm:$0xff]
      %v337 = vld [vmem:[%s296 + $0x20] sm:$0xff]
      %v338 = vld [vmem:[%s296 + $0x28] sm:$0xff]
      %v339 = vld [vmem:[%s296 + $0x30] sm:$0xff]
      %v340 = vld [vmem:[%s296 + $0x38] sm:$0xff]
      %v341 = vld [vmem:[%s296 + $0x40] sm:$0xff]
      %v342 = vld [vmem:[%s296 + $0x48] sm:$0xff]
      %v343 = vld [vmem:[%s296 + $0x50] sm:$0xff]
      %v344 = vld [vmem:[%s296 + $0x58] sm:$0xff]
      %v345 = vld [vmem:[%s296 + $0x60] sm:$0xff]
      %v346 = vld [vmem:[%s296 + $0x68] sm:$0xff]
      %v347 = vld [vmem:[%s296 + $0x70] sm:$0xff]
      %v348 = vld [vmem:[%s296 + $0x78] sm:$0xff]
      %v349 = vld [vmem:[%s296 + $0x80] sm:$0xff]
      %v350 = vld [vmem:[%s296 + $0x88] sm:$0xff]
      %v351 = vld [vmem:[%s296 + $0x90] sm:$0xff]
      %v352 = vld [vmem:[%s296 + $0x98] sm:$0xff]
      %v353 = vld [vmem:[%s296 + $0xa0] sm:$0xff]
      %v354 = vld [vmem:[%s296 + $0xa8] sm:$0xff]
      %v355 = vld [vmem:[%s296 + $0xb0] sm:$0xff]
      %v356 = vld [vmem:[%s296 + $0xb8] sm:$0xff]
      %v357 = vld [vmem:[%s296 + $0xc0] sm:$0xff]
      %v358 = vld [vmem:[%s296 + $0xc8] sm:$0xff]
      %v359 = vld [vmem:[%s296 + $0xd0] sm:$0xff]
      %v360 = vld [vmem:[%s296 + $0xd8] sm:$0xff]
      %v361 = vld [vmem:[%s296 + $0xe0] sm:$0xff]
      %v362 = vld [vmem:[%s296 + $0xe8] sm:$0xff]
      %v363 = vld [vmem:[%s296 + $0xf0] sm:$0xff]
      %v364 = vld [vmem:[%s296 + $0xf8] sm:$0xff]
      %v397 = vunpack.c.l.b16 %v333
      %v398 = vunpack.c.h.b16 %v333
      %v399 = vunpack.c.l.b16 %v334
      %v400 = vunpack.c.h.b16 %v334
      %v401 = vunpack.c.l.b16 %v335
      %v402 = vunpack.c.h.b16 %v335
      %v403 = vunpack.c.l.b16 %v336
      %v404 = vunpack.c.h.b16 %v336
      %v405 = vunpack.c.l.b16 %v337
      %v406 = vunpack.c.h.b16 %v337
      %v407 = vunpack.c.l.b16 %v338
      %v408 = vunpack.c.h.b16 %v338
      %v409 = vunpack.c.l.b16 %v339
      %v410 = vunpack.c.h.b16 %v339
      %v411 = vunpack.c.l.b16 %v340
      %v412 = vunpack.c.h.b16 %v340
      %v413 = vunpack.c.l.b16 %v341
      %v414 = vunpack.c.h.b16 %v341
      %v415 = vunpack.c.l.b16 %v342
      %v416 = vunpack.c.h.b16 %v342
      %v417 = vunpack.c.l.b16 %v343
      %v418 = vunpack.c.h.b16 %v343
      %v419 = vunpack.c.l.b16 %v344
      %v420 = vunpack.c.h.b16 %v344
      %v421 = vunpack.c.l.b16 %v345
      %v422 = vunpack.c.h.b16 %v345
      %v423 = vunpack.c.l.b16 %v346
      %v424 = vunpack.c.h.b16 %v346
      %v425 = vunpack.c.l.b16 %v347
      %v426 = vunpack.c.h.b16 %v347
      %v427 = vunpack.c.l.b16 %v348
      %v428 = vunpack.c.h.b16 %v348
      %v429 = vunpack.c.l.b16 %v349
      %v430 = vunpack.c.h.b16 %v349
      %v431 = vunpack.c.l.b16 %v350
      %v432 = vunpack.c.h.b16 %v350
      %v433 = vunpack.c.l.b16 %v351
      %v434 = vunpack.c.h.b16 %v351
      %v435 = vunpack.c.l.b16 %v352
      %v436 = vunpack.c.h.b16 %v352
      %v437 = vunpack.c.l.b16 %v353
      %v438 = vunpack.c.h.b16 %v353
      %v439 = vunpack.c.l.b16 %v354
      %v440 = vunpack.c.h.b16 %v354
      %v441 = vunpack.c.l.b16 %v355
      %v442 = vunpack.c.h.b16 %v355
      %v443 = vunpack.c.l.b16 %v356
      %v444 = vunpack.c.h.b16 %v356
      %v445 = vunpack.c.l.b16 %v357
      %v446 = vunpack.c.h.b16 %v357
      %v447 = vunpack.c.l.b16 %v358
      %v448 = vunpack.c.h.b16 %v358
      %v449 = vunpack.c.l.b16 %v359
      %v450 = vunpack.c.h.b16 %v359
      %v451 = vunpack.c.l.b16 %v360
      %v452 = vunpack.c.h.b16 %v360
      %v453 = vunpack.c.l.b16 %v361
      %v454 = vunpack.c.h.b16 %v361
      %v455 = vunpack.c.l.b16 %v362
      %v456 = vunpack.c.h.b16 %v362
      %v457 = vunpack.c.l.b16 %v363
      %v458 = vunpack.c.h.b16 %v363
      %v459 = vunpack.c.l.b16 %v364
      %v460 = vunpack.c.h.b16 %v364
      %v461 = vpack.c.b16 %v401, %v397
      %v462 = vpack.c.b16 %v402, %v398
      %v463 = vpack.c.b16 %v403, %v399
      %v464 = vpack.c.b16 %v404, %v400
      %v465 = vpack.c.b16 %v409, %v405
      %v466 = vpack.c.b16 %v410, %v406
      %v467 = vpack.c.b16 %v411, %v407
      %v468 = vpack.c.b16 %v412, %v408
      %v469 = vpack.c.b16 %v417, %v413
      %v470 = vpack.c.b16 %v418, %v414
      %v471 = vpack.c.b16 %v419, %v415
      %v472 = vpack.c.b16 %v420, %v416
      %v473 = vpack.c.b16 %v425, %v421
      %v474 = vpack.c.b16 %v426, %v422
      %v475 = vpack.c.b16 %v427, %v423
      %v476 = vpack.c.b16 %v428, %v424
      %v477 = vpack.c.b16 %v433, %v429
      %v478 = vpack.c.b16 %v434, %v430
      %v479 = vpack.c.b16 %v435, %v431
      %v480 = vpack.c.b16 %v436, %v432
      %v481 = vpack.c.b16 %v441, %v437
      %v482 = vpack.c.b16 %v442, %v438
      %v483 = vpack.c.b16 %v443, %v439
      %v484 = vpack.c.b16 %v444, %v440
      %v485 = vpack.c.b16 %v449, %v445
      %v486 = vpack.c.b16 %v450, %v446
      %v487 = vpack.c.b16 %v451, %v447
      %v488 = vpack.c.b16 %v452, %v448
      %v489 = vpack.c.b16 %v457, %v453
      %v490 = vpack.c.b16 %v458, %v454
      %v491 = vpack.c.b16 %v459, %v455
      %v492 = vpack.c.b16 %v460, %v456
      %525 = vmatpush.bf16.msra.mxu0 %v489
      %526 = vmatpush.bf16.msra.mxu0 %v485
      %527 = vmatpush.bf16.msra.mxu0 %v481
      %528 = vmatpush.bf16.msra.mxu0 %v477
      %529 = vmatpush.bf16.msra.mxu0 %v473
      %530 = vmatpush.bf16.msra.mxu0 %v469
      %531 = vmatpush.bf16.msra.mxu0 %v465
      %532 = vmatpush.bf16.msra.mxu0 %v461
      %533 = vmatmul.bf16.gmra.mxu0 %v332
      %v534 = vpop.f32.mrf.mxu0
      %v535 = vadd.f32 0.0, %v534
      %v536 = vpop.f32.mrf.mxu0
      %537 = vdwg.mxu0
      %538 = vmatpush.bf16.msra.mxu0 %v490
      %539 = vmatpush.bf16.msra.mxu0 %v486
      %540 = vmatpush.bf16.msra.mxu0 %v482
      %541 = vmatpush.bf16.msra.mxu0 %v478
      %542 = vmatpush.bf16.msra.mxu0 %v474
      %543 = vmatpush.bf16.msra.mxu0 %v470
      %544 = vmatpush.bf16.msra.mxu0 %v466
      %545 = vmatpush.bf16.msra.mxu0 %v462
      %546 = vmatmul.bf16.gmra.mxu0 %v332
      %v547 = vpop.f32.mrf.mxu0
      %v548 = vadd.f32 0.0, %v547
      %v549 = vpop.f32.mrf.mxu0
      %550 = vdwg.mxu0
      %551 = vmatpush.bf16.msra.mxu0 %v491
      %552 = vmatpush.bf16.msra.mxu0 %v487
      %553 = vmatpush.bf16.msra.mxu0 %v483
      %554 = vmatpush.bf16.msra.mxu0 %v479
      %555 = vmatpush.bf16.msra.mxu0 %v475
      %556 = vmatpush.bf16.msra.mxu0 %v471
      %557 = vmatpush.bf16.msra.mxu0 %v467
      %558 = vmatpush.bf16.msra.mxu0 %v463
      %559 = vmatmul.bf16.gmra.mxu0 %v332
      %v560 = vpop.f32.mrf.mxu0
      %v561 = vadd.f32 0.0, %v560
      %v562 = vpop.f32.mrf.mxu0
      %563 = vdwg.mxu0
      %564 = vmatpush.bf16.msra.mxu0 %v492
      %565 = vmatpush.bf16.msra.mxu0 %v488
      %566 = vmatpush.bf16.msra.mxu0 %v484
      %567 = vmatpush.bf16.msra.mxu0 %v480
      %568 = vmatpush.bf16.msra.mxu0 %v476
      %569 = vmatpush.bf16.msra.mxu0 %v472
      %570 = vmatpush.bf16.msra.mxu0 %v468
      %571 = vmatpush.bf16.msra.mxu0 %v464
      %572 = vmatmul.bf16.gmra.mxu0 %v332
      %v573 = vpop.f32.mrf.mxu0
      %v574 = vadd.f32 0.0, %v573
      %v575 = vpop.f32.mrf.mxu0
      %576 = vdwg.mxu0
      %v577 = vadd.f32 %v328, %v535
      %v578 = vadd.f32 %v329, %v548
      %v579 = vadd.f32 %v330, %v561
      %v580 = vadd.f32 %v331, %v574
      %581 = vst [vmem:[#allocation2] sm:$0xff] %v577
      %582 = vst [vmem:[#allocation2 + $0x8] sm:$0xff] %v578
      %583 = vst [vmem:[#allocation2 + $0x10] sm:$0xff] %v579
      %584 = vst [vmem:[#allocation2 + $0x18] sm:$0xff] %v580
      // Predicated region
      $region37: #{lazy_vae_forward.11} parent=31 // pred_check
        %p585 = pneg %p320
      $region38: #{lazy_vae_forward.11} parent=31 // pred_check_branch
        %587 = sbr.rel (%p585) target = $region40
      $region39: #{lazy_vae_forward.11} parent=31 // pred_region
        %v588 = vld [vmem:[#allocation2] sm:$0xff]
        %v589 = vld [vmem:[#allocation2 + $0x8] sm:$0xff]
        %v590 = vld [vmem:[#allocation2 + $0x10] sm:$0xff]
        %v591 = vld [vmem:[#allocation2 + $0x18] sm:$0xff]
        %v592 = vld [vmem:[%s305] sm:$0xff]
        %594 = vset.pattern.permute.xlu0 0
        %595 = vperm.xlu0 %594, %v592
        %v596 = vpop.permute.xlu0 %595
        %v598 = vadd.f32 %v588, %v596
        %v599 = vadd.f32 %v589, %v596
        %v600 = vadd.f32 %v590, %v596
        %v601 = vadd.f32 %v591, %v596
        %v602 = vxor.u32 %v598, 2147483648
        %v603 = vxor.u32 %v599, 2147483648
        %v604 = vxor.u32 %v600, 2147483648
        %v605 = vxor.u32 %v601, 2147483648
        %v606 = vmul.f32 %v602, 1.442695
        %v607 = vpow.pop %v606
        %v608 = vmul.f32 %v603, 1.442695
        %v609 = vpow.pop %v608
        %v610 = vmul.f32 %v604, 1.442695
        %v611 = vpow.pop %v610
        %v612 = vmul.f32 %v605, 1.442695
        %v613 = vpow.pop %v612
        %v614 = vadd.f32 %v607, 1.0
        %v615 = vadd.f32 %v609, 1.0
        %v616 = vadd.f32 %v611, 1.0
        %v617 = vadd.f32 %v613, 1.0
        %v618 = vrcp.pop %v614
        %v619 = vmul.f32 %v614, %v618
        %v620 = vsub.f32 1.0, %v619
        %v621 = vmul.f32 %v618, %v620
        %v622 = vadd.f32 %v618, %v621
        %vm623 = vweird.f32 %v614
        %vm624 = vweird.f32 %v618
        %vm625 = vmor %vm623, %vm624
        %v626 = vsel %vm625, %v618, %v622
        %v627 = vand.u32 2147483647, %v614
        %vm628 = vcmp.eq.f32.partialorder %v627, 8.507059e+37
        %v629 = vand.u32 %v614, 2147483648
        %v630 = vor.u32 1.1754944e-38, %v629
        %v631 = vsel %vm628, %v630, %v626
        %v632 = vmul.f32 1.0, %v631
        %v633 = vrcp.pop %v615
        %v634 = vmul.f32 %v615, %v633
        %v635 = vsub.f32 1.0, %v634
        %v636 = vmul.f32 %v633, %v635
        %v637 = vadd.f32 %v633, %v636
        %vm638 = vweird.f32 %v615
        %vm639 = vweird.f32 %v633
        %vm640 = vmor %vm638, %vm639
        %v641 = vsel %vm640, %v633, %v637
        %v642 = vand.u32 2147483647, %v615
        %vm643 = vcmp.eq.f32.partialorder %v642, 8.507059e+37
        %v644 = vand.u32 %v615, 2147483648
        %v645 = vor.u32 1.1754944e-38, %v644
        %v646 = vsel %vm643, %v645, %v641
        %v647 = vmul.f32 1.0, %v646
        %v648 = vrcp.pop %v616
        %v649 = vmul.f32 %v616, %v648
        %v650 = vsub.f32 1.0, %v649
        %v651 = vmul.f32 %v648, %v650
        %v652 = vadd.f32 %v648, %v651
        %vm653 = vweird.f32 %v616
        %vm654 = vweird.f32 %v648
        %vm655 = vmor %vm653, %vm654
        %v656 = vsel %vm655, %v648, %v652
        %v657 = vand.u32 2147483647, %v616
        %vm658 = vcmp.eq.f32.partialorder %v657, 8.507059e+37
        %v659 = vand.u32 %v616, 2147483648
        %v660 = vor.u32 1.1754944e-38, %v659
        %v661 = vsel %vm658, %v660, %v656
        %v662 = vmul.f32 1.0, %v661
        %v663 = vrcp.pop %v617
        %v664 = vmul.f32 %v617, %v663
        %v665 = vsub.f32 1.0, %v664
        %v666 = vmul.f32 %v663, %v665
        %v667 = vadd.f32 %v663, %v666
        %vm668 = vweird.f32 %v617
        %vm669 = vweird.f32 %v663
        %vm670 = vmor %vm668, %vm669
        %v671 = vsel %vm670, %v663, %v667
        %v672 = vand.u32 2147483647, %v617
        %vm673 = vcmp.eq.f32.partialorder %v672, 8.507059e+37
        %v674 = vand.u32 %v617, 2147483648
        %v675 = vor.u32 1.1754944e-38, %v674
        %v676 = vsel %vm673, %v675, %v671
        %v677 = vmul.f32 1.0, %v676
        %678 = vst [vmem:[%s318] sm:$0xff] %v632
        %679 = vst [vmem:[%s318 + $0x8] sm:$0xff] %v647
        %680 = vst [vmem:[%s318 + $0x10] sm:$0xff] %v662
        %681 = vst [vmem:[%s318 + $0x18] sm:$0xff] %v677
      $region40: #{lazy_vae_forward.11} parent=31 // pred_fallthru
        _
      %s682 = smul.u32 4, %s22
      %p683 = scmp.lt.s32.totalorder %s20, 3
      %s684 = scalar_select %p683, %s20, 3
      %p685 = scmp.lt.s32.totalorder %s21, 0
      %s686 = scalar_select %p685, %s21, 0
      %p687 = scmp.lt.s32.totalorder %s682, 3
      %s688 = scalar_select %p687, %s682, 3
      %s689 = smul.addr %s686, 4
      %s690 = sadd.s32 %s688, %s689
      %s691 = smul.addr %s684, 4
      %s692 = sadd.s32 %s690, %s691
      %s693 = smul.addr %s692, 8
      %s694 = scalar_lea.vmem %s3, %s693
      // Predicated region
      $region41: #{lazy_vae_forward.11} parent=31 // pred_check
        %p695 = pneg %p150
      $region42: #{lazy_vae_forward.11} parent=31 // pred_check_branch
        %697 = sbr.rel (%p695) target = $region44
      $region43: #{lazy_vae_forward.11} parent=31 // pred_region
        %s698 = smul.u32 4, %s22
      $region44: #{lazy_vae_forward.11} parent=31 // pred_fallthru
        _
    $region32: #{lazy_vae_forward.11} parent=5 // pred_fallthru
      _
    %p699 = scmp.le.s32.totalorder 2, %s9
    // Predicated region
    $region45: #{lazy_vae_forward.11} parent=5 // pred_check
      %p700 = pneg %p699
    $region46: #{lazy_vae_forward.11} parent=5 // pred_check_branch
      %702 = sbr.rel (%p700) target = $region48
    $region47: #{lazy_vae_forward.11} parent=5 // pred_region
      %s703 = ssub.s32 %s9, 2
      // Predicated region
      $region49: #{lazy_vae_forward.11} parent=47 // pred_check
        %p704 = pneg %p156
      $region50: #{lazy_vae_forward.11} parent=47 // pred_check_branch
        %706 = sbr.rel (%p704) target = $region52
      $region51: #{lazy_vae_forward.11} parent=47 // pred_region
        %s707 = smul.u32 4, %s26
        %p708 = scmp.lt.s32.totalorder %s24, 3
        %s709 = scalar_select %p708, %s24, 3
        %p710 = scmp.lt.s32.totalorder %s25, 0
        %s711 = scalar_select %p710, %s25, 0
        %p712 = scmp.lt.s32.totalorder %s707, 3
        %s713 = scalar_select %p712, %s707, 3
        %s714 = smul.addr %s711, 4
        %s715 = sadd.s32 %s713, %s714
        %s716 = smul.addr %s709, 4
        %s717 = sadd.s32 %s715, %s716
        %s718 = smul.addr %s717, 8
        %s719 = scalar_lea.vmem %s3, %s718
      $region52: #{lazy_vae_forward.11} parent=47 // pred_fallthru
        _
    $region48: #{lazy_vae_forward.11} parent=5 // pred_fallthru
      _
  $region6: #{lazy_vae_forward.11} parent=0 // loop_footer
    %s13 = sadd.s32 1, %s9
  $region7: #{lazy_vae_forward.11} parent=0 // loop_footer_branch
    %8 = sbr.rel target = $region3
  $region8: #{lazy_vae_forward.11} parent=0 // loop_exit
    _

</llo_original>
